<compile_context>
chip_gen: v7x
topology: tpu7x:2x2x1
jax: 0.10.0
libtpu: 0.0.40
codegen_flags: <defaults>
</compile_context>

<pallas_src>
import jax
import jax.numpy as jnp
from jax import lax
from jax.experimental import pallas as pl
from jax.experimental.pallas import tpu as pltpu

IMG_SIZE = 16
LATENT_DIM = 32
CHANNELS = 3
NUM_CLASSES = 1000
INIT_SIZE = IMG_SIZE // 4          # 4
HW0 = INIT_SIZE * INIT_SIZE        # 16
C0 = 128                           # l1 / conv1 channels
C2 = 64                            # conv2 real output channels
C2P = 128                          # conv2 Cout zero-padded 64 -> 128 (lane dense)
C3P = 128                          # conv3 Cout zero-padded 3 -> 128 (regular matmul)
OUT_ROWS = 8                       # channel rows stored (3 real + 5 exact-zero pad)
BN_EPS = 1e-5
LEAKY_SLOPE = 0.2


# ------------------------- in-kernel building blocks -------------------------

def _bn_stats(x, eps=BN_EPS):
    """One-pass per-channel batch stats of (B, HW, C). Returns mean, inv_std
    of shape (1,1,C). Biased variance via E[x^2] - mean^2 (training-mode BN)."""
    b, hw, c = x.shape
    n = b * hw
    x2 = x.reshape(n, c)
    mean = jnp.sum(x2, axis=0, keepdims=True) * (1.0 / n)
    msq = jnp.sum(x2 * x2, axis=0, keepdims=True) * (1.0 / n)
    var = msq - mean * mean
    return mean.reshape(1, 1, c), lax.rsqrt(var + eps).reshape(1, 1, c)


def _ccbn(x, g, b, slope=None):
    """Conditional BN (+ optional fused LeakyReLU), folded to one scale/shift.
    x:(B,HW,C) f32, g,b:(B,1,C) f32."""
    mean, inv = _bn_stats(x)
    scale = g * inv                       # (B,1,C) -- tiny
    shift = b - mean * scale              # (B,1,C) -- tiny
    y = x * scale + shift
    if slope is not None:
        y = jnp.maximum(y, slope * y)     # LeakyReLU(slope), slope < 1
    return y


def _upsample2x(x):
    """Nearest-neighbour 2x upsample of (B,H,W,C); VMEM only.
    TODO(synk): fold into conv1/conv2 via sub-pixel 2x2 phase kernels (2.25x
    fewer MACs) -- mainly a v5e MXU win, skipped for lowering simplicity."""
    x = jnp.repeat(x, 2, axis=1)
    x = jnp.repeat(x, 2, axis=2)
    return x


def _conv3x3(x, w_ref, bias):
    """3x3 / stride 1 / pad 1 conv as ONE im2col matmul (bf16 MXU, f32 acc).

    x:     (B, H, W, Cin) f32 (VMEM value)
    w_ref: VMEM ref (9*Cin, Cout) bf16, row = (kh*3+kw)*Cin + cin
    bias:  (1, Cout) f32
    returns (B*H*W, Cout) f32
    """
    B, H, W, cin = x.shape
    xb = x.astype(jnp.bfloat16)                               # cast ONCE
    zrow = jnp.zeros((B, 1, W, cin), jnp.bfloat16)
    xp = jnp.concatenate([zrow, xb, zrow], axis=1)            # (B, H+2, W, Cin)
    zcol = jnp.zeros((B, H + 2, 1, cin), jnp.bfloat16)
    xp = jnp.concatenate([zcol, xp, zcol], axis=2)            # (B, H+2, W+2, Cin)

    cols = jnp.concatenate(
        [xp[:, kh:kh + H, kw:kw + W, :]
         for kh in range(3) for kw in range(3)], axis=-1)     # (B,H,W,9*Cin) bf16
    cols = cols.reshape(B * H * W, 9 * cin)
    y = jnp.dot(cols, w_ref[...], preferred_element_type=jnp.float32)
    return y + bias


# ------------------------------ fused kernel ---------------------------------

def _generator_kernel(z_ref, l1w_ref, l1b_ref,
                      g0_ref, b0_ref,
                      c1w_ref, c1b_ref, g1_ref, b1_ref,
                      c2w_ref, c2b_ref, g2_ref, b2_ref,
                      c3w_ref, c3b_ref,
                      out_ref):
    B = z_ref.shape[0]

    # ---- l1: (B, latent) @ (latent, 128*s*s) + bias ----
    # Weight columns pre-permuted so this reshape reproduces torch's
    # out.view(B,128,s,s) (NCHW) in HW-major / channels-last form.
    lin = jnp.dot(z_ref[...].astype(jnp.bfloat16), l1w_ref[...],
                  preferred_element_type=jnp.float32) + l1b_ref[...]
    x = lin.reshape(B, HW0, C0)                               # (B, 16, 128)

    # ---- conv_blocks0_0: conditional BN ----
    x = _ccbn(x, g0_ref[...], b0_ref[...])
    x = x.reshape(B, INIT_SIZE, INIT_SIZE, C0)

    # ---- upsample x2 -> conv1 -> conditional BN + LeakyReLU ----
    x = _upsample2x(x)                                        # (B, 8, 8, 128)
    h1 = 2 * INIT_SIZE
    y = _conv3x3(x, c1w_ref, c1b_ref[...])                    # (B*64, 128)
    x = _ccbn(y.reshape(B, h1 * h1, C0), g1_ref[...], b1_ref[...],
              slope=LEAKY_SLOPE)
    x = x.reshape(B, h1, h1, C0)

    # ---- upsample x2 -> conv2 (Cout padded 64->128) -> CCBN + LeakyReLU ----
    x = _upsample2x(x)                                        # (B, 16, 16, 128)
    y = _conv3x3(x, c2w_ref, c2b_ref[...])                    # (B*256, 128)
    x = _ccbn(y.reshape(B, IMG_SIZE * IMG_SIZE, C2P), g2_ref[...], b2_ref[...],
              slope=LEAKY_SLOPE)
    x = x.reshape(B, IMG_SIZE, IMG_SIZE, C2P)

    # ---- conv3 (Cin padded 64->128, Cout padded 3->128) -> channel-major tail ----
    y = _conv3x3(x, c3w_ref, c3b_ref[...])                    # (B*256, 128) f32
    yt = jnp.transpose(y)[:OUT_ROWS, :]                       # (8, B*256) channel-major
    yt = jnp.tanh(yt)                                         # tanh only on 8 rows
    # BatchNorm2d(affine=False), training mode: per-channel (per-row) stats.
    n = yt.shape[1]
    mean = jnp.sum(yt, axis=1, keepdims=True) * (1.0 / n)
    msq = jnp.sum(yt * yt, axis=1, keepdims=True) * (1.0 / n)
    var = msq - mean * mean
    out_ref[...] = (yt - mean) * lax.rsqrt(var + BN_EPS)      # lane-dense store


# ------------------------------- parameters ----------------------------------

def init_raw_params(key):
    """Parameters in PyTorch conventions (Linear (out,in), Conv OIHW)."""
    ks = jax.random.split(key, 14)

    def normal(k, shape, scale):
        return scale * jax.random.normal(k, shape, dtype=jnp.float32)

    p = {}
    p["l1_w"] = normal(ks[0], (C0 * HW0, LATENT_DIM), 0.05)
    p["l1_b"] = normal(ks[1], (C0 * HW0,), 0.05)
    p["c1_w"] = normal(ks[2], (C0, C0, 3, 3), 0.03)
    p["c1_b"] = normal(ks[3], (C0,), 0.03)
    p["c2_w"] = normal(ks[4], (C2, C0, 3, 3), 0.03)
    p["c2_b"] = normal(ks[5], (C2,), 0.03)
    p["c3_w"] = normal(ks[6], (CHANNELS, C2, 3, 3), 0.03)
    p["c3_b"] = normal(ks[7], (CHANNELS,), 0.03)
    # Conditional BN embeddings (gamma ~ 1, beta ~ 0 + small noise).
    p["bn0_gamma"] = 1.0 + normal(ks[8], (NUM_CLASSES, C0), 0.1)
    p["bn0_beta"] = normal(ks[9], (NUM_CLASSES, C0), 0.1)
    p["bn1_gamma"] = 1.0 + normal(ks[10], (NUM_CLASSES, C0), 0.1)
    p["bn1_beta"] = normal(ks[11], (NUM_CLASSES, C0), 0.1)
    p["bn2_gamma"] = 1.0 + normal(ks[12], (NUM_CLASSES, C2), 0.1)
    p["bn2_beta"] = normal(ks[13], (NUM_CLASSES, C2), 0.1)
    return p


def prepare_params(raw):
    """One-time conversion from PyTorch layout to the fused-kernel layout:
       * l1 weight columns permuted (view-compatibility) and pre-transposed.
       * conv weights OIHW -> im2col (9*Cin, Cout) bf16; Cin/Cout zero-padded
         where needed (conv2 Cout 64->128, conv3 Cin 64->128, Cout 3->128).
       * CCBN2 embedding tables padded 64->128 (beta padding is exactly 0)."""
    p = {}
    # Linear: torch out index j = c*HW0 + pix  ->  kernel column m = pix*C0 + c.
    w3 = raw["l1_w"].reshape(C0, HW0, LATENT_DIM)                 # [c, pix, k]
    wp = jnp.transpose(w3, (1, 0, 2)).reshape(HW0 * C0, LATENT_DIM)
    p["l1_w"] = jnp.transpose(wp, (1, 0)).astype(jnp.bfloat16)    # (latent, 2048)
    p["l1_b"] = (jnp.transpose(raw["l1_b"].reshape(C0, HW0), (1, 0))
                 .reshape(1, C0 * HW0).astype(jnp.float32))

    def conv_prep(w_oihw, bias, cin_pad=None, cout_pad=None):
        cout, cin = w_oihw.shape[0], w_oihw.shape[1]
        w9 = jnp.transpose(w_oihw, (2, 3, 1, 0)).reshape(9, cin, cout)
        b1 = bias
        if cin_pad is not None and cin_pad > cin:
            w9 = jnp.pad(w9, ((0, 0), (0, cin_pad - cin), (0, 0)))
        if cout_pad is not None and cout_pad > cout:
            w9 = jnp.pad(w9, ((0, 0), (0, 0), (0, cout_pad - cout)))
            b1 = jnp.pad(b1, (0, cout_pad - cout))
        cinp, coutp = w9.shape[1], w9.shape[2]
        return (w9.reshape(9 * cinp, coutp).astype(jnp.bfloat16),
                b1.reshape(1, coutp).astype(jnp.float32))

    p["c1_w"], p["c1_b"] = conv_prep(raw["c1_w"], raw["c1_b"])
    p["c2_w"], p["c2_b"] = conv_prep(raw["c2_w"], raw["c2_b"], cout_pad=C2P)
    p["c3_w"], p["c3_b"] = conv_prep(raw["c3_w"], raw["c3_b"],
                                     cin_pad=C2P, cout_pad=C3P)

    for k in ("bn0_gamma", "bn0_beta", "bn1_gamma", "bn1_beta"):
        p[k] = raw[k].astype(jnp.float32)
    # Lane-densify CCBN2 tables: pad channel dim 64 -> 128. Beta padding MUST
    # be 0 so padded channels stay exactly zero through the whole tail.
    p["bn2_gamma"] = jnp.pad(raw["bn2_gamma"].astype(jnp.float32),
                             ((0, 0), (0, C2P - C2)))
    p["bn2_beta"] = jnp.pad(raw["bn2_beta"].astype(jnp.float32),
                            ((0, 0), (0, C2P - C2)))
    return p


# -------------------------------- forward ------------------------------------

def _full_spec(shape):
    nd = len(shape)
    return pl.BlockSpec(tuple(shape), lambda i, _nd=nd: (0,) * _nd)


def _vmem_limit_bytes(B):
    """Rough resident-footprint upper bound, clamped to v7x's 64 MiB VMEM."""
    hw = IMG_SIZE * IMG_SIZE
    cols = B * hw * 9 * C0 * 2            # largest bf16 im2col (conv2/conv3)
    act = B * hw * C0 * 4                 # largest f32 activation
    weights = 3 * 9 * C0 * C0 * 2 + LATENT_DIM * C0 * HW0 * 2
    est = 4 * (cols + 3 * act) + 2 * weights + (2 << 20)
    return int(min(max(est, 16 << 20), 64 << 20))


def generator_forward(params, z, labels):
    B = z.shape[0]
    # Tiny embedding gathers stay in XLA (per-sample conditional affine params).
    g0 = jnp.take(params["bn0_gamma"], labels, axis=0).reshape(B, 1, C0)
    b0 = jnp.take(params["bn0_beta"], labels, axis=0).reshape(B, 1, C0)
    g1 = jnp.take(params["bn1_gamma"], labels, axis=0).reshape(B, 1, C0)
    b1 = jnp.take(params["bn1_beta"], labels, axis=0).reshape(B, 1, C0)
    g2 = jnp.take(params["bn2_gamma"], labels, axis=0).reshape(B, 1, C2P)
    b2 = jnp.take(params["bn2_beta"], labels, axis=0).reshape(B, 1, C2P)

    args = (z.astype(jnp.float32),
            params["l1_w"], params["l1_b"], g0, b0,
            params["c1_w"], params["c1_b"], g1, b1,
            params["c2_w"], params["c2_b"], g2, b2,
            params["c3_w"], params["c3_b"])

    hw = IMG_SIZE * IMG_SIZE
    flops = 2 * B * (LATENT_DIM * C0 * HW0
                     + (2 * INIT_SIZE) ** 2 * 9 * C0 * C0
                     + hw * 9 * C0 * C2P
                     + hw * 9 * C2P * C3P)
    out_elems = OUT_ROWS * B * hw
    bytes_accessed = int(sum(int(a.size) * a.dtype.itemsize for a in args)
                         + out_elems * 4)
    cost = pl.CostEstimate(flops=int(flops),
                           transcendentals=int(out_elems),
                           bytes_accessed=bytes_accessed)

    # TODO(synk): for large B, tile the batch on an 'arbitrary' grid axis with
    # a two-pass BN (sum/sum-sq scratch) to bound per-step VMEM, and on v7x
    # split B across both TensorCores with a small cross-core BN reduction.
    out = pl.pallas_call(
        _generator_kernel,
        out_shape=jax.ShapeDtypeStruct((OUT_ROWS, B * hw), jnp.float32),
        grid=(1,),
        in_specs=[_full_spec(a.shape) for a in args],
        out_specs=_full_spec((OUT_ROWS, B * hw)),
        compiler_params=pltpu.CompilerParams(
            dimension_semantics=("arbitrary",),
            vmem_limit_bytes=_vmem_limit_bytes(B)),
        cost_estimate=cost,
    )(*args)

    # Channel-major (8, B*H*W) -> take the 3 real channels -> NCHW.
    img = out[:CHANNELS].reshape(CHANNELS, B, IMG_SIZE, IMG_SIZE)
    # TODO(synk): running-mean/var buffer updates of the BN layers are stateful
    # training bookkeeping and do not affect the forward output; omitted.
    return jnp.transpose(img, (1, 0, 2, 3))


if __name__ == "__main__":
    key = jax.random.PRNGKey(0)
    kp, kz, kl = jax.random.split(key, 3)
    params = prepare_params(init_raw_params(kp))

    B = 2
    z = jax.random.normal(kz, (B, LATENT_DIM), dtype=jnp.float32)
    labels = jax.random.randint(kl, (B,), 0, NUM_CLASSES, dtype=jnp.int32)

    img = jax.jit(generator_forward)(params, z, labels)
    jax.block_until_ready(img)

    assert img.shape == (B, CHANNELS, IMG_SIZE, IMG_SIZE), img.shape
    assert img.dtype == jnp.float32
    assert bool(jnp.all(jnp.isfinite(img)))
    print("KERNEL_OK")
</pallas_src>

<mosaic_0001>
module attributes {stable_mosaic.version = 11 : i64} {
  func.func @_generator_kernel(%arg0: i32, %arg1: memref<2x32xf32, #tpu.memory_space<vmem>>, %arg2: memref<32x2048xbf16, #tpu.memory_space<vmem>>, %arg3: memref<1x2048xf32, #tpu.memory_space<vmem>>, %arg4: memref<2x1x128xf32, #tpu.memory_space<vmem>>, %arg5: memref<2x1x128xf32, #tpu.memory_space<vmem>>, %arg6: memref<1152x128xbf16, #tpu.memory_space<vmem>>, %arg7: memref<1x128xf32, #tpu.memory_space<vmem>>, %arg8: memref<2x1x128xf32, #tpu.memory_space<vmem>>, %arg9: memref<2x1x128xf32, #tpu.memory_space<vmem>>, %arg10: memref<1152x128xbf16, #tpu.memory_space<vmem>>, %arg11: memref<1x128xf32, #tpu.memory_space<vmem>>, %arg12: memref<2x1x128xf32, #tpu.memory_space<vmem>>, %arg13: memref<2x1x128xf32, #tpu.memory_space<vmem>>, %arg14: memref<1152x128xbf16, #tpu.memory_space<vmem>>, %arg15: memref<1x128xf32, #tpu.memory_space<vmem>>, %arg16: memref<8x512xf32, #tpu.memory_space<vmem>>) attributes {dimension_semantics = [#tpu.dimension_semantics<arbitrary>], iteration_bounds = array<i64: 1>, scalar_prefetch = 0 : i64, scratch_operands = 0 : i64, tpu.core_type = #tpu.core_type<tc>, window_params = [{pipeline_mode = #tpu.pipeline_mode<synchronous>, transform_indices = @transform_0, window_bounds = array<i64: 2, 32>}, {pipeline_mode = #tpu.pipeline_mode<synchronous>, transform_indices = @transform_1, window_bounds = array<i64: 32, 2048>}, {pipeline_mode = #tpu.pipeline_mode<synchronous>, transform_indices = @transform_2, window_bounds = array<i64: 1, 2048>}, {pipeline_mode = #tpu.pipeline_mode<synchronous>, transform_indices = @transform_3, window_bounds = array<i64: 2, 1, 128>}, {pipeline_mode = #tpu.pipeline_mode<synchronous>, transform_indices = @transform_4, window_bounds = array<i64: 2, 1, 128>}, {pipeline_mode = #tpu.pipeline_mode<synchronous>, transform_indices = @transform_5, window_bounds = array<i64: 1152, 128>}, {pipeline_mode = #tpu.pipeline_mode<synchronous>, transform_indices = @transform_6, window_bounds = array<i64: 1, 128>}, {pipeline_mode = #tpu.pipeline_mode<synchronous>, transform_indices = @transform_7, window_bounds = array<i64: 2, 1, 128>}, {pipeline_mode = #tpu.pipeline_mode<synchronous>, transform_indices = @transform_8, window_bounds = array<i64: 2, 1, 128>}, {pipeline_mode = #tpu.pipeline_mode<synchronous>, transform_indices = @transform_9, window_bounds = array<i64: 1152, 128>}, {pipeline_mode = #tpu.pipeline_mode<synchronous>, transform_indices = @transform_10, window_bounds = array<i64: 1, 128>}, {pipeline_mode = #tpu.pipeline_mode<synchronous>, transform_indices = @transform_11, window_bounds = array<i64: 2, 1, 128>}, {pipeline_mode = #tpu.pipeline_mode<synchronous>, transform_indices = @transform_12, window_bounds = array<i64: 2, 1, 128>}, {pipeline_mode = #tpu.pipeline_mode<synchronous>, transform_indices = @transform_13, window_bounds = array<i64: 1152, 128>}, {pipeline_mode = #tpu.pipeline_mode<synchronous>, transform_indices = @transform_14, window_bounds = array<i64: 1, 128>}, {pipeline_mode = #tpu.pipeline_mode<synchronous>, transform_indices = @transform_15, window_bounds = array<i64: 8, 512>}]} {
    %c0 = arith.constant 0 : index
    %c0_0 = arith.constant 0 : index
    %0 = vector.load %arg1[%c0, %c0_0] : memref<2x32xf32, #tpu.memory_space<vmem>>, vector<2x32xf32>
    %1 = arith.truncf %0 : vector<2x32xf32> to vector<2x32xbf16>
    %c0_1 = arith.constant 0 : index
    %c0_2 = arith.constant 0 : index
    %2 = vector.load %arg2[%c0_1, %c0_2] : memref<32x2048xbf16, #tpu.memory_space<vmem>>, vector<32x2048xbf16>
    %cst = arith.constant dense<0.000000e+00> : vector<2x2048xf32>
    %3 = tpu.matmul %1, %2, %cst {dimension_numbers = #tpu.dot_dimension_numbers<[1], [0], [0], [1], [0, 0, 1, 1], [], []>} : vector<2x32xbf16>, vector<32x2048xbf16>, vector<2x2048xf32> -> vector<2x2048xf32>
    %c0_3 = arith.constant 0 : index
    %c0_4 = arith.constant 0 : index
    %4 = vector.load %arg3[%c0_3, %c0_4] : memref<1x2048xf32, #tpu.memory_space<vmem>>, vector<1x2048xf32>
    %5 = vector.broadcast %4 : vector<1x2048xf32> to vector<2x2048xf32>
    %6 = arith.addf %3, %5 : vector<2x2048xf32>
    %7 = vector.shape_cast %6 : vector<2x2048xf32> to vector<2x16x128xf32>
    %c0_5 = arith.constant 0 : index
    %c0_6 = arith.constant 0 : index
    %c0_7 = arith.constant 0 : index
    %8 = vector.load %arg4[%c0_5, %c0_6, %c0_7] : memref<2x1x128xf32, #tpu.memory_space<vmem>>, vector<2x1x128xf32>
    %c0_8 = arith.constant 0 : index
    %c0_9 = arith.constant 0 : index
    %c0_10 = arith.constant 0 : index
    %9 = vector.load %arg5[%c0_8, %c0_9, %c0_10] : memref<2x1x128xf32, #tpu.memory_space<vmem>>, vector<2x1x128xf32>
    %10 = vector.shape_cast %7 : vector<2x16x128xf32> to vector<32x128xf32>
    %cst_11 = arith.constant dense<0.000000e+00> : vector<128xf32>
    %11 = vector.multi_reduction <add>, %10, %cst_11 [0] : vector<32x128xf32> to vector<128xf32>
    %12 = vector.shape_cast %11 : vector<128xf32> to vector<1x128xf32>
    %cst_12 = arith.constant 3.125000e-02 : f32
    %13 = vector.broadcast %cst_12 : f32 to vector<1x128xf32>
    %14 = arith.mulf %12, %13 : vector<1x128xf32>
    %15 = arith.mulf %10, %10 : vector<32x128xf32>
    %cst_13 = arith.constant dense<0.000000e+00> : vector<128xf32>
    %16 = vector.multi_reduction <add>, %15, %cst_13 [0] : vector<32x128xf32> to vector<128xf32>
    %17 = vector.shape_cast %16 : vector<128xf32> to vector<1x128xf32>
    %cst_14 = arith.constant 3.125000e-02 : f32
    %18 = vector.broadcast %cst_14 : f32 to vector<1x128xf32>
    %19 = arith.mulf %17, %18 : vector<1x128xf32>
    %20 = arith.mulf %14, %14 : vector<1x128xf32>
    %21 = arith.subf %19, %20 : vector<1x128xf32>
    %22 = vector.shape_cast %14 : vector<1x128xf32> to vector<1x1x128xf32>
    %cst_15 = arith.constant 9.99999974E-6 : f32
    %23 = vector.broadcast %cst_15 : f32 to vector<1x128xf32>
    %24 = arith.addf %21, %23 : vector<1x128xf32>
    %25 = math.rsqrt %24 : vector<1x128xf32>
    %26 = vector.shape_cast %25 : vector<1x128xf32> to vector<1x1x128xf32>
    %27 = vector.broadcast %26 : vector<1x1x128xf32> to vector<2x1x128xf32>
    %28 = arith.mulf %8, %27 : vector<2x1x128xf32>
    %29 = vector.broadcast %22 : vector<1x1x128xf32> to vector<2x1x128xf32>
    %30 = arith.mulf %29, %28 : vector<2x1x128xf32>
    %31 = arith.subf %9, %30 : vector<2x1x128xf32>
    %32 = vector.broadcast %28 : vector<2x1x128xf32> to vector<2x16x128xf32>
    %33 = arith.mulf %7, %32 : vector<2x16x128xf32>
    %34 = vector.broadcast %31 : vector<2x1x128xf32> to vector<2x16x128xf32>
    %35 = arith.addf %33, %34 : vector<2x16x128xf32>
    %36 = vector.shape_cast %35 : vector<2x16x128xf32> to vector<2x4x4x128xf32>
    %37 = vector.shape_cast %36 : vector<2x4x4x128xf32> to vector<2x4x1x4x128xf32>
    %38 = vector.broadcast %37 : vector<2x4x1x4x128xf32> to vector<2x4x2x4x128xf32>
    %39 = vector.shape_cast %38 : vector<2x4x2x4x128xf32> to vector<2x8x4x128xf32>
    %40 = vector.shape_cast %39 : vector<2x8x4x128xf32> to vector<2x8x4x1x128xf32>
    %41 = vector.broadcast %40 : vector<2x8x4x1x128xf32> to vector<2x8x4x2x128xf32>
    %42 = vector.shape_cast %41 : vector<2x8x4x2x128xf32> to vector<2x8x8x128xf32>
    %c0_16 = arith.constant 0 : index
    %c0_17 = arith.constant 0 : index
    %43 = vector.load %arg7[%c0_16, %c0_17] : memref<1x128xf32, #tpu.memory_space<vmem>>, vector<1x128xf32>
    %44 = arith.truncf %42 : vector<2x8x8x128xf32> to vector<2x8x8x128xbf16>
    %cst_18 = arith.constant 0.000000e+00 : bf16
    %45 = vector.broadcast %cst_18 : bf16 to vector<2x1x8x128xbf16>
    %46 = tpu.concatenate %45, %44, %45 in 1 : vector<2x1x8x128xbf16>, vector<2x8x8x128xbf16>, vector<2x1x8x128xbf16> -> vector<2x10x8x128xbf16>
    %cst_19 = arith.constant 0.000000e+00 : bf16
    %47 = vector.broadcast %cst_19 : bf16 to vector<2x10x1x128xbf16>
    %48 = tpu.concatenate %47, %46, %47 in 2 : vector<2x10x1x128xbf16>, vector<2x10x8x128xbf16>, vector<2x10x1x128xbf16> -> vector<2x10x10x128xbf16>
    %49 = vector.extract_strided_slice %48 {offsets = [0, 0, 0, 0], sizes = [2, 8, 8, 128], strides = [1, 1, 1, 1]} : vector<2x10x10x128xbf16> to vector<2x8x8x128xbf16>
    %50 = vector.extract_strided_slice %48 {offsets = [0, 0, 1, 0], sizes = [2, 8, 8, 128], strides = [1, 1, 1, 1]} : vector<2x10x10x128xbf16> to vector<2x8x8x128xbf16>
    %51 = vector.extract_strided_slice %48 {offsets = [0, 0, 2, 0], sizes = [2, 8, 8, 128], strides = [1, 1, 1, 1]} : vector<2x10x10x128xbf16> to vector<2x8x8x128xbf16>
    %52 = vector.extract_strided_slice %48 {offsets = [0, 1, 0, 0], sizes = [2, 8, 8, 128], strides = [1, 1, 1, 1]} : vector<2x10x10x128xbf16> to vector<2x8x8x128xbf16>
    %53 = vector.extract_strided_slice %48 {offsets = [0, 1, 1, 0], sizes = [2, 8, 8, 128], strides = [1, 1, 1, 1]} : vector<2x10x10x128xbf16> to vector<2x8x8x128xbf16>
    %54 = vector.extract_strided_slice %48 {offsets = [0, 1, 2, 0], sizes = [2, 8, 8, 128], strides = [1, 1, 1, 1]} : vector<2x10x10x128xbf16> to vector<2x8x8x128xbf16>
    %55 = vector.extract_strided_slice %48 {offsets = [0, 2, 0, 0], sizes = [2, 8, 8, 128], strides = [1, 1, 1, 1]} : vector<2x10x10x128xbf16> to vector<2x8x8x128xbf16>
    %56 = vector.extract_strided_slice %48 {offsets = [0, 2, 1, 0], sizes = [2, 8, 8, 128], strides = [1, 1, 1, 1]} : vector<2x10x10x128xbf16> to vector<2x8x8x128xbf16>
    %57 = vector.extract_strided_slice %48 {offsets = [0, 2, 2, 0], sizes = [2, 8, 8, 128], strides = [1, 1, 1, 1]} : vector<2x10x10x128xbf16> to vector<2x8x8x128xbf16>
    %58 = tpu.concatenate %49, %50, %51, %52, %53, %54, %55, %56, %57 in 3 : vector<2x8x8x128xbf16>, vector<2x8x8x128xbf16>, vector<2x8x8x128xbf16>, vector<2x8x8x128xbf16>, vector<2x8x8x128xbf16>, vector<2x8x8x128xbf16>, vector<2x8x8x128xbf16>, vector<2x8x8x128xbf16>, vector<2x8x8x128xbf16> -> vector<2x8x8x1152xbf16>
    %59 = vector.shape_cast %58 : vector<2x8x8x1152xbf16> to vector<128x1152xbf16>
    %c0_20 = arith.constant 0 : index
    %c0_21 = arith.constant 0 : index
    %60 = vector.load %arg6[%c0_20, %c0_21] : memref<1152x128xbf16, #tpu.memory_space<vmem>>, vector<1152x128xbf16>
    %cst_22 = arith.constant dense<0.000000e+00> : vector<128x128xf32>
    %61 = tpu.matmul %59, %60, %cst_22 {dimension_numbers = #tpu.dot_dimension_numbers<[1], [0], [0], [1], [0, 0, 1, 1], [], []>} : vector<128x1152xbf16>, vector<1152x128xbf16>, vector<128x128xf32> -> vector<128x128xf32>
    %62 = vector.broadcast %43 : vector<1x128xf32> to vector<128x128xf32>
    %63 = arith.addf %61, %62 : vector<128x128xf32>
    %64 = vector.shape_cast %63 : vector<128x128xf32> to vector<2x64x128xf32>
    %c0_23 = arith.constant 0 : index
    %c0_24 = arith.constant 0 : index
    %c0_25 = arith.constant 0 : index
    %65 = vector.load %arg8[%c0_23, %c0_24, %c0_25] : memref<2x1x128xf32, #tpu.memory_space<vmem>>, vector<2x1x128xf32>
    %c0_26 = arith.constant 0 : index
    %c0_27 = arith.constant 0 : index
    %c0_28 = arith.constant 0 : index
    %66 = vector.load %arg9[%c0_26, %c0_27, %c0_28] : memref<2x1x128xf32, #tpu.memory_space<vmem>>, vector<2x1x128xf32>
    %67 = vector.shape_cast %64 : vector<2x64x128xf32> to vector<128x128xf32>
    %cst_29 = arith.constant dense<0.000000e+00> : vector<128xf32>
    %68 = vector.multi_reduction <add>, %67, %cst_29 [0] : vector<128x128xf32> to vector<128xf32>
    %69 = vector.shape_cast %68 : vector<128xf32> to vector<1x128xf32>
    %cst_30 = arith.constant 7.812500e-03 : f32
    %70 = vector.broadcast %cst_30 : f32 to vector<1x128xf32>
    %71 = arith.mulf %69, %70 : vector<1x128xf32>
    %72 = arith.mulf %67, %67 : vector<128x128xf32>
    %cst_31 = arith.constant dense<0.000000e+00> : vector<128xf32>
    %73 = vector.multi_reduction <add>, %72, %cst_31 [0] : vector<128x128xf32> to vector<128xf32>
    %74 = vector.shape_cast %73 : vector<128xf32> to vector<1x128xf32>
    %cst_32 = arith.constant 7.812500e-03 : f32
    %75 = vector.broadcast %cst_32 : f32 to vector<1x128xf32>
    %76 = arith.mulf %74, %75 : vector<1x128xf32>
    %77 = arith.mulf %71, %71 : vector<1x128xf32>
    %78 = arith.subf %76, %77 : vector<1x128xf32>
    %79 = vector.shape_cast %71 : vector<1x128xf32> to vector<1x1x128xf32>
    %cst_33 = arith.constant 9.99999974E-6 : f32
    %80 = vector.broadcast %cst_33 : f32 to vector<1x128xf32>
    %81 = arith.addf %78, %80 : vector<1x128xf32>
    %82 = math.rsqrt %81 : vector<1x128xf32>
    %83 = vector.shape_cast %82 : vector<1x128xf32> to vector<1x1x128xf32>
    %84 = vector.broadcast %83 : vector<1x1x128xf32> to vector<2x1x128xf32>
    %85 = arith.mulf %65, %84 : vector<2x1x128xf32>
    %86 = vector.broadcast %79 : vector<1x1x128xf32> to vector<2x1x128xf32>
    %87 = arith.mulf %86, %85 : vector<2x1x128xf32>
    %88 = arith.subf %66, %87 : vector<2x1x128xf32>
    %89 = vector.broadcast %85 : vector<2x1x128xf32> to vector<2x64x128xf32>
    %90 = arith.mulf %64, %89 : vector<2x64x128xf32>
    %91 = vector.broadcast %88 : vector<2x1x128xf32> to vector<2x64x128xf32>
    %92 = arith.addf %90, %91 : vector<2x64x128xf32>
    %cst_34 = arith.constant 2.000000e-01 : f32
    %93 = vector.broadcast %cst_34 : f32 to vector<2x64x128xf32>
    %94 = arith.mulf %93, %92 : vector<2x64x128xf32>
    %95 = arith.maximumf %92, %94 : vector<2x64x128xf32>
    %96 = vector.shape_cast %95 : vector<2x64x128xf32> to vector<2x8x8x128xf32>
    %97 = vector.shape_cast %96 : vector<2x8x8x128xf32> to vector<2x8x1x8x128xf32>
    %98 = vector.broadcast %97 : vector<2x8x1x8x128xf32> to vector<2x8x2x8x128xf32>
    %99 = vector.shape_cast %98 : vector<2x8x2x8x128xf32> to vector<2x16x8x128xf32>
    %100 = vector.shape_cast %99 : vector<2x16x8x128xf32> to vector<2x16x8x1x128xf32>
    %101 = vector.broadcast %100 : vector<2x16x8x1x128xf32> to vector<2x16x8x2x128xf32>
    %102 = vector.shape_cast %101 : vector<2x16x8x2x128xf32> to vector<2x16x16x128xf32>
    %c0_35 = arith.constant 0 : index
    %c0_36 = arith.constant 0 : index
    %103 = vector.load %arg11[%c0_35, %c0_36] : memref<1x128xf32, #tpu.memory_space<vmem>>, vector<1x128xf32>
    %104 = arith.truncf %102 : vector<2x16x16x128xf32> to vector<2x16x16x128xbf16>
    %cst_37 = arith.constant 0.000000e+00 : bf16
    %105 = vector.broadcast %cst_37 : bf16 to vector<2x1x16x128xbf16>
    %106 = tpu.concatenate %105, %104, %105 in 1 : vector<2x1x16x128xbf16>, vector<2x16x16x128xbf16>, vector<2x1x16x128xbf16> -> vector<2x18x16x128xbf16>
    %cst_38 = arith.constant 0.000000e+00 : bf16
    %107 = vector.broadcast %cst_38 : bf16 to vector<2x18x1x128xbf16>
    %108 = tpu.concatenate %107, %106, %107 in 2 : vector<2x18x1x128xbf16>, vector<2x18x16x128xbf16>, vector<2x18x1x128xbf16> -> vector<2x18x18x128xbf16>
    %109 = vector.extract_strided_slice %108 {offsets = [0, 0, 0, 0], sizes = [2, 16, 16, 128], strides = [1, 1, 1, 1]} : vector<2x18x18x128xbf16> to vector<2x16x16x128xbf16>
    %110 = vector.extract_strided_slice %108 {offsets = [0, 0, 1, 0], sizes = [2, 16, 16, 128], strides = [1, 1, 1, 1]} : vector<2x18x18x128xbf16> to vector<2x16x16x128xbf16>
    %111 = vector.extract_strided_slice %108 {offsets = [0, 0, 2, 0], sizes = [2, 16, 16, 128], strides = [1, 1, 1, 1]} : vector<2x18x18x128xbf16> to vector<2x16x16x128xbf16>
    %112 = vector.extract_strided_slice %108 {offsets = [0, 1, 0, 0], sizes = [2, 16, 16, 128], strides = [1, 1, 1, 1]} : vector<2x18x18x128xbf16> to vector<2x16x16x128xbf16>
    %113 = vector.extract_strided_slice %108 {offsets = [0, 1, 1, 0], sizes = [2, 16, 16, 128], strides = [1, 1, 1, 1]} : vector<2x18x18x128xbf16> to vector<2x16x16x128xbf16>
    %114 = vector.extract_strided_slice %108 {offsets = [0, 1, 2, 0], sizes = [2, 16, 16, 128], strides = [1, 1, 1, 1]} : vector<2x18x18x128xbf16> to vector<2x16x16x128xbf16>
    %115 = vector.extract_strided_slice %108 {offsets = [0, 2, 0, 0], sizes = [2, 16, 16, 128], strides = [1, 1, 1, 1]} : vector<2x18x18x128xbf16> to vector<2x16x16x128xbf16>
    %116 = vector.extract_strided_slice %108 {offsets = [0, 2, 1, 0], sizes = [2, 16, 16, 128], strides = [1, 1, 1, 1]} : vector<2x18x18x128xbf16> to vector<2x16x16x128xbf16>
    %117 = vector.extract_strided_slice %108 {offsets = [0, 2, 2, 0], sizes = [2, 16, 16, 128], strides = [1, 1, 1, 1]} : vector<2x18x18x128xbf16> to vector<2x16x16x128xbf16>
    %118 = tpu.concatenate %109, %110, %111, %112, %113, %114, %115, %116, %117 in 3 : vector<2x16x16x128xbf16>, vector<2x16x16x128xbf16>, vector<2x16x16x128xbf16>, vector<2x16x16x128xbf16>, vector<2x16x16x128xbf16>, vector<2x16x16x128xbf16>, vector<2x16x16x128xbf16>, vector<2x16x16x128xbf16>, vector<2x16x16x128xbf16> -> vector<2x16x16x1152xbf16>
    %119 = vector.shape_cast %118 : vector<2x16x16x1152xbf16> to vector<512x1152xbf16>
    %c0_39 = arith.constant 0 : index
    %c0_40 = arith.constant 0 : index
    %120 = vector.load %arg10[%c0_39, %c0_40] : memref<1152x128xbf16, #tpu.memory_space<vmem>>, vector<1152x128xbf16>
    %cst_41 = arith.constant dense<0.000000e+00> : vector<512x128xf32>
    %121 = tpu.matmul %119, %120, %cst_41 {dimension_numbers = #tpu.dot_dimension_numbers<[1], [0], [0], [1], [0, 0, 1, 1], [], []>} : vector<512x1152xbf16>, vector<1152x128xbf16>, vector<512x128xf32> -> vector<512x128xf32>
    %122 = vector.broadcast %103 : vector<1x128xf32> to vector<512x128xf32>
    %123 = arith.addf %121, %122 : vector<512x128xf32>
    %124 = vector.shape_cast %123 : vector<512x128xf32> to vector<2x256x128xf32>
    %c0_42 = arith.constant 0 : index
    %c0_43 = arith.constant 0 : index
    %c0_44 = arith.constant 0 : index
    %125 = vector.load %arg12[%c0_42, %c0_43, %c0_44] : memref<2x1x128xf32, #tpu.memory_space<vmem>>, vector<2x1x128xf32>
    %c0_45 = arith.constant 0 : index
    %c0_46 = arith.constant 0 : index
    %c0_47 = arith.constant 0 : index
    %126 = vector.load %arg13[%c0_45, %c0_46, %c0_47] : memref<2x1x128xf32, #tpu.memory_space<vmem>>, vector<2x1x128xf32>
    %127 = vector.shape_cast %124 : vector<2x256x128xf32> to vector<512x128xf32>
    %cst_48 = arith.constant dense<0.000000e+00> : vector<128xf32>
    %128 = vector.multi_reduction <add>, %127, %cst_48 [0] : vector<512x128xf32> to vector<128xf32>
    %129 = vector.shape_cast %128 : vector<128xf32> to vector<1x128xf32>
    %cst_49 = arith.constant 0.001953125 : f32
    %130 = vector.broadcast %cst_49 : f32 to vector<1x128xf32>
    %131 = arith.mulf %129, %130 : vector<1x128xf32>
    %132 = arith.mulf %127, %127 : vector<512x128xf32>
    %cst_50 = arith.constant dense<0.000000e+00> : vector<128xf32>
    %133 = vector.multi_reduction <add>, %132, %cst_50 [0] : vector<512x128xf32> to vector<128xf32>
    %134 = vector.shape_cast %133 : vector<128xf32> to vector<1x128xf32>
    %cst_51 = arith.constant 0.001953125 : f32
    %135 = vector.broadcast %cst_51 : f32 to vector<1x128xf32>
    %136 = arith.mulf %134, %135 : vector<1x128xf32>
    %137 = arith.mulf %131, %131 : vector<1x128xf32>
    %138 = arith.subf %136, %137 : vector<1x128xf32>
    %139 = vector.shape_cast %131 : vector<1x128xf32> to vector<1x1x128xf32>
    %cst_52 = arith.constant 9.99999974E-6 : f32
    %140 = vector.broadcast %cst_52 : f32 to vector<1x128xf32>
    %141 = arith.addf %138, %140 : vector<1x128xf32>
    %142 = math.rsqrt %141 : vector<1x128xf32>
    %143 = vector.shape_cast %142 : vector<1x128xf32> to vector<1x1x128xf32>
    %144 = vector.broadcast %143 : vector<1x1x128xf32> to vector<2x1x128xf32>
    %145 = arith.mulf %125, %144 : vector<2x1x128xf32>
    %146 = vector.broadcast %139 : vector<1x1x128xf32> to vector<2x1x128xf32>
    %147 = arith.mulf %146, %145 : vector<2x1x128xf32>
    %148 = arith.subf %126, %147 : vector<2x1x128xf32>
    %149 = vector.broadcast %145 : vector<2x1x128xf32> to vector<2x256x128xf32>
    %150 = arith.mulf %124, %149 : vector<2x256x128xf32>
    %151 = vector.broadcast %148 : vector<2x1x128xf32> to vector<2x256x128xf32>
    %152 = arith.addf %150, %151 : vector<2x256x128xf32>
    %cst_53 = arith.constant 2.000000e-01 : f32
    %153 = vector.broadcast %cst_53 : f32 to vector<2x256x128xf32>
    %154 = arith.mulf %153, %152 : vector<2x256x128xf32>
    %155 = arith.maximumf %152, %154 : vector<2x256x128xf32>
    %156 = vector.shape_cast %155 : vector<2x256x128xf32> to vector<2x16x16x128xf32>
    %c0_54 = arith.constant 0 : index
    %c0_55 = arith.constant 0 : index
    %157 = vector.load %arg15[%c0_54, %c0_55] : memref<1x128xf32, #tpu.memory_space<vmem>>, vector<1x128xf32>
    %158 = arith.truncf %156 : vector<2x16x16x128xf32> to vector<2x16x16x128xbf16>
    %cst_56 = arith.constant 0.000000e+00 : bf16
    %159 = vector.broadcast %cst_56 : bf16 to vector<2x1x16x128xbf16>
    %160 = tpu.concatenate %159, %158, %159 in 1 : vector<2x1x16x128xbf16>, vector<2x16x16x128xbf16>, vector<2x1x16x128xbf16> -> vector<2x18x16x128xbf16>
    %cst_57 = arith.constant 0.000000e+00 : bf16
    %161 = vector.broadcast %cst_57 : bf16 to vector<2x18x1x128xbf16>
    %162 = tpu.concatenate %161, %160, %161 in 2 : vector<2x18x1x128xbf16>, vector<2x18x16x128xbf16>, vector<2x18x1x128xbf16> -> vector<2x18x18x128xbf16>
    %163 = vector.extract_strided_slice %162 {offsets = [0, 0, 0, 0], sizes = [2, 16, 16, 128], strides = [1, 1, 1, 1]} : vector<2x18x18x128xbf16> to vector<2x16x16x128xbf16>
    %164 = vector.extract_strided_slice %162 {offsets = [0, 0, 1, 0], sizes = [2, 16, 16, 128], strides = [1, 1, 1, 1]} : vector<2x18x18x128xbf16> to vector<2x16x16x128xbf16>
    %165 = vector.extract_strided_slice %162 {offsets = [0, 0, 2, 0], sizes = [2, 16, 16, 128], strides = [1, 1, 1, 1]} : vector<2x18x18x128xbf16> to vector<2x16x16x128xbf16>
    %166 = vector.extract_strided_slice %162 {offsets = [0, 1, 0, 0], sizes = [2, 16, 16, 128], strides = [1, 1, 1, 1]} : vector<2x18x18x128xbf16> to vector<2x16x16x128xbf16>
    %167 = vector.extract_strided_slice %162 {offsets = [0, 1, 1, 0], sizes = [2, 16, 16, 128], strides = [1, 1, 1, 1]} : vector<2x18x18x128xbf16> to vector<2x16x16x128xbf16>
    %168 = vector.extract_strided_slice %162 {offsets = [0, 1, 2, 0], sizes = [2, 16, 16, 128], strides = [1, 1, 1, 1]} : vector<2x18x18x128xbf16> to vector<2x16x16x128xbf16>
    %169 = vector.extract_strided_slice %162 {offsets = [0, 2, 0, 0], sizes = [2, 16, 16, 128], strides = [1, 1, 1, 1]} : vector<2x18x18x128xbf16> to vector<2x16x16x128xbf16>
    %170 = vector.extract_strided_slice %162 {offsets = [0, 2, 1, 0], sizes = [2, 16, 16, 128], strides = [1, 1, 1, 1]} : vector<2x18x18x128xbf16> to vector<2x16x16x128xbf16>
    %171 = vector.extract_strided_slice %162 {offsets = [0, 2, 2, 0], sizes = [2, 16, 16, 128], strides = [1, 1, 1, 1]} : vector<2x18x18x128xbf16> to vector<2x16x16x128xbf16>
    %172 = tpu.concatenate %163, %164, %165, %166, %167, %168, %169, %170, %171 in 3 : vector<2x16x16x128xbf16>, vector<2x16x16x128xbf16>, vector<2x16x16x128xbf16>, vector<2x16x16x128xbf16>, vector<2x16x16x128xbf16>, vector<2x16x16x128xbf16>, vector<2x16x16x128xbf16>, vector<2x16x16x128xbf16>, vector<2x16x16x128xbf16> -> vector<2x16x16x1152xbf16>
    %173 = vector.shape_cast %172 : vector<2x16x16x1152xbf16> to vector<512x1152xbf16>
    %c0_58 = arith.constant 0 : index
    %c0_59 = arith.constant 0 : index
    %174 = vector.load %arg14[%c0_58, %c0_59] : memref<1152x128xbf16, #tpu.memory_space<vmem>>, vector<1152x128xbf16>
    %cst_60 = arith.constant dense<0.000000e+00> : vector<512x128xf32>
    %175 = tpu.matmul %173, %174, %cst_60 {dimension_numbers = #tpu.dot_dimension_numbers<[1], [0], [0], [1], [0, 0, 1, 1], [], []>} : vector<512x1152xbf16>, vector<1152x128xbf16>, vector<512x128xf32> -> vector<512x128xf32>
    %176 = vector.broadcast %157 : vector<1x128xf32> to vector<512x128xf32>
    %177 = arith.addf %175, %176 : vector<512x128xf32>
    %178 = tpu.transpose %177, [1, 0] : vector<512x128xf32> -> vector<128x512xf32>
    %179 = vector.extract_strided_slice %178 {offsets = [0, 0], sizes = [8, 512], strides = [1, 1]} : vector<128x512xf32> to vector<8x512xf32>
    %180 = math.tanh %179 : vector<8x512xf32>
    %cst_61 = arith.constant dense<0.000000e+00> : vector<8xf32>
    %181 = vector.multi_reduction <add>, %180, %cst_61 [1] : vector<8x512xf32> to vector<8xf32>
    %182 = vector.shape_cast %181 : vector<8xf32> to vector<8x1xf32>
    %cst_62 = arith.constant 0.001953125 : f32
    %183 = vector.broadcast %cst_62 : f32 to vector<8x1xf32>
    %184 = arith.mulf %182, %183 : vector<8x1xf32>
    %185 = arith.mulf %180, %180 : vector<8x512xf32>
    %cst_63 = arith.constant dense<0.000000e+00> : vector<8xf32>
    %186 = vector.multi_reduction <add>, %185, %cst_63 [1] : vector<8x512xf32> to vector<8xf32>
    %187 = vector.shape_cast %186 : vector<8xf32> to vector<8x1xf32>
    %cst_64 = arith.constant 0.001953125 : f32
    %188 = vector.broadcast %cst_64 : f32 to vector<8x1xf32>
    %189 = arith.mulf %187, %188 : vector<8x1xf32>
    %190 = arith.mulf %184, %184 : vector<8x1xf32>
    %191 = arith.subf %189, %190 : vector<8x1xf32>
    %192 = vector.broadcast %184 : vector<8x1xf32> to vector<8x512xf32>
    %193 = arith.subf %180, %192 : vector<8x512xf32>
    %cst_65 = arith.constant 9.99999974E-6 : f32
    %194 = vector.broadcast %cst_65 : f32 to vector<8x1xf32>
    %195 = arith.addf %191, %194 : vector<8x1xf32>
    %196 = math.rsqrt %195 : vector<8x1xf32>
    %197 = vector.broadcast %196 : vector<8x1xf32> to vector<8x512xf32>
    %198 = arith.mulf %193, %197 : vector<8x512xf32>
    %c0_66 = arith.constant 0 : index
    %c0_67 = arith.constant 0 : index
    %199 = vector.load %arg16[%c0_66, %c0_67] : memref<8x512xf32, #tpu.memory_space<vmem>>, vector<8x512xf32>
    tpu.vector_store %arg16[%c0_66, %c0_67], %198 {strides = array<i32>} : memref<8x512xf32, #tpu.memory_space<vmem>>, vector<8x512xf32>,
    return
  }
  func.func @transform_0(%arg0: i32) -> (i32, i32) {
    %c0_i32 = arith.constant 0 : i32
    %c0_i32_0 = arith.constant 0 : i32
    %c0_i32_1 = arith.constant 0 : i32
    return %c0_i32, %c0_i32_0 : i32, i32
  }
  func.func @transform_1(%arg0: i32) -> (i32, i32) {
    %c0_i32 = arith.constant 0 : i32
    %c0_i32_0 = arith.constant 0 : i32
    %c0_i32_1 = arith.constant 0 : i32
    return %c0_i32, %c0_i32_0 : i32, i32
  }
  func.func @transform_2(%arg0: i32) -> (i32, i32) {
    %c0_i32 = arith.constant 0 : i32
    %c0_i32_0 = arith.constant 0 : i32
    %c0_i32_1 = arith.constant 0 : i32
    return %c0_i32, %c0_i32_0 : i32, i32
  }
  func.func @transform_3(%arg0: i32) -> (i32, i32, i32) {
    %c0_i32 = arith.constant 0 : i32
    %c0_i32_0 = arith.constant 0 : i32
    %c0_i32_1 = arith.constant 0 : i32
    %c0_i32_2 = arith.constant 0 : i32
    return %c0_i32, %c0_i32_0, %c0_i32_1 : i32, i32, i32
  }
  func.func @transform_4(%arg0: i32) -> (i32, i32, i32) {
    %c0_i32 = arith.constant 0 : i32
    %c0_i32_0 = arith.constant 0 : i32
    %c0_i32_1 = arith.constant 0 : i32
    %c0_i32_2 = arith.constant 0 : i32
    return %c0_i32, %c0_i32_0, %c0_i32_1 : i32, i32, i32
  }
  func.func @transform_5(%arg0: i32) -> (i32, i32) {
    %c0_i32 = arith.constant 0 : i32
    %c0_i32_0 = arith.constant 0 : i32
    %c0_i32_1 = arith.constant 0 : i32
    return %c0_i32, %c0_i32_0 : i32, i32
  }
  func.func @transform_6(%arg0: i32) -> (i32, i32) {
    %c0_i32 = arith.constant 0 : i32
    %c0_i32_0 = arith.constant 0 : i32
    %c0_i32_1 = arith.constant 0 : i32
    return %c0_i32, %c0_i32_0 : i32, i32
  }
  func.func @transform_7(%arg0: i32) -> (i32, i32, i32) {
    %c0_i32 = arith.constant 0 : i32
    %c0_i32_0 = arith.constant 0 : i32
    %c0_i32_1 = arith.constant 0 : i32
    %c0_i32_2 = arith.constant 0 : i32
    return %c0_i32, %c0_i32_0, %c0_i32_1 : i32, i32, i32
  }
  func.func @transform_8(%arg0: i32) -> (i32, i32, i32) {
    %c0_i32 = arith.constant 0 : i32
    %c0_i32_0 = arith.constant 0 : i32
    %c0_i32_1 = arith.constant 0 : i32
    %c0_i32_2 = arith.constant 0 : i32
    return %c0_i32, %c0_i32_0, %c0_i32_1 : i32, i32, i32
  }
  func.func @transform_9(%arg0: i32) -> (i32, i32) {
    %c0_i32 = arith.constant 0 : i32
    %c0_i32_0 = arith.constant 0 : i32
    %c0_i32_1 = arith.constant 0 : i32
    return %c0_i32, %c0_i32_0 : i32, i32
  }
  func.func @transform_10(%arg0: i32) -> (i32, i32) {
    %c0_i32 = arith.constant 0 : i32
    %c0_i32_0 = arith.constant 0 : i32
    %c0_i32_1 = arith.constant 0 : i32
    return %c0_i32, %c0_i32_0 : i32, i32
  }
  func.func @transform_11(%arg0: i32) -> (i32, i32, i32) {
    %c0_i32 = arith.constant 0 : i32
    %c0_i32_0 = arith.constant 0 : i32
    %c0_i32_1 = arith.constant 0 : i32
    %c0_i32_2 = arith.constant 0 : i32
    return %c0_i32, %c0_i32_0, %c0_i32_1 : i32, i32, i32
  }
  func.func @transform_12(%arg0: i32) -> (i32, i32, i32) {
    %c0_i32 = arith.constant 0 : i32
    %c0_i32_0 = arith.constant 0 : i32
    %c0_i32_1 = arith.constant 0 : i32
    %c0_i32_2 = arith.constant 0 : i32
    return %c0_i32, %c0_i32_0, %c0_i32_1 : i32, i32, i32
  }
  func.func @transform_13(%arg0: i32) -> (i32, i32) {
    %c0_i32 = arith.constant 0 : i32
    %c0_i32_0 = arith.constant 0 : i32
    %c0_i32_1 = arith.constant 0 : i32
    return %c0_i32, %c0_i32_0 : i32, i32
  }
  func.func @transform_14(%arg0: i32) -> (i32, i32) {
    %c0_i32 = arith.constant 0 : i32
    %c0_i32_0 = arith.constant 0 : i32
    %c0_i32_1 = arith.constant 0 : i32
    return %c0_i32, %c0_i32_0 : i32, i32
  }
  func.func @transform_15(%arg0: i32) -> (i32, i32) {
    %c0_i32 = arith.constant 0 : i32
    %c0_i32_0 = arith.constant 0 : i32
    %c0_i32_1 = arith.constant 0 : i32
    return %c0_i32, %c0_i32_0 : i32, i32
  }
}

</mosaic_0001>

<llo_original>
// kernel: generator_forward.1
$region0: #{generator_forward.1}
  #allocation0 [shape = 'u32[]', space=smem, size = 0x4, offset = 0x4, fixed_abs, tag = 'smem constant byte address 0x4 - core index']
  #allocation1 [shape = 'u32[144,128]{1,0:T(1,128)}', space=vmem, size = 0x12000, scoped, tag = 'internal scratch']
  %s0 = inlined_call_operand.vmem [shape: f32[2,32], index: 0, kind: input, shape index: {}]
  %s1 = inlined_call_operand.hbm [shape: bf16[32,2048], index: 1, kind: input, shape index: {}]
  %s2 = inlined_call_operand.vmem [shape: f32[1,2048], index: 2, kind: input, shape index: {}]
  %s3 = inlined_call_operand.vmem [shape: f32[2,1,128], index: 3, kind: input, shape index: {}]
  %s4 = inlined_call_operand.vmem [shape: f32[2,1,128], index: 4, kind: input, shape index: {}]
  %s5 = inlined_call_operand.hbm [shape: bf16[1152,128], index: 5, kind: input, shape index: {}]
  %s6 = inlined_call_operand.vmem [shape: f32[1,128], index: 6, kind: input, shape index: {}]
  %s7 = inlined_call_operand.vmem [shape: f32[2,1,128], index: 7, kind: input, shape index: {}]
  %s8 = inlined_call_operand.vmem [shape: f32[2,1,128], index: 8, kind: input, shape index: {}]
  %s9 = inlined_call_operand.hbm [shape: bf16[1152,128], index: 9, kind: input, shape index: {}]
  %s10 = inlined_call_operand.vmem [shape: f32[1,128], index: 10, kind: input, shape index: {}]
  %s11 = inlined_call_operand.vmem [shape: f32[2,1,128], index: 11, kind: input, shape index: {}]
  %s12 = inlined_call_operand.vmem [shape: f32[2,1,128], index: 12, kind: input, shape index: {}]
  %s13 = inlined_call_operand.hbm [shape: bf16[1152,128], index: 13, kind: input, shape index: {}]
  %s14 = inlined_call_operand.vmem [shape: f32[1,128], index: 14, kind: input, shape index: {}]
  %s15 = inlined_call_operand.vmem [shape: f32[8,512], index: 15, kind: output, shape index: {}]
  %s16 = sld [smem:[#allocation0]]
  $region86: #{generator_forward.1} parent=0
    _
  %s18 = ssub.s32 1, %s16
  %s19 = scalar_select 0, %s18, %s16
  $region1: #{generator_forward.1} parent=0
    #allocation2 [shape = 'u8[131072]{0}', space=vmem, size = 0x20000, scoped, tag = 'input window, operand 1, single buffered']
    #allocation3 [shape = 's32[1]{0}', space=sflag, size = 0x4, scoped, tag = 'scoped memory for generator_forward.1']
    #allocation4 [shape = 'u8[294912]{0}', space=vmem, size = 0x48000, scoped, tag = 'input window, operand 5, single buffered']
    #allocation5 [shape = 's32[1]{0}', space=sflag, size = 0x4, scoped, tag = 'scoped memory for generator_forward.1']
    #allocation6 [shape = 'u8[294912]{0}', space=vmem, size = 0x48000, scoped, tag = 'input window, operand 9, single buffered']
    #allocation7 [shape = 'u8[294912]{0}', space=vmem, size = 0x48000, scoped, tag = 'input window, operand 13, single buffered']
    #allocation8 [shape = 's32[1]{0}', space=sflag, size = 0x4, scoped, tag = 'scoped memory for generator_forward.1']
    %20 = vsyncpa [#allocation3], 0
    %21 = vsyncpa [#allocation5], 0
    %22 = vsyncpa [#allocation8], 0
    // Predicated region
    $region2: #{generator_forward.1} parent=1 // pred_check
      _
    $region3: #{generator_forward.1} parent=1 // pred_check_branch
      %24 = sbr.rel (0) target = $region5
    $region4: #{generator_forward.1} parent=1 // pred_region
      _
    $region5: #{generator_forward.1} parent=1 // pred_fallthru
      _
    // Predicated region
    $region6: #{generator_forward.1} parent=1 // pred_check
      _
    $region7: #{generator_forward.1} parent=1 // pred_check_branch
      %26 = sbr.rel (0) target = $region9
    $region8: #{generator_forward.1} parent=1 // pred_region
      %s28 = ssub.s32 4096, 4096
      %29 = vsyncadd [#allocation3], %s28
      %s30 = sshll.u32 [#allocation2], 4
      %s31 = int_to_ptr.vmem [resolvable:$true] %s30
      %36 = dma.hbm_to_vmem [thread:$0]  %s1, 4096, %s31, [#allocation3], 1024, 1024, 64
    $region9: #{generator_forward.1} parent=1 // pred_fallthru
      _
    // Predicated region
    $region10: #{generator_forward.1} parent=1 // pred_check
      _
    $region11: #{generator_forward.1} parent=1 // pred_check_branch
      %38 = sbr.rel (0) target = $region13
    $region12: #{generator_forward.1} parent=1 // pred_region
      _
    $region13: #{generator_forward.1} parent=1 // pred_fallthru
      _
    // Predicated region
    $region14: #{generator_forward.1} parent=1 // pred_check
      _
    $region15: #{generator_forward.1} parent=1 // pred_check_branch
      %40 = sbr.rel (0) target = $region17
    $region16: #{generator_forward.1} parent=1 // pred_region
      _
    $region17: #{generator_forward.1} parent=1 // pred_fallthru
      _
    // Predicated region
    $region18: #{generator_forward.1} parent=1 // pred_check
      _
    $region19: #{generator_forward.1} parent=1 // pred_check_branch
      %42 = sbr.rel (0) target = $region21
    $region20: #{generator_forward.1} parent=1 // pred_region
      _
    $region21: #{generator_forward.1} parent=1 // pred_fallthru
      _
    // Predicated region
    $region22: #{generator_forward.1} parent=1 // pred_check
      _
    $region23: #{generator_forward.1} parent=1 // pred_check_branch
      %44 = sbr.rel (0) target = $region25
    $region24: #{generator_forward.1} parent=1 // pred_region
      %s46 = ssub.s32 9216, 9216
      %47 = vsyncadd [#allocation5], %s46
      %s48 = sshll.u32 [#allocation4], 4
      %s49 = int_to_ptr.vmem [resolvable:$true] %s48
      %54 = dma.hbm_to_vmem [thread:$0]  %s5, 9216, %s49, [#allocation5], 64, 64, 4
    $region25: #{generator_forward.1} parent=1 // pred_fallthru
      _
    // Predicated region
    $region26: #{generator_forward.1} parent=1 // pred_check
      _
    $region27: #{generator_forward.1} parent=1 // pred_check_branch
      %56 = sbr.rel (0) target = $region29
    $region28: #{generator_forward.1} parent=1 // pred_region
      _
    $region29: #{generator_forward.1} parent=1 // pred_fallthru
      _
    // Predicated region
    $region30: #{generator_forward.1} parent=1 // pred_check
      _
    $region31: #{generator_forward.1} parent=1 // pred_check_branch
      %58 = sbr.rel (0) target = $region33
    $region32: #{generator_forward.1} parent=1 // pred_region
      _
    $region33: #{generator_forward.1} parent=1 // pred_fallthru
      _
    // Predicated region
    $region34: #{generator_forward.1} parent=1 // pred_check
      _
    $region35: #{generator_forward.1} parent=1 // pred_check_branch
      %60 = sbr.rel (0) target = $region37
    $region36: #{generator_forward.1} parent=1 // pred_region
      _
    $region37: #{generator_forward.1} parent=1 // pred_fallthru
      _
    // Predicated region
    $region38: #{generator_forward.1} parent=1 // pred_check
      _
    $region39: #{generator_forward.1} parent=1 // pred_check_branch
      %62 = sbr.rel (0) target = $region41
    $region40: #{generator_forward.1} parent=1 // pred_region
      %s64 = ssub.s32 9216, 9216
      %65 = vsyncadd [#allocation5], %s64
      %s66 = sshll.u32 [#allocation6], 4
      %s67 = int_to_ptr.vmem [resolvable:$true] %s66
      %72 = dma.hbm_to_vmem [thread:$0]  %s9, 9216, %s67, [#allocation5], 64, 64, 4
    $region41: #{generator_forward.1} parent=1 // pred_fallthru
      _
    // Predicated region
    $region42: #{generator_forward.1} parent=1 // pred_check
      _
    $region43: #{generator_forward.1} parent=1 // pred_check_branch
      %74 = sbr.rel (0) target = $region45
    $region44: #{generator_forward.1} parent=1 // pred_region
      _
    $region45: #{generator_forward.1} parent=1 // pred_fallthru
      _
    // Predicated region
    $region46: #{generator_forward.1} parent=1 // pred_check
      _
    $region47: #{generator_forward.1} parent=1 // pred_check_branch
      %76 = sbr.rel (0) target = $region49
    $region48: #{generator_forward.1} parent=1 // pred_region
      _
    $region49: #{generator_forward.1} parent=1 // pred_fallthru
      _
    // Predicated region
    $region50: #{generator_forward.1} parent=1 // pred_check
      _
    $region51: #{generator_forward.1} parent=1 // pred_check_branch
      %78 = sbr.rel (0) target = $region53
    $region52: #{generator_forward.1} parent=1 // pred_region
      _
    $region53: #{generator_forward.1} parent=1 // pred_fallthru
      _
    // Predicated region
    $region54: #{generator_forward.1} parent=1 // pred_check
      _
    $region55: #{generator_forward.1} parent=1 // pred_check_branch
      %80 = sbr.rel (0) target = $region57
    $region56: #{generator_forward.1} parent=1 // pred_region
      %s82 = ssub.s32 9216, 9216
      %83 = vsyncadd [#allocation8], %s82
      %s84 = sshll.u32 [#allocation7], 4
      %s85 = int_to_ptr.vmem [resolvable:$true] %s84
      %90 = dma.hbm_to_vmem [thread:$0]  %s13, 9216, %s85, [#allocation8], 64, 64, 4
    $region57: #{generator_forward.1} parent=1 // pred_fallthru
      _
    // Predicated region
    $region58: #{generator_forward.1} parent=1 // pred_check
      _
    $region59: #{generator_forward.1} parent=1 // pred_check_branch
      %92 = sbr.rel (0) target = $region61
    $region60: #{generator_forward.1} parent=1 // pred_region
      _
    $region61: #{generator_forward.1} parent=1 // pred_fallthru
      _
    // Predicated region
    $region62: #{generator_forward.1} parent=1 // pred_check
      _
    $region63: #{generator_forward.1} parent=1 // pred_check_branch
      %94 = sbr.rel (0) target = $region65
    $region64: #{generator_forward.1} parent=1 // pred_region
      %95 = dma.done [#allocation3], 4096
    $region65: #{generator_forward.1} parent=1 // pred_fallthru
      _
    // Predicated region
    $region66: #{generator_forward.1} parent=1 // pred_check
      _
    $region67: #{generator_forward.1} parent=1 // pred_check_branch
      %97 = sbr.rel (0) target = $region69
    $region68: #{generator_forward.1} parent=1 // pred_region
      %98 = dma.done [#allocation5], 9216
    $region69: #{generator_forward.1} parent=1 // pred_fallthru
      _
    // Predicated region
    $region70: #{generator_forward.1} parent=1 // pred_check
      _
    $region71: #{generator_forward.1} parent=1 // pred_check_branch
      %100 = sbr.rel (0) target = $region73
    $region72: #{generator_forward.1} parent=1 // pred_region
      %101 = dma.done [#allocation5], 9216
    $region73: #{generator_forward.1} parent=1 // pred_fallthru
      _
    // Predicated region
    $region74: #{generator_forward.1} parent=1 // pred_check
      _
    $region75: #{generator_forward.1} parent=1 // pred_check_branch
      %103 = sbr.rel (0) target = $region77
    $region76: #{generator_forward.1} parent=1 // pred_region
      %104 = dma.done [#allocation8], 9216
    $region77: #{generator_forward.1} parent=1 // pred_fallthru
      _
    %v106 = vld [vmem:[%s0] sm:$0x3]
    %v107 = vpack.c.bf16 %v106, %v106
    %v108 = vld [vmem:[#allocation2] sm:$0xff]
    %v109 = vld [vmem:[#allocation2 + $0x8] sm:$0xff]
    %v110 = vld [vmem:[#allocation2 + $0x10] sm:$0xff]
    %v111 = vld [vmem:[#allocation2 + $0x18] sm:$0xff]
    %v112 = vld [vmem:[#allocation2 + $0x20] sm:$0xff]
    %v113 = vld [vmem:[#allocation2 + $0x28] sm:$0xff]
    %v114 = vld [vmem:[#allocation2 + $0x30] sm:$0xff]
    %v115 = vld [vmem:[#allocation2 + $0x38] sm:$0xff]
    %v116 = vld [vmem:[#allocation2 + $0x40] sm:$0xff]
    %v117 = vld [vmem:[#allocation2 + $0x48] sm:$0xff]
    %v118 = vld [vmem:[#allocation2 + $0x50] sm:$0xff]
    %v119 = vld [vmem:[#allocation2 + $0x58] sm:$0xff]
    %v120 = vld [vmem:[#allocation2 + $0x60] sm:$0xff]
    %v121 = vld [vmem:[#allocation2 + $0x68] sm:$0xff]
    %v122 = vld [vmem:[#allocation2 + $0x70] sm:$0xff]
    %v123 = vld [vmem:[#allocation2 + $0x78] sm:$0xff]
    %v124 = vld [vmem:[#allocation2 + $0x80] sm:$0xff]
    %v125 = vld [vmem:[#allocation2 + $0x88] sm:$0xff]
    %v126 = vld [vmem:[#allocation2 + $0x90] sm:$0xff]
    %v127 = vld [vmem:[#allocation2 + $0x98] sm:$0xff]
    %v128 = vld [vmem:[#allocation2 + $0xa0] sm:$0xff]
    %v129 = vld [vmem:[#allocation2 + $0xa8] sm:$0xff]
    %v130 = vld [vmem:[#allocation2 + $0xb0] sm:$0xff]
    %v131 = vld [vmem:[#allocation2 + $0xb8] sm:$0xff]
    %v132 = vld [vmem:[#allocation2 + $0xc0] sm:$0xff]
    %v133 = vld [vmem:[#allocation2 + $0xc8] sm:$0xff]
    %v134 = vld [vmem:[#allocation2 + $0xd0] sm:$0xff]
    %v135 = vld [vmem:[#allocation2 + $0xd8] sm:$0xff]
    %v136 = vld [vmem:[#allocation2 + $0xe0] sm:$0xff]
    %v137 = vld [vmem:[#allocation2 + $0xe8] sm:$0xff]
    %v138 = vld [vmem:[#allocation2 + $0xf0] sm:$0xff]
    %v139 = vld [vmem:[#allocation2 + $0xf8] sm:$0xff]
    %v140 = vld [vmem:[%s2] sm:$0xff]
    %v141 = vld [vmem:[%s2 + $0x8] sm:$0xff]
    %v144 = vlaneseq
    %v145 = vshrl.u32 %v144, 7
    %v146 = vsub.s32 0, %v145
    %v147 = vrot.slane %v140, %v146
    %v148 = vlaneseq
    %v149 = vshrl.u32 %v148, 7
    %v150 = vsub.s32 1, %v149
    %v151 = vrot.slane %v140, %v150
    %v152 = vlaneseq
    %v153 = vshrl.u32 %v152, 7
    %v154 = vsub.s32 2, %v153
    %v155 = vrot.slane %v140, %v154
    %v156 = vlaneseq
    %v157 = vshrl.u32 %v156, 7
    %v158 = vsub.s32 3, %v157
    %v159 = vrot.slane %v140, %v158
    %v160 = vlaneseq
    %v161 = vshrl.u32 %v160, 7
    %v162 = vsub.s32 4, %v161
    %v163 = vrot.slane %v140, %v162
    %v164 = vlaneseq
    %v165 = vshrl.u32 %v164, 7
    %v166 = vsub.s32 5, %v165
    %v167 = vrot.slane %v140, %v166
    %v168 = vlaneseq
    %v169 = vshrl.u32 %v168, 7
    %v170 = vsub.s32 6, %v169
    %v171 = vrot.slane %v140, %v170
    %v172 = vlaneseq
    %v173 = vshrl.u32 %v172, 7
    %v174 = vsub.s32 7, %v173
    %v175 = vrot.slane %v140, %v174
    %v176 = vlaneseq
    %v177 = vshrl.u32 %v176, 7
    %v178 = vsub.s32 0, %v177
    %v179 = vrot.slane %v141, %v178
    %v180 = vlaneseq
    %v181 = vshrl.u32 %v180, 7
    %v182 = vsub.s32 1, %v181
    %v183 = vrot.slane %v141, %v182
    %v184 = vlaneseq
    %v185 = vshrl.u32 %v184, 7
    %v186 = vsub.s32 2, %v185
    %v187 = vrot.slane %v141, %v186
    %v188 = vlaneseq
    %v189 = vshrl.u32 %v188, 7
    %v190 = vsub.s32 3, %v189
    %v191 = vrot.slane %v141, %v190
    %v192 = vlaneseq
    %v193 = vshrl.u32 %v192, 7
    %v194 = vsub.s32 4, %v193
    %v195 = vrot.slane %v141, %v194
    %v196 = vlaneseq
    %v197 = vshrl.u32 %v196, 7
    %v198 = vsub.s32 5, %v197
    %v199 = vrot.slane %v141, %v198
    %v200 = vlaneseq
    %v201 = vshrl.u32 %v200, 7
    %v202 = vsub.s32 6, %v201
    %v203 = vrot.slane %v141, %v202
    %v204 = vlaneseq
    %v205 = vshrl.u32 %v204, 7
    %v206 = vsub.s32 7, %v205
    %v207 = vrot.slane %v141, %v206
    %v256 = vunpack.c.l.b16 %v108
    %v257 = vunpack.c.h.b16 %v108
    %v258 = vunpack.c.l.b16 %v109
    %v259 = vunpack.c.h.b16 %v109
    %v260 = vunpack.c.l.b16 %v110
    %v261 = vunpack.c.h.b16 %v110
    %v262 = vunpack.c.l.b16 %v111
    %v263 = vunpack.c.h.b16 %v111
    %v264 = vunpack.c.l.b16 %v112
    %v265 = vunpack.c.h.b16 %v112
    %v266 = vunpack.c.l.b16 %v113
    %v267 = vunpack.c.h.b16 %v113
    %v268 = vunpack.c.l.b16 %v114
    %v269 = vunpack.c.h.b16 %v114
    %v270 = vunpack.c.l.b16 %v115
    %v271 = vunpack.c.h.b16 %v115
    %v272 = vunpack.c.l.b16 %v116
    %v273 = vunpack.c.h.b16 %v116
    %v274 = vunpack.c.l.b16 %v117
    %v275 = vunpack.c.h.b16 %v117
    %v276 = vunpack.c.l.b16 %v118
    %v277 = vunpack.c.h.b16 %v118
    %v278 = vunpack.c.l.b16 %v119
    %v279 = vunpack.c.h.b16 %v119
    %v280 = vunpack.c.l.b16 %v120
    %v281 = vunpack.c.h.b16 %v120
    %v282 = vunpack.c.l.b16 %v121
    %v283 = vunpack.c.h.b16 %v121
    %v284 = vunpack.c.l.b16 %v122
    %v285 = vunpack.c.h.b16 %v122
    %v286 = vunpack.c.l.b16 %v123
    %v287 = vunpack.c.h.b16 %v123
    %v288 = vunpack.c.l.b16 %v124
    %v289 = vunpack.c.h.b16 %v124
    %v290 = vunpack.c.l.b16 %v125
    %v291 = vunpack.c.h.b16 %v125
    %v292 = vunpack.c.l.b16 %v126
    %v293 = vunpack.c.h.b16 %v126
    %v294 = vunpack.c.l.b16 %v127
    %v295 = vunpack.c.h.b16 %v127
    %v296 = vunpack.c.l.b16 %v128
    %v297 = vunpack.c.h.b16 %v128
    %v298 = vunpack.c.l.b16 %v129
    %v299 = vunpack.c.h.b16 %v129
    %v300 = vunpack.c.l.b16 %v130
    %v301 = vunpack.c.h.b16 %v130
    %v302 = vunpack.c.l.b16 %v131
    %v303 = vunpack.c.h.b16 %v131
    %v304 = vunpack.c.l.b16 %v132
    %v305 = vunpack.c.h.b16 %v132
    %v306 = vunpack.c.l.b16 %v133
    %v307 = vunpack.c.h.b16 %v133
    %v308 = vunpack.c.l.b16 %v134
    %v309 = vunpack.c.h.b16 %v134
    %v310 = vunpack.c.l.b16 %v135
    %v311 = vunpack.c.h.b16 %v135
    %v312 = vunpack.c.l.b16 %v136
    %v313 = vunpack.c.h.b16 %v136
    %v314 = vunpack.c.l.b16 %v137
    %v315 = vunpack.c.h.b16 %v137
    %v316 = vunpack.c.l.b16 %v138
    %v317 = vunpack.c.h.b16 %v138
    %v318 = vunpack.c.l.b16 %v139
    %v319 = vunpack.c.h.b16 %v139
    %v320 = vpack.c.b16 %v272, %v256
    %v321 = vpack.c.b16 %v273, %v257
    %v322 = vpack.c.b16 %v274, %v258
    %v323 = vpack.c.b16 %v275, %v259
    %v324 = vpack.c.b16 %v276, %v260
    %v325 = vpack.c.b16 %v277, %v261
    %v326 = vpack.c.b16 %v278, %v262
    %v327 = vpack.c.b16 %v279, %v263
    %v328 = vpack.c.b16 %v280, %v264
    %v329 = vpack.c.b16 %v281, %v265
    %v330 = vpack.c.b16 %v282, %v266
    %v331 = vpack.c.b16 %v283, %v267
    %v332 = vpack.c.b16 %v284, %v268
    %v333 = vpack.c.b16 %v285, %v269
    %v334 = vpack.c.b16 %v286, %v270
    %v335 = vpack.c.b16 %v287, %v271
    %v336 = vpack.c.b16 %v304, %v288
    %v337 = vpack.c.b16 %v305, %v289
    %v338 = vpack.c.b16 %v306, %v290
    %v339 = vpack.c.b16 %v307, %v291
    %v340 = vpack.c.b16 %v308, %v292
    %v341 = vpack.c.b16 %v309, %v293
    %v342 = vpack.c.b16 %v310, %v294
    %v343 = vpack.c.b16 %v311, %v295
    %v344 = vpack.c.b16 %v312, %v296
    %v345 = vpack.c.b16 %v313, %v297
    %v346 = vpack.c.b16 %v314, %v298
    %v347 = vpack.c.b16 %v315, %v299
    %v348 = vpack.c.b16 %v316, %v300
    %v349 = vpack.c.b16 %v317, %v301
    %v350 = vpack.c.b16 %v318, %v302
    %v351 = vpack.c.b16 %v319, %v303
    %vm384 = vcmask 261120
    %v386 = vsel %vm384, %v107, 0
    %388 = vmatprep.subr.bf16.mxu0 %v321
    %389 = vmatpush1.bf16.msra.mxu0 %v320
    %390 = vmatprep.subr.bf16.mxu0 %v337
    %391 = vmatpush1.bf16.msra.mxu0 %v336
    %392 = vmatprep.subr.bf16.mxu0 0
    %393 = vmatpush1.bf16.msra.mxu0 0
    %394 = vmatprep.subr.bf16.mxu0 0
    %395 = vmatpush1.bf16.msra.mxu0 0
    %396 = vmatprep.subr.bf16.mxu0 0
    %397 = vmatpush1.bf16.msra.mxu0 0
    %398 = vmatprep.subr.bf16.mxu0 0
    %399 = vmatpush1.bf16.msra.mxu0 0
    %400 = vmatprep.subr.bf16.mxu0 0
    %401 = vmatpush1.bf16.msra.mxu0 0
    %402 = vmatprep.subr.bf16.mxu0 0
    %403 = vmatpush1.bf16.msra.mxu0 0
    %404 = vmatprep.subr.bf16.mxu0 0
    %405 = vmatpush1.bf16.msra.mxu0 0
    %406 = vmatprep.subr.bf16.mxu0 0
    %407 = vmatpush1.bf16.msra.mxu0 0
    %408 = vmatprep.subr.bf16.mxu0 0
    %409 = vmatpush1.bf16.msra.mxu0 0
    %410 = vmatprep.subr.bf16.mxu0 0
    %411 = vmatpush1.bf16.msra.mxu0 0
    %412 = vmatprep.subr.bf16.mxu0 0
    %413 = vmatpush1.bf16.msra.mxu0 0
    %414 = vmatprep.subr.bf16.mxu0 0
    %415 = vmatpush1.bf16.msra.mxu0 0
    %416 = vmatprep.subr.bf16.mxu0 0
    %417 = vmatpush1.bf16.msra.mxu0 0
    %418 = vmatprep.subr.bf16.mxu0 0
    %419 = vmatpush1.bf16.msra.mxu0 0
    %420 = vmatprep.mubr.bf16.mxu0 0
    %421 = vmatmul.mubr.bf16.gmra.mrb[0].mxu0 %v386
    %v422 = vpop.f32.mrb[0].mxu0
    %v423 = vadd.f32 %v147, %v422
    %v424 = vpop.f32.mrb[0].mxu0
    %v425 = vadd.f32 %v151, %v424
    %v426 = vpop.f32.mrb[0].mxu0
    %v427 = vpop.f32.mrb[0].mxu0
    %428 = vdwg.mxu0
    %429 = vmatprep.subr.bf16.mxu0 %v323
    %430 = vmatpush1.bf16.msra.mxu0 %v322
    %431 = vmatprep.subr.bf16.mxu0 %v339
    %432 = vmatpush1.bf16.msra.mxu0 %v338
    %433 = vmatprep.subr.bf16.mxu0 0
    %434 = vmatpush1.bf16.msra.mxu0 0
    %435 = vmatprep.subr.bf16.mxu0 0
    %436 = vmatpush1.bf16.msra.mxu0 0
    %437 = vmatprep.subr.bf16.mxu0 0
    %438 = vmatpush1.bf16.msra.mxu0 0
    %439 = vmatprep.subr.bf16.mxu0 0
    %440 = vmatpush1.bf16.msra.mxu0 0
    %441 = vmatprep.subr.bf16.mxu0 0
    %442 = vmatpush1.bf16.msra.mxu0 0
    %443 = vmatprep.subr.bf16.mxu0 0
    %444 = vmatpush1.bf16.msra.mxu0 0
    %445 = vmatprep.subr.bf16.mxu0 0
    %446 = vmatpush1.bf16.msra.mxu0 0
    %447 = vmatprep.subr.bf16.mxu0 0
    %448 = vmatpush1.bf16.msra.mxu0 0
    %449 = vmatprep.subr.bf16.mxu0 0
    %450 = vmatpush1.bf16.msra.mxu0 0
    %451 = vmatprep.subr.bf16.mxu0 0
    %452 = vmatpush1.bf16.msra.mxu0 0
    %453 = vmatprep.subr.bf16.mxu0 0
    %454 = vmatpush1.bf16.msra.mxu0 0
    %455 = vmatprep.subr.bf16.mxu0 0
    %456 = vmatpush1.bf16.msra.mxu0 0
    %457 = vmatprep.subr.bf16.mxu0 0
    %458 = vmatpush1.bf16.msra.mxu0 0
    %459 = vmatprep.subr.bf16.mxu0 0
    %460 = vmatpush1.bf16.msra.mxu0 0
    %461 = vmatprep.mubr.bf16.mxu0 0
    %462 = vmatmul.mubr.bf16.gmra.mrb[0].mxu0 %v386
    %v463 = vpop.f32.mrb[0].mxu0
    %v464 = vadd.f32 %v155, %v463
    %v465 = vpop.f32.mrb[0].mxu0
    %v466 = vadd.f32 %v159, %v465
    %v467 = vpop.f32.mrb[0].mxu0
    %v468 = vpop.f32.mrb[0].mxu0
    %469 = vdwg.mxu0
    %470 = vmatprep.subr.bf16.mxu0 %v325
    %471 = vmatpush1.bf16.msra.mxu0 %v324
    %472 = vmatprep.subr.bf16.mxu0 %v341
    %473 = vmatpush1.bf16.msra.mxu0 %v340
    %474 = vmatprep.subr.bf16.mxu0 0
    %475 = vmatpush1.bf16.msra.mxu0 0
    %476 = vmatprep.subr.bf16.mxu0 0
    %477 = vmatpush1.bf16.msra.mxu0 0
    %478 = vmatprep.subr.bf16.mxu0 0
    %479 = vmatpush1.bf16.msra.mxu0 0
    %480 = vmatprep.subr.bf16.mxu0 0
    %481 = vmatpush1.bf16.msra.mxu0 0
    %482 = vmatprep.subr.bf16.mxu0 0
    %483 = vmatpush1.bf16.msra.mxu0 0
    %484 = vmatprep.subr.bf16.mxu0 0
    %485 = vmatpush1.bf16.msra.mxu0 0
    %486 = vmatprep.subr.bf16.mxu0 0
    %487 = vmatpush1.bf16.msra.mxu0 0
    %488 = vmatprep.subr.bf16.mxu0 0
    %489 = vmatpush1.bf16.msra.mxu0 0
    %490 = vmatprep.subr.bf16.mxu0 0
    %491 = vmatpush1.bf16.msra.mxu0 0
    %492 = vmatprep.subr.bf16.mxu0 0
    %493 = vmatpush1.bf16.msra.mxu0 0
    %494 = vmatprep.subr.bf16.mxu0 0
    %495 = vmatpush1.bf16.msra.mxu0 0
    %496 = vmatprep.subr.bf16.mxu0 0
    %497 = vmatpush1.bf16.msra.mxu0 0
    %498 = vmatprep.subr.bf16.mxu0 0
    %499 = vmatpush1.bf16.msra.mxu0 0
    %500 = vmatprep.subr.bf16.mxu0 0
    %501 = vmatpush1.bf16.msra.mxu0 0
    %502 = vmatprep.mubr.bf16.mxu0 0
    %503 = vmatmul.mubr.bf16.gmra.mrb[0].mxu0 %v386
    %v504 = vpop.f32.mrb[0].mxu0
    %v505 = vadd.f32 %v163, %v504
    %v506 = vpop.f32.mrb[0].mxu0
    %v507 = vadd.f32 %v167, %v506
    %v508 = vpop.f32.mrb[0].mxu0
    %v509 = vpop.f32.mrb[0].mxu0
    %510 = vdwg.mxu0
    %511 = vmatprep.subr.bf16.mxu0 %v327
    %512 = vmatpush1.bf16.msra.mxu0 %v326
    %513 = vmatprep.subr.bf16.mxu0 %v343
    %514 = vmatpush1.bf16.msra.mxu0 %v342
    %515 = vmatprep.subr.bf16.mxu0 0
    %516 = vmatpush1.bf16.msra.mxu0 0
    %517 = vmatprep.subr.bf16.mxu0 0
    %518 = vmatpush1.bf16.msra.mxu0 0
    %519 = vmatprep.subr.bf16.mxu0 0
    %520 = vmatpush1.bf16.msra.mxu0 0
    %521 = vmatprep.subr.bf16.mxu0 0
    %522 = vmatpush1.bf16.msra.mxu0 0
    %523 = vmatprep.subr.bf16.mxu0 0
    %524 = vmatpush1.bf16.msra.mxu0 0
    %525 = vmatprep.subr.bf16.mxu0 0
    %526 = vmatpush1.bf16.msra.mxu0 0
    %527 = vmatprep.subr.bf16.mxu0 0
    %528 = vmatpush1.bf16.msra.mxu0 0
    %529 = vmatprep.subr.bf16.mxu0 0
    %530 = vmatpush1.bf16.msra.mxu0 0
    %531 = vmatprep.subr.bf16.mxu0 0
    %532 = vmatpush1.bf16.msra.mxu0 0
    %533 = vmatprep.subr.bf16.mxu0 0
    %534 = vmatpush1.bf16.msra.mxu0 0
    %535 = vmatprep.subr.bf16.mxu0 0
    %536 = vmatpush1.bf16.msra.mxu0 0
    %537 = vmatprep.subr.bf16.mxu0 0
    %538 = vmatpush1.bf16.msra.mxu0 0
    %539 = vmatprep.subr.bf16.mxu0 0
    %540 = vmatpush1.bf16.msra.mxu0 0
    %541 = vmatprep.subr.bf16.mxu0 0
    %542 = vmatpush1.bf16.msra.mxu0 0
    %543 = vmatprep.mubr.bf16.mxu0 0
    %544 = vmatmul.mubr.bf16.gmra.mrb[0].mxu0 %v386
    %v545 = vpop.f32.mrb[0].mxu0
    %v546 = vadd.f32 %v171, %v545
    %v547 = vpop.f32.mrb[0].mxu0
    %v548 = vadd.f32 %v175, %v547
    %v549 = vpop.f32.mrb[0].mxu0
    %v550 = vpop.f32.mrb[0].mxu0
    %551 = vdwg.mxu0
    %552 = vmatprep.subr.bf16.mxu0 %v329
    %553 = vmatpush1.bf16.msra.mxu0 %v328
    %554 = vmatprep.subr.bf16.mxu0 %v345
    %555 = vmatpush1.bf16.msra.mxu0 %v344
    %556 = vmatprep.subr.bf16.mxu0 0
    %557 = vmatpush1.bf16.msra.mxu0 0
    %558 = vmatprep.subr.bf16.mxu0 0
    %559 = vmatpush1.bf16.msra.mxu0 0
    %560 = vmatprep.subr.bf16.mxu0 0
    %561 = vmatpush1.bf16.msra.mxu0 0
    %562 = vmatprep.subr.bf16.mxu0 0
    %563 = vmatpush1.bf16.msra.mxu0 0
    %564 = vmatprep.subr.bf16.mxu0 0
    %565 = vmatpush1.bf16.msra.mxu0 0
    %566 = vmatprep.subr.bf16.mxu0 0
    %567 = vmatpush1.bf16.msra.mxu0 0
    %568 = vmatprep.subr.bf16.mxu0 0
    %569 = vmatpush1.bf16.msra.mxu0 0
    %570 = vmatprep.subr.bf16.mxu0 0
    %571 = vmatpush1.bf16.msra.mxu0 0
    %572 = vmatprep.subr.bf16.mxu0 0
    %573 = vmatpush1.bf16.msra.mxu0 0
    %574 = vmatprep.subr.bf16.mxu0 0
    %575 = vmatpush1.bf16.msra.mxu0 0
    %576 = vmatprep.subr.bf16.mxu0 0
    %577 = vmatpush1.bf16.msra.mxu0 0
    %578 = vmatprep.subr.bf16.mxu0 0
    %579 = vmatpush1.bf16.msra.mxu0 0
    %580 = vmatprep.subr.bf16.mxu0 0
    %581 = vmatpush1.bf16.msra.mxu0 0
    %582 = vmatprep.subr.bf16.mxu0 0
    %583 = vmatpush1.bf16.msra.mxu0 0
    %584 = vmatprep.mubr.bf16.mxu0 0
    %585 = vmatmul.mubr.bf16.gmra.mrb[0].mxu0 %v386
    %v586 = vpop.f32.mrb[0].mxu0
    %v587 = vadd.f32 %v179, %v586
    %v588 = vpop.f32.mrb[0].mxu0
    %v589 = vadd.f32 %v183, %v588
    %v590 = vpop.f32.mrb[0].mxu0
    %v591 = vpop.f32.mrb[0].mxu0
    %592 = vdwg.mxu0
    %593 = vmatprep.subr.bf16.mxu0 %v331
    %594 = vmatpush1.bf16.msra.mxu0 %v330
    %595 = vmatprep.subr.bf16.mxu0 %v347
    %596 = vmatpush1.bf16.msra.mxu0 %v346
    %597 = vmatprep.subr.bf16.mxu0 0
    %598 = vmatpush1.bf16.msra.mxu0 0
    %599 = vmatprep.subr.bf16.mxu0 0
    %600 = vmatpush1.bf16.msra.mxu0 0
    %601 = vmatprep.subr.bf16.mxu0 0
    %602 = vmatpush1.bf16.msra.mxu0 0
    %603 = vmatprep.subr.bf16.mxu0 0
    %604 = vmatpush1.bf16.msra.mxu0 0
    %605 = vmatprep.subr.bf16.mxu0 0
    %606 = vmatpush1.bf16.msra.mxu0 0
    %607 = vmatprep.subr.bf16.mxu0 0
    %608 = vmatpush1.bf16.msra.mxu0 0
    %609 = vmatprep.subr.bf16.mxu0 0
    %610 = vmatpush1.bf16.msra.mxu0 0
    %611 = vmatprep.subr.bf16.mxu0 0
    %612 = vmatpush1.bf16.msra.mxu0 0
    %613 = vmatprep.subr.bf16.mxu0 0
    %614 = vmatpush1.bf16.msra.mxu0 0
    %615 = vmatprep.subr.bf16.mxu0 0
    %616 = vmatpush1.bf16.msra.mxu0 0
    %617 = vmatprep.subr.bf16.mxu0 0
    %618 = vmatpush1.bf16.msra.mxu0 0
    %619 = vmatprep.subr.bf16.mxu0 0
    %620 = vmatpush1.bf16.msra.mxu0 0
    %621 = vmatprep.subr.bf16.mxu0 0
    %622 = vmatpush1.bf16.msra.mxu0 0
    %623 = vmatprep.subr.bf16.mxu0 0
    %624 = vmatpush1.bf16.msra.mxu0 0
    %625 = vmatprep.mubr.bf16.mxu0 0
    %626 = vmatmul.mubr.bf16.gmra.mrb[0].mxu0 %v386
    %v627 = vpop.f32.mrb[0].mxu0
    %v628 = vadd.f32 %v187, %v627
    %v629 = vpop.f32.mrb[0].mxu0
    %v630 = vadd.f32 %v191, %v629
    %v631 = vpop.f32.mrb[0].mxu0
    %v632 = vpop.f32.mrb[0].mxu0
    %633 = vdwg.mxu0
    %634 = vmatprep.subr.bf16.mxu0 %v333
    %635 = vmatpush1.bf16.msra.mxu0 %v332
    %636 = vmatprep.subr.bf16.mxu0 %v349
    %637 = vmatpush1.bf16.msra.mxu0 %v348
    %638 = vmatprep.subr.bf16.mxu0 0
    %639 = vmatpush1.bf16.msra.mxu0 0
    %640 = vmatprep.subr.bf16.mxu0 0
    %641 = vmatpush1.bf16.msra.mxu0 0
    %642 = vmatprep.subr.bf16.mxu0 0
    %643 = vmatpush1.bf16.msra.mxu0 0
    %644 = vmatprep.subr.bf16.mxu0 0
    %645 = vmatpush1.bf16.msra.mxu0 0
    %646 = vmatprep.subr.bf16.mxu0 0
    %647 = vmatpush1.bf16.msra.mxu0 0
    %648 = vmatprep.subr.bf16.mxu0 0
    %649 = vmatpush1.bf16.msra.mxu0 0
    %650 = vmatprep.subr.bf16.mxu0 0
    %651 = vmatpush1.bf16.msra.mxu0 0
    %652 = vmatprep.subr.bf16.mxu0 0
    %653 = vmatpush1.bf16.msra.mxu0 0
    %654 = vmatprep.subr.bf16.mxu0 0
    %655 = vmatpush1.bf16.msra.mxu0 0
    %656 = vmatprep.subr.bf16.mxu0 0
    %657 = vmatpush1.bf16.msra.mxu0 0
    %658 = vmatprep.subr.bf16.mxu0 0
    %659 = vmatpush1.bf16.msra.mxu0 0
    %660 = vmatprep.subr.bf16.mxu0 0
    %661 = vmatpush1.bf16.msra.mxu0 0
    %662 = vmatprep.subr.bf16.mxu0 0
    %663 = vmatpush1.bf16.msra.mxu0 0
    %664 = vmatprep.subr.bf16.mxu0 0
    %665 = vmatpush1.bf16.msra.mxu0 0
    %666 = vmatprep.mubr.bf16.mxu0 0
    %667 = vmatmul.mubr.bf16.gmra.mrb[0].mxu0 %v386
    %v668 = vpop.f32.mrb[0].mxu0
    %v669 = vadd.f32 %v195, %v668
    %v670 = vpop.f32.mrb[0].mxu0
    %v671 = vadd.f32 %v199, %v670
    %v672 = vpop.f32.mrb[0].mxu0
    %v673 = vpop.f32.mrb[0].mxu0
    %674 = vdwg.mxu0
    %675 = vmatprep.subr.bf16.mxu0 %v335
    %676 = vmatpush1.bf16.msra.mxu0 %v334
    %677 = vmatprep.subr.bf16.mxu0 %v351
    %678 = vmatpush1.bf16.msra.mxu0 %v350
    %679 = vmatprep.subr.bf16.mxu0 0
    %680 = vmatpush1.bf16.msra.mxu0 0
    %681 = vmatprep.subr.bf16.mxu0 0
    %682 = vmatpush1.bf16.msra.mxu0 0
    %683 = vmatprep.subr.bf16.mxu0 0
    %684 = vmatpush1.bf16.msra.mxu0 0
    %685 = vmatprep.subr.bf16.mxu0 0
    %686 = vmatpush1.bf16.msra.mxu0 0
    %687 = vmatprep.subr.bf16.mxu0 0
    %688 = vmatpush1.bf16.msra.mxu0 0
    %689 = vmatprep.subr.bf16.mxu0 0
    %690 = vmatpush1.bf16.msra.mxu0 0
    %691 = vmatprep.subr.bf16.mxu0 0
    %692 = vmatpush1.bf16.msra.mxu0 0
    %693 = vmatprep.subr.bf16.mxu0 0
    %694 = vmatpush1.bf16.msra.mxu0 0
    %695 = vmatprep.subr.bf16.mxu0 0
    %696 = vmatpush1.bf16.msra.mxu0 0
    %697 = vmatprep.subr.bf16.mxu0 0
    %698 = vmatpush1.bf16.msra.mxu0 0
    %699 = vmatprep.subr.bf16.mxu0 0
    %700 = vmatpush1.bf16.msra.mxu0 0
    %701 = vmatprep.subr.bf16.mxu0 0
    %702 = vmatpush1.bf16.msra.mxu0 0
    %703 = vmatprep.subr.bf16.mxu0 0
    %704 = vmatpush1.bf16.msra.mxu0 0
    %705 = vmatprep.subr.bf16.mxu0 0
    %706 = vmatpush1.bf16.msra.mxu0 0
    %707 = vmatprep.mubr.bf16.mxu0 0
    %708 = vmatmul.mubr.bf16.gmra.mrb[0].mxu0 %v386
    %v709 = vpop.f32.mrb[0].mxu0
    %v710 = vadd.f32 %v203, %v709
    %v711 = vpop.f32.mrb[0].mxu0
    %v712 = vadd.f32 %v207, %v711
    %v713 = vpop.f32.mrb[0].mxu0
    %v714 = vpop.f32.mrb[0].mxu0
    %715 = vdwg.mxu0
    %v716 = vcombine.low %v423, %v464
    %v718 = vunpack.c.l.s4 1983009808
    %v719 = vunpack.c.0.s8 %v718
    %v720 = vlaneseq
    %v721 = vshrl.u32 %v720, 7
    %v722 = vsub.s32 %v719, %v721
    %v723 = vrot.slane %v716, %v722
    %v724 = vcombine.low %v425, %v466
    %v726 = vunpack.c.l.s4 1983009808
    %v727 = vunpack.c.0.s8 %v726
    %v728 = vlaneseq
    %v729 = vshrl.u32 %v728, 7
    %v730 = vsub.s32 %v727, %v729
    %v731 = vrot.slane %v724, %v730
    %v732 = vcombine.low %v505, %v546
    %v734 = vunpack.c.l.s4 1983009808
    %v735 = vunpack.c.0.s8 %v734
    %v736 = vlaneseq
    %v737 = vshrl.u32 %v736, 7
    %v738 = vsub.s32 %v735, %v737
    %v739 = vrot.slane %v732, %v738
    %v740 = vcombine.low %v507, %v548
    %v742 = vunpack.c.l.s4 1983009808
    %v743 = vunpack.c.0.s8 %v742
    %v744 = vlaneseq
    %v745 = vshrl.u32 %v744, 7
    %v746 = vsub.s32 %v743, %v745
    %v747 = vrot.slane %v740, %v746
    %v748 = vcombine.low %v723, %v731
    %v750 = vunpack.c.l.s4 1934713408
    %v751 = vunpack.c.0.s8 %v750
    %v752 = vlaneseq
    %v753 = vshrl.u32 %v752, 7
    %v754 = vsub.s32 %v751, %v753
    %v755 = vrot.slane %v748, %v754
    %v756 = vcombine.low %v739, %v747
    %v758 = vunpack.c.l.s4 1934713408
    %v759 = vunpack.c.0.s8 %v758
    %v760 = vlaneseq
    %v761 = vshrl.u32 %v760, 7
    %v762 = vsub.s32 %v759, %v761
    %v763 = vrot.slane %v756, %v762
    %v764 = vcombine.low %v755, %v763
    %v765 = vcombine.high %v755, %v763
    %v766 = vcombine.low %v587, %v628
    %v768 = vunpack.c.l.s4 1983009808
    %v769 = vunpack.c.0.s8 %v768
    %v770 = vlaneseq
    %v771 = vshrl.u32 %v770, 7
    %v772 = vsub.s32 %v769, %v771
    %v773 = vrot.slane %v766, %v772
    %v774 = vcombine.low %v589, %v630
    %v776 = vunpack.c.l.s4 1983009808
    %v777 = vunpack.c.0.s8 %v776
    %v778 = vlaneseq
    %v779 = vshrl.u32 %v778, 7
    %v780 = vsub.s32 %v777, %v779
    %v781 = vrot.slane %v774, %v780
    %v782 = vcombine.low %v669, %v710
    %v784 = vunpack.c.l.s4 1983009808
    %v785 = vunpack.c.0.s8 %v784
    %v786 = vlaneseq
    %v787 = vshrl.u32 %v786, 7
    %v788 = vsub.s32 %v785, %v787
    %v789 = vrot.slane %v782, %v788
    %v790 = vcombine.low %v671, %v712
    %v792 = vunpack.c.l.s4 1983009808
    %v793 = vunpack.c.0.s8 %v792
    %v794 = vlaneseq
    %v795 = vshrl.u32 %v794, 7
    %v796 = vsub.s32 %v793, %v795
    %v797 = vrot.slane %v790, %v796
    %v798 = vcombine.low %v773, %v781
    %v800 = vunpack.c.l.s4 1934713408
    %v801 = vunpack.c.0.s8 %v800
    %v802 = vlaneseq
    %v803 = vshrl.u32 %v802, 7
    %v804 = vsub.s32 %v801, %v803
    %v805 = vrot.slane %v798, %v804
    %v806 = vcombine.low %v789, %v797
    %v808 = vunpack.c.l.s4 1934713408
    %v809 = vunpack.c.0.s8 %v808
    %v810 = vlaneseq
    %v811 = vshrl.u32 %v810, 7
    %v812 = vsub.s32 %v809, %v811
    %v813 = vrot.slane %v806, %v812
    %v814 = vcombine.low %v805, %v813
    %v815 = vcombine.high %v805, %v813
    %v816 = vld [vmem:[%s3] sm:$0x1]
    %v817 = vld [vmem:[%s3 + $0x1] sm:$0x1]
    %v818 = vld [vmem:[%s4] sm:$0x1]
    %v819 = vld [vmem:[%s4 + $0x1] sm:$0x1]
    %v836 = vcombine.low %v423, %v425
    %v837 = vcombine.low %v464, %v466
    %v838 = vcombine.low %v505, %v507
    %v839 = vcombine.low %v546, %v548
    %v841 = vunpack.c.l.s4 1966171168
    %v842 = vunpack.c.0.s8 %v841
    %v843 = vlaneseq
    %v844 = vshrl.u32 %v843, 7
    %v845 = vsub.s32 %v842, %v844
    %v846 = vrot.slane %v836, %v845
    %v848 = vunpack.c.l.s4 1966171168
    %v849 = vunpack.c.0.s8 %v848
    %v850 = vlaneseq
    %v851 = vshrl.u32 %v850, 7
    %v852 = vsub.s32 %v849, %v851
    %v853 = vrot.slane %v837, %v852
    %v855 = vunpack.c.l.s4 1966171168
    %v856 = vunpack.c.0.s8 %v855
    %v857 = vlaneseq
    %v858 = vshrl.u32 %v857, 7
    %v859 = vsub.s32 %v856, %v858
    %v860 = vrot.slane %v838, %v859
    %v862 = vunpack.c.l.s4 1966171168
    %v863 = vunpack.c.0.s8 %v862
    %v864 = vlaneseq
    %v865 = vshrl.u32 %v864, 7
    %v866 = vsub.s32 %v863, %v865
    %v867 = vrot.slane %v839, %v866
    %v868 = vcombine.low %v846, %v853
    %v869 = vcombine.high %v846, %v853
    %v870 = vcombine.low %v860, %v867
    %v871 = vcombine.high %v860, %v867
    %v873 = vunpack.c.l.s4 1966171168
    %v874 = vunpack.c.0.s8 %v873
    %v875 = vlaneseq
    %v876 = vshrl.u32 %v875, 7
    %v877 = vsub.s32 %v874, %v876
    %v878 = vrot.slane %v868, %v877
    %v880 = vunpack.c.l.s4 1966171168
    %v881 = vunpack.c.0.s8 %v880
    %v882 = vlaneseq
    %v883 = vshrl.u32 %v882, 7
    %v884 = vsub.s32 %v881, %v883
    %v885 = vrot.slane %v869, %v884
    %v887 = vunpack.c.l.s4 1966171168
    %v888 = vunpack.c.0.s8 %v887
    %v889 = vlaneseq
    %v890 = vshrl.u32 %v889, 7
    %v891 = vsub.s32 %v888, %v890
    %v892 = vrot.slane %v870, %v891
    %v894 = vunpack.c.l.s4 1966171168
    %v895 = vunpack.c.0.s8 %v894
    %v896 = vlaneseq
    %v897 = vshrl.u32 %v896, 7
    %v898 = vsub.s32 %v895, %v897
    %v899 = vrot.slane %v871, %v898
    %v900 = vcombine.low %v878, %v892
    %v901 = vcombine.low %v885, %v899
    %v902 = vcombine.low %v587, %v589
    %v903 = vcombine.low %v628, %v630
    %v904 = vcombine.low %v669, %v671
    %v905 = vcombine.low %v710, %v712
    %v907 = vunpack.c.l.s4 1966171168
    %v908 = vunpack.c.0.s8 %v907
    %v909 = vlaneseq
    %v910 = vshrl.u32 %v909, 7
    %v911 = vsub.s32 %v908, %v910
    %v912 = vrot.slane %v902, %v911
    %v914 = vunpack.c.l.s4 1966171168
    %v915 = vunpack.c.0.s8 %v914
    %v916 = vlaneseq
    %v917 = vshrl.u32 %v916, 7
    %v918 = vsub.s32 %v915, %v917
    %v919 = vrot.slane %v903, %v918
    %v921 = vunpack.c.l.s4 1966171168
    %v922 = vunpack.c.0.s8 %v921
    %v923 = vlaneseq
    %v924 = vshrl.u32 %v923, 7
    %v925 = vsub.s32 %v922, %v924
    %v926 = vrot.slane %v904, %v925
    %v928 = vunpack.c.l.s4 1966171168
    %v929 = vunpack.c.0.s8 %v928
    %v930 = vlaneseq
    %v931 = vshrl.u32 %v930, 7
    %v932 = vsub.s32 %v929, %v931
    %v933 = vrot.slane %v905, %v932
    %v934 = vcombine.low %v912, %v919
    %v935 = vcombine.high %v912, %v919
    %v936 = vcombine.low %v926, %v933
    %v937 = vcombine.high %v926, %v933
    %v939 = vunpack.c.l.s4 1966171168
    %v940 = vunpack.c.0.s8 %v939
    %v941 = vlaneseq
    %v942 = vshrl.u32 %v941, 7
    %v943 = vsub.s32 %v940, %v942
    %v944 = vrot.slane %v934, %v943
    %v946 = vunpack.c.l.s4 1966171168
    %v947 = vunpack.c.0.s8 %v946
    %v948 = vlaneseq
    %v949 = vshrl.u32 %v948, 7
    %v950 = vsub.s32 %v947, %v949
    %v951 = vrot.slane %v935, %v950
    %v953 = vunpack.c.l.s4 1966171168
    %v954 = vunpack.c.0.s8 %v953
    %v955 = vlaneseq
    %v956 = vshrl.u32 %v955, 7
    %v957 = vsub.s32 %v954, %v956
    %v958 = vrot.slane %v936, %v957
    %v960 = vunpack.c.l.s4 1966171168
    %v961 = vunpack.c.0.s8 %v960
    %v962 = vlaneseq
    %v963 = vshrl.u32 %v962, 7
    %v964 = vsub.s32 %v961, %v963
    %v965 = vrot.slane %v937, %v964
    %v966 = vcombine.low %v944, %v958
    %v967 = vcombine.low %v951, %v965
    %v972 = vadd.f32 %v900, %v966
    %v973 = vadd.f32 %v972, %v901
    %v974 = vadd.f32 %v973, %v967
    %v975 = vrot.slane %v974, 4
    %v976 = vadd.f32 %v974, %v975
    %v977 = vrot.slane %v976, 2
    %v978 = vadd.f32 %v976, %v977
    %v979 = vrot.slane %v978, 1
    %v980 = vadd.f32 %v978, %v979
    %v981 = vmul.f32 %v980, 0.03125
    %v982 = vmul.f32 %v900, %v900
    %v983 = vmul.f32 %v966, %v966
    %v984 = vmul.f32 %v901, %v901
    %v985 = vmul.f32 %v967, %v967
    %v986 = vadd.f32 %v982, %v983
    %v987 = vadd.f32 %v986, %v984
    %v988 = vadd.f32 %v987, %v985
    %v989 = vrot.slane %v988, 4
    %v990 = vadd.f32 %v988, %v989
    %v991 = vrot.slane %v990, 2
    %v992 = vadd.f32 %v990, %v991
    %v993 = vrot.slane %v992, 1
    %v994 = vadd.f32 %v992, %v993
    %v995 = vmul.f32 %v994, 0.03125
    %v996 = vmul.f32 %v981, %v981
    %v997 = vsub.f32 %v995, %v996
    %v998 = vadd.f32 %v997, 1e-05
    %v999 = vrsqrt.pop %v998
    %v1000 = vmul.f32 %v816, %v999
    %v1001 = vmul.f32 %v817, %v999
    %v1002 = vmul.f32 %v981, %v1000
    %v1003 = vmul.f32 %v981, %v1001
    %v1004 = vsub.f32 %v818, %v1002
    %v1005 = vsub.f32 %v819, %v1003
    %v1008 = vlaneseq
    %v1009 = vshrl.u32 %v1008, 7
    %v1010 = vsub.s32 0, %v1009
    %v1011 = vrot.slane %v1000, %v1010
    %v1012 = vlaneseq
    %v1013 = vshrl.u32 %v1012, 7
    %v1014 = vsub.s32 0, %v1013
    %v1015 = vrot.slane %v1001, %v1014
    %v1018 = vmul.f32 %v764, %v1011
    %v1019 = vmul.f32 %v814, %v1011
    %v1020 = vmul.f32 %v765, %v1015
    %v1021 = vmul.f32 %v815, %v1015
    %v1024 = vlaneseq
    %v1025 = vshrl.u32 %v1024, 7
    %v1026 = vsub.s32 0, %v1025
    %v1027 = vrot.slane %v1004, %v1026
    %v1028 = vlaneseq
    %v1029 = vshrl.u32 %v1028, 7
    %v1030 = vsub.s32 0, %v1029
    %v1031 = vrot.slane %v1005, %v1030
    %v1034 = vadd.f32 %v1018, %v1027
    %v1035 = vadd.f32 %v1019, %v1027
    %v1036 = vadd.f32 %v1020, %v1031
    %v1037 = vadd.f32 %v1021, %v1031
    %v1042 = vcombine.high %v1034, %v1034
    %v1043 = vcombine.high %v1035, %v1035
    %v1044 = vcombine.high %v1036, %v1036
    %v1045 = vcombine.high %v1037, %v1037
    %v1047 = vunpack.c.l.s4 1966171168
    %v1048 = vunpack.c.0.s8 %v1047
    %v1049 = vlaneseq
    %v1050 = vshrl.u32 %v1049, 7
    %v1051 = vsub.s32 %v1048, %v1050
    %v1052 = vrot.slane %v1034, %v1051
    %v1053 = vcombine.high %v1052, %v1052
    %v1055 = vunpack.c.l.s4 1966171168
    %v1056 = vunpack.c.0.s8 %v1055
    %v1057 = vlaneseq
    %v1058 = vshrl.u32 %v1057, 7
    %v1059 = vsub.s32 %v1056, %v1058
    %v1060 = vrot.slane %v1052, %v1059
    %v1062 = vunpack.c.l.s4 1966171168
    %v1063 = vunpack.c.0.s8 %v1062
    %v1064 = vlaneseq
    %v1065 = vshrl.u32 %v1064, 7
    %v1066 = vsub.s32 %v1063, %v1065
    %v1067 = vrot.slane %v1053, %v1066
    %v1068 = vcombine.high %v1060, %v1060
    %v1069 = vcombine.high %v1067, %v1067
    %v1071 = vunpack.c.l.s4 1966171168
    %v1072 = vunpack.c.0.s8 %v1071
    %v1073 = vlaneseq
    %v1074 = vshrl.u32 %v1073, 7
    %v1075 = vsub.s32 %v1072, %v1074
    %v1076 = vrot.slane %v1042, %v1075
    %v1077 = vcombine.high %v1076, %v1076
    %v1079 = vunpack.c.l.s4 1966171168
    %v1080 = vunpack.c.0.s8 %v1079
    %v1081 = vlaneseq
    %v1082 = vshrl.u32 %v1081, 7
    %v1083 = vsub.s32 %v1080, %v1082
    %v1084 = vrot.slane %v1076, %v1083
    %v1086 = vunpack.c.l.s4 1966171168
    %v1087 = vunpack.c.0.s8 %v1086
    %v1088 = vlaneseq
    %v1089 = vshrl.u32 %v1088, 7
    %v1090 = vsub.s32 %v1087, %v1089
    %v1091 = vrot.slane %v1077, %v1090
    %v1092 = vcombine.high %v1084, %v1084
    %v1093 = vcombine.high %v1091, %v1091
    %v1095 = vunpack.c.l.s4 1966171168
    %v1096 = vunpack.c.0.s8 %v1095
    %v1097 = vlaneseq
    %v1098 = vshrl.u32 %v1097, 7
    %v1099 = vsub.s32 %v1096, %v1098
    %v1100 = vrot.slane %v1035, %v1099
    %v1101 = vcombine.high %v1100, %v1100
    %v1103 = vunpack.c.l.s4 1966171168
    %v1104 = vunpack.c.0.s8 %v1103
    %v1105 = vlaneseq
    %v1106 = vshrl.u32 %v1105, 7
    %v1107 = vsub.s32 %v1104, %v1106
    %v1108 = vrot.slane %v1100, %v1107
    %v1110 = vunpack.c.l.s4 1966171168
    %v1111 = vunpack.c.0.s8 %v1110
    %v1112 = vlaneseq
    %v1113 = vshrl.u32 %v1112, 7
    %v1114 = vsub.s32 %v1111, %v1113
    %v1115 = vrot.slane %v1101, %v1114
    %v1116 = vcombine.high %v1108, %v1108
    %v1117 = vcombine.high %v1115, %v1115
    %v1119 = vunpack.c.l.s4 1966171168
    %v1120 = vunpack.c.0.s8 %v1119
    %v1121 = vlaneseq
    %v1122 = vshrl.u32 %v1121, 7
    %v1123 = vsub.s32 %v1120, %v1122
    %v1124 = vrot.slane %v1043, %v1123
    %v1125 = vcombine.high %v1124, %v1124
    %v1127 = vunpack.c.l.s4 1966171168
    %v1128 = vunpack.c.0.s8 %v1127
    %v1129 = vlaneseq
    %v1130 = vshrl.u32 %v1129, 7
    %v1131 = vsub.s32 %v1128, %v1130
    %v1132 = vrot.slane %v1124, %v1131
    %v1134 = vunpack.c.l.s4 1966171168
    %v1135 = vunpack.c.0.s8 %v1134
    %v1136 = vlaneseq
    %v1137 = vshrl.u32 %v1136, 7
    %v1138 = vsub.s32 %v1135, %v1137
    %v1139 = vrot.slane %v1125, %v1138
    %v1140 = vcombine.high %v1132, %v1132
    %v1141 = vcombine.high %v1139, %v1139
    %v1143 = vunpack.c.l.s4 1966171168
    %v1144 = vunpack.c.0.s8 %v1143
    %v1145 = vlaneseq
    %v1146 = vshrl.u32 %v1145, 7
    %v1147 = vsub.s32 %v1144, %v1146
    %v1148 = vrot.slane %v1036, %v1147
    %v1149 = vcombine.high %v1148, %v1148
    %v1151 = vunpack.c.l.s4 1966171168
    %v1152 = vunpack.c.0.s8 %v1151
    %v1153 = vlaneseq
    %v1154 = vshrl.u32 %v1153, 7
    %v1155 = vsub.s32 %v1152, %v1154
    %v1156 = vrot.slane %v1148, %v1155
    %v1158 = vunpack.c.l.s4 1966171168
    %v1159 = vunpack.c.0.s8 %v1158
    %v1160 = vlaneseq
    %v1161 = vshrl.u32 %v1160, 7
    %v1162 = vsub.s32 %v1159, %v1161
    %v1163 = vrot.slane %v1149, %v1162
    %v1164 = vcombine.high %v1156, %v1156
    %v1165 = vcombine.high %v1163, %v1163
    %v1167 = vunpack.c.l.s4 1966171168
    %v1168 = vunpack.c.0.s8 %v1167
    %v1169 = vlaneseq
    %v1170 = vshrl.u32 %v1169, 7
    %v1171 = vsub.s32 %v1168, %v1170
    %v1172 = vrot.slane %v1044, %v1171
    %v1173 = vcombine.high %v1172, %v1172
    %v1175 = vunpack.c.l.s4 1966171168
    %v1176 = vunpack.c.0.s8 %v1175
    %v1177 = vlaneseq
    %v1178 = vshrl.u32 %v1177, 7
    %v1179 = vsub.s32 %v1176, %v1178
    %v1180 = vrot.slane %v1172, %v1179
    %v1182 = vunpack.c.l.s4 1966171168
    %v1183 = vunpack.c.0.s8 %v1182
    %v1184 = vlaneseq
    %v1185 = vshrl.u32 %v1184, 7
    %v1186 = vsub.s32 %v1183, %v1185
    %v1187 = vrot.slane %v1173, %v1186
    %v1188 = vcombine.high %v1180, %v1180
    %v1189 = vcombine.high %v1187, %v1187
    %v1191 = vunpack.c.l.s4 1966171168
    %v1192 = vunpack.c.0.s8 %v1191
    %v1193 = vlaneseq
    %v1194 = vshrl.u32 %v1193, 7
    %v1195 = vsub.s32 %v1192, %v1194
    %v1196 = vrot.slane %v1037, %v1195
    %v1197 = vcombine.high %v1196, %v1196
    %v1199 = vunpack.c.l.s4 1966171168
    %v1200 = vunpack.c.0.s8 %v1199
    %v1201 = vlaneseq
    %v1202 = vshrl.u32 %v1201, 7
    %v1203 = vsub.s32 %v1200, %v1202
    %v1204 = vrot.slane %v1196, %v1203
    %v1206 = vunpack.c.l.s4 1966171168
    %v1207 = vunpack.c.0.s8 %v1206
    %v1208 = vlaneseq
    %v1209 = vshrl.u32 %v1208, 7
    %v1210 = vsub.s32 %v1207, %v1209
    %v1211 = vrot.slane %v1197, %v1210
    %v1212 = vcombine.high %v1204, %v1204
    %v1213 = vcombine.high %v1211, %v1211
    %v1215 = vunpack.c.l.s4 1966171168
    %v1216 = vunpack.c.0.s8 %v1215
    %v1217 = vlaneseq
    %v1218 = vshrl.u32 %v1217, 7
    %v1219 = vsub.s32 %v1216, %v1218
    %v1220 = vrot.slane %v1045, %v1219
    %v1221 = vcombine.high %v1220, %v1220
    %v1223 = vunpack.c.l.s4 1966171168
    %v1224 = vunpack.c.0.s8 %v1223
    %v1225 = vlaneseq
    %v1226 = vshrl.u32 %v1225, 7
    %v1227 = vsub.s32 %v1224, %v1226
    %v1228 = vrot.slane %v1220, %v1227
    %v1230 = vunpack.c.l.s4 1966171168
    %v1231 = vunpack.c.0.s8 %v1230
    %v1232 = vlaneseq
    %v1233 = vshrl.u32 %v1232, 7
    %v1234 = vsub.s32 %v1231, %v1233
    %v1235 = vrot.slane %v1221, %v1234
    %v1236 = vcombine.high %v1228, %v1228
    %v1237 = vcombine.high %v1235, %v1235
    %v1238 = vlaneseq
    %v1239 = vshrl.u32 %v1238, 7
    %v1240 = vsub.s32 0, %v1239
    %v1241 = vrot.slane %v1060, %v1240
    %v1242 = vlaneseq
    %v1243 = vshrl.u32 %v1242, 7
    %v1244 = vsub.s32 0, %v1243
    %v1245 = vrot.slane %v1067, %v1244
    %v1246 = vlaneseq
    %v1247 = vshrl.u32 %v1246, 7
    %v1248 = vsub.s32 0, %v1247
    %v1249 = vrot.slane %v1068, %v1248
    %v1250 = vlaneseq
    %v1251 = vshrl.u32 %v1250, 7
    %v1252 = vsub.s32 0, %v1251
    %v1253 = vrot.slane %v1069, %v1252
    %v1254 = vlaneseq
    %v1255 = vshrl.u32 %v1254, 7
    %v1256 = vsub.s32 0, %v1255
    %v1257 = vrot.slane %v1084, %v1256
    %v1258 = vlaneseq
    %v1259 = vshrl.u32 %v1258, 7
    %v1260 = vsub.s32 0, %v1259
    %v1261 = vrot.slane %v1091, %v1260
    %v1262 = vlaneseq
    %v1263 = vshrl.u32 %v1262, 7
    %v1264 = vsub.s32 0, %v1263
    %v1265 = vrot.slane %v1092, %v1264
    %v1266 = vlaneseq
    %v1267 = vshrl.u32 %v1266, 7
    %v1268 = vsub.s32 0, %v1267
    %v1269 = vrot.slane %v1093, %v1268
    %v1270 = vlaneseq
    %v1271 = vshrl.u32 %v1270, 7
    %v1272 = vsub.s32 0, %v1271
    %v1273 = vrot.slane %v1108, %v1272
    %v1274 = vlaneseq
    %v1275 = vshrl.u32 %v1274, 7
    %v1276 = vsub.s32 0, %v1275
    %v1277 = vrot.slane %v1115, %v1276
    %v1278 = vlaneseq
    %v1279 = vshrl.u32 %v1278, 7
    %v1280 = vsub.s32 0, %v1279
    %v1281 = vrot.slane %v1116, %v1280
    %v1282 = vlaneseq
    %v1283 = vshrl.u32 %v1282, 7
    %v1284 = vsub.s32 0, %v1283
    %v1285 = vrot.slane %v1117, %v1284
    %v1286 = vlaneseq
    %v1287 = vshrl.u32 %v1286, 7
    %v1288 = vsub.s32 0, %v1287
    %v1289 = vrot.slane %v1132, %v1288
    %v1290 = vlaneseq
    %v1291 = vshrl.u32 %v1290, 7
    %v1292 = vsub.s32 0, %v1291
    %v1293 = vrot.slane %v1139, %v1292
    %v1294 = vlaneseq
    %v1295 = vshrl.u32 %v1294, 7
    %v1296 = vsub.s32 0, %v1295
    %v1297 = vrot.slane %v1140, %v1296
    %v1298 = vlaneseq
    %v1299 = vshrl.u32 %v1298, 7
    %v1300 = vsub.s32 0, %v1299
    %v1301 = vrot.slane %v1141, %v1300
    %v1302 = vlaneseq
    %v1303 = vshrl.u32 %v1302, 7
    %v1304 = vsub.s32 0, %v1303
    %v1305 = vrot.slane %v1156, %v1304
    %v1306 = vlaneseq
    %v1307 = vshrl.u32 %v1306, 7
    %v1308 = vsub.s32 0, %v1307
    %v1309 = vrot.slane %v1163, %v1308
    %v1310 = vlaneseq
    %v1311 = vshrl.u32 %v1310, 7
    %v1312 = vsub.s32 0, %v1311
    %v1313 = vrot.slane %v1164, %v1312
    %v1314 = vlaneseq
    %v1315 = vshrl.u32 %v1314, 7
    %v1316 = vsub.s32 0, %v1315
    %v1317 = vrot.slane %v1165, %v1316
    %v1318 = vlaneseq
    %v1319 = vshrl.u32 %v1318, 7
    %v1320 = vsub.s32 0, %v1319
    %v1321 = vrot.slane %v1180, %v1320
    %v1322 = vlaneseq
    %v1323 = vshrl.u32 %v1322, 7
    %v1324 = vsub.s32 0, %v1323
    %v1325 = vrot.slane %v1187, %v1324
    %v1326 = vlaneseq
    %v1327 = vshrl.u32 %v1326, 7
    %v1328 = vsub.s32 0, %v1327
    %v1329 = vrot.slane %v1188, %v1328
    %v1330 = vlaneseq
    %v1331 = vshrl.u32 %v1330, 7
    %v1332 = vsub.s32 0, %v1331
    %v1333 = vrot.slane %v1189, %v1332
    %v1334 = vlaneseq
    %v1335 = vshrl.u32 %v1334, 7
    %v1336 = vsub.s32 0, %v1335
    %v1337 = vrot.slane %v1204, %v1336
    %v1338 = vlaneseq
    %v1339 = vshrl.u32 %v1338, 7
    %v1340 = vsub.s32 0, %v1339
    %v1341 = vrot.slane %v1211, %v1340
    %v1342 = vlaneseq
    %v1343 = vshrl.u32 %v1342, 7
    %v1344 = vsub.s32 0, %v1343
    %v1345 = vrot.slane %v1212, %v1344
    %v1346 = vlaneseq
    %v1347 = vshrl.u32 %v1346, 7
    %v1348 = vsub.s32 0, %v1347
    %v1349 = vrot.slane %v1213, %v1348
    %v1350 = vlaneseq
    %v1351 = vshrl.u32 %v1350, 7
    %v1352 = vsub.s32 0, %v1351
    %v1353 = vrot.slane %v1228, %v1352
    %v1354 = vlaneseq
    %v1355 = vshrl.u32 %v1354, 7
    %v1356 = vsub.s32 0, %v1355
    %v1357 = vrot.slane %v1235, %v1356
    %v1358 = vlaneseq
    %v1359 = vshrl.u32 %v1358, 7
    %v1360 = vsub.s32 0, %v1359
    %v1361 = vrot.slane %v1236, %v1360
    %v1362 = vlaneseq
    %v1363 = vshrl.u32 %v1362, 7
    %v1364 = vsub.s32 0, %v1363
    %v1365 = vrot.slane %v1237, %v1364
    %v1366 = vld [vmem:[%s6] sm:$0x1]
    %v1367 = vcombine.low %v1241, %v1245
    %v1368 = vcombine.low %v1249, %v1253
    %v1370 = vunpack.c.l.s4 1983009808
    %v1371 = vunpack.c.0.s8 %v1370
    %v1372 = vlaneseq
    %v1373 = vshrl.u32 %v1372, 7
    %v1374 = vsub.s32 %v1371, %v1373
    %v1375 = vrot.slane %v1367, %v1374
    %v1377 = vunpack.c.l.s4 1983009808
    %v1378 = vunpack.c.0.s8 %v1377
    %v1379 = vlaneseq
    %v1380 = vshrl.u32 %v1379, 7
    %v1381 = vsub.s32 %v1378, %v1380
    %v1382 = vrot.slane %v1368, %v1381
    %v1383 = vcombine.low %v1375, %v1382
    %v1384 = vcombine.low %v1257, %v1261
    %v1385 = vcombine.low %v1265, %v1269
    %v1387 = vunpack.c.l.s4 1983009808
    %v1388 = vunpack.c.0.s8 %v1387
    %v1389 = vlaneseq
    %v1390 = vshrl.u32 %v1389, 7
    %v1391 = vsub.s32 %v1388, %v1390
    %v1392 = vrot.slane %v1384, %v1391
    %v1394 = vunpack.c.l.s4 1983009808
    %v1395 = vunpack.c.0.s8 %v1394
    %v1396 = vlaneseq
    %v1397 = vshrl.u32 %v1396, 7
    %v1398 = vsub.s32 %v1395, %v1397
    %v1399 = vrot.slane %v1385, %v1398
    %v1400 = vcombine.low %v1392, %v1399
    %v1401 = vcombine.low %v1273, %v1277
    %v1402 = vcombine.low %v1281, %v1285
    %v1404 = vunpack.c.l.s4 1983009808
    %v1405 = vunpack.c.0.s8 %v1404
    %v1406 = vlaneseq
    %v1407 = vshrl.u32 %v1406, 7
    %v1408 = vsub.s32 %v1405, %v1407
    %v1409 = vrot.slane %v1401, %v1408
    %v1411 = vunpack.c.l.s4 1983009808
    %v1412 = vunpack.c.0.s8 %v1411
    %v1413 = vlaneseq
    %v1414 = vshrl.u32 %v1413, 7
    %v1415 = vsub.s32 %v1412, %v1414
    %v1416 = vrot.slane %v1402, %v1415
    %v1417 = vcombine.low %v1409, %v1416
    %v1418 = vcombine.low %v1289, %v1293
    %v1419 = vcombine.low %v1297, %v1301
    %v1421 = vunpack.c.l.s4 1983009808
    %v1422 = vunpack.c.0.s8 %v1421
    %v1423 = vlaneseq
    %v1424 = vshrl.u32 %v1423, 7
    %v1425 = vsub.s32 %v1422, %v1424
    %v1426 = vrot.slane %v1418, %v1425
    %v1428 = vunpack.c.l.s4 1983009808
    %v1429 = vunpack.c.0.s8 %v1428
    %v1430 = vlaneseq
    %v1431 = vshrl.u32 %v1430, 7
    %v1432 = vsub.s32 %v1429, %v1431
    %v1433 = vrot.slane %v1419, %v1432
    %v1434 = vcombine.low %v1426, %v1433
    %v1435 = vcombine.low %v1305, %v1309
    %v1436 = vcombine.low %v1313, %v1317
    %v1438 = vunpack.c.l.s4 1983009808
    %v1439 = vunpack.c.0.s8 %v1438
    %v1440 = vlaneseq
    %v1441 = vshrl.u32 %v1440, 7
    %v1442 = vsub.s32 %v1439, %v1441
    %v1443 = vrot.slane %v1435, %v1442
    %v1445 = vunpack.c.l.s4 1983009808
    %v1446 = vunpack.c.0.s8 %v1445
    %v1447 = vlaneseq
    %v1448 = vshrl.u32 %v1447, 7
    %v1449 = vsub.s32 %v1446, %v1448
    %v1450 = vrot.slane %v1436, %v1449
    %v1451 = vcombine.low %v1443, %v1450
    %v1452 = vcombine.low %v1321, %v1325
    %v1453 = vcombine.low %v1329, %v1333
    %v1455 = vunpack.c.l.s4 1983009808
    %v1456 = vunpack.c.0.s8 %v1455
    %v1457 = vlaneseq
    %v1458 = vshrl.u32 %v1457, 7
    %v1459 = vsub.s32 %v1456, %v1458
    %v1460 = vrot.slane %v1452, %v1459
    %v1462 = vunpack.c.l.s4 1983009808
    %v1463 = vunpack.c.0.s8 %v1462
    %v1464 = vlaneseq
    %v1465 = vshrl.u32 %v1464, 7
    %v1466 = vsub.s32 %v1463, %v1465
    %v1467 = vrot.slane %v1453, %v1466
    %v1468 = vcombine.low %v1460, %v1467
    %v1469 = vcombine.low %v1337, %v1341
    %v1470 = vcombine.low %v1345, %v1349
    %v1472 = vunpack.c.l.s4 1983009808
    %v1473 = vunpack.c.0.s8 %v1472
    %v1474 = vlaneseq
    %v1475 = vshrl.u32 %v1474, 7
    %v1476 = vsub.s32 %v1473, %v1475
    %v1477 = vrot.slane %v1469, %v1476
    %v1479 = vunpack.c.l.s4 1983009808
    %v1480 = vunpack.c.0.s8 %v1479
    %v1481 = vlaneseq
    %v1482 = vshrl.u32 %v1481, 7
    %v1483 = vsub.s32 %v1480, %v1482
    %v1484 = vrot.slane %v1470, %v1483
    %v1485 = vcombine.low %v1477, %v1484
    %v1486 = vcombine.low %v1353, %v1357
    %v1487 = vcombine.low %v1361, %v1365
    %v1489 = vunpack.c.l.s4 1983009808
    %v1490 = vunpack.c.0.s8 %v1489
    %v1491 = vlaneseq
    %v1492 = vshrl.u32 %v1491, 7
    %v1493 = vsub.s32 %v1490, %v1492
    %v1494 = vrot.slane %v1486, %v1493
    %v1496 = vunpack.c.l.s4 1983009808
    %v1497 = vunpack.c.0.s8 %v1496
    %v1498 = vlaneseq
    %v1499 = vshrl.u32 %v1498, 7
    %v1500 = vsub.s32 %v1497, %v1499
    %v1501 = vrot.slane %v1487, %v1500
    %v1502 = vcombine.low %v1494, %v1501
    %v1511 = vpack.c.bf16 %v1383, %v1383
    %v1512 = vpack.c.bf16 %v1400, %v1400
    %v1513 = vpack.c.bf16 %v1417, %v1417
    %v1514 = vpack.c.bf16 %v1434, %v1434
    %v1515 = vpack.c.bf16 %v1451, %v1451
    %v1516 = vpack.c.bf16 %v1468, %v1468
    %v1517 = vpack.c.bf16 %v1485, %v1485
    %v1518 = vpack.c.bf16 %v1502, %v1502
    %v1520 = vshrl.u32 0, 16
    %v1522 = vrot.slane %v1520, 7
    %v1523 = vshll.u32 0, 16
    %v1525 = vor.u32 %v1522, %v1523
    %v1527 = vshrl.u32 %v1511, 16
    %v1529 = vrot.slane %v1527, 7
    %v1530 = vshll.u32 %v1511, 16
    %v1532 = vor.u32 %v1529, %v1530
    %v1534 = vshrl.u32 %v1512, 16
    %v1536 = vrot.slane %v1534, 7
    %v1537 = vshll.u32 %v1512, 16
    %v1539 = vor.u32 %v1536, %v1537
    %v1541 = vshrl.u32 %v1513, 16
    %v1543 = vrot.slane %v1541, 7
    %v1544 = vshll.u32 %v1513, 16
    %v1546 = vor.u32 %v1543, %v1544
    %v1548 = vshrl.u32 %v1514, 16
    %v1550 = vrot.slane %v1548, 7
    %v1551 = vshll.u32 %v1514, 16
    %v1553 = vor.u32 %v1550, %v1551
    %v1555 = vshrl.u32 %v1515, 16
    %v1557 = vrot.slane %v1555, 7
    %v1558 = vshll.u32 %v1515, 16
    %v1560 = vor.u32 %v1557, %v1558
    %v1562 = vshrl.u32 %v1516, 16
    %v1564 = vrot.slane %v1562, 7
    %v1565 = vshll.u32 %v1516, 16
    %v1567 = vor.u32 %v1564, %v1565
    %v1569 = vshrl.u32 %v1517, 16
    %v1571 = vrot.slane %v1569, 7
    %v1572 = vshll.u32 %v1517, 16
    %v1574 = vor.u32 %v1571, %v1572
    %v1576 = vshrl.u32 %v1518, 16
    %v1578 = vrot.slane %v1576, 7
    %v1579 = vshll.u32 %v1518, 16
    %v1581 = vor.u32 %v1578, %v1579
    %vm1591 = vcmask 1040384
    %vm1592 = vsmask.f32 256
    %vm1593 = vmand %vm1591, %vm1592
    %v1594 = vsel %vm1593, 0, %v1525
    %v1595 = vsel %vm1593, 0, %v1532
    %v1596 = vsel %vm1593, 0, %v1539
    %v1597 = vsel %vm1593, 0, %v1546
    %v1598 = vsel %vm1593, 0, %v1553
    %v1599 = vsel %vm1593, 0, %v1560
    %v1600 = vsel %vm1593, 0, %v1567
    %v1601 = vsel %vm1593, 0, %v1574
    %v1602 = vsel %vm1593, 0, %v1581
    %vm1603 = vcmask 1044480
    %vm1604 = vsmask.f32 4352
    %vm1605 = vmand %vm1603, %vm1604
    %v1606 = vsel %vm1605, %v1594, 0
    %v1607 = vsel %vm1605, %v1595, 0
    %v1608 = vsel %vm1605, %v1596, 0
    %v1609 = vsel %vm1605, %v1597, 0
    %v1610 = vsel %vm1605, %v1598, 0
    %v1611 = vsel %vm1605, %v1599, 0
    %v1612 = vsel %vm1605, %v1600, 0
    %v1613 = vsel %vm1605, %v1601, 0
    %v1614 = vsel %vm1605, %v1602, 0
    %v1616 = vshrl.u32 %v1606, 16
    %v1618 = vshll.u32 %v1606, 16
    %v1620 = vrot.slane %v1618, 1
    %v1621 = vor.u32 %v1616, %v1620
    %v1623 = vshrl.u32 %v1607, 16
    %v1625 = vshll.u32 %v1607, 16
    %v1627 = vrot.slane %v1625, 1
    %v1628 = vor.u32 %v1623, %v1627
    %v1630 = vshrl.u32 %v1608, 16
    %v1632 = vshll.u32 %v1608, 16
    %v1634 = vrot.slane %v1632, 1
    %v1635 = vor.u32 %v1630, %v1634
    %v1637 = vshrl.u32 %v1609, 16
    %v1639 = vshll.u32 %v1609, 16
    %v1641 = vrot.slane %v1639, 1
    %v1642 = vor.u32 %v1637, %v1641
    %v1644 = vshrl.u32 %v1610, 16
    %v1646 = vshll.u32 %v1610, 16
    %v1648 = vrot.slane %v1646, 1
    %v1649 = vor.u32 %v1644, %v1648
    %v1651 = vshrl.u32 %v1611, 16
    %v1653 = vshll.u32 %v1611, 16
    %v1655 = vrot.slane %v1653, 1
    %v1656 = vor.u32 %v1651, %v1655
    %v1658 = vshrl.u32 %v1612, 16
    %v1660 = vshll.u32 %v1612, 16
    %v1662 = vrot.slane %v1660, 1
    %v1663 = vor.u32 %v1658, %v1662
    %v1665 = vshrl.u32 %v1613, 16
    %v1667 = vshll.u32 %v1613, 16
    %v1669 = vrot.slane %v1667, 1
    %v1670 = vor.u32 %v1665, %v1669
    %v1672 = vshrl.u32 %v1614, 16
    %v1674 = vshll.u32 %v1614, 16
    %v1676 = vrot.slane %v1674, 1
    %v1677 = vor.u32 %v1672, %v1676
    %v1687 = vrot.slane %v1606, 1
    %v1688 = vrot.slane %v1607, 1
    %v1689 = vrot.slane %v1608, 1
    %v1690 = vrot.slane %v1609, 1
    %v1691 = vrot.slane %v1610, 1
    %v1692 = vrot.slane %v1611, 1
    %v1693 = vrot.slane %v1612, 1
    %v1694 = vrot.slane %v1613, 1
    %v1695 = vrot.slane %v1614, 1
    %v1696 = vunpack.c.l.b16 %v1606
    %v1697 = vunpack.c.l.b16 %v1621
    %v1698 = vunpack.c.l.b16 %v1687
    %v1699 = vunpack.c.l.b16 %v1607
    %v1700 = vunpack.c.l.b16 %v1628
    %v1701 = vunpack.c.l.b16 %v1688
    %v1702 = vunpack.c.l.b16 %v1608
    %v1703 = vunpack.c.l.b16 %v1635
    %v1704 = vunpack.c.l.b16 %v1689
    %v1705 = vunpack.c.l.b16 %v1609
    %v1706 = vunpack.c.l.b16 %v1642
    %v1707 = vunpack.c.l.b16 %v1690
    %v1708 = vunpack.c.l.b16 %v1610
    %v1709 = vunpack.c.l.b16 %v1649
    %v1710 = vunpack.c.l.b16 %v1691
    %v1711 = vunpack.c.l.b16 %v1611
    %v1712 = vunpack.c.l.b16 %v1656
    %v1713 = vunpack.c.l.b16 %v1692
    %v1714 = vunpack.c.l.b16 %v1612
    %v1715 = vunpack.c.l.b16 %v1663
    %v1716 = vunpack.c.l.b16 %v1693
    %v1717 = vunpack.c.l.b16 %v1613
    %v1718 = vunpack.c.l.b16 %v1670
    %v1719 = vunpack.c.l.b16 %v1694
    %v1720 = vunpack.c.l.b16 %v1614
    %v1721 = vunpack.c.l.b16 %v1677
    %v1722 = vunpack.c.l.b16 %v1695
    %v1723 = vld [vmem:[#allocation4] sm:$0xf]
    %v1724 = vld [vmem:[#allocation4 + $0x4] sm:$0xf]
    %v1725 = vld [vmem:[#allocation4 + $0x8] sm:$0xf]
    %v1726 = vld [vmem:[#allocation4 + $0xc] sm:$0xf]
    %v1727 = vld [vmem:[#allocation4 + $0x10] sm:$0xf]
    %v1728 = vld [vmem:[#allocation4 + $0x14] sm:$0xf]
    %v1729 = vld [vmem:[#allocation4 + $0x18] sm:$0xf]
    %v1730 = vld [vmem:[#allocation4 + $0x1c] sm:$0xf]
    %v1731 = vld [vmem:[#allocation4 + $0x20] sm:$0xf]
    %v1732 = vld [vmem:[#allocation4 + $0x24] sm:$0xf]
    %v1733 = vld [vmem:[#allocation4 + $0x28] sm:$0xf]
    %v1734 = vld [vmem:[#allocation4 + $0x2c] sm:$0xf]
    %v1735 = vld [vmem:[#allocation4 + $0x30] sm:$0xf]
    %v1736 = vld [vmem:[#allocation4 + $0x34] sm:$0xf]
    %v1737 = vld [vmem:[#allocation4 + $0x38] sm:$0xf]
    %v1738 = vld [vmem:[#allocation4 + $0x3c] sm:$0xf]
    %v1739 = vld [vmem:[#allocation4 + $0x40] sm:$0xf]
    %v1740 = vld [vmem:[#allocation4 + $0x44] sm:$0xf]
    %v1741 = vld [vmem:[#allocation4 + $0x48] sm:$0xf]
    %v1742 = vld [vmem:[#allocation4 + $0x4c] sm:$0xf]
    %v1743 = vld [vmem:[#allocation4 + $0x50] sm:$0xf]
    %v1744 = vld [vmem:[#allocation4 + $0x54] sm:$0xf]
    %v1745 = vld [vmem:[#allocation4 + $0x58] sm:$0xf]
    %v1746 = vld [vmem:[#allocation4 + $0x5c] sm:$0xf]
    %v1747 = vld [vmem:[#allocation4 + $0x60] sm:$0xf]
    %v1748 = vld [vmem:[#allocation4 + $0x64] sm:$0xf]
    %v1749 = vld [vmem:[#allocation4 + $0x68] sm:$0xf]
    %v1750 = vld [vmem:[#allocation4 + $0x6c] sm:$0xf]
    %v1751 = vld [vmem:[#allocation4 + $0x70] sm:$0xf]
    %v1752 = vld [vmem:[#allocation4 + $0x74] sm:$0xf]
    %v1753 = vld [vmem:[#allocation4 + $0x78] sm:$0xf]
    %v1754 = vld [vmem:[#allocation4 + $0x7c] sm:$0xf]
    %v1755 = vld [vmem:[#allocation4 + $0x80] sm:$0xf]
    %v1756 = vld [vmem:[#allocation4 + $0x84] sm:$0xf]
    %v1757 = vld [vmem:[#allocation4 + $0x88] sm:$0xf]
    %v1758 = vld [vmem:[#allocation4 + $0x8c] sm:$0xf]
    %v1759 = vld [vmem:[#allocation4 + $0x90] sm:$0xf]
    %v1760 = vld [vmem:[#allocation4 + $0x94] sm:$0xf]
    %v1761 = vld [vmem:[#allocation4 + $0x98] sm:$0xf]
    %v1762 = vld [vmem:[#allocation4 + $0x9c] sm:$0xf]
    %v1763 = vld [vmem:[#allocation4 + $0xa0] sm:$0xf]
    %v1764 = vld [vmem:[#allocation4 + $0xa4] sm:$0xf]
    %v1765 = vld [vmem:[#allocation4 + $0xa8] sm:$0xf]
    %v1766 = vld [vmem:[#allocation4 + $0xac] sm:$0xf]
    %v1767 = vld [vmem:[#allocation4 + $0xb0] sm:$0xf]
    %v1768 = vld [vmem:[#allocation4 + $0xb4] sm:$0xf]
    %v1769 = vld [vmem:[#allocation4 + $0xb8] sm:$0xf]
    %v1770 = vld [vmem:[#allocation4 + $0xbc] sm:$0xf]
    %v1771 = vld [vmem:[#allocation4 + $0xc0] sm:$0xf]
    %v1772 = vld [vmem:[#allocation4 + $0xc4] sm:$0xf]
    %v1773 = vld [vmem:[#allocation4 + $0xc8] sm:$0xf]
    %v1774 = vld [vmem:[#allocation4 + $0xcc] sm:$0xf]
    %v1775 = vld [vmem:[#allocation4 + $0xd0] sm:$0xf]
    %v1776 = vld [vmem:[#allocation4 + $0xd4] sm:$0xf]
    %v1777 = vld [vmem:[#allocation4 + $0xd8] sm:$0xf]
    %v1778 = vld [vmem:[#allocation4 + $0xdc] sm:$0xf]
    %v1779 = vld [vmem:[#allocation4 + $0xe0] sm:$0xf]
    %v1780 = vld [vmem:[#allocation4 + $0xe4] sm:$0xf]
    %v1781 = vld [vmem:[#allocation4 + $0xe8] sm:$0xf]
    %v1782 = vld [vmem:[#allocation4 + $0xec] sm:$0xf]
    %v1783 = vld [vmem:[#allocation4 + $0xf0] sm:$0xf]
    %v1784 = vld [vmem:[#allocation4 + $0xf4] sm:$0xf]
    %v1785 = vld [vmem:[#allocation4 + $0xf8] sm:$0xf]
    %v1786 = vld [vmem:[#allocation4 + $0xfc] sm:$0xf]
    %v1787 = vld [vmem:[#allocation4 + $0x100] sm:$0xf]
    %v1788 = vld [vmem:[#allocation4 + $0x104] sm:$0xf]
    %v1789 = vld [vmem:[#allocation4 + $0x108] sm:$0xf]
    %v1790 = vld [vmem:[#allocation4 + $0x10c] sm:$0xf]
    %v1791 = vld [vmem:[#allocation4 + $0x110] sm:$0xf]
    %v1792 = vld [vmem:[#allocation4 + $0x114] sm:$0xf]
    %v1793 = vld [vmem:[#allocation4 + $0x118] sm:$0xf]
    %v1794 = vld [vmem:[#allocation4 + $0x11c] sm:$0xf]
    %v1795 = vld [vmem:[#allocation4 + $0x120] sm:$0xf]
    %v1796 = vld [vmem:[#allocation4 + $0x124] sm:$0xf]
    %v1797 = vld [vmem:[#allocation4 + $0x128] sm:$0xf]
    %v1798 = vld [vmem:[#allocation4 + $0x12c] sm:$0xf]
    %v1799 = vld [vmem:[#allocation4 + $0x130] sm:$0xf]
    %v1800 = vld [vmem:[#allocation4 + $0x134] sm:$0xf]
    %v1801 = vld [vmem:[#allocation4 + $0x138] sm:$0xf]
    %v1802 = vld [vmem:[#allocation4 + $0x13c] sm:$0xf]
    %v1803 = vld [vmem:[#allocation4 + $0x140] sm:$0xf]
    %v1804 = vld [vmem:[#allocation4 + $0x144] sm:$0xf]
    %v1805 = vld [vmem:[#allocation4 + $0x148] sm:$0xf]
    %v1806 = vld [vmem:[#allocation4 + $0x14c] sm:$0xf]
    %v1807 = vld [vmem:[#allocation4 + $0x150] sm:$0xf]
    %v1808 = vld [vmem:[#allocation4 + $0x154] sm:$0xf]
    %v1809 = vld [vmem:[#allocation4 + $0x158] sm:$0xf]
    %v1810 = vld [vmem:[#allocation4 + $0x15c] sm:$0xf]
    %v1811 = vld [vmem:[#allocation4 + $0x160] sm:$0xf]
    %v1812 = vld [vmem:[#allocation4 + $0x164] sm:$0xf]
    %v1813 = vld [vmem:[#allocation4 + $0x168] sm:$0xf]
    %v1814 = vld [vmem:[#allocation4 + $0x16c] sm:$0xf]
    %v1815 = vld [vmem:[#allocation4 + $0x170] sm:$0xf]
    %v1816 = vld [vmem:[#allocation4 + $0x174] sm:$0xf]
    %v1817 = vld [vmem:[#allocation4 + $0x178] sm:$0xf]
    %v1818 = vld [vmem:[#allocation4 + $0x17c] sm:$0xf]
    %v1819 = vld [vmem:[#allocation4 + $0x180] sm:$0xf]
    %v1820 = vld [vmem:[#allocation4 + $0x184] sm:$0xf]
    %v1821 = vld [vmem:[#allocation4 + $0x188] sm:$0xf]
    %v1822 = vld [vmem:[#allocation4 + $0x18c] sm:$0xf]
    %v1823 = vld [vmem:[#allocation4 + $0x190] sm:$0xf]
    %v1824 = vld [vmem:[#allocation4 + $0x194] sm:$0xf]
    %v1825 = vld [vmem:[#allocation4 + $0x198] sm:$0xf]
    %v1826 = vld [vmem:[#allocation4 + $0x19c] sm:$0xf]
    %v1827 = vld [vmem:[#allocation4 + $0x1a0] sm:$0xf]
    %v1828 = vld [vmem:[#allocation4 + $0x1a4] sm:$0xf]
    %v1829 = vld [vmem:[#allocation4 + $0x1a8] sm:$0xf]
    %v1830 = vld [vmem:[#allocation4 + $0x1ac] sm:$0xf]
    %v1831 = vld [vmem:[#allocation4 + $0x1b0] sm:$0xf]
    %v1832 = vld [vmem:[#allocation4 + $0x1b4] sm:$0xf]
    %v1833 = vld [vmem:[#allocation4 + $0x1b8] sm:$0xf]
    %v1834 = vld [vmem:[#allocation4 + $0x1bc] sm:$0xf]
    %v1835 = vld [vmem:[#allocation4 + $0x1c0] sm:$0xf]
    %v1836 = vld [vmem:[#allocation4 + $0x1c4] sm:$0xf]
    %v1837 = vld [vmem:[#allocation4 + $0x1c8] sm:$0xf]
    %v1838 = vld [vmem:[#allocation4 + $0x1cc] sm:$0xf]
    %v1839 = vld [vmem:[#allocation4 + $0x1d0] sm:$0xf]
    %v1840 = vld [vmem:[#allocation4 + $0x1d4] sm:$0xf]
    %v1841 = vld [vmem:[#allocation4 + $0x1d8] sm:$0xf]
    %v1842 = vld [vmem:[#allocation4 + $0x1dc] sm:$0xf]
    %v1843 = vld [vmem:[#allocation4 + $0x1e0] sm:$0xf]
    %v1844 = vld [vmem:[#allocation4 + $0x1e4] sm:$0xf]
    %v1845 = vld [vmem:[#allocation4 + $0x1e8] sm:$0xf]
    %v1846 = vld [vmem:[#allocation4 + $0x1ec] sm:$0xf]
    %v1847 = vld [vmem:[#allocation4 + $0x1f0] sm:$0xf]
    %v1848 = vld [vmem:[#allocation4 + $0x1f4] sm:$0xf]
    %v1849 = vld [vmem:[#allocation4 + $0x1f8] sm:$0xf]
    %v1850 = vld [vmem:[#allocation4 + $0x1fc] sm:$0xf]
    %v1851 = vld [vmem:[#allocation4 + $0x200] sm:$0xf]
    %v1852 = vld [vmem:[#allocation4 + $0x204] sm:$0xf]
    %v1853 = vld [vmem:[#allocation4 + $0x208] sm:$0xf]
    %v1854 = vld [vmem:[#allocation4 + $0x20c] sm:$0xf]
    %v1855 = vld [vmem:[#allocation4 + $0x210] sm:$0xf]
    %v1856 = vld [vmem:[#allocation4 + $0x214] sm:$0xf]
    %v1857 = vld [vmem:[#allocation4 + $0x218] sm:$0xf]
    %v1858 = vld [vmem:[#allocation4 + $0x21c] sm:$0xf]
    %v1859 = vld [vmem:[#allocation4 + $0x220] sm:$0xf]
    %v1860 = vld [vmem:[#allocation4 + $0x224] sm:$0xf]
    %v1861 = vld [vmem:[#allocation4 + $0x228] sm:$0xf]
    %v1862 = vld [vmem:[#allocation4 + $0x22c] sm:$0xf]
    %v1863 = vld [vmem:[#allocation4 + $0x230] sm:$0xf]
    %v1864 = vld [vmem:[#allocation4 + $0x234] sm:$0xf]
    %v1865 = vld [vmem:[#allocation4 + $0x238] sm:$0xf]
    %v1866 = vld [vmem:[#allocation4 + $0x23c] sm:$0xf]
    %v1868 = vlaneseq
    %v1869 = vshrl.u32 %v1868, 7
    %v1870 = vsub.s32 0, %v1869
    %v1871 = vrot.slane %v1366, %v1870
    %v1873 = vpack.c.b16 %v1699, %v1696
    %v1874 = vpack.c.b16 %v1700, %v1697
    %v1875 = vpack.c.b16 %v1701, %v1698
    %v1876 = vpack.c.b16 %v1699, %v1699
    %v1877 = vpack.c.b16 %v1700, %v1700
    %v1878 = vpack.c.b16 %v1701, %v1701
    %v1879 = vpack.c.b16 %v1702, %v1699
    %v1880 = vpack.c.b16 %v1703, %v1700
    %v1881 = vpack.c.b16 %v1704, %v1701
    %v1882 = vpack.c.b16 %v1702, %v1702
    %v1883 = vpack.c.b16 %v1703, %v1703
    %v1884 = vpack.c.b16 %v1704, %v1704
    %v1885 = vpack.c.b16 %v1705, %v1702
    %v1886 = vpack.c.b16 %v1706, %v1703
    %v1887 = vpack.c.b16 %v1707, %v1704
    %v1888 = vpack.c.b16 %v1705, %v1705
    %v1889 = vpack.c.b16 %v1706, %v1706
    %v1890 = vpack.c.b16 %v1707, %v1707
    %v1891 = vpack.c.b16 %v1708, %v1705
    %v1892 = vpack.c.b16 %v1709, %v1706
    %v1893 = vpack.c.b16 %v1710, %v1707
    %v1894 = vpack.c.b16 %v1708, %v1708
    %v1895 = vpack.c.b16 %v1709, %v1709
    %v1896 = vpack.c.b16 %v1710, %v1710
    %v1897 = vpack.c.b16 %v1696, %v1708
    %v1898 = vpack.c.b16 %v1697, %v1709
    %v1899 = vpack.c.b16 %v1698, %v1710
    %v1900 = vpack.c.b16 %v1711, %v1696
    %v1901 = vpack.c.b16 %v1712, %v1697
    %v1902 = vpack.c.b16 %v1713, %v1698
    %v1903 = vpack.c.b16 %v1711, %v1711
    %v1904 = vpack.c.b16 %v1712, %v1712
    %v1905 = vpack.c.b16 %v1713, %v1713
    %v1906 = vpack.c.b16 %v1714, %v1711
    %v1907 = vpack.c.b16 %v1715, %v1712
    %v1908 = vpack.c.b16 %v1716, %v1713
    %v1909 = vpack.c.b16 %v1714, %v1714
    %v1910 = vpack.c.b16 %v1715, %v1715
    %v1911 = vpack.c.b16 %v1716, %v1716
    %v1912 = vpack.c.b16 %v1717, %v1714
    %v1913 = vpack.c.b16 %v1718, %v1715
    %v1914 = vpack.c.b16 %v1719, %v1716
    %v1915 = vpack.c.b16 %v1717, %v1717
    %v1916 = vpack.c.b16 %v1718, %v1718
    %v1917 = vpack.c.b16 %v1719, %v1719
    %v1918 = vpack.c.b16 %v1720, %v1717
    %v1919 = vpack.c.b16 %v1721, %v1718
    %v1920 = vpack.c.b16 %v1722, %v1719
    %v1921 = vpack.c.b16 %v1720, %v1720
    %v1922 = vpack.c.b16 %v1721, %v1721
    %v1923 = vpack.c.b16 %v1722, %v1722
    %v1924 = vpack.c.b16 %v1696, %v1720
    %v1925 = vpack.c.b16 %v1697, %v1721
    %v1926 = vpack.c.b16 %v1698, %v1722
    %v2125 = vunpack.c.l.b16 %v1723
    %v2126 = vunpack.c.l.b16 %v1724
    %v2127 = vunpack.c.l.b16 %v1725
    %v2128 = vunpack.c.l.b16 %v1726
    %v2129 = vunpack.c.l.b16 %v1727
    %v2130 = vunpack.c.l.b16 %v1728
    %v2131 = vunpack.c.l.b16 %v1729
    %v2132 = vunpack.c.l.b16 %v1730
    %v2133 = vunpack.c.l.b16 %v1731
    %v2134 = vunpack.c.l.b16 %v1732
    %v2135 = vunpack.c.l.b16 %v1733
    %v2136 = vunpack.c.l.b16 %v1734
    %v2137 = vunpack.c.l.b16 %v1735
    %v2138 = vunpack.c.l.b16 %v1736
    %v2139 = vunpack.c.l.b16 %v1737
    %v2140 = vunpack.c.l.b16 %v1738
    %v2141 = vunpack.c.l.b16 %v1739
    %v2142 = vunpack.c.l.b16 %v1740
    %v2143 = vunpack.c.l.b16 %v1741
    %v2144 = vunpack.c.l.b16 %v1742
    %v2145 = vunpack.c.l.b16 %v1743
    %v2146 = vunpack.c.l.b16 %v1744
    %v2147 = vunpack.c.l.b16 %v1745
    %v2148 = vunpack.c.l.b16 %v1746
    %v2149 = vunpack.c.l.b16 %v1747
    %v2150 = vunpack.c.l.b16 %v1748
    %v2151 = vunpack.c.l.b16 %v1749
    %v2152 = vunpack.c.l.b16 %v1750
    %v2153 = vunpack.c.l.b16 %v1751
    %v2154 = vunpack.c.l.b16 %v1752
    %v2155 = vunpack.c.l.b16 %v1753
    %v2156 = vunpack.c.l.b16 %v1754
    %v2157 = vunpack.c.l.b16 %v1755
    %v2158 = vunpack.c.l.b16 %v1756
    %v2159 = vunpack.c.l.b16 %v1757
    %v2160 = vunpack.c.l.b16 %v1758
    %v2161 = vunpack.c.l.b16 %v1759
    %v2162 = vunpack.c.l.b16 %v1760
    %v2163 = vunpack.c.l.b16 %v1761
    %v2164 = vunpack.c.l.b16 %v1762
    %v2165 = vunpack.c.l.b16 %v1763
    %v2166 = vunpack.c.l.b16 %v1764
    %v2167 = vunpack.c.l.b16 %v1765
    %v2168 = vunpack.c.l.b16 %v1766
    %v2169 = vunpack.c.l.b16 %v1767
    %v2170 = vunpack.c.l.b16 %v1768
    %v2171 = vunpack.c.l.b16 %v1769
    %v2172 = vunpack.c.l.b16 %v1770
    %v2173 = vunpack.c.l.b16 %v1771
    %v2174 = vunpack.c.l.b16 %v1772
    %v2175 = vunpack.c.l.b16 %v1773
    %v2176 = vunpack.c.l.b16 %v1774
    %v2177 = vunpack.c.l.b16 %v1775
    %v2178 = vunpack.c.l.b16 %v1776
    %v2179 = vunpack.c.l.b16 %v1777
    %v2180 = vunpack.c.l.b16 %v1778
    %v2181 = vunpack.c.l.b16 %v1779
    %v2182 = vunpack.c.l.b16 %v1780
    %v2183 = vunpack.c.l.b16 %v1781
    %v2184 = vunpack.c.l.b16 %v1782
    %v2185 = vunpack.c.l.b16 %v1783
    %v2186 = vunpack.c.l.b16 %v1784
    %v2187 = vunpack.c.l.b16 %v1785
    %v2188 = vunpack.c.l.b16 %v1786
    %v2189 = vunpack.c.l.b16 %v1787
    %v2190 = vunpack.c.l.b16 %v1788
    %v2191 = vunpack.c.l.b16 %v1789
    %v2192 = vunpack.c.l.b16 %v1790
    %v2193 = vunpack.c.l.b16 %v1791
    %v2194 = vunpack.c.l.b16 %v1792
    %v2195 = vunpack.c.l.b16 %v1793
    %v2196 = vunpack.c.l.b16 %v1794
    %v2197 = vunpack.c.l.b16 %v1795
    %v2198 = vunpack.c.l.b16 %v1796
    %v2199 = vunpack.c.l.b16 %v1797
    %v2200 = vunpack.c.l.b16 %v1798
    %v2201 = vunpack.c.l.b16 %v1799
    %v2202 = vunpack.c.l.b16 %v1800
    %v2203 = vunpack.c.l.b16 %v1801
    %v2204 = vunpack.c.l.b16 %v1802
    %v2205 = vunpack.c.l.b16 %v1803
    %v2206 = vunpack.c.l.b16 %v1804
    %v2207 = vunpack.c.l.b16 %v1805
    %v2208 = vunpack.c.l.b16 %v1806
    %v2209 = vunpack.c.l.b16 %v1807
    %v2210 = vunpack.c.l.b16 %v1808
    %v2211 = vunpack.c.l.b16 %v1809
    %v2212 = vunpack.c.l.b16 %v1810
    %v2213 = vunpack.c.l.b16 %v1811
    %v2214 = vunpack.c.l.b16 %v1812
    %v2215 = vunpack.c.l.b16 %v1813
    %v2216 = vunpack.c.l.b16 %v1814
    %v2217 = vunpack.c.l.b16 %v1815
    %v2218 = vunpack.c.l.b16 %v1816
    %v2219 = vunpack.c.l.b16 %v1817
    %v2220 = vunpack.c.l.b16 %v1818
    %v2221 = vunpack.c.l.b16 %v1819
    %v2222 = vunpack.c.l.b16 %v1820
    %v2223 = vunpack.c.l.b16 %v1821
    %v2224 = vunpack.c.l.b16 %v1822
    %v2225 = vunpack.c.l.b16 %v1823
    %v2226 = vunpack.c.l.b16 %v1824
    %v2227 = vunpack.c.l.b16 %v1825
    %v2228 = vunpack.c.l.b16 %v1826
    %v2229 = vunpack.c.l.b16 %v1827
    %v2230 = vunpack.c.l.b16 %v1828
    %v2231 = vunpack.c.l.b16 %v1829
    %v2232 = vunpack.c.l.b16 %v1830
    %v2233 = vunpack.c.l.b16 %v1831
    %v2234 = vunpack.c.l.b16 %v1832
    %v2235 = vunpack.c.l.b16 %v1833
    %v2236 = vunpack.c.l.b16 %v1834
    %v2237 = vunpack.c.l.b16 %v1835
    %v2238 = vunpack.c.l.b16 %v1836
    %v2239 = vunpack.c.l.b16 %v1837
    %v2240 = vunpack.c.l.b16 %v1838
    %v2241 = vunpack.c.l.b16 %v1839
    %v2242 = vunpack.c.l.b16 %v1840
    %v2243 = vunpack.c.l.b16 %v1841
    %v2244 = vunpack.c.l.b16 %v1842
    %v2245 = vunpack.c.l.b16 %v1843
    %v2246 = vunpack.c.l.b16 %v1844
    %v2247 = vunpack.c.l.b16 %v1845
    %v2248 = vunpack.c.l.b16 %v1846
    %v2249 = vunpack.c.l.b16 %v1847
    %v2250 = vunpack.c.l.b16 %v1848
    %v2251 = vunpack.c.l.b16 %v1849
    %v2252 = vunpack.c.l.b16 %v1850
    %v2253 = vunpack.c.l.b16 %v1851
    %v2254 = vunpack.c.l.b16 %v1852
    %v2255 = vunpack.c.l.b16 %v1853
    %v2256 = vunpack.c.l.b16 %v1854
    %v2257 = vunpack.c.l.b16 %v1855
    %v2258 = vunpack.c.l.b16 %v1856
    %v2259 = vunpack.c.l.b16 %v1857
    %v2260 = vunpack.c.l.b16 %v1858
    %v2261 = vunpack.c.l.b16 %v1859
    %v2262 = vunpack.c.l.b16 %v1860
    %v2263 = vunpack.c.l.b16 %v1861
    %v2264 = vunpack.c.l.b16 %v1862
    %v2265 = vunpack.c.l.b16 %v1863
    %v2266 = vunpack.c.l.b16 %v1864
    %v2267 = vunpack.c.l.b16 %v1865
    %v2268 = vunpack.c.l.b16 %v1866
    %v2269 = vpack.c.b16 %v2126, %v2125
    %v2270 = vpack.c.b16 %v2128, %v2127
    %v2271 = vpack.c.b16 %v2130, %v2129
    %v2272 = vpack.c.b16 %v2132, %v2131
    %v2273 = vpack.c.b16 %v2134, %v2133
    %v2274 = vpack.c.b16 %v2136, %v2135
    %v2275 = vpack.c.b16 %v2138, %v2137
    %v2276 = vpack.c.b16 %v2140, %v2139
    %v2277 = vpack.c.b16 %v2142, %v2141
    %v2278 = vpack.c.b16 %v2144, %v2143
    %v2279 = vpack.c.b16 %v2146, %v2145
    %v2280 = vpack.c.b16 %v2148, %v2147
    %v2281 = vpack.c.b16 %v2150, %v2149
    %v2282 = vpack.c.b16 %v2152, %v2151
    %v2283 = vpack.c.b16 %v2154, %v2153
    %v2284 = vpack.c.b16 %v2156, %v2155
    %v2285 = vpack.c.b16 %v2158, %v2157
    %v2286 = vpack.c.b16 %v2160, %v2159
    %v2287 = vpack.c.b16 %v2162, %v2161
    %v2288 = vpack.c.b16 %v2164, %v2163
    %v2289 = vpack.c.b16 %v2166, %v2165
    %v2290 = vpack.c.b16 %v2168, %v2167
    %v2291 = vpack.c.b16 %v2170, %v2169
    %v2292 = vpack.c.b16 %v2172, %v2171
    %v2293 = vpack.c.b16 %v2174, %v2173
    %v2294 = vpack.c.b16 %v2176, %v2175
    %v2295 = vpack.c.b16 %v2178, %v2177
    %v2296 = vpack.c.b16 %v2180, %v2179
    %v2297 = vpack.c.b16 %v2182, %v2181
    %v2298 = vpack.c.b16 %v2184, %v2183
    %v2299 = vpack.c.b16 %v2186, %v2185
    %v2300 = vpack.c.b16 %v2188, %v2187
    %v2301 = vpack.c.b16 %v2190, %v2189
    %v2302 = vpack.c.b16 %v2192, %v2191
    %v2303 = vpack.c.b16 %v2194, %v2193
    %v2304 = vpack.c.b16 %v2196, %v2195
    %v2305 = vpack.c.b16 %v2198, %v2197
    %v2306 = vpack.c.b16 %v2200, %v2199
    %v2307 = vpack.c.b16 %v2202, %v2201
    %v2308 = vpack.c.b16 %v2204, %v2203
    %v2309 = vpack.c.b16 %v2206, %v2205
    %v2310 = vpack.c.b16 %v2208, %v2207
    %v2311 = vpack.c.b16 %v2210, %v2209
    %v2312 = vpack.c.b16 %v2212, %v2211
    %v2313 = vpack.c.b16 %v2214, %v2213
    %v2314 = vpack.c.b16 %v2216, %v2215
    %v2315 = vpack.c.b16 %v2218, %v2217
    %v2316 = vpack.c.b16 %v2220, %v2219
    %v2317 = vpack.c.b16 %v2222, %v2221
    %v2318 = vpack.c.b16 %v2224, %v2223
    %v2319 = vpack.c.b16 %v2226, %v2225
    %v2320 = vpack.c.b16 %v2228, %v2227
    %v2321 = vpack.c.b16 %v2230, %v2229
    %v2322 = vpack.c.b16 %v2232, %v2231
    %v2323 = vpack.c.b16 %v2234, %v2233
    %v2324 = vpack.c.b16 %v2236, %v2235
    %v2325 = vpack.c.b16 %v2238, %v2237
    %v2326 = vpack.c.b16 %v2240, %v2239
    %v2327 = vpack.c.b16 %v2242, %v2241
    %v2328 = vpack.c.b16 %v2244, %v2243
    %v2329 = vpack.c.b16 %v2246, %v2245
    %v2330 = vpack.c.b16 %v2248, %v2247
    %v2331 = vpack.c.b16 %v2250, %v2249
    %v2332 = vpack.c.b16 %v2252, %v2251
    %v2333 = vpack.c.b16 %v2254, %v2253
    %v2334 = vpack.c.b16 %v2256, %v2255
    %v2335 = vpack.c.b16 %v2258, %v2257
    %v2336 = vpack.c.b16 %v2260, %v2259
    %v2337 = vpack.c.b16 %v2262, %v2261
    %v2338 = vpack.c.b16 %v2264, %v2263
    %v2339 = vpack.c.b16 %v2266, %v2265
    %v2340 = vpack.c.b16 %v2268, %v2267
    %2413 = vmatprep.subr.bf16.mxu0 0
    %2414 = vmatpush1.bf16.msra.mxu0 %v2269
    %2415 = vmatprep.subr.bf16.mxu0 0
    %2416 = vmatpush1.bf16.msra.mxu0 %v2270
    %2417 = vmatprep.subr.bf16.mxu0 0
    %2418 = vmatpush1.bf16.msra.mxu0 %v2271
    %2419 = vmatprep.subr.bf16.mxu0 0
    %2420 = vmatpush1.bf16.msra.mxu0 %v2272
    %2421 = vmatprep.subr.bf16.mxu0 0
    %2422 = vmatpush1.bf16.msra.mxu0 %v2273
    %2423 = vmatprep.subr.bf16.mxu0 0
    %2424 = vmatpush1.bf16.msra.mxu0 %v2274
    %2425 = vmatprep.subr.bf16.mxu0 0
    %2426 = vmatpush1.bf16.msra.mxu0 %v2275
    %2427 = vmatprep.subr.bf16.mxu0 0
    %2428 = vmatpush1.bf16.msra.mxu0 %v2276
    %2429 = vmatprep.subr.bf16.mxu0 0
    %2430 = vmatpush1.bf16.msra.mxu0 %v2277
    %2431 = vmatprep.subr.bf16.mxu0 0
    %2432 = vmatpush1.bf16.msra.mxu0 %v2278
    %2433 = vmatprep.subr.bf16.mxu0 0
    %2434 = vmatpush1.bf16.msra.mxu0 %v2279
    %2435 = vmatprep.subr.bf16.mxu0 0
    %2436 = vmatpush1.bf16.msra.mxu0 %v2280
    %2437 = vmatprep.subr.bf16.mxu0 0
    %2438 = vmatpush1.bf16.msra.mxu0 %v2281
    %2439 = vmatprep.subr.bf16.mxu0 0
    %2440 = vmatpush1.bf16.msra.mxu0 %v2282
    %2441 = vmatprep.subr.bf16.mxu0 0
    %2442 = vmatpush1.bf16.msra.mxu0 %v2283
    %2443 = vmatprep.subr.bf16.mxu0 0
    %2444 = vmatpush1.bf16.msra.mxu0 %v2284
    %2445 = vmatprep.mubr.bf16.mxu0 %v1874
    %2446 = vmatmul.mubr.bf16.gmra.mrb[0].mxu0 %v1873
    %v2447 = vpop.f32.mrb[0].mxu0
    %v2448 = vadd.f32 %v1871, %v2447
    %v2449 = vpop.f32.mrb[0].mxu0
    %v2450 = vpop.f32.mrb[0].mxu0
    %v2451 = vadd.f32 %v1871, %v2450
    %v2452 = vpop.f32.mrb[0].mxu0
    %2453 = vmatprep.mubr.bf16.mxu0 %v1880
    %2454 = vmatmul.mubr.bf16.gmra.mrb[0].mxu0 %v1879
    %v2455 = vpop.f32.mrb[0].mxu0
    %v2456 = vadd.f32 %v1871, %v2455
    %v2457 = vpop.f32.mrb[0].mxu0
    %v2458 = vpop.f32.mrb[0].mxu0
    %v2459 = vadd.f32 %v1871, %v2458
    %v2460 = vpop.f32.mrb[0].mxu0
    %2461 = vmatprep.mubr.bf16.mxu0 %v1886
    %2462 = vmatmul.mubr.bf16.gmra.mrb[0].mxu0 %v1885
    %v2463 = vpop.f32.mrb[0].mxu0
    %v2464 = vadd.f32 %v1871, %v2463
    %v2465 = vpop.f32.mrb[0].mxu0
    %v2466 = vpop.f32.mrb[0].mxu0
    %v2467 = vadd.f32 %v1871, %v2466
    %v2468 = vpop.f32.mrb[0].mxu0
    %2469 = vmatprep.mubr.bf16.mxu0 %v1892
    %2470 = vmatmul.mubr.bf16.gmra.mrb[0].mxu0 %v1891
    %v2471 = vpop.f32.mrb[0].mxu0
    %v2472 = vadd.f32 %v1871, %v2471
    %v2473 = vpop.f32.mrb[0].mxu0
    %v2474 = vpop.f32.mrb[0].mxu0
    %v2475 = vadd.f32 %v1871, %v2474
    %v2476 = vpop.f32.mrb[0].mxu0
    %2477 = vmatprep.mubr.bf16.mxu0 %v1901
    %2478 = vmatmul.mubr.bf16.gmra.mrb[0].mxu0 %v1900
    %v2479 = vpop.f32.mrb[0].mxu0
    %v2480 = vadd.f32 %v1871, %v2479
    %v2481 = vpop.f32.mrb[0].mxu0
    %v2482 = vpop.f32.mrb[0].mxu0
    %v2483 = vadd.f32 %v1871, %v2482
    %v2484 = vpop.f32.mrb[0].mxu0
    %2485 = vmatprep.mubr.bf16.mxu0 %v1907
    %2486 = vmatmul.mubr.bf16.gmra.mrb[0].mxu0 %v1906
    %v2487 = vpop.f32.mrb[0].mxu0
    %v2488 = vadd.f32 %v1871, %v2487
    %v2489 = vpop.f32.mrb[0].mxu0
    %v2490 = vpop.f32.mrb[0].mxu0
    %v2491 = vadd.f32 %v1871, %v2490
    %v2492 = vpop.f32.mrb[0].mxu0
    %2493 = vmatprep.mubr.bf16.mxu0 %v1913
    %2494 = vmatmul.mubr.bf16.gmra.mrb[0].mxu0 %v1912
    %v2495 = vpop.f32.mrb[0].mxu0
    %v2496 = vadd.f32 %v1871, %v2495
    %v2497 = vpop.f32.mrb[0].mxu0
    %v2498 = vpop.f32.mrb[0].mxu0
    %v2499 = vadd.f32 %v1871, %v2498
    %v2500 = vpop.f32.mrb[0].mxu0
    %2501 = vmatprep.mubr.bf16.mxu0 %v1919
    %2502 = vmatmul.mubr.bf16.gmra.mrb[0].mxu0 %v1918
    %v2503 = vpop.f32.mrb[0].mxu0
    %v2504 = vadd.f32 %v1871, %v2503
    %v2505 = vpop.f32.mrb[0].mxu0
    %v2506 = vpop.f32.mrb[0].mxu0
    %v2507 = vadd.f32 %v1871, %v2506
    %v2508 = vpop.f32.mrb[0].mxu0
    %2509 = vdwg.mxu0
    %2510 = vmatprep.subr.bf16.mxu0 0
    %2511 = vmatpush1.bf16.msra.mxu0 %v2285
    %2512 = vmatprep.subr.bf16.mxu0 0
    %2513 = vmatpush1.bf16.msra.mxu0 %v2286
    %2514 = vmatprep.subr.bf16.mxu0 0
    %2515 = vmatpush1.bf16.msra.mxu0 %v2287
    %2516 = vmatprep.subr.bf16.mxu0 0
    %2517 = vmatpush1.bf16.msra.mxu0 %v2288
    %2518 = vmatprep.subr.bf16.mxu0 0
    %2519 = vmatpush1.bf16.msra.mxu0 %v2289
    %2520 = vmatprep.subr.bf16.mxu0 0
    %2521 = vmatpush1.bf16.msra.mxu0 %v2290
    %2522 = vmatprep.subr.bf16.mxu0 0
    %2523 = vmatpush1.bf16.msra.mxu0 %v2291
    %2524 = vmatprep.subr.bf16.mxu0 0
    %2525 = vmatpush1.bf16.msra.mxu0 %v2292
    %2526 = vmatprep.subr.bf16.mxu0 0
    %2527 = vmatpush1.bf16.msra.mxu0 %v2293
    %2528 = vmatprep.subr.bf16.mxu0 0
    %2529 = vmatpush1.bf16.msra.mxu0 %v2294
    %2530 = vmatprep.subr.bf16.mxu0 0
    %2531 = vmatpush1.bf16.msra.mxu0 %v2295
    %2532 = vmatprep.subr.bf16.mxu0 0
    %2533 = vmatpush1.bf16.msra.mxu0 %v2296
    %2534 = vmatprep.subr.bf16.mxu0 0
    %2535 = vmatpush1.bf16.msra.mxu0 %v2297
    %2536 = vmatprep.subr.bf16.mxu0 0
    %2537 = vmatpush1.bf16.msra.mxu0 %v2298
    %2538 = vmatprep.subr.bf16.mxu0 0
    %2539 = vmatpush1.bf16.msra.mxu0 %v2299
    %2540 = vmatprep.subr.bf16.mxu0 0
    %2541 = vmatpush1.bf16.msra.mxu0 %v2300
    %2542 = vmatprep.mubr.bf16.mxu0 %v1876
    %2543 = vmatmul.mubr.bf16.gmra.mrb[0].mxu0 %v1875
    %v2544 = vpop.f32.mrb[0].mxu0
    %v2545 = vadd.f32 %v2448, %v2544
    %v2546 = vpop.f32.mrb[0].mxu0
    %v2547 = vpop.f32.mrb[0].mxu0
    %v2548 = vadd.f32 %v2451, %v2547
    %v2549 = vpop.f32.mrb[0].mxu0
    %2550 = vmatprep.mubr.bf16.mxu0 %v1882
    %2551 = vmatmul.mubr.bf16.gmra.mrb[0].mxu0 %v1881
    %v2552 = vpop.f32.mrb[0].mxu0
    %v2553 = vadd.f32 %v2456, %v2552
    %v2554 = vpop.f32.mrb[0].mxu0
    %v2555 = vpop.f32.mrb[0].mxu0
    %v2556 = vadd.f32 %v2459, %v2555
    %v2557 = vpop.f32.mrb[0].mxu0
    %2558 = vmatprep.mubr.bf16.mxu0 %v1888
    %2559 = vmatmul.mubr.bf16.gmra.mrb[0].mxu0 %v1887
    %v2560 = vpop.f32.mrb[0].mxu0
    %v2561 = vadd.f32 %v2464, %v2560
    %v2562 = vpop.f32.mrb[0].mxu0
    %v2563 = vpop.f32.mrb[0].mxu0
    %v2564 = vadd.f32 %v2467, %v2563
    %v2565 = vpop.f32.mrb[0].mxu0
    %2566 = vmatprep.mubr.bf16.mxu0 %v1894
    %2567 = vmatmul.mubr.bf16.gmra.mrb[0].mxu0 %v1893
    %v2568 = vpop.f32.mrb[0].mxu0
    %v2569 = vadd.f32 %v2472, %v2568
    %v2570 = vpop.f32.mrb[0].mxu0
    %v2571 = vpop.f32.mrb[0].mxu0
    %v2572 = vadd.f32 %v2475, %v2571
    %v2573 = vpop.f32.mrb[0].mxu0
    %2574 = vmatprep.mubr.bf16.mxu0 %v1903
    %2575 = vmatmul.mubr.bf16.gmra.mrb[0].mxu0 %v1902
    %v2576 = vpop.f32.mrb[0].mxu0
    %v2577 = vadd.f32 %v2480, %v2576
    %v2578 = vpop.f32.mrb[0].mxu0
    %v2579 = vpop.f32.mrb[0].mxu0
    %v2580 = vadd.f32 %v2483, %v2579
    %v2581 = vpop.f32.mrb[0].mxu0
    %2582 = vmatprep.mubr.bf16.mxu0 %v1909
    %2583 = vmatmul.mubr.bf16.gmra.mrb[0].mxu0 %v1908
    %v2584 = vpop.f32.mrb[0].mxu0
    %v2585 = vadd.f32 %v2488, %v2584
    %v2586 = vpop.f32.mrb[0].mxu0
    %v2587 = vpop.f32.mrb[0].mxu0
    %v2588 = vadd.f32 %v2491, %v2587
    %v2589 = vpop.f32.mrb[0].mxu0
    %2590 = vmatprep.mubr.bf16.mxu0 %v1915
    %2591 = vmatmul.mubr.bf16.gmra.mrb[0].mxu0 %v1914
    %v2592 = vpop.f32.mrb[0].mxu0
    %v2593 = vadd.f32 %v2496, %v2592
    %v2594 = vpop.f32.mrb[0].mxu0
    %v2595 = vpop.f32.mrb[0].mxu0
    %v2596 = vadd.f32 %v2499, %v2595
    %v2597 = vpop.f32.mrb[0].mxu0
    %2598 = vmatprep.mubr.bf16.mxu0 %v1921
    %2599 = vmatmul.mubr.bf16.gmra.mrb[0].mxu0 %v1920
    %v2600 = vpop.f32.mrb[0].mxu0
    %v2601 = vadd.f32 %v2504, %v2600
    %v2602 = vpop.f32.mrb[0].mxu0
    %v2603 = vpop.f32.mrb[0].mxu0
    %v2604 = vadd.f32 %v2507, %v2603
    %v2605 = vpop.f32.mrb[0].mxu0
    %2606 = vdwg.mxu0
    %2607 = vmatprep.subr.bf16.mxu0 0
    %2608 = vmatpush1.bf16.msra.mxu0 %v2301
    %2609 = vmatprep.subr.bf16.mxu0 0
    %2610 = vmatpush1.bf16.msra.mxu0 %v2302
    %2611 = vmatprep.subr.bf16.mxu0 0
    %2612 = vmatpush1.bf16.msra.mxu0 %v2303
    %2613 = vmatprep.subr.bf16.mxu0 0
    %2614 = vmatpush1.bf16.msra.mxu0 %v2304
    %2615 = vmatprep.subr.bf16.mxu0 0
    %2616 = vmatpush1.bf16.msra.mxu0 %v2305
    %2617 = vmatprep.subr.bf16.mxu0 0
    %2618 = vmatpush1.bf16.msra.mxu0 %v2306
    %2619 = vmatprep.subr.bf16.mxu0 0
    %2620 = vmatpush1.bf16.msra.mxu0 %v2307
    %2621 = vmatprep.subr.bf16.mxu0 0
    %2622 = vmatpush1.bf16.msra.mxu0 %v2308
    %2623 = vmatprep.subr.bf16.mxu0 0
    %2624 = vmatpush1.bf16.msra.mxu0 %v2309
    %2625 = vmatprep.subr.bf16.mxu0 0
    %2626 = vmatpush1.bf16.msra.mxu0 %v2310
    %2627 = vmatprep.subr.bf16.mxu0 0
    %2628 = vmatpush1.bf16.msra.mxu0 %v2311
    %2629 = vmatprep.subr.bf16.mxu0 0
    %2630 = vmatpush1.bf16.msra.mxu0 %v2312
    %2631 = vmatprep.subr.bf16.mxu0 0
    %2632 = vmatpush1.bf16.msra.mxu0 %v2313
    %2633 = vmatprep.subr.bf16.mxu0 0
    %2634 = vmatpush1.bf16.msra.mxu0 %v2314
    %2635 = vmatprep.subr.bf16.mxu0 0
    %2636 = vmatpush1.bf16.msra.mxu0 %v2315
    %2637 = vmatprep.subr.bf16.mxu0 0
    %2638 = vmatpush1.bf16.msra.mxu0 %v2316
    %2639 = vmatprep.mubr.bf16.mxu0 %v1878
    %2640 = vmatmul.mubr.bf16.gmra.mrb[0].mxu0 %v1877
    %v2641 = vpop.f32.mrb[0].mxu0
    %v2642 = vadd.f32 %v2545, %v2641
    %v2643 = vpop.f32.mrb[0].mxu0
    %v2644 = vpop.f32.mrb[0].mxu0
    %v2645 = vadd.f32 %v2548, %v2644
    %v2646 = vpop.f32.mrb[0].mxu0
    %2647 = vmatprep.mubr.bf16.mxu0 %v1884
    %2648 = vmatmul.mubr.bf16.gmra.mrb[0].mxu0 %v1883
    %v2649 = vpop.f32.mrb[0].mxu0
    %v2650 = vadd.f32 %v2553, %v2649
    %v2651 = vpop.f32.mrb[0].mxu0
    %v2652 = vpop.f32.mrb[0].mxu0
    %v2653 = vadd.f32 %v2556, %v2652
    %v2654 = vpop.f32.mrb[0].mxu0
    %2655 = vmatprep.mubr.bf16.mxu0 %v1890
    %2656 = vmatmul.mubr.bf16.gmra.mrb[0].mxu0 %v1889
    %v2657 = vpop.f32.mrb[0].mxu0
    %v2658 = vadd.f32 %v2561, %v2657
    %v2659 = vpop.f32.mrb[0].mxu0
    %v2660 = vpop.f32.mrb[0].mxu0
    %v2661 = vadd.f32 %v2564, %v2660
    %v2662 = vpop.f32.mrb[0].mxu0
    %2663 = vmatprep.mubr.bf16.mxu0 %v1896
    %2664 = vmatmul.mubr.bf16.gmra.mrb[0].mxu0 %v1895
    %v2665 = vpop.f32.mrb[0].mxu0
    %v2666 = vadd.f32 %v2569, %v2665
    %v2667 = vpop.f32.mrb[0].mxu0
    %v2668 = vpop.f32.mrb[0].mxu0
    %v2669 = vadd.f32 %v2572, %v2668
    %v2670 = vpop.f32.mrb[0].mxu0
    %2671 = vmatprep.mubr.bf16.mxu0 %v1905
    %2672 = vmatmul.mubr.bf16.gmra.mrb[0].mxu0 %v1904
    %v2673 = vpop.f32.mrb[0].mxu0
    %v2674 = vadd.f32 %v2577, %v2673
    %v2675 = vpop.f32.mrb[0].mxu0
    %v2676 = vpop.f32.mrb[0].mxu0
    %v2677 = vadd.f32 %v2580, %v2676
    %v2678 = vpop.f32.mrb[0].mxu0
    %2679 = vmatprep.mubr.bf16.mxu0 %v1911
    %2680 = vmatmul.mubr.bf16.gmra.mrb[0].mxu0 %v1910
    %v2681 = vpop.f32.mrb[0].mxu0
    %v2682 = vadd.f32 %v2585, %v2681
    %v2683 = vpop.f32.mrb[0].mxu0
    %v2684 = vpop.f32.mrb[0].mxu0
    %v2685 = vadd.f32 %v2588, %v2684
    %v2686 = vpop.f32.mrb[0].mxu0
    %2687 = vmatprep.mubr.bf16.mxu0 %v1917
    %2688 = vmatmul.mubr.bf16.gmra.mrb[0].mxu0 %v1916
    %v2689 = vpop.f32.mrb[0].mxu0
    %v2690 = vadd.f32 %v2593, %v2689
    %v2691 = vpop.f32.mrb[0].mxu0
    %v2692 = vpop.f32.mrb[0].mxu0
    %v2693 = vadd.f32 %v2596, %v2692
    %v2694 = vpop.f32.mrb[0].mxu0
    %2695 = vmatprep.mubr.bf16.mxu0 %v1923
    %2696 = vmatmul.mubr.bf16.gmra.mrb[0].mxu0 %v1922
    %v2697 = vpop.f32.mrb[0].mxu0
    %v2698 = vadd.f32 %v2601, %v2697
    %v2699 = vpop.f32.mrb[0].mxu0
    %v2700 = vpop.f32.mrb[0].mxu0
    %v2701 = vadd.f32 %v2604, %v2700
    %v2702 = vpop.f32.mrb[0].mxu0
    %2703 = vdwg.mxu0
    %2704 = vmatprep.subr.bf16.mxu0 0
    %2705 = vmatpush1.bf16.msra.mxu0 %v2317
    %2706 = vmatprep.subr.bf16.mxu0 0
    %2707 = vmatpush1.bf16.msra.mxu0 %v2318
    %2708 = vmatprep.subr.bf16.mxu0 0
    %2709 = vmatpush1.bf16.msra.mxu0 %v2319
    %2710 = vmatprep.subr.bf16.mxu0 0
    %2711 = vmatpush1.bf16.msra.mxu0 %v2320
    %2712 = vmatprep.subr.bf16.mxu0 0
    %2713 = vmatpush1.bf16.msra.mxu0 %v2321
    %2714 = vmatprep.subr.bf16.mxu0 0
    %2715 = vmatpush1.bf16.msra.mxu0 %v2322
    %2716 = vmatprep.subr.bf16.mxu0 0
    %2717 = vmatpush1.bf16.msra.mxu0 %v2323
    %2718 = vmatprep.subr.bf16.mxu0 0
    %2719 = vmatpush1.bf16.msra.mxu0 %v2324
    %2720 = vmatprep.subr.bf16.mxu0 0
    %2721 = vmatpush1.bf16.msra.mxu0 %v2325
    %2722 = vmatprep.subr.bf16.mxu0 0
    %2723 = vmatpush1.bf16.msra.mxu0 %v2326
    %2724 = vmatprep.subr.bf16.mxu0 0
    %2725 = vmatpush1.bf16.msra.mxu0 %v2327
    %2726 = vmatprep.subr.bf16.mxu0 0
    %2727 = vmatpush1.bf16.msra.mxu0 %v2328
    %2728 = vmatprep.subr.bf16.mxu0 0
    %2729 = vmatpush1.bf16.msra.mxu0 %v2329
    %2730 = vmatprep.subr.bf16.mxu0 0
    %2731 = vmatpush1.bf16.msra.mxu0 %v2330
    %2732 = vmatprep.subr.bf16.mxu0 0
    %2733 = vmatpush1.bf16.msra.mxu0 %v2331
    %2734 = vmatprep.subr.bf16.mxu0 0
    %2735 = vmatpush1.bf16.msra.mxu0 %v2332
    %2736 = vmatprep.mubr.bf16.mxu0 %v1880
    %2737 = vmatmul.mubr.bf16.gmra.mrb[0].mxu0 %v1879
    %v2738 = vpop.f32.mrb[0].mxu0
    %v2739 = vadd.f32 %v2642, %v2738
    %v2740 = vpop.f32.mrb[0].mxu0
    %v2741 = vpop.f32.mrb[0].mxu0
    %v2742 = vadd.f32 %v2645, %v2741
    %v2743 = vpop.f32.mrb[0].mxu0
    %2744 = vmatprep.mubr.bf16.mxu0 %v1886
    %2745 = vmatmul.mubr.bf16.gmra.mrb[0].mxu0 %v1885
    %v2746 = vpop.f32.mrb[0].mxu0
    %v2747 = vadd.f32 %v2650, %v2746
    %v2748 = vpop.f32.mrb[0].mxu0
    %v2749 = vpop.f32.mrb[0].mxu0
    %v2750 = vadd.f32 %v2653, %v2749
    %v2751 = vpop.f32.mrb[0].mxu0
    %2752 = vmatprep.mubr.bf16.mxu0 %v1892
    %2753 = vmatmul.mubr.bf16.gmra.mrb[0].mxu0 %v1891
    %v2754 = vpop.f32.mrb[0].mxu0
    %v2755 = vadd.f32 %v2658, %v2754
    %v2756 = vpop.f32.mrb[0].mxu0
    %v2757 = vpop.f32.mrb[0].mxu0
    %v2758 = vadd.f32 %v2661, %v2757
    %v2759 = vpop.f32.mrb[0].mxu0
    %2760 = vmatprep.mubr.bf16.mxu0 %v1898
    %2761 = vmatmul.mubr.bf16.gmra.mrb[0].mxu0 %v1897
    %v2762 = vpop.f32.mrb[0].mxu0
    %v2763 = vadd.f32 %v2666, %v2762
    %v2764 = vpop.f32.mrb[0].mxu0
    %v2765 = vpop.f32.mrb[0].mxu0
    %v2766 = vadd.f32 %v2669, %v2765
    %v2767 = vpop.f32.mrb[0].mxu0
    %2768 = vmatprep.mubr.bf16.mxu0 %v1907
    %2769 = vmatmul.mubr.bf16.gmra.mrb[0].mxu0 %v1906
    %v2770 = vpop.f32.mrb[0].mxu0
    %v2771 = vadd.f32 %v2674, %v2770
    %v2772 = vpop.f32.mrb[0].mxu0
    %v2773 = vpop.f32.mrb[0].mxu0
    %v2774 = vadd.f32 %v2677, %v2773
    %v2775 = vpop.f32.mrb[0].mxu0
    %2776 = vmatprep.mubr.bf16.mxu0 %v1913
    %2777 = vmatmul.mubr.bf16.gmra.mrb[0].mxu0 %v1912
    %v2778 = vpop.f32.mrb[0].mxu0
    %v2779 = vadd.f32 %v2682, %v2778
    %v2780 = vpop.f32.mrb[0].mxu0
    %v2781 = vpop.f32.mrb[0].mxu0
    %v2782 = vadd.f32 %v2685, %v2781
    %v2783 = vpop.f32.mrb[0].mxu0
    %2784 = vmatprep.mubr.bf16.mxu0 %v1919
    %2785 = vmatmul.mubr.bf16.gmra.mrb[0].mxu0 %v1918
    %v2786 = vpop.f32.mrb[0].mxu0
    %v2787 = vadd.f32 %v2690, %v2786
    %v2788 = vpop.f32.mrb[0].mxu0
    %v2789 = vpop.f32.mrb[0].mxu0
    %v2790 = vadd.f32 %v2693, %v2789
    %v2791 = vpop.f32.mrb[0].mxu0
    %2792 = vmatprep.mubr.bf16.mxu0 %v1925
    %2793 = vmatmul.mubr.bf16.gmra.mrb[0].mxu0 %v1924
    %v2794 = vpop.f32.mrb[0].mxu0
    %v2795 = vadd.f32 %v2698, %v2794
    %v2796 = vpop.f32.mrb[0].mxu0
    %v2797 = vpop.f32.mrb[0].mxu0
    %v2798 = vadd.f32 %v2701, %v2797
    %v2799 = vpop.f32.mrb[0].mxu0
    %2800 = vdwg.mxu0
    %2801 = vmatprep.subr.bf16.mxu0 0
    %2802 = vmatpush1.bf16.msra.mxu0 %v2333
    %2803 = vmatprep.subr.bf16.mxu0 0
    %2804 = vmatpush1.bf16.msra.mxu0 %v2334
    %2805 = vmatprep.subr.bf16.mxu0 0
    %2806 = vmatpush1.bf16.msra.mxu0 %v2335
    %2807 = vmatprep.subr.bf16.mxu0 0
    %2808 = vmatpush1.bf16.msra.mxu0 %v2336
    %2809 = vmatprep.subr.bf16.mxu0 0
    %2810 = vmatpush1.bf16.msra.mxu0 %v2337
    %2811 = vmatprep.subr.bf16.mxu0 0
    %2812 = vmatpush1.bf16.msra.mxu0 %v2338
    %2813 = vmatprep.subr.bf16.mxu0 0
    %2814 = vmatpush1.bf16.msra.mxu0 %v2339
    %2815 = vmatprep.subr.bf16.mxu0 0
    %2816 = vmatpush1.bf16.msra.mxu0 %v2340
    %2817 = vmatprep.subr.bf16.mxu0 0
    %2818 = vmatpush1.bf16.msra.mxu0 0
    %2819 = vmatprep.subr.bf16.mxu0 0
    %2820 = vmatpush1.bf16.msra.mxu0 0
    %2821 = vmatprep.subr.bf16.mxu0 0
    %2822 = vmatpush1.bf16.msra.mxu0 0
    %2823 = vmatprep.subr.bf16.mxu0 0
    %2824 = vmatpush1.bf16.msra.mxu0 0
    %2825 = vmatprep.subr.bf16.mxu0 0
    %2826 = vmatpush1.bf16.msra.mxu0 0
    %2827 = vmatprep.subr.bf16.mxu0 0
    %2828 = vmatpush1.bf16.msra.mxu0 0
    %2829 = vmatprep.subr.bf16.mxu0 0
    %2830 = vmatpush1.bf16.msra.mxu0 0
    %2831 = vmatprep.subr.bf16.mxu0 0
    %2832 = vmatpush1.bf16.msra.mxu0 0
    %2833 = vmatprep.mubr.bf16.mxu0 0
    %2834 = vmatmul.mubr.bf16.gmra.mrb[0].mxu0 %v1881
    %v2835 = vpop.f32.mrb[0].mxu0
    %v2836 = vadd.f32 %v2739, %v2835
    %v2837 = vpop.f32.mrb[0].mxu0
    %v2838 = vpop.f32.mrb[0].mxu0
    %v2839 = vadd.f32 %v2742, %v2838
    %v2840 = vpop.f32.mrb[0].mxu0
    %2841 = vmatprep.mubr.bf16.mxu0 0
    %2842 = vmatmul.mubr.bf16.gmra.mrb[0].mxu0 %v1887
    %v2843 = vpop.f32.mrb[0].mxu0
    %v2844 = vadd.f32 %v2747, %v2843
    %v2845 = vpop.f32.mrb[0].mxu0
    %v2846 = vpop.f32.mrb[0].mxu0
    %v2847 = vadd.f32 %v2750, %v2846
    %v2848 = vpop.f32.mrb[0].mxu0
    %2849 = vmatprep.mubr.bf16.mxu0 0
    %2850 = vmatmul.mubr.bf16.gmra.mrb[0].mxu0 %v1893
    %v2851 = vpop.f32.mrb[0].mxu0
    %v2852 = vadd.f32 %v2755, %v2851
    %v2853 = vpop.f32.mrb[0].mxu0
    %v2854 = vpop.f32.mrb[0].mxu0
    %v2855 = vadd.f32 %v2758, %v2854
    %v2856 = vpop.f32.mrb[0].mxu0
    %2857 = vmatprep.mubr.bf16.mxu0 0
    %2858 = vmatmul.mubr.bf16.gmra.mrb[0].mxu0 %v1899
    %v2859 = vpop.f32.mrb[0].mxu0
    %v2860 = vadd.f32 %v2763, %v2859
    %v2861 = vpop.f32.mrb[0].mxu0
    %v2862 = vpop.f32.mrb[0].mxu0
    %v2863 = vadd.f32 %v2766, %v2862
    %v2864 = vpop.f32.mrb[0].mxu0
    %2865 = vmatprep.mubr.bf16.mxu0 0
    %2866 = vmatmul.mubr.bf16.gmra.mrb[0].mxu0 %v1908
    %v2867 = vpop.f32.mrb[0].mxu0
    %v2868 = vadd.f32 %v2771, %v2867
    %v2869 = vpop.f32.mrb[0].mxu0
    %v2870 = vpop.f32.mrb[0].mxu0
    %v2871 = vadd.f32 %v2774, %v2870
    %v2872 = vpop.f32.mrb[0].mxu0
    %2873 = vmatprep.mubr.bf16.mxu0 0
    %2874 = vmatmul.mubr.bf16.gmra.mrb[0].mxu0 %v1914
    %v2875 = vpop.f32.mrb[0].mxu0
    %v2876 = vadd.f32 %v2779, %v2875
    %v2877 = vpop.f32.mrb[0].mxu0
    %v2878 = vpop.f32.mrb[0].mxu0
    %v2879 = vadd.f32 %v2782, %v2878
    %v2880 = vpop.f32.mrb[0].mxu0
    %2881 = vmatprep.mubr.bf16.mxu0 0
    %2882 = vmatmul.mubr.bf16.gmra.mrb[0].mxu0 %v1920
    %v2883 = vpop.f32.mrb[0].mxu0
    %v2884 = vadd.f32 %v2787, %v2883
    %v2885 = vpop.f32.mrb[0].mxu0
    %v2886 = vpop.f32.mrb[0].mxu0
    %v2887 = vadd.f32 %v2790, %v2886
    %v2888 = vpop.f32.mrb[0].mxu0
    %2889 = vmatprep.mubr.bf16.mxu0 0
    %2890 = vmatmul.mubr.bf16.gmra.mrb[0].mxu0 %v1926
    %v2891 = vpop.f32.mrb[0].mxu0
    %v2892 = vadd.f32 %v2795, %v2891
    %v2893 = vpop.f32.mrb[0].mxu0
    %v2894 = vpop.f32.mrb[0].mxu0
    %v2895 = vadd.f32 %v2798, %v2894
    %v2896 = vpop.f32.mrb[0].mxu0
    %2897 = vdwg.mxu0
    %v2898 = vld [vmem:[%s7] sm:$0x1]
    %v2899 = vld [vmem:[%s7 + $0x1] sm:$0x1]
    %v2900 = vld [vmem:[%s8] sm:$0x1]
    %v2901 = vld [vmem:[%s8 + $0x1] sm:$0x1]
    %v2902 = vadd.f32 %v2836, %v2839
    %v2903 = vadd.f32 %v2902, %v2844
    %v2904 = vadd.f32 %v2903, %v2847
    %v2905 = vadd.f32 %v2904, %v2852
    %v2906 = vadd.f32 %v2905, %v2855
    %v2907 = vadd.f32 %v2906, %v2860
    %v2908 = vadd.f32 %v2907, %v2863
    %v2909 = vadd.f32 %v2908, %v2868
    %v2910 = vadd.f32 %v2909, %v2871
    %v2911 = vadd.f32 %v2910, %v2876
    %v2912 = vadd.f32 %v2911, %v2879
    %v2913 = vadd.f32 %v2912, %v2884
    %v2914 = vadd.f32 %v2913, %v2887
    %v2915 = vadd.f32 %v2914, %v2892
    %v2916 = vadd.f32 %v2915, %v2895
    %v2917 = vrot.slane %v2916, 4
    %v2918 = vadd.f32 %v2916, %v2917
    %v2919 = vrot.slane %v2918, 2
    %v2920 = vadd.f32 %v2918, %v2919
    %v2921 = vrot.slane %v2920, 1
    %v2922 = vadd.f32 %v2920, %v2921
    %v2923 = vmul.f32 %v2922, 0.0078125
    %v2924 = vmul.f32 %v2836, %v2836
    %v2925 = vmul.f32 %v2839, %v2839
    %v2926 = vmul.f32 %v2844, %v2844
    %v2927 = vmul.f32 %v2847, %v2847
    %v2928 = vmul.f32 %v2852, %v2852
    %v2929 = vmul.f32 %v2855, %v2855
    %v2930 = vmul.f32 %v2860, %v2860
    %v2931 = vmul.f32 %v2863, %v2863
    %v2932 = vmul.f32 %v2868, %v2868
    %v2933 = vmul.f32 %v2871, %v2871
    %v2934 = vmul.f32 %v2876, %v2876
    %v2935 = vmul.f32 %v2879, %v2879
    %v2936 = vmul.f32 %v2884, %v2884
    %v2937 = vmul.f32 %v2887, %v2887
    %v2938 = vmul.f32 %v2892, %v2892
    %v2939 = vmul.f32 %v2895, %v2895
    %v2940 = vadd.f32 %v2924, %v2925
    %v2941 = vadd.f32 %v2940, %v2926
    %v2942 = vadd.f32 %v2941, %v2927
    %v2943 = vadd.f32 %v2942, %v2928
    %v2944 = vadd.f32 %v2943, %v2929
    %v2945 = vadd.f32 %v2944, %v2930
    %v2946 = vadd.f32 %v2945, %v2931
    %v2947 = vadd.f32 %v2946, %v2932
    %v2948 = vadd.f32 %v2947, %v2933
    %v2949 = vadd.f32 %v2948, %v2934
    %v2950 = vadd.f32 %v2949, %v2935
    %v2951 = vadd.f32 %v2950, %v2936
    %v2952 = vadd.f32 %v2951, %v2937
    %v2953 = vadd.f32 %v2952, %v2938
    %v2954 = vadd.f32 %v2953, %v2939
    %v2955 = vrot.slane %v2954, 4
    %v2956 = vadd.f32 %v2954, %v2955
    %v2957 = vrot.slane %v2956, 2
    %v2958 = vadd.f32 %v2956, %v2957
    %v2959 = vrot.slane %v2958, 1
    %v2960 = vadd.f32 %v2958, %v2959
    %v2961 = vmul.f32 %v2960, 0.0078125
    %v2962 = vmul.f32 %v2923, %v2923
    %v2963 = vsub.f32 %v2961, %v2962
    %v2964 = vadd.f32 %v2963, 1e-05
    %v2965 = vrsqrt.pop %v2964
    %v2966 = vmul.f32 %v2898, %v2965
    %v2967 = vmul.f32 %v2899, %v2965
    %v2968 = vmul.f32 %v2923, %v2966
    %v2969 = vmul.f32 %v2923, %v2967
    %v2970 = vsub.f32 %v2900, %v2968
    %v2971 = vsub.f32 %v2901, %v2969
    %v2974 = vlaneseq
    %v2975 = vshrl.u32 %v2974, 7
    %v2976 = vsub.s32 0, %v2975
    %v2977 = vrot.slane %v2966, %v2976
    %v2978 = vlaneseq
    %v2979 = vshrl.u32 %v2978, 7
    %v2980 = vsub.s32 0, %v2979
    %v2981 = vrot.slane %v2967, %v2980
    %v2984 = vmul.f32 %v2836, %v2977
    %v2985 = vmul.f32 %v2839, %v2977
    %v2986 = vmul.f32 %v2844, %v2977
    %v2987 = vmul.f32 %v2847, %v2977
    %v2988 = vmul.f32 %v2852, %v2977
    %v2989 = vmul.f32 %v2855, %v2977
    %v2990 = vmul.f32 %v2860, %v2977
    %v2991 = vmul.f32 %v2863, %v2977
    %v2992 = vmul.f32 %v2868, %v2981
    %v2993 = vmul.f32 %v2871, %v2981
    %v2994 = vmul.f32 %v2876, %v2981
    %v2995 = vmul.f32 %v2879, %v2981
    %v2996 = vmul.f32 %v2884, %v2981
    %v2997 = vmul.f32 %v2887, %v2981
    %v2998 = vmul.f32 %v2892, %v2981
    %v2999 = vmul.f32 %v2895, %v2981
    %v3002 = vlaneseq
    %v3003 = vshrl.u32 %v3002, 7
    %v3004 = vsub.s32 0, %v3003
    %v3005 = vrot.slane %v2970, %v3004
    %v3006 = vlaneseq
    %v3007 = vshrl.u32 %v3006, 7
    %v3008 = vsub.s32 0, %v3007
    %v3009 = vrot.slane %v2971, %v3008
    %v3012 = vadd.f32 %v2984, %v3005
    %v3013 = vadd.f32 %v2985, %v3005
    %v3014 = vadd.f32 %v2986, %v3005
    %v3015 = vadd.f32 %v2987, %v3005
    %v3016 = vadd.f32 %v2988, %v3005
    %v3017 = vadd.f32 %v2989, %v3005
    %v3018 = vadd.f32 %v2990, %v3005
    %v3019 = vadd.f32 %v2991, %v3005
    %v3020 = vadd.f32 %v2992, %v3009
    %v3021 = vadd.f32 %v2993, %v3009
    %v3022 = vadd.f32 %v2994, %v3009
    %v3023 = vadd.f32 %v2995, %v3009
    %v3024 = vadd.f32 %v2996, %v3009
    %v3025 = vadd.f32 %v2997, %v3009
    %v3026 = vadd.f32 %v2998, %v3009
    %v3027 = vadd.f32 %v2999, %v3009
    %v3028 = vmul.f32 %v3012, 0.2
    %v3029 = vmul.f32 %v3013, 0.2
    %v3030 = vmul.f32 %v3014, 0.2
    %v3031 = vmul.f32 %v3015, 0.2
    %v3032 = vmul.f32 %v3016, 0.2
    %v3033 = vmul.f32 %v3017, 0.2
    %v3034 = vmul.f32 %v3018, 0.2
    %v3035 = vmul.f32 %v3019, 0.2
    %v3036 = vmul.f32 %v3020, 0.2
    %v3037 = vmul.f32 %v3021, 0.2
    %v3038 = vmul.f32 %v3022, 0.2
    %v3039 = vmul.f32 %v3023, 0.2
    %v3040 = vmul.f32 %v3024, 0.2
    %v3041 = vmul.f32 %v3025, 0.2
    %v3042 = vmul.f32 %v3026, 0.2
    %v3043 = vmul.f32 %v3027, 0.2
    %v3044 = vmax.f32 %v3012, %v3028
    %v3045 = vmax.f32 %v3013, %v3029
    %v3046 = vmax.f32 %v3014, %v3030
    %v3047 = vmax.f32 %v3015, %v3031
    %v3048 = vmax.f32 %v3016, %v3032
    %v3049 = vmax.f32 %v3017, %v3033
    %v3050 = vmax.f32 %v3018, %v3034
    %v3051 = vmax.f32 %v3019, %v3035
    %v3052 = vmax.f32 %v3020, %v3036
    %v3053 = vmax.f32 %v3021, %v3037
    %v3054 = vmax.f32 %v3022, %v3038
    %v3055 = vmax.f32 %v3023, %v3039
    %v3056 = vmax.f32 %v3024, %v3040
    %v3057 = vmax.f32 %v3025, %v3041
    %v3058 = vmax.f32 %v3026, %v3042
    %v3059 = vmax.f32 %v3027, %v3043
    %v3076 = vcombine.high %v3044, %v3044
    %v3078 = vunpack.c.l.s4 1966171168
    %v3079 = vunpack.c.0.s8 %v3078
    %v3080 = vlaneseq
    %v3081 = vshrl.u32 %v3080, 7
    %v3082 = vsub.s32 %v3079, %v3081
    %v3083 = vrot.slane %v3044, %v3082
    %v3085 = vunpack.c.l.s4 1966171168
    %v3086 = vunpack.c.0.s8 %v3085
    %v3087 = vlaneseq
    %v3088 = vshrl.u32 %v3087, 7
    %v3089 = vsub.s32 %v3086, %v3088
    %v3090 = vrot.slane %v3076, %v3089
    %v3091 = vcombine.high %v3083, %v3083
    %v3092 = vcombine.high %v3090, %v3090
    %v3094 = vunpack.c.l.s4 1966171168
    %v3095 = vunpack.c.0.s8 %v3094
    %v3096 = vlaneseq
    %v3097 = vshrl.u32 %v3096, 7
    %v3098 = vsub.s32 %v3095, %v3097
    %v3099 = vrot.slane %v3083, %v3098
    %v3101 = vunpack.c.l.s4 1966171168
    %v3102 = vunpack.c.0.s8 %v3101
    %v3103 = vlaneseq
    %v3104 = vshrl.u32 %v3103, 7
    %v3105 = vsub.s32 %v3102, %v3104
    %v3106 = vrot.slane %v3090, %v3105
    %v3108 = vunpack.c.l.s4 1966171168
    %v3109 = vunpack.c.0.s8 %v3108
    %v3110 = vlaneseq
    %v3111 = vshrl.u32 %v3110, 7
    %v3112 = vsub.s32 %v3109, %v3111
    %v3113 = vrot.slane %v3091, %v3112
    %v3115 = vunpack.c.l.s4 1966171168
    %v3116 = vunpack.c.0.s8 %v3115
    %v3117 = vlaneseq
    %v3118 = vshrl.u32 %v3117, 7
    %v3119 = vsub.s32 %v3116, %v3118
    %v3120 = vrot.slane %v3092, %v3119
    %v3121 = vcombine.high %v3099, %v3099
    %v3122 = vcombine.high %v3106, %v3106
    %v3123 = vcombine.high %v3113, %v3113
    %v3124 = vcombine.high %v3120, %v3120
    %v3125 = vcombine.high %v3045, %v3045
    %v3127 = vunpack.c.l.s4 1966171168
    %v3128 = vunpack.c.0.s8 %v3127
    %v3129 = vlaneseq
    %v3130 = vshrl.u32 %v3129, 7
    %v3131 = vsub.s32 %v3128, %v3130
    %v3132 = vrot.slane %v3045, %v3131
    %v3134 = vunpack.c.l.s4 1966171168
    %v3135 = vunpack.c.0.s8 %v3134
    %v3136 = vlaneseq
    %v3137 = vshrl.u32 %v3136, 7
    %v3138 = vsub.s32 %v3135, %v3137
    %v3139 = vrot.slane %v3125, %v3138
    %v3140 = vcombine.high %v3132, %v3132
    %v3141 = vcombine.high %v3139, %v3139
    %v3143 = vunpack.c.l.s4 1966171168
    %v3144 = vunpack.c.0.s8 %v3143
    %v3145 = vlaneseq
    %v3146 = vshrl.u32 %v3145, 7
    %v3147 = vsub.s32 %v3144, %v3146
    %v3148 = vrot.slane %v3132, %v3147
    %v3150 = vunpack.c.l.s4 1966171168
    %v3151 = vunpack.c.0.s8 %v3150
    %v3152 = vlaneseq
    %v3153 = vshrl.u32 %v3152, 7
    %v3154 = vsub.s32 %v3151, %v3153
    %v3155 = vrot.slane %v3139, %v3154
    %v3157 = vunpack.c.l.s4 1966171168
    %v3158 = vunpack.c.0.s8 %v3157
    %v3159 = vlaneseq
    %v3160 = vshrl.u32 %v3159, 7
    %v3161 = vsub.s32 %v3158, %v3160
    %v3162 = vrot.slane %v3140, %v3161
    %v3164 = vunpack.c.l.s4 1966171168
    %v3165 = vunpack.c.0.s8 %v3164
    %v3166 = vlaneseq
    %v3167 = vshrl.u32 %v3166, 7
    %v3168 = vsub.s32 %v3165, %v3167
    %v3169 = vrot.slane %v3141, %v3168
    %v3170 = vcombine.high %v3148, %v3148
    %v3171 = vcombine.high %v3155, %v3155
    %v3172 = vcombine.high %v3162, %v3162
    %v3173 = vcombine.high %v3169, %v3169
    %v3174 = vcombine.high %v3046, %v3046
    %v3176 = vunpack.c.l.s4 1966171168
    %v3177 = vunpack.c.0.s8 %v3176
    %v3178 = vlaneseq
    %v3179 = vshrl.u32 %v3178, 7
    %v3180 = vsub.s32 %v3177, %v3179
    %v3181 = vrot.slane %v3046, %v3180
    %v3183 = vunpack.c.l.s4 1966171168
    %v3184 = vunpack.c.0.s8 %v3183
    %v3185 = vlaneseq
    %v3186 = vshrl.u32 %v3185, 7
    %v3187 = vsub.s32 %v3184, %v3186
    %v3188 = vrot.slane %v3174, %v3187
    %v3189 = vcombine.high %v3181, %v3181
    %v3190 = vcombine.high %v3188, %v3188
    %v3192 = vunpack.c.l.s4 1966171168
    %v3193 = vunpack.c.0.s8 %v3192
    %v3194 = vlaneseq
    %v3195 = vshrl.u32 %v3194, 7
    %v3196 = vsub.s32 %v3193, %v3195
    %v3197 = vrot.slane %v3181, %v3196
    %v3199 = vunpack.c.l.s4 1966171168
    %v3200 = vunpack.c.0.s8 %v3199
    %v3201 = vlaneseq
    %v3202 = vshrl.u32 %v3201, 7
    %v3203 = vsub.s32 %v3200, %v3202
    %v3204 = vrot.slane %v3188, %v3203
    %v3206 = vunpack.c.l.s4 1966171168
    %v3207 = vunpack.c.0.s8 %v3206
    %v3208 = vlaneseq
    %v3209 = vshrl.u32 %v3208, 7
    %v3210 = vsub.s32 %v3207, %v3209
    %v3211 = vrot.slane %v3189, %v3210
    %v3213 = vunpack.c.l.s4 1966171168
    %v3214 = vunpack.c.0.s8 %v3213
    %v3215 = vlaneseq
    %v3216 = vshrl.u32 %v3215, 7
    %v3217 = vsub.s32 %v3214, %v3216
    %v3218 = vrot.slane %v3190, %v3217
    %v3219 = vcombine.high %v3197, %v3197
    %v3220 = vcombine.high %v3204, %v3204
    %v3221 = vcombine.high %v3211, %v3211
    %v3222 = vcombine.high %v3218, %v3218
    %v3223 = vcombine.high %v3047, %v3047
    %v3225 = vunpack.c.l.s4 1966171168
    %v3226 = vunpack.c.0.s8 %v3225
    %v3227 = vlaneseq
    %v3228 = vshrl.u32 %v3227, 7
    %v3229 = vsub.s32 %v3226, %v3228
    %v3230 = vrot.slane %v3047, %v3229
    %v3232 = vunpack.c.l.s4 1966171168
    %v3233 = vunpack.c.0.s8 %v3232
    %v3234 = vlaneseq
    %v3235 = vshrl.u32 %v3234, 7
    %v3236 = vsub.s32 %v3233, %v3235
    %v3237 = vrot.slane %v3223, %v3236
    %v3238 = vcombine.high %v3230, %v3230
    %v3239 = vcombine.high %v3237, %v3237
    %v3241 = vunpack.c.l.s4 1966171168
    %v3242 = vunpack.c.0.s8 %v3241
    %v3243 = vlaneseq
    %v3244 = vshrl.u32 %v3243, 7
    %v3245 = vsub.s32 %v3242, %v3244
    %v3246 = vrot.slane %v3230, %v3245
    %v3248 = vunpack.c.l.s4 1966171168
    %v3249 = vunpack.c.0.s8 %v3248
    %v3250 = vlaneseq
    %v3251 = vshrl.u32 %v3250, 7
    %v3252 = vsub.s32 %v3249, %v3251
    %v3253 = vrot.slane %v3237, %v3252
    %v3255 = vunpack.c.l.s4 1966171168
    %v3256 = vunpack.c.0.s8 %v3255
    %v3257 = vlaneseq
    %v3258 = vshrl.u32 %v3257, 7
    %v3259 = vsub.s32 %v3256, %v3258
    %v3260 = vrot.slane %v3238, %v3259
    %v3262 = vunpack.c.l.s4 1966171168
    %v3263 = vunpack.c.0.s8 %v3262
    %v3264 = vlaneseq
    %v3265 = vshrl.u32 %v3264, 7
    %v3266 = vsub.s32 %v3263, %v3265
    %v3267 = vrot.slane %v3239, %v3266
    %v3268 = vcombine.high %v3246, %v3246
    %v3269 = vcombine.high %v3253, %v3253
    %v3270 = vcombine.high %v3260, %v3260
    %v3271 = vcombine.high %v3267, %v3267
    %v3272 = vcombine.high %v3048, %v3048
    %v3274 = vunpack.c.l.s4 1966171168
    %v3275 = vunpack.c.0.s8 %v3274
    %v3276 = vlaneseq
    %v3277 = vshrl.u32 %v3276, 7
    %v3278 = vsub.s32 %v3275, %v3277
    %v3279 = vrot.slane %v3048, %v3278
    %v3281 = vunpack.c.l.s4 1966171168
    %v3282 = vunpack.c.0.s8 %v3281
    %v3283 = vlaneseq
    %v3284 = vshrl.u32 %v3283, 7
    %v3285 = vsub.s32 %v3282, %v3284
    %v3286 = vrot.slane %v3272, %v3285
    %v3287 = vcombine.high %v3279, %v3279
    %v3288 = vcombine.high %v3286, %v3286
    %v3290 = vunpack.c.l.s4 1966171168
    %v3291 = vunpack.c.0.s8 %v3290
    %v3292 = vlaneseq
    %v3293 = vshrl.u32 %v3292, 7
    %v3294 = vsub.s32 %v3291, %v3293
    %v3295 = vrot.slane %v3279, %v3294
    %v3297 = vunpack.c.l.s4 1966171168
    %v3298 = vunpack.c.0.s8 %v3297
    %v3299 = vlaneseq
    %v3300 = vshrl.u32 %v3299, 7
    %v3301 = vsub.s32 %v3298, %v3300
    %v3302 = vrot.slane %v3286, %v3301
    %v3304 = vunpack.c.l.s4 1966171168
    %v3305 = vunpack.c.0.s8 %v3304
    %v3306 = vlaneseq
    %v3307 = vshrl.u32 %v3306, 7
    %v3308 = vsub.s32 %v3305, %v3307
    %v3309 = vrot.slane %v3287, %v3308
    %v3311 = vunpack.c.l.s4 1966171168
    %v3312 = vunpack.c.0.s8 %v3311
    %v3313 = vlaneseq
    %v3314 = vshrl.u32 %v3313, 7
    %v3315 = vsub.s32 %v3312, %v3314
    %v3316 = vrot.slane %v3288, %v3315
    %v3317 = vcombine.high %v3295, %v3295
    %v3318 = vcombine.high %v3302, %v3302
    %v3319 = vcombine.high %v3309, %v3309
    %v3320 = vcombine.high %v3316, %v3316
    %v3321 = vcombine.high %v3049, %v3049
    %v3323 = vunpack.c.l.s4 1966171168
    %v3324 = vunpack.c.0.s8 %v3323
    %v3325 = vlaneseq
    %v3326 = vshrl.u32 %v3325, 7
    %v3327 = vsub.s32 %v3324, %v3326
    %v3328 = vrot.slane %v3049, %v3327
    %v3330 = vunpack.c.l.s4 1966171168
    %v3331 = vunpack.c.0.s8 %v3330
    %v3332 = vlaneseq
    %v3333 = vshrl.u32 %v3332, 7
    %v3334 = vsub.s32 %v3331, %v3333
    %v3335 = vrot.slane %v3321, %v3334
    %v3336 = vcombine.high %v3328, %v3328
    %v3337 = vcombine.high %v3335, %v3335
    %v3339 = vunpack.c.l.s4 1966171168
    %v3340 = vunpack.c.0.s8 %v3339
    %v3341 = vlaneseq
    %v3342 = vshrl.u32 %v3341, 7
    %v3343 = vsub.s32 %v3340, %v3342
    %v3344 = vrot.slane %v3328, %v3343
    %v3346 = vunpack.c.l.s4 1966171168
    %v3347 = vunpack.c.0.s8 %v3346
    %v3348 = vlaneseq
    %v3349 = vshrl.u32 %v3348, 7
    %v3350 = vsub.s32 %v3347, %v3349
    %v3351 = vrot.slane %v3335, %v3350
    %v3353 = vunpack.c.l.s4 1966171168
    %v3354 = vunpack.c.0.s8 %v3353
    %v3355 = vlaneseq
    %v3356 = vshrl.u32 %v3355, 7
    %v3357 = vsub.s32 %v3354, %v3356
    %v3358 = vrot.slane %v3336, %v3357
    %v3360 = vunpack.c.l.s4 1966171168
    %v3361 = vunpack.c.0.s8 %v3360
    %v3362 = vlaneseq
    %v3363 = vshrl.u32 %v3362, 7
    %v3364 = vsub.s32 %v3361, %v3363
    %v3365 = vrot.slane %v3337, %v3364
    %v3366 = vcombine.high %v3344, %v3344
    %v3367 = vcombine.high %v3351, %v3351
    %v3368 = vcombine.high %v3358, %v3358
    %v3369 = vcombine.high %v3365, %v3365
    %v3370 = vcombine.high %v3050, %v3050
    %v3372 = vunpack.c.l.s4 1966171168
    %v3373 = vunpack.c.0.s8 %v3372
    %v3374 = vlaneseq
    %v3375 = vshrl.u32 %v3374, 7
    %v3376 = vsub.s32 %v3373, %v3375
    %v3377 = vrot.slane %v3050, %v3376
    %v3379 = vunpack.c.l.s4 1966171168
    %v3380 = vunpack.c.0.s8 %v3379
    %v3381 = vlaneseq
    %v3382 = vshrl.u32 %v3381, 7
    %v3383 = vsub.s32 %v3380, %v3382
    %v3384 = vrot.slane %v3370, %v3383
    %v3385 = vcombine.high %v3377, %v3377
    %v3386 = vcombine.high %v3384, %v3384
    %v3388 = vunpack.c.l.s4 1966171168
    %v3389 = vunpack.c.0.s8 %v3388
    %v3390 = vlaneseq
    %v3391 = vshrl.u32 %v3390, 7
    %v3392 = vsub.s32 %v3389, %v3391
    %v3393 = vrot.slane %v3377, %v3392
    %v3395 = vunpack.c.l.s4 1966171168
    %v3396 = vunpack.c.0.s8 %v3395
    %v3397 = vlaneseq
    %v3398 = vshrl.u32 %v3397, 7
    %v3399 = vsub.s32 %v3396, %v3398
    %v3400 = vrot.slane %v3384, %v3399
    %v3402 = vunpack.c.l.s4 1966171168
    %v3403 = vunpack.c.0.s8 %v3402
    %v3404 = vlaneseq
    %v3405 = vshrl.u32 %v3404, 7
    %v3406 = vsub.s32 %v3403, %v3405
    %v3407 = vrot.slane %v3385, %v3406
    %v3409 = vunpack.c.l.s4 1966171168
    %v3410 = vunpack.c.0.s8 %v3409
    %v3411 = vlaneseq
    %v3412 = vshrl.u32 %v3411, 7
    %v3413 = vsub.s32 %v3410, %v3412
    %v3414 = vrot.slane %v3386, %v3413
    %v3415 = vcombine.high %v3393, %v3393
    %v3416 = vcombine.high %v3400, %v3400
    %v3417 = vcombine.high %v3407, %v3407
    %v3418 = vcombine.high %v3414, %v3414
    %v3419 = vcombine.high %v3051, %v3051
    %v3421 = vunpack.c.l.s4 1966171168
    %v3422 = vunpack.c.0.s8 %v3421
    %v3423 = vlaneseq
    %v3424 = vshrl.u32 %v3423, 7
    %v3425 = vsub.s32 %v3422, %v3424
    %v3426 = vrot.slane %v3051, %v3425
    %v3428 = vunpack.c.l.s4 1966171168
    %v3429 = vunpack.c.0.s8 %v3428
    %v3430 = vlaneseq
    %v3431 = vshrl.u32 %v3430, 7
    %v3432 = vsub.s32 %v3429, %v3431
    %v3433 = vrot.slane %v3419, %v3432
    %v3434 = vcombine.high %v3426, %v3426
    %v3435 = vcombine.high %v3433, %v3433
    %v3437 = vunpack.c.l.s4 1966171168
    %v3438 = vunpack.c.0.s8 %v3437
    %v3439 = vlaneseq
    %v3440 = vshrl.u32 %v3439, 7
    %v3441 = vsub.s32 %v3438, %v3440
    %v3442 = vrot.slane %v3426, %v3441
    %v3444 = vunpack.c.l.s4 1966171168
    %v3445 = vunpack.c.0.s8 %v3444
    %v3446 = vlaneseq
    %v3447 = vshrl.u32 %v3446, 7
    %v3448 = vsub.s32 %v3445, %v3447
    %v3449 = vrot.slane %v3433, %v3448
    %v3451 = vunpack.c.l.s4 1966171168
    %v3452 = vunpack.c.0.s8 %v3451
    %v3453 = vlaneseq
    %v3454 = vshrl.u32 %v3453, 7
    %v3455 = vsub.s32 %v3452, %v3454
    %v3456 = vrot.slane %v3434, %v3455
    %v3458 = vunpack.c.l.s4 1966171168
    %v3459 = vunpack.c.0.s8 %v3458
    %v3460 = vlaneseq
    %v3461 = vshrl.u32 %v3460, 7
    %v3462 = vsub.s32 %v3459, %v3461
    %v3463 = vrot.slane %v3435, %v3462
    %v3464 = vcombine.high %v3442, %v3442
    %v3465 = vcombine.high %v3449, %v3449
    %v3466 = vcombine.high %v3456, %v3456
    %v3467 = vcombine.high %v3463, %v3463
    %v3468 = vcombine.high %v3052, %v3052
    %v3470 = vunpack.c.l.s4 1966171168
    %v3471 = vunpack.c.0.s8 %v3470
    %v3472 = vlaneseq
    %v3473 = vshrl.u32 %v3472, 7
    %v3474 = vsub.s32 %v3471, %v3473
    %v3475 = vrot.slane %v3052, %v3474
    %v3477 = vunpack.c.l.s4 1966171168
    %v3478 = vunpack.c.0.s8 %v3477
    %v3479 = vlaneseq
    %v3480 = vshrl.u32 %v3479, 7
    %v3481 = vsub.s32 %v3478, %v3480
    %v3482 = vrot.slane %v3468, %v3481
    %v3483 = vcombine.high %v3475, %v3475
    %v3484 = vcombine.high %v3482, %v3482
    %v3486 = vunpack.c.l.s4 1966171168
    %v3487 = vunpack.c.0.s8 %v3486
    %v3488 = vlaneseq
    %v3489 = vshrl.u32 %v3488, 7
    %v3490 = vsub.s32 %v3487, %v3489
    %v3491 = vrot.slane %v3475, %v3490
    %v3493 = vunpack.c.l.s4 1966171168
    %v3494 = vunpack.c.0.s8 %v3493
    %v3495 = vlaneseq
    %v3496 = vshrl.u32 %v3495, 7
    %v3497 = vsub.s32 %v3494, %v3496
    %v3498 = vrot.slane %v3482, %v3497
    %v3500 = vunpack.c.l.s4 1966171168
    %v3501 = vunpack.c.0.s8 %v3500
    %v3502 = vlaneseq
    %v3503 = vshrl.u32 %v3502, 7
    %v3504 = vsub.s32 %v3501, %v3503
    %v3505 = vrot.slane %v3483, %v3504
    %v3507 = vunpack.c.l.s4 1966171168
    %v3508 = vunpack.c.0.s8 %v3507
    %v3509 = vlaneseq
    %v3510 = vshrl.u32 %v3509, 7
    %v3511 = vsub.s32 %v3508, %v3510
    %v3512 = vrot.slane %v3484, %v3511
    %v3513 = vcombine.high %v3491, %v3491
    %v3514 = vcombine.high %v3498, %v3498
    %v3515 = vcombine.high %v3505, %v3505
    %v3516 = vcombine.high %v3512, %v3512
    %v3517 = vcombine.high %v3053, %v3053
    %v3519 = vunpack.c.l.s4 1966171168
    %v3520 = vunpack.c.0.s8 %v3519
    %v3521 = vlaneseq
    %v3522 = vshrl.u32 %v3521, 7
    %v3523 = vsub.s32 %v3520, %v3522
    %v3524 = vrot.slane %v3053, %v3523
    %v3526 = vunpack.c.l.s4 1966171168
    %v3527 = vunpack.c.0.s8 %v3526
    %v3528 = vlaneseq
    %v3529 = vshrl.u32 %v3528, 7
    %v3530 = vsub.s32 %v3527, %v3529
    %v3531 = vrot.slane %v3517, %v3530
    %v3532 = vcombine.high %v3524, %v3524
    %v3533 = vcombine.high %v3531, %v3531
    %v3535 = vunpack.c.l.s4 1966171168
    %v3536 = vunpack.c.0.s8 %v3535
    %v3537 = vlaneseq
    %v3538 = vshrl.u32 %v3537, 7
    %v3539 = vsub.s32 %v3536, %v3538
    %v3540 = vrot.slane %v3524, %v3539
    %v3542 = vunpack.c.l.s4 1966171168
    %v3543 = vunpack.c.0.s8 %v3542
    %v3544 = vlaneseq
    %v3545 = vshrl.u32 %v3544, 7
    %v3546 = vsub.s32 %v3543, %v3545
    %v3547 = vrot.slane %v3531, %v3546
    %v3549 = vunpack.c.l.s4 1966171168
    %v3550 = vunpack.c.0.s8 %v3549
    %v3551 = vlaneseq
    %v3552 = vshrl.u32 %v3551, 7
    %v3553 = vsub.s32 %v3550, %v3552
    %v3554 = vrot.slane %v3532, %v3553
    %v3556 = vunpack.c.l.s4 1966171168
    %v3557 = vunpack.c.0.s8 %v3556
    %v3558 = vlaneseq
    %v3559 = vshrl.u32 %v3558, 7
    %v3560 = vsub.s32 %v3557, %v3559
    %v3561 = vrot.slane %v3533, %v3560
    %v3562 = vcombine.high %v3540, %v3540
    %v3563 = vcombine.high %v3547, %v3547
    %v3564 = vcombine.high %v3554, %v3554
    %v3565 = vcombine.high %v3561, %v3561
    %v3566 = vcombine.high %v3054, %v3054
    %v3568 = vunpack.c.l.s4 1966171168
    %v3569 = vunpack.c.0.s8 %v3568
    %v3570 = vlaneseq
    %v3571 = vshrl.u32 %v3570, 7
    %v3572 = vsub.s32 %v3569, %v3571
    %v3573 = vrot.slane %v3054, %v3572
    %v3575 = vunpack.c.l.s4 1966171168
    %v3576 = vunpack.c.0.s8 %v3575
    %v3577 = vlaneseq
    %v3578 = vshrl.u32 %v3577, 7
    %v3579 = vsub.s32 %v3576, %v3578
    %v3580 = vrot.slane %v3566, %v3579
    %v3581 = vcombine.high %v3573, %v3573
    %v3582 = vcombine.high %v3580, %v3580
    %v3584 = vunpack.c.l.s4 1966171168
    %v3585 = vunpack.c.0.s8 %v3584
    %v3586 = vlaneseq
    %v3587 = vshrl.u32 %v3586, 7
    %v3588 = vsub.s32 %v3585, %v3587
    %v3589 = vrot.slane %v3573, %v3588
    %v3591 = vunpack.c.l.s4 1966171168
    %v3592 = vunpack.c.0.s8 %v3591
    %v3593 = vlaneseq
    %v3594 = vshrl.u32 %v3593, 7
    %v3595 = vsub.s32 %v3592, %v3594
    %v3596 = vrot.slane %v3580, %v3595
    %v3598 = vunpack.c.l.s4 1966171168
    %v3599 = vunpack.c.0.s8 %v3598
    %v3600 = vlaneseq
    %v3601 = vshrl.u32 %v3600, 7
    %v3602 = vsub.s32 %v3599, %v3601
    %v3603 = vrot.slane %v3581, %v3602
    %v3605 = vunpack.c.l.s4 1966171168
    %v3606 = vunpack.c.0.s8 %v3605
    %v3607 = vlaneseq
    %v3608 = vshrl.u32 %v3607, 7
    %v3609 = vsub.s32 %v3606, %v3608
    %v3610 = vrot.slane %v3582, %v3609
    %v3611 = vcombine.high %v3589, %v3589
    %v3612 = vcombine.high %v3596, %v3596
    %v3613 = vcombine.high %v3603, %v3603
    %v3614 = vcombine.high %v3610, %v3610
    %v3615 = vcombine.high %v3055, %v3055
    %v3617 = vunpack.c.l.s4 1966171168
    %v3618 = vunpack.c.0.s8 %v3617
    %v3619 = vlaneseq
    %v3620 = vshrl.u32 %v3619, 7
    %v3621 = vsub.s32 %v3618, %v3620
    %v3622 = vrot.slane %v3055, %v3621
    %v3624 = vunpack.c.l.s4 1966171168
    %v3625 = vunpack.c.0.s8 %v3624
    %v3626 = vlaneseq
    %v3627 = vshrl.u32 %v3626, 7
    %v3628 = vsub.s32 %v3625, %v3627
    %v3629 = vrot.slane %v3615, %v3628
    %v3630 = vcombine.high %v3622, %v3622
    %v3631 = vcombine.high %v3629, %v3629
    %v3633 = vunpack.c.l.s4 1966171168
    %v3634 = vunpack.c.0.s8 %v3633
    %v3635 = vlaneseq
    %v3636 = vshrl.u32 %v3635, 7
    %v3637 = vsub.s32 %v3634, %v3636
    %v3638 = vrot.slane %v3622, %v3637
    %v3640 = vunpack.c.l.s4 1966171168
    %v3641 = vunpack.c.0.s8 %v3640
    %v3642 = vlaneseq
    %v3643 = vshrl.u32 %v3642, 7
    %v3644 = vsub.s32 %v3641, %v3643
    %v3645 = vrot.slane %v3629, %v3644
    %v3647 = vunpack.c.l.s4 1966171168
    %v3648 = vunpack.c.0.s8 %v3647
    %v3649 = vlaneseq
    %v3650 = vshrl.u32 %v3649, 7
    %v3651 = vsub.s32 %v3648, %v3650
    %v3652 = vrot.slane %v3630, %v3651
    %v3654 = vunpack.c.l.s4 1966171168
    %v3655 = vunpack.c.0.s8 %v3654
    %v3656 = vlaneseq
    %v3657 = vshrl.u32 %v3656, 7
    %v3658 = vsub.s32 %v3655, %v3657
    %v3659 = vrot.slane %v3631, %v3658
    %v3660 = vcombine.high %v3638, %v3638
    %v3661 = vcombine.high %v3645, %v3645
    %v3662 = vcombine.high %v3652, %v3652
    %v3663 = vcombine.high %v3659, %v3659
    %v3664 = vcombine.high %v3056, %v3056
    %v3666 = vunpack.c.l.s4 1966171168
    %v3667 = vunpack.c.0.s8 %v3666
    %v3668 = vlaneseq
    %v3669 = vshrl.u32 %v3668, 7
    %v3670 = vsub.s32 %v3667, %v3669
    %v3671 = vrot.slane %v3056, %v3670
    %v3673 = vunpack.c.l.s4 1966171168
    %v3674 = vunpack.c.0.s8 %v3673
    %v3675 = vlaneseq
    %v3676 = vshrl.u32 %v3675, 7
    %v3677 = vsub.s32 %v3674, %v3676
    %v3678 = vrot.slane %v3664, %v3677
    %v3679 = vcombine.high %v3671, %v3671
    %v3680 = vcombine.high %v3678, %v3678
    %v3682 = vunpack.c.l.s4 1966171168
    %v3683 = vunpack.c.0.s8 %v3682
    %v3684 = vlaneseq
    %v3685 = vshrl.u32 %v3684, 7
    %v3686 = vsub.s32 %v3683, %v3685
    %v3687 = vrot.slane %v3671, %v3686
    %v3689 = vunpack.c.l.s4 1966171168
    %v3690 = vunpack.c.0.s8 %v3689
    %v3691 = vlaneseq
    %v3692 = vshrl.u32 %v3691, 7
    %v3693 = vsub.s32 %v3690, %v3692
    %v3694 = vrot.slane %v3678, %v3693
    %v3696 = vunpack.c.l.s4 1966171168
    %v3697 = vunpack.c.0.s8 %v3696
    %v3698 = vlaneseq
    %v3699 = vshrl.u32 %v3698, 7
    %v3700 = vsub.s32 %v3697, %v3699
    %v3701 = vrot.slane %v3679, %v3700
    %v3703 = vunpack.c.l.s4 1966171168
    %v3704 = vunpack.c.0.s8 %v3703
    %v3705 = vlaneseq
    %v3706 = vshrl.u32 %v3705, 7
    %v3707 = vsub.s32 %v3704, %v3706
    %v3708 = vrot.slane %v3680, %v3707
    %v3709 = vcombine.high %v3687, %v3687
    %v3710 = vcombine.high %v3694, %v3694
    %v3711 = vcombine.high %v3701, %v3701
    %v3712 = vcombine.high %v3708, %v3708
    %v3713 = vcombine.high %v3057, %v3057
    %v3715 = vunpack.c.l.s4 1966171168
    %v3716 = vunpack.c.0.s8 %v3715
    %v3717 = vlaneseq
    %v3718 = vshrl.u32 %v3717, 7
    %v3719 = vsub.s32 %v3716, %v3718
    %v3720 = vrot.slane %v3057, %v3719
    %v3722 = vunpack.c.l.s4 1966171168
    %v3723 = vunpack.c.0.s8 %v3722
    %v3724 = vlaneseq
    %v3725 = vshrl.u32 %v3724, 7
    %v3726 = vsub.s32 %v3723, %v3725
    %v3727 = vrot.slane %v3713, %v3726
    %v3728 = vcombine.high %v3720, %v3720
    %v3729 = vcombine.high %v3727, %v3727
    %v3731 = vunpack.c.l.s4 1966171168
    %v3732 = vunpack.c.0.s8 %v3731
    %v3733 = vlaneseq
    %v3734 = vshrl.u32 %v3733, 7
    %v3735 = vsub.s32 %v3732, %v3734
    %v3736 = vrot.slane %v3720, %v3735
    %v3738 = vunpack.c.l.s4 1966171168
    %v3739 = vunpack.c.0.s8 %v3738
    %v3740 = vlaneseq
    %v3741 = vshrl.u32 %v3740, 7
    %v3742 = vsub.s32 %v3739, %v3741
    %v3743 = vrot.slane %v3727, %v3742
    %v3745 = vunpack.c.l.s4 1966171168
    %v3746 = vunpack.c.0.s8 %v3745
    %v3747 = vlaneseq
    %v3748 = vshrl.u32 %v3747, 7
    %v3749 = vsub.s32 %v3746, %v3748
    %v3750 = vrot.slane %v3728, %v3749
    %v3752 = vunpack.c.l.s4 1966171168
    %v3753 = vunpack.c.0.s8 %v3752
    %v3754 = vlaneseq
    %v3755 = vshrl.u32 %v3754, 7
    %v3756 = vsub.s32 %v3753, %v3755
    %v3757 = vrot.slane %v3729, %v3756
    %v3758 = vcombine.high %v3736, %v3736
    %v3759 = vcombine.high %v3743, %v3743
    %v3760 = vcombine.high %v3750, %v3750
    %v3761 = vcombine.high %v3757, %v3757
    %v3762 = vcombine.high %v3058, %v3058
    %v3764 = vunpack.c.l.s4 1966171168
    %v3765 = vunpack.c.0.s8 %v3764
    %v3766 = vlaneseq
    %v3767 = vshrl.u32 %v3766, 7
    %v3768 = vsub.s32 %v3765, %v3767
    %v3769 = vrot.slane %v3058, %v3768
    %v3771 = vunpack.c.l.s4 1966171168
    %v3772 = vunpack.c.0.s8 %v3771
    %v3773 = vlaneseq
    %v3774 = vshrl.u32 %v3773, 7
    %v3775 = vsub.s32 %v3772, %v3774
    %v3776 = vrot.slane %v3762, %v3775
    %v3777 = vcombine.high %v3769, %v3769
    %v3778 = vcombine.high %v3776, %v3776
    %v3780 = vunpack.c.l.s4 1966171168
    %v3781 = vunpack.c.0.s8 %v3780
    %v3782 = vlaneseq
    %v3783 = vshrl.u32 %v3782, 7
    %v3784 = vsub.s32 %v3781, %v3783
    %v3785 = vrot.slane %v3769, %v3784
    %v3787 = vunpack.c.l.s4 1966171168
    %v3788 = vunpack.c.0.s8 %v3787
    %v3789 = vlaneseq
    %v3790 = vshrl.u32 %v3789, 7
    %v3791 = vsub.s32 %v3788, %v3790
    %v3792 = vrot.slane %v3776, %v3791
    %v3794 = vunpack.c.l.s4 1966171168
    %v3795 = vunpack.c.0.s8 %v3794
    %v3796 = vlaneseq
    %v3797 = vshrl.u32 %v3796, 7
    %v3798 = vsub.s32 %v3795, %v3797
    %v3799 = vrot.slane %v3777, %v3798
    %v3801 = vunpack.c.l.s4 1966171168
    %v3802 = vunpack.c.0.s8 %v3801
    %v3803 = vlaneseq
    %v3804 = vshrl.u32 %v3803, 7
    %v3805 = vsub.s32 %v3802, %v3804
    %v3806 = vrot.slane %v3778, %v3805
    %v3807 = vcombine.high %v3785, %v3785
    %v3808 = vcombine.high %v3792, %v3792
    %v3809 = vcombine.high %v3799, %v3799
    %v3810 = vcombine.high %v3806, %v3806
    %v3811 = vcombine.high %v3059, %v3059
    %v3813 = vunpack.c.l.s4 1966171168
    %v3814 = vunpack.c.0.s8 %v3813
    %v3815 = vlaneseq
    %v3816 = vshrl.u32 %v3815, 7
    %v3817 = vsub.s32 %v3814, %v3816
    %v3818 = vrot.slane %v3059, %v3817
    %v3820 = vunpack.c.l.s4 1966171168
    %v3821 = vunpack.c.0.s8 %v3820
    %v3822 = vlaneseq
    %v3823 = vshrl.u32 %v3822, 7
    %v3824 = vsub.s32 %v3821, %v3823
    %v3825 = vrot.slane %v3811, %v3824
    %v3826 = vcombine.high %v3818, %v3818
    %v3827 = vcombine.high %v3825, %v3825
    %v3829 = vunpack.c.l.s4 1966171168
    %v3830 = vunpack.c.0.s8 %v3829
    %v3831 = vlaneseq
    %v3832 = vshrl.u32 %v3831, 7
    %v3833 = vsub.s32 %v3830, %v3832
    %v3834 = vrot.slane %v3818, %v3833
    %v3836 = vunpack.c.l.s4 1966171168
    %v3837 = vunpack.c.0.s8 %v3836
    %v3838 = vlaneseq
    %v3839 = vshrl.u32 %v3838, 7
    %v3840 = vsub.s32 %v3837, %v3839
    %v3841 = vrot.slane %v3825, %v3840
    %v3843 = vunpack.c.l.s4 1966171168
    %v3844 = vunpack.c.0.s8 %v3843
    %v3845 = vlaneseq
    %v3846 = vshrl.u32 %v3845, 7
    %v3847 = vsub.s32 %v3844, %v3846
    %v3848 = vrot.slane %v3826, %v3847
    %v3850 = vunpack.c.l.s4 1966171168
    %v3851 = vunpack.c.0.s8 %v3850
    %v3852 = vlaneseq
    %v3853 = vshrl.u32 %v3852, 7
    %v3854 = vsub.s32 %v3851, %v3853
    %v3855 = vrot.slane %v3827, %v3854
    %v3856 = vcombine.high %v3834, %v3834
    %v3857 = vcombine.high %v3841, %v3841
    %v3858 = vcombine.high %v3848, %v3848
    %v3859 = vcombine.high %v3855, %v3855
    %v3860 = vlaneseq
    %v3861 = vshrl.u32 %v3860, 7
    %v3862 = vsub.s32 0, %v3861
    %v3863 = vrot.slane %v3099, %v3862
    %v3864 = vlaneseq
    %v3865 = vshrl.u32 %v3864, 7
    %v3866 = vsub.s32 0, %v3865
    %v3867 = vrot.slane %v3113, %v3866
    %v3868 = vlaneseq
    %v3869 = vshrl.u32 %v3868, 7
    %v3870 = vsub.s32 0, %v3869
    %v3871 = vrot.slane %v3121, %v3870
    %v3872 = vlaneseq
    %v3873 = vshrl.u32 %v3872, 7
    %v3874 = vsub.s32 0, %v3873
    %v3875 = vrot.slane %v3123, %v3874
    %v3876 = vlaneseq
    %v3877 = vshrl.u32 %v3876, 7
    %v3878 = vsub.s32 0, %v3877
    %v3879 = vrot.slane %v3106, %v3878
    %v3880 = vlaneseq
    %v3881 = vshrl.u32 %v3880, 7
    %v3882 = vsub.s32 0, %v3881
    %v3883 = vrot.slane %v3120, %v3882
    %v3884 = vlaneseq
    %v3885 = vshrl.u32 %v3884, 7
    %v3886 = vsub.s32 0, %v3885
    %v3887 = vrot.slane %v3122, %v3886
    %v3888 = vlaneseq
    %v3889 = vshrl.u32 %v3888, 7
    %v3890 = vsub.s32 0, %v3889
    %v3891 = vrot.slane %v3124, %v3890
    %v3892 = vlaneseq
    %v3893 = vshrl.u32 %v3892, 7
    %v3894 = vsub.s32 0, %v3893
    %v3895 = vrot.slane %v3148, %v3894
    %v3896 = vlaneseq
    %v3897 = vshrl.u32 %v3896, 7
    %v3898 = vsub.s32 0, %v3897
    %v3899 = vrot.slane %v3162, %v3898
    %v3900 = vlaneseq
    %v3901 = vshrl.u32 %v3900, 7
    %v3902 = vsub.s32 0, %v3901
    %v3903 = vrot.slane %v3170, %v3902
    %v3904 = vlaneseq
    %v3905 = vshrl.u32 %v3904, 7
    %v3906 = vsub.s32 0, %v3905
    %v3907 = vrot.slane %v3172, %v3906
    %v3908 = vlaneseq
    %v3909 = vshrl.u32 %v3908, 7
    %v3910 = vsub.s32 0, %v3909
    %v3911 = vrot.slane %v3155, %v3910
    %v3912 = vlaneseq
    %v3913 = vshrl.u32 %v3912, 7
    %v3914 = vsub.s32 0, %v3913
    %v3915 = vrot.slane %v3169, %v3914
    %v3916 = vlaneseq
    %v3917 = vshrl.u32 %v3916, 7
    %v3918 = vsub.s32 0, %v3917
    %v3919 = vrot.slane %v3171, %v3918
    %v3920 = vlaneseq
    %v3921 = vshrl.u32 %v3920, 7
    %v3922 = vsub.s32 0, %v3921
    %v3923 = vrot.slane %v3173, %v3922
    %v3924 = vlaneseq
    %v3925 = vshrl.u32 %v3924, 7
    %v3926 = vsub.s32 0, %v3925
    %v3927 = vrot.slane %v3197, %v3926
    %v3928 = vlaneseq
    %v3929 = vshrl.u32 %v3928, 7
    %v3930 = vsub.s32 0, %v3929
    %v3931 = vrot.slane %v3211, %v3930
    %v3932 = vlaneseq
    %v3933 = vshrl.u32 %v3932, 7
    %v3934 = vsub.s32 0, %v3933
    %v3935 = vrot.slane %v3219, %v3934
    %v3936 = vlaneseq
    %v3937 = vshrl.u32 %v3936, 7
    %v3938 = vsub.s32 0, %v3937
    %v3939 = vrot.slane %v3221, %v3938
    %v3940 = vlaneseq
    %v3941 = vshrl.u32 %v3940, 7
    %v3942 = vsub.s32 0, %v3941
    %v3943 = vrot.slane %v3204, %v3942
    %v3944 = vlaneseq
    %v3945 = vshrl.u32 %v3944, 7
    %v3946 = vsub.s32 0, %v3945
    %v3947 = vrot.slane %v3218, %v3946
    %v3948 = vlaneseq
    %v3949 = vshrl.u32 %v3948, 7
    %v3950 = vsub.s32 0, %v3949
    %v3951 = vrot.slane %v3220, %v3950
    %v3952 = vlaneseq
    %v3953 = vshrl.u32 %v3952, 7
    %v3954 = vsub.s32 0, %v3953
    %v3955 = vrot.slane %v3222, %v3954
    %v3956 = vlaneseq
    %v3957 = vshrl.u32 %v3956, 7
    %v3958 = vsub.s32 0, %v3957
    %v3959 = vrot.slane %v3246, %v3958
    %v3960 = vlaneseq
    %v3961 = vshrl.u32 %v3960, 7
    %v3962 = vsub.s32 0, %v3961
    %v3963 = vrot.slane %v3260, %v3962
    %v3964 = vlaneseq
    %v3965 = vshrl.u32 %v3964, 7
    %v3966 = vsub.s32 0, %v3965
    %v3967 = vrot.slane %v3268, %v3966
    %v3968 = vlaneseq
    %v3969 = vshrl.u32 %v3968, 7
    %v3970 = vsub.s32 0, %v3969
    %v3971 = vrot.slane %v3270, %v3970
    %v3972 = vlaneseq
    %v3973 = vshrl.u32 %v3972, 7
    %v3974 = vsub.s32 0, %v3973
    %v3975 = vrot.slane %v3253, %v3974
    %v3976 = vlaneseq
    %v3977 = vshrl.u32 %v3976, 7
    %v3978 = vsub.s32 0, %v3977
    %v3979 = vrot.slane %v3267, %v3978
    %v3980 = vlaneseq
    %v3981 = vshrl.u32 %v3980, 7
    %v3982 = vsub.s32 0, %v3981
    %v3983 = vrot.slane %v3269, %v3982
    %v3984 = vlaneseq
    %v3985 = vshrl.u32 %v3984, 7
    %v3986 = vsub.s32 0, %v3985
    %v3987 = vrot.slane %v3271, %v3986
    %v3988 = vlaneseq
    %v3989 = vshrl.u32 %v3988, 7
    %v3990 = vsub.s32 0, %v3989
    %v3991 = vrot.slane %v3295, %v3990
    %v3992 = vlaneseq
    %v3993 = vshrl.u32 %v3992, 7
    %v3994 = vsub.s32 0, %v3993
    %v3995 = vrot.slane %v3309, %v3994
    %v3996 = vlaneseq
    %v3997 = vshrl.u32 %v3996, 7
    %v3998 = vsub.s32 0, %v3997
    %v3999 = vrot.slane %v3317, %v3998
    %v4000 = vlaneseq
    %v4001 = vshrl.u32 %v4000, 7
    %v4002 = vsub.s32 0, %v4001
    %v4003 = vrot.slane %v3319, %v4002
    %v4004 = vlaneseq
    %v4005 = vshrl.u32 %v4004, 7
    %v4006 = vsub.s32 0, %v4005
    %v4007 = vrot.slane %v3302, %v4006
    %v4008 = vlaneseq
    %v4009 = vshrl.u32 %v4008, 7
    %v4010 = vsub.s32 0, %v4009
    %v4011 = vrot.slane %v3316, %v4010
    %v4012 = vlaneseq
    %v4013 = vshrl.u32 %v4012, 7
    %v4014 = vsub.s32 0, %v4013
    %v4015 = vrot.slane %v3318, %v4014
    %v4016 = vlaneseq
    %v4017 = vshrl.u32 %v4016, 7
    %v4018 = vsub.s32 0, %v4017
    %v4019 = vrot.slane %v3320, %v4018
    %v4020 = vlaneseq
    %v4021 = vshrl.u32 %v4020, 7
    %v4022 = vsub.s32 0, %v4021
    %v4023 = vrot.slane %v3344, %v4022
    %v4024 = vlaneseq
    %v4025 = vshrl.u32 %v4024, 7
    %v4026 = vsub.s32 0, %v4025
    %v4027 = vrot.slane %v3358, %v4026
    %v4028 = vlaneseq
    %v4029 = vshrl.u32 %v4028, 7
    %v4030 = vsub.s32 0, %v4029
    %v4031 = vrot.slane %v3366, %v4030
    %v4032 = vlaneseq
    %v4033 = vshrl.u32 %v4032, 7
    %v4034 = vsub.s32 0, %v4033
    %v4035 = vrot.slane %v3368, %v4034
    %v4036 = vlaneseq
    %v4037 = vshrl.u32 %v4036, 7
    %v4038 = vsub.s32 0, %v4037
    %v4039 = vrot.slane %v3351, %v4038
    %v4040 = vlaneseq
    %v4041 = vshrl.u32 %v4040, 7
    %v4042 = vsub.s32 0, %v4041
    %v4043 = vrot.slane %v3365, %v4042
    %v4044 = vlaneseq
    %v4045 = vshrl.u32 %v4044, 7
    %v4046 = vsub.s32 0, %v4045
    %v4047 = vrot.slane %v3367, %v4046
    %v4048 = vlaneseq
    %v4049 = vshrl.u32 %v4048, 7
    %v4050 = vsub.s32 0, %v4049
    %v4051 = vrot.slane %v3369, %v4050
    %v4052 = vlaneseq
    %v4053 = vshrl.u32 %v4052, 7
    %v4054 = vsub.s32 0, %v4053
    %v4055 = vrot.slane %v3393, %v4054
    %v4056 = vlaneseq
    %v4057 = vshrl.u32 %v4056, 7
    %v4058 = vsub.s32 0, %v4057
    %v4059 = vrot.slane %v3407, %v4058
    %v4060 = vlaneseq
    %v4061 = vshrl.u32 %v4060, 7
    %v4062 = vsub.s32 0, %v4061
    %v4063 = vrot.slane %v3415, %v4062
    %v4064 = vlaneseq
    %v4065 = vshrl.u32 %v4064, 7
    %v4066 = vsub.s32 0, %v4065
    %v4067 = vrot.slane %v3417, %v4066
    %v4068 = vlaneseq
    %v4069 = vshrl.u32 %v4068, 7
    %v4070 = vsub.s32 0, %v4069
    %v4071 = vrot.slane %v3400, %v4070
    %v4072 = vlaneseq
    %v4073 = vshrl.u32 %v4072, 7
    %v4074 = vsub.s32 0, %v4073
    %v4075 = vrot.slane %v3414, %v4074
    %v4076 = vlaneseq
    %v4077 = vshrl.u32 %v4076, 7
    %v4078 = vsub.s32 0, %v4077
    %v4079 = vrot.slane %v3416, %v4078
    %v4080 = vlaneseq
    %v4081 = vshrl.u32 %v4080, 7
    %v4082 = vsub.s32 0, %v4081
    %v4083 = vrot.slane %v3418, %v4082
    %v4084 = vlaneseq
    %v4085 = vshrl.u32 %v4084, 7
    %v4086 = vsub.s32 0, %v4085
    %v4087 = vrot.slane %v3442, %v4086
    %v4088 = vlaneseq
    %v4089 = vshrl.u32 %v4088, 7
    %v4090 = vsub.s32 0, %v4089
    %v4091 = vrot.slane %v3456, %v4090
    %v4092 = vlaneseq
    %v4093 = vshrl.u32 %v4092, 7
    %v4094 = vsub.s32 0, %v4093
    %v4095 = vrot.slane %v3464, %v4094
    %v4096 = vlaneseq
    %v4097 = vshrl.u32 %v4096, 7
    %v4098 = vsub.s32 0, %v4097
    %v4099 = vrot.slane %v3466, %v4098
    %v4100 = vlaneseq
    %v4101 = vshrl.u32 %v4100, 7
    %v4102 = vsub.s32 0, %v4101
    %v4103 = vrot.slane %v3449, %v4102
    %v4104 = vlaneseq
    %v4105 = vshrl.u32 %v4104, 7
    %v4106 = vsub.s32 0, %v4105
    %v4107 = vrot.slane %v3463, %v4106
    %v4108 = vlaneseq
    %v4109 = vshrl.u32 %v4108, 7
    %v4110 = vsub.s32 0, %v4109
    %v4111 = vrot.slane %v3465, %v4110
    %v4112 = vlaneseq
    %v4113 = vshrl.u32 %v4112, 7
    %v4114 = vsub.s32 0, %v4113
    %v4115 = vrot.slane %v3467, %v4114
    %v4116 = vlaneseq
    %v4117 = vshrl.u32 %v4116, 7
    %v4118 = vsub.s32 0, %v4117
    %v4119 = vrot.slane %v3491, %v4118
    %v4120 = vlaneseq
    %v4121 = vshrl.u32 %v4120, 7
    %v4122 = vsub.s32 0, %v4121
    %v4123 = vrot.slane %v3505, %v4122
    %v4124 = vlaneseq
    %v4125 = vshrl.u32 %v4124, 7
    %v4126 = vsub.s32 0, %v4125
    %v4127 = vrot.slane %v3513, %v4126
    %v4128 = vlaneseq
    %v4129 = vshrl.u32 %v4128, 7
    %v4130 = vsub.s32 0, %v4129
    %v4131 = vrot.slane %v3515, %v4130
    %v4132 = vlaneseq
    %v4133 = vshrl.u32 %v4132, 7
    %v4134 = vsub.s32 0, %v4133
    %v4135 = vrot.slane %v3498, %v4134
    %v4136 = vlaneseq
    %v4137 = vshrl.u32 %v4136, 7
    %v4138 = vsub.s32 0, %v4137
    %v4139 = vrot.slane %v3512, %v4138
    %v4140 = vlaneseq
    %v4141 = vshrl.u32 %v4140, 7
    %v4142 = vsub.s32 0, %v4141
    %v4143 = vrot.slane %v3514, %v4142
    %v4144 = vlaneseq
    %v4145 = vshrl.u32 %v4144, 7
    %v4146 = vsub.s32 0, %v4145
    %v4147 = vrot.slane %v3516, %v4146
    %v4148 = vlaneseq
    %v4149 = vshrl.u32 %v4148, 7
    %v4150 = vsub.s32 0, %v4149
    %v4151 = vrot.slane %v3540, %v4150
    %v4152 = vlaneseq
    %v4153 = vshrl.u32 %v4152, 7
    %v4154 = vsub.s32 0, %v4153
    %v4155 = vrot.slane %v3554, %v4154
    %v4156 = vlaneseq
    %v4157 = vshrl.u32 %v4156, 7
    %v4158 = vsub.s32 0, %v4157
    %v4159 = vrot.slane %v3562, %v4158
    %v4160 = vlaneseq
    %v4161 = vshrl.u32 %v4160, 7
    %v4162 = vsub.s32 0, %v4161
    %v4163 = vrot.slane %v3564, %v4162
    %v4164 = vlaneseq
    %v4165 = vshrl.u32 %v4164, 7
    %v4166 = vsub.s32 0, %v4165
    %v4167 = vrot.slane %v3547, %v4166
    %v4168 = vlaneseq
    %v4169 = vshrl.u32 %v4168, 7
    %v4170 = vsub.s32 0, %v4169
    %v4171 = vrot.slane %v3561, %v4170
    %v4172 = vlaneseq
    %v4173 = vshrl.u32 %v4172, 7
    %v4174 = vsub.s32 0, %v4173
    %v4175 = vrot.slane %v3563, %v4174
    %v4176 = vlaneseq
    %v4177 = vshrl.u32 %v4176, 7
    %v4178 = vsub.s32 0, %v4177
    %v4179 = vrot.slane %v3565, %v4178
    %v4180 = vlaneseq
    %v4181 = vshrl.u32 %v4180, 7
    %v4182 = vsub.s32 0, %v4181
    %v4183 = vrot.slane %v3589, %v4182
    %v4184 = vlaneseq
    %v4185 = vshrl.u32 %v4184, 7
    %v4186 = vsub.s32 0, %v4185
    %v4187 = vrot.slane %v3603, %v4186
    %v4188 = vlaneseq
    %v4189 = vshrl.u32 %v4188, 7
    %v4190 = vsub.s32 0, %v4189
    %v4191 = vrot.slane %v3611, %v4190
    %v4192 = vlaneseq
    %v4193 = vshrl.u32 %v4192, 7
    %v4194 = vsub.s32 0, %v4193
    %v4195 = vrot.slane %v3613, %v4194
    %v4196 = vlaneseq
    %v4197 = vshrl.u32 %v4196, 7
    %v4198 = vsub.s32 0, %v4197
    %v4199 = vrot.slane %v3596, %v4198
    %v4200 = vlaneseq
    %v4201 = vshrl.u32 %v4200, 7
    %v4202 = vsub.s32 0, %v4201
    %v4203 = vrot.slane %v3610, %v4202
    %v4204 = vlaneseq
    %v4205 = vshrl.u32 %v4204, 7
    %v4206 = vsub.s32 0, %v4205
    %v4207 = vrot.slane %v3612, %v4206
    %v4208 = vlaneseq
    %v4209 = vshrl.u32 %v4208, 7
    %v4210 = vsub.s32 0, %v4209
    %v4211 = vrot.slane %v3614, %v4210
    %v4212 = vlaneseq
    %v4213 = vshrl.u32 %v4212, 7
    %v4214 = vsub.s32 0, %v4213
    %v4215 = vrot.slane %v3638, %v4214
    %v4216 = vlaneseq
    %v4217 = vshrl.u32 %v4216, 7
    %v4218 = vsub.s32 0, %v4217
    %v4219 = vrot.slane %v3652, %v4218
    %v4220 = vlaneseq
    %v4221 = vshrl.u32 %v4220, 7
    %v4222 = vsub.s32 0, %v4221
    %v4223 = vrot.slane %v3660, %v4222
    %v4224 = vlaneseq
    %v4225 = vshrl.u32 %v4224, 7
    %v4226 = vsub.s32 0, %v4225
    %v4227 = vrot.slane %v3662, %v4226
    %v4228 = vlaneseq
    %v4229 = vshrl.u32 %v4228, 7
    %v4230 = vsub.s32 0, %v4229
    %v4231 = vrot.slane %v3645, %v4230
    %v4232 = vlaneseq
    %v4233 = vshrl.u32 %v4232, 7
    %v4234 = vsub.s32 0, %v4233
    %v4235 = vrot.slane %v3659, %v4234
    %v4236 = vlaneseq
    %v4237 = vshrl.u32 %v4236, 7
    %v4238 = vsub.s32 0, %v4237
    %v4239 = vrot.slane %v3661, %v4238
    %v4240 = vlaneseq
    %v4241 = vshrl.u32 %v4240, 7
    %v4242 = vsub.s32 0, %v4241
    %v4243 = vrot.slane %v3663, %v4242
    %v4244 = vlaneseq
    %v4245 = vshrl.u32 %v4244, 7
    %v4246 = vsub.s32 0, %v4245
    %v4247 = vrot.slane %v3687, %v4246
    %v4248 = vlaneseq
    %v4249 = vshrl.u32 %v4248, 7
    %v4250 = vsub.s32 0, %v4249
    %v4251 = vrot.slane %v3701, %v4250
    %v4252 = vlaneseq
    %v4253 = vshrl.u32 %v4252, 7
    %v4254 = vsub.s32 0, %v4253
    %v4255 = vrot.slane %v3709, %v4254
    %v4256 = vlaneseq
    %v4257 = vshrl.u32 %v4256, 7
    %v4258 = vsub.s32 0, %v4257
    %v4259 = vrot.slane %v3711, %v4258
    %v4260 = vlaneseq
    %v4261 = vshrl.u32 %v4260, 7
    %v4262 = vsub.s32 0, %v4261
    %v4263 = vrot.slane %v3694, %v4262
    %v4264 = vlaneseq
    %v4265 = vshrl.u32 %v4264, 7
    %v4266 = vsub.s32 0, %v4265
    %v4267 = vrot.slane %v3708, %v4266
    %v4268 = vlaneseq
    %v4269 = vshrl.u32 %v4268, 7
    %v4270 = vsub.s32 0, %v4269
    %v4271 = vrot.slane %v3710, %v4270
    %v4272 = vlaneseq
    %v4273 = vshrl.u32 %v4272, 7
    %v4274 = vsub.s32 0, %v4273
    %v4275 = vrot.slane %v3712, %v4274
    %v4276 = vlaneseq
    %v4277 = vshrl.u32 %v4276, 7
    %v4278 = vsub.s32 0, %v4277
    %v4279 = vrot.slane %v3736, %v4278
    %v4280 = vlaneseq
    %v4281 = vshrl.u32 %v4280, 7
    %v4282 = vsub.s32 0, %v4281
    %v4283 = vrot.slane %v3750, %v4282
    %v4284 = vlaneseq
    %v4285 = vshrl.u32 %v4284, 7
    %v4286 = vsub.s32 0, %v4285
    %v4287 = vrot.slane %v3758, %v4286
    %v4288 = vlaneseq
    %v4289 = vshrl.u32 %v4288, 7
    %v4290 = vsub.s32 0, %v4289
    %v4291 = vrot.slane %v3760, %v4290
    %v4292 = vlaneseq
    %v4293 = vshrl.u32 %v4292, 7
    %v4294 = vsub.s32 0, %v4293
    %v4295 = vrot.slane %v3743, %v4294
    %v4296 = vlaneseq
    %v4297 = vshrl.u32 %v4296, 7
    %v4298 = vsub.s32 0, %v4297
    %v4299 = vrot.slane %v3757, %v4298
    %v4300 = vlaneseq
    %v4301 = vshrl.u32 %v4300, 7
    %v4302 = vsub.s32 0, %v4301
    %v4303 = vrot.slane %v3759, %v4302
    %v4304 = vlaneseq
    %v4305 = vshrl.u32 %v4304, 7
    %v4306 = vsub.s32 0, %v4305
    %v4307 = vrot.slane %v3761, %v4306
    %v4308 = vlaneseq
    %v4309 = vshrl.u32 %v4308, 7
    %v4310 = vsub.s32 0, %v4309
    %v4311 = vrot.slane %v3785, %v4310
    %v4312 = vlaneseq
    %v4313 = vshrl.u32 %v4312, 7
    %v4314 = vsub.s32 0, %v4313
    %v4315 = vrot.slane %v3799, %v4314
    %v4316 = vlaneseq
    %v4317 = vshrl.u32 %v4316, 7
    %v4318 = vsub.s32 0, %v4317
    %v4319 = vrot.slane %v3807, %v4318
    %v4320 = vlaneseq
    %v4321 = vshrl.u32 %v4320, 7
    %v4322 = vsub.s32 0, %v4321
    %v4323 = vrot.slane %v3809, %v4322
    %v4324 = vlaneseq
    %v4325 = vshrl.u32 %v4324, 7
    %v4326 = vsub.s32 0, %v4325
    %v4327 = vrot.slane %v3792, %v4326
    %v4328 = vlaneseq
    %v4329 = vshrl.u32 %v4328, 7
    %v4330 = vsub.s32 0, %v4329
    %v4331 = vrot.slane %v3806, %v4330
    %v4332 = vlaneseq
    %v4333 = vshrl.u32 %v4332, 7
    %v4334 = vsub.s32 0, %v4333
    %v4335 = vrot.slane %v3808, %v4334
    %v4336 = vlaneseq
    %v4337 = vshrl.u32 %v4336, 7
    %v4338 = vsub.s32 0, %v4337
    %v4339 = vrot.slane %v3810, %v4338
    %v4340 = vlaneseq
    %v4341 = vshrl.u32 %v4340, 7
    %v4342 = vsub.s32 0, %v4341
    %v4343 = vrot.slane %v3834, %v4342
    %v4344 = vlaneseq
    %v4345 = vshrl.u32 %v4344, 7
    %v4346 = vsub.s32 0, %v4345
    %v4347 = vrot.slane %v3848, %v4346
    %v4348 = vlaneseq
    %v4349 = vshrl.u32 %v4348, 7
    %v4350 = vsub.s32 0, %v4349
    %v4351 = vrot.slane %v3856, %v4350
    %v4352 = vlaneseq
    %v4353 = vshrl.u32 %v4352, 7
    %v4354 = vsub.s32 0, %v4353
    %v4355 = vrot.slane %v3858, %v4354
    %v4356 = vlaneseq
    %v4357 = vshrl.u32 %v4356, 7
    %v4358 = vsub.s32 0, %v4357
    %v4359 = vrot.slane %v3841, %v4358
    %v4360 = vlaneseq
    %v4361 = vshrl.u32 %v4360, 7
    %v4362 = vsub.s32 0, %v4361
    %v4363 = vrot.slane %v3855, %v4362
    %v4364 = vlaneseq
    %v4365 = vshrl.u32 %v4364, 7
    %v4366 = vsub.s32 0, %v4365
    %v4367 = vrot.slane %v3857, %v4366
    %v4368 = vlaneseq
    %v4369 = vshrl.u32 %v4368, 7
    %v4370 = vsub.s32 0, %v4369
    %v4371 = vrot.slane %v3859, %v4370
    %v4372 = vld [vmem:[%s10] sm:$0x1]
    %v4373 = vcombine.low %v3863, %v3867
    %v4374 = vcombine.low %v3871, %v3875
    %v4376 = vunpack.c.l.s4 1983009808
    %v4377 = vunpack.c.0.s8 %v4376
    %v4378 = vlaneseq
    %v4379 = vshrl.u32 %v4378, 7
    %v4380 = vsub.s32 %v4377, %v4379
    %v4381 = vrot.slane %v4373, %v4380
    %v4383 = vunpack.c.l.s4 1983009808
    %v4384 = vunpack.c.0.s8 %v4383
    %v4385 = vlaneseq
    %v4386 = vshrl.u32 %v4385, 7
    %v4387 = vsub.s32 %v4384, %v4386
    %v4388 = vrot.slane %v4374, %v4387
    %v4389 = vcombine.low %v4381, %v4388
    %v4390 = vcombine.low %v3879, %v3883
    %v4391 = vcombine.low %v3887, %v3891
    %v4393 = vunpack.c.l.s4 1983009808
    %v4394 = vunpack.c.0.s8 %v4393
    %v4395 = vlaneseq
    %v4396 = vshrl.u32 %v4395, 7
    %v4397 = vsub.s32 %v4394, %v4396
    %v4398 = vrot.slane %v4390, %v4397
    %v4400 = vunpack.c.l.s4 1983009808
    %v4401 = vunpack.c.0.s8 %v4400
    %v4402 = vlaneseq
    %v4403 = vshrl.u32 %v4402, 7
    %v4404 = vsub.s32 %v4401, %v4403
    %v4405 = vrot.slane %v4391, %v4404
    %v4406 = vcombine.low %v4398, %v4405
    %v4407 = vcombine.low %v3895, %v3899
    %v4408 = vcombine.low %v3903, %v3907
    %v4410 = vunpack.c.l.s4 1983009808
    %v4411 = vunpack.c.0.s8 %v4410
    %v4412 = vlaneseq
    %v4413 = vshrl.u32 %v4412, 7
    %v4414 = vsub.s32 %v4411, %v4413
    %v4415 = vrot.slane %v4407, %v4414
    %v4417 = vunpack.c.l.s4 1983009808
    %v4418 = vunpack.c.0.s8 %v4417
    %v4419 = vlaneseq
    %v4420 = vshrl.u32 %v4419, 7
    %v4421 = vsub.s32 %v4418, %v4420
    %v4422 = vrot.slane %v4408, %v4421
    %v4423 = vcombine.low %v4415, %v4422
    %v4424 = vcombine.low %v3911, %v3915
    %v4425 = vcombine.low %v3919, %v3923
    %v4427 = vunpack.c.l.s4 1983009808
    %v4428 = vunpack.c.0.s8 %v4427
    %v4429 = vlaneseq
    %v4430 = vshrl.u32 %v4429, 7
    %v4431 = vsub.s32 %v4428, %v4430
    %v4432 = vrot.slane %v4424, %v4431
    %v4434 = vunpack.c.l.s4 1983009808
    %v4435 = vunpack.c.0.s8 %v4434
    %v4436 = vlaneseq
    %v4437 = vshrl.u32 %v4436, 7
    %v4438 = vsub.s32 %v4435, %v4437
    %v4439 = vrot.slane %v4425, %v4438
    %v4440 = vcombine.low %v4432, %v4439
    %v4441 = vcombine.low %v3927, %v3931
    %v4442 = vcombine.low %v3935, %v3939
    %v4444 = vunpack.c.l.s4 1983009808
    %v4445 = vunpack.c.0.s8 %v4444
    %v4446 = vlaneseq
    %v4447 = vshrl.u32 %v4446, 7
    %v4448 = vsub.s32 %v4445, %v4447
    %v4449 = vrot.slane %v4441, %v4448
    %v4451 = vunpack.c.l.s4 1983009808
    %v4452 = vunpack.c.0.s8 %v4451
    %v4453 = vlaneseq
    %v4454 = vshrl.u32 %v4453, 7
    %v4455 = vsub.s32 %v4452, %v4454
    %v4456 = vrot.slane %v4442, %v4455
    %v4457 = vcombine.low %v4449, %v4456
    %v4458 = vcombine.low %v3943, %v3947
    %v4459 = vcombine.low %v3951, %v3955
    %v4461 = vunpack.c.l.s4 1983009808
    %v4462 = vunpack.c.0.s8 %v4461
    %v4463 = vlaneseq
    %v4464 = vshrl.u32 %v4463, 7
    %v4465 = vsub.s32 %v4462, %v4464
    %v4466 = vrot.slane %v4458, %v4465
    %v4468 = vunpack.c.l.s4 1983009808
    %v4469 = vunpack.c.0.s8 %v4468
    %v4470 = vlaneseq
    %v4471 = vshrl.u32 %v4470, 7
    %v4472 = vsub.s32 %v4469, %v4471
    %v4473 = vrot.slane %v4459, %v4472
    %v4474 = vcombine.low %v4466, %v4473
    %v4475 = vcombine.low %v3959, %v3963
    %v4476 = vcombine.low %v3967, %v3971
    %v4478 = vunpack.c.l.s4 1983009808
    %v4479 = vunpack.c.0.s8 %v4478
    %v4480 = vlaneseq
    %v4481 = vshrl.u32 %v4480, 7
    %v4482 = vsub.s32 %v4479, %v4481
    %v4483 = vrot.slane %v4475, %v4482
    %v4485 = vunpack.c.l.s4 1983009808
    %v4486 = vunpack.c.0.s8 %v4485
    %v4487 = vlaneseq
    %v4488 = vshrl.u32 %v4487, 7
    %v4489 = vsub.s32 %v4486, %v4488
    %v4490 = vrot.slane %v4476, %v4489
    %v4491 = vcombine.low %v4483, %v4490
    %v4492 = vcombine.low %v3975, %v3979
    %v4493 = vcombine.low %v3983, %v3987
    %v4495 = vunpack.c.l.s4 1983009808
    %v4496 = vunpack.c.0.s8 %v4495
    %v4497 = vlaneseq
    %v4498 = vshrl.u32 %v4497, 7
    %v4499 = vsub.s32 %v4496, %v4498
    %v4500 = vrot.slane %v4492, %v4499
    %v4502 = vunpack.c.l.s4 1983009808
    %v4503 = vunpack.c.0.s8 %v4502
    %v4504 = vlaneseq
    %v4505 = vshrl.u32 %v4504, 7
    %v4506 = vsub.s32 %v4503, %v4505
    %v4507 = vrot.slane %v4493, %v4506
    %v4508 = vcombine.low %v4500, %v4507
    %v4509 = vcombine.low %v3991, %v3995
    %v4510 = vcombine.low %v3999, %v4003
    %v4512 = vunpack.c.l.s4 1983009808
    %v4513 = vunpack.c.0.s8 %v4512
    %v4514 = vlaneseq
    %v4515 = vshrl.u32 %v4514, 7
    %v4516 = vsub.s32 %v4513, %v4515
    %v4517 = vrot.slane %v4509, %v4516
    %v4519 = vunpack.c.l.s4 1983009808
    %v4520 = vunpack.c.0.s8 %v4519
    %v4521 = vlaneseq
    %v4522 = vshrl.u32 %v4521, 7
    %v4523 = vsub.s32 %v4520, %v4522
    %v4524 = vrot.slane %v4510, %v4523
    %v4525 = vcombine.low %v4517, %v4524
    %v4526 = vcombine.low %v4007, %v4011
    %v4527 = vcombine.low %v4015, %v4019
    %v4529 = vunpack.c.l.s4 1983009808
    %v4530 = vunpack.c.0.s8 %v4529
    %v4531 = vlaneseq
    %v4532 = vshrl.u32 %v4531, 7
    %v4533 = vsub.s32 %v4530, %v4532
    %v4534 = vrot.slane %v4526, %v4533
    %v4536 = vunpack.c.l.s4 1983009808
    %v4537 = vunpack.c.0.s8 %v4536
    %v4538 = vlaneseq
    %v4539 = vshrl.u32 %v4538, 7
    %v4540 = vsub.s32 %v4537, %v4539
    %v4541 = vrot.slane %v4527, %v4540
    %v4542 = vcombine.low %v4534, %v4541
    %v4543 = vcombine.low %v4023, %v4027
    %v4544 = vcombine.low %v4031, %v4035
    %v4546 = vunpack.c.l.s4 1983009808
    %v4547 = vunpack.c.0.s8 %v4546
    %v4548 = vlaneseq
    %v4549 = vshrl.u32 %v4548, 7
    %v4550 = vsub.s32 %v4547, %v4549
    %v4551 = vrot.slane %v4543, %v4550
    %v4553 = vunpack.c.l.s4 1983009808
    %v4554 = vunpack.c.0.s8 %v4553
    %v4555 = vlaneseq
    %v4556 = vshrl.u32 %v4555, 7
    %v4557 = vsub.s32 %v4554, %v4556
    %v4558 = vrot.slane %v4544, %v4557
    %v4559 = vcombine.low %v4551, %v4558
    %v4560 = vcombine.low %v4039, %v4043
    %v4561 = vcombine.low %v4047, %v4051
    %v4563 = vunpack.c.l.s4 1983009808
    %v4564 = vunpack.c.0.s8 %v4563
    %v4565 = vlaneseq
    %v4566 = vshrl.u32 %v4565, 7
    %v4567 = vsub.s32 %v4564, %v4566
    %v4568 = vrot.slane %v4560, %v4567
    %v4570 = vunpack.c.l.s4 1983009808
    %v4571 = vunpack.c.0.s8 %v4570
    %v4572 = vlaneseq
    %v4573 = vshrl.u32 %v4572, 7
    %v4574 = vsub.s32 %v4571, %v4573
    %v4575 = vrot.slane %v4561, %v4574
    %v4576 = vcombine.low %v4568, %v4575
    %v4577 = vcombine.low %v4055, %v4059
    %v4578 = vcombine.low %v4063, %v4067
    %v4580 = vunpack.c.l.s4 1983009808
    %v4581 = vunpack.c.0.s8 %v4580
    %v4582 = vlaneseq
    %v4583 = vshrl.u32 %v4582, 7
    %v4584 = vsub.s32 %v4581, %v4583
    %v4585 = vrot.slane %v4577, %v4584
    %v4587 = vunpack.c.l.s4 1983009808
    %v4588 = vunpack.c.0.s8 %v4587
    %v4589 = vlaneseq
    %v4590 = vshrl.u32 %v4589, 7
    %v4591 = vsub.s32 %v4588, %v4590
    %v4592 = vrot.slane %v4578, %v4591
    %v4593 = vcombine.low %v4585, %v4592
    %v4594 = vcombine.low %v4071, %v4075
    %v4595 = vcombine.low %v4079, %v4083
    %v4597 = vunpack.c.l.s4 1983009808
    %v4598 = vunpack.c.0.s8 %v4597
    %v4599 = vlaneseq
    %v4600 = vshrl.u32 %v4599, 7
    %v4601 = vsub.s32 %v4598, %v4600
    %v4602 = vrot.slane %v4594, %v4601
    %v4604 = vunpack.c.l.s4 1983009808
    %v4605 = vunpack.c.0.s8 %v4604
    %v4606 = vlaneseq
    %v4607 = vshrl.u32 %v4606, 7
    %v4608 = vsub.s32 %v4605, %v4607
    %v4609 = vrot.slane %v4595, %v4608
    %v4610 = vcombine.low %v4602, %v4609
    %v4611 = vcombine.low %v4087, %v4091
    %v4612 = vcombine.low %v4095, %v4099
    %v4614 = vunpack.c.l.s4 1983009808
    %v4615 = vunpack.c.0.s8 %v4614
    %v4616 = vlaneseq
    %v4617 = vshrl.u32 %v4616, 7
    %v4618 = vsub.s32 %v4615, %v4617
    %v4619 = vrot.slane %v4611, %v4618
    %v4621 = vunpack.c.l.s4 1983009808
    %v4622 = vunpack.c.0.s8 %v4621
    %v4623 = vlaneseq
    %v4624 = vshrl.u32 %v4623, 7
    %v4625 = vsub.s32 %v4622, %v4624
    %v4626 = vrot.slane %v4612, %v4625
    %v4627 = vcombine.low %v4619, %v4626
    %v4628 = vcombine.low %v4103, %v4107
    %v4629 = vcombine.low %v4111, %v4115
    %v4631 = vunpack.c.l.s4 1983009808
    %v4632 = vunpack.c.0.s8 %v4631
    %v4633 = vlaneseq
    %v4634 = vshrl.u32 %v4633, 7
    %v4635 = vsub.s32 %v4632, %v4634
    %v4636 = vrot.slane %v4628, %v4635
    %v4638 = vunpack.c.l.s4 1983009808
    %v4639 = vunpack.c.0.s8 %v4638
    %v4640 = vlaneseq
    %v4641 = vshrl.u32 %v4640, 7
    %v4642 = vsub.s32 %v4639, %v4641
    %v4643 = vrot.slane %v4629, %v4642
    %v4644 = vcombine.low %v4636, %v4643
    %v4645 = vcombine.low %v4119, %v4123
    %v4646 = vcombine.low %v4127, %v4131
    %v4648 = vunpack.c.l.s4 1983009808
    %v4649 = vunpack.c.0.s8 %v4648
    %v4650 = vlaneseq
    %v4651 = vshrl.u32 %v4650, 7
    %v4652 = vsub.s32 %v4649, %v4651
    %v4653 = vrot.slane %v4645, %v4652
    %v4655 = vunpack.c.l.s4 1983009808
    %v4656 = vunpack.c.0.s8 %v4655
    %v4657 = vlaneseq
    %v4658 = vshrl.u32 %v4657, 7
    %v4659 = vsub.s32 %v4656, %v4658
    %v4660 = vrot.slane %v4646, %v4659
    %v4661 = vcombine.low %v4653, %v4660
    %v4662 = vcombine.low %v4135, %v4139
    %v4663 = vcombine.low %v4143, %v4147
    %v4665 = vunpack.c.l.s4 1983009808
    %v4666 = vunpack.c.0.s8 %v4665
    %v4667 = vlaneseq
    %v4668 = vshrl.u32 %v4667, 7
    %v4669 = vsub.s32 %v4666, %v4668
    %v4670 = vrot.slane %v4662, %v4669
    %v4672 = vunpack.c.l.s4 1983009808
    %v4673 = vunpack.c.0.s8 %v4672
    %v4674 = vlaneseq
    %v4675 = vshrl.u32 %v4674, 7
    %v4676 = vsub.s32 %v4673, %v4675
    %v4677 = vrot.slane %v4663, %v4676
    %v4678 = vcombine.low %v4670, %v4677
    %v4679 = vcombine.low %v4151, %v4155
    %v4680 = vcombine.low %v4159, %v4163
    %v4682 = vunpack.c.l.s4 1983009808
    %v4683 = vunpack.c.0.s8 %v4682
    %v4684 = vlaneseq
    %v4685 = vshrl.u32 %v4684, 7
    %v4686 = vsub.s32 %v4683, %v4685
    %v4687 = vrot.slane %v4679, %v4686
    %v4689 = vunpack.c.l.s4 1983009808
    %v4690 = vunpack.c.0.s8 %v4689
    %v4691 = vlaneseq
    %v4692 = vshrl.u32 %v4691, 7
    %v4693 = vsub.s32 %v4690, %v4692
    %v4694 = vrot.slane %v4680, %v4693
    %v4695 = vcombine.low %v4687, %v4694
    %v4696 = vcombine.low %v4167, %v4171
    %v4697 = vcombine.low %v4175, %v4179
    %v4699 = vunpack.c.l.s4 1983009808
    %v4700 = vunpack.c.0.s8 %v4699
    %v4701 = vlaneseq
    %v4702 = vshrl.u32 %v4701, 7
    %v4703 = vsub.s32 %v4700, %v4702
    %v4704 = vrot.slane %v4696, %v4703
    %v4706 = vunpack.c.l.s4 1983009808
    %v4707 = vunpack.c.0.s8 %v4706
    %v4708 = vlaneseq
    %v4709 = vshrl.u32 %v4708, 7
    %v4710 = vsub.s32 %v4707, %v4709
    %v4711 = vrot.slane %v4697, %v4710
    %v4712 = vcombine.low %v4704, %v4711
    %v4713 = vcombine.low %v4183, %v4187
    %v4714 = vcombine.low %v4191, %v4195
    %v4716 = vunpack.c.l.s4 1983009808
    %v4717 = vunpack.c.0.s8 %v4716
    %v4718 = vlaneseq
    %v4719 = vshrl.u32 %v4718, 7
    %v4720 = vsub.s32 %v4717, %v4719
    %v4721 = vrot.slane %v4713, %v4720
    %v4723 = vunpack.c.l.s4 1983009808
    %v4724 = vunpack.c.0.s8 %v4723
    %v4725 = vlaneseq
    %v4726 = vshrl.u32 %v4725, 7
    %v4727 = vsub.s32 %v4724, %v4726
    %v4728 = vrot.slane %v4714, %v4727
    %v4729 = vcombine.low %v4721, %v4728
    %v4730 = vcombine.low %v4199, %v4203
    %v4731 = vcombine.low %v4207, %v4211
    %v4733 = vunpack.c.l.s4 1983009808
    %v4734 = vunpack.c.0.s8 %v4733
    %v4735 = vlaneseq
    %v4736 = vshrl.u32 %v4735, 7
    %v4737 = vsub.s32 %v4734, %v4736
    %v4738 = vrot.slane %v4730, %v4737
    %v4740 = vunpack.c.l.s4 1983009808
    %v4741 = vunpack.c.0.s8 %v4740
    %v4742 = vlaneseq
    %v4743 = vshrl.u32 %v4742, 7
    %v4744 = vsub.s32 %v4741, %v4743
    %v4745 = vrot.slane %v4731, %v4744
    %v4746 = vcombine.low %v4738, %v4745
    %v4747 = vcombine.low %v4215, %v4219
    %v4748 = vcombine.low %v4223, %v4227
    %v4750 = vunpack.c.l.s4 1983009808
    %v4751 = vunpack.c.0.s8 %v4750
    %v4752 = vlaneseq
    %v4753 = vshrl.u32 %v4752, 7
    %v4754 = vsub.s32 %v4751, %v4753
    %v4755 = vrot.slane %v4747, %v4754
    %v4757 = vunpack.c.l.s4 1983009808
    %v4758 = vunpack.c.0.s8 %v4757
    %v4759 = vlaneseq
    %v4760 = vshrl.u32 %v4759, 7
    %v4761 = vsub.s32 %v4758, %v4760
    %v4762 = vrot.slane %v4748, %v4761
    %v4763 = vcombine.low %v4755, %v4762
    %v4764 = vcombine.low %v4231, %v4235
    %v4765 = vcombine.low %v4239, %v4243
    %v4767 = vunpack.c.l.s4 1983009808
    %v4768 = vunpack.c.0.s8 %v4767
    %v4769 = vlaneseq
    %v4770 = vshrl.u32 %v4769, 7
    %v4771 = vsub.s32 %v4768, %v4770
    %v4772 = vrot.slane %v4764, %v4771
    %v4774 = vunpack.c.l.s4 1983009808
    %v4775 = vunpack.c.0.s8 %v4774
    %v4776 = vlaneseq
    %v4777 = vshrl.u32 %v4776, 7
    %v4778 = vsub.s32 %v4775, %v4777
    %v4779 = vrot.slane %v4765, %v4778
    %v4780 = vcombine.low %v4772, %v4779
    %v4781 = vcombine.low %v4247, %v4251
    %v4782 = vcombine.low %v4255, %v4259
    %v4784 = vunpack.c.l.s4 1983009808
    %v4785 = vunpack.c.0.s8 %v4784
    %v4786 = vlaneseq
    %v4787 = vshrl.u32 %v4786, 7
    %v4788 = vsub.s32 %v4785, %v4787
    %v4789 = vrot.slane %v4781, %v4788
    %v4791 = vunpack.c.l.s4 1983009808
    %v4792 = vunpack.c.0.s8 %v4791
    %v4793 = vlaneseq
    %v4794 = vshrl.u32 %v4793, 7
    %v4795 = vsub.s32 %v4792, %v4794
    %v4796 = vrot.slane %v4782, %v4795
    %v4797 = vcombine.low %v4789, %v4796
    %v4798 = vcombine.low %v4263, %v4267
    %v4799 = vcombine.low %v4271, %v4275
    %v4801 = vunpack.c.l.s4 1983009808
    %v4802 = vunpack.c.0.s8 %v4801
    %v4803 = vlaneseq
    %v4804 = vshrl.u32 %v4803, 7
    %v4805 = vsub.s32 %v4802, %v4804
    %v4806 = vrot.slane %v4798, %v4805
    %v4808 = vunpack.c.l.s4 1983009808
    %v4809 = vunpack.c.0.s8 %v4808
    %v4810 = vlaneseq
    %v4811 = vshrl.u32 %v4810, 7
    %v4812 = vsub.s32 %v4809, %v4811
    %v4813 = vrot.slane %v4799, %v4812
    %v4814 = vcombine.low %v4806, %v4813
    %v4815 = vcombine.low %v4279, %v4283
    %v4816 = vcombine.low %v4287, %v4291
    %v4818 = vunpack.c.l.s4 1983009808
    %v4819 = vunpack.c.0.s8 %v4818
    %v4820 = vlaneseq
    %v4821 = vshrl.u32 %v4820, 7
    %v4822 = vsub.s32 %v4819, %v4821
    %v4823 = vrot.slane %v4815, %v4822
    %v4825 = vunpack.c.l.s4 1983009808
    %v4826 = vunpack.c.0.s8 %v4825
    %v4827 = vlaneseq
    %v4828 = vshrl.u32 %v4827, 7
    %v4829 = vsub.s32 %v4826, %v4828
    %v4830 = vrot.slane %v4816, %v4829
    %v4831 = vcombine.low %v4823, %v4830
    %v4832 = vcombine.low %v4295, %v4299
    %v4833 = vcombine.low %v4303, %v4307
    %v4835 = vunpack.c.l.s4 1983009808
    %v4836 = vunpack.c.0.s8 %v4835
    %v4837 = vlaneseq
    %v4838 = vshrl.u32 %v4837, 7
    %v4839 = vsub.s32 %v4836, %v4838
    %v4840 = vrot.slane %v4832, %v4839
    %v4842 = vunpack.c.l.s4 1983009808
    %v4843 = vunpack.c.0.s8 %v4842
    %v4844 = vlaneseq
    %v4845 = vshrl.u32 %v4844, 7
    %v4846 = vsub.s32 %v4843, %v4845
    %v4847 = vrot.slane %v4833, %v4846
    %v4848 = vcombine.low %v4840, %v4847
    %v4849 = vcombine.low %v4311, %v4315
    %v4850 = vcombine.low %v4319, %v4323
    %v4852 = vunpack.c.l.s4 1983009808
    %v4853 = vunpack.c.0.s8 %v4852
    %v4854 = vlaneseq
    %v4855 = vshrl.u32 %v4854, 7
    %v4856 = vsub.s32 %v4853, %v4855
    %v4857 = vrot.slane %v4849, %v4856
    %v4859 = vunpack.c.l.s4 1983009808
    %v4860 = vunpack.c.0.s8 %v4859
    %v4861 = vlaneseq
    %v4862 = vshrl.u32 %v4861, 7
    %v4863 = vsub.s32 %v4860, %v4862
    %v4864 = vrot.slane %v4850, %v4863
    %v4865 = vcombine.low %v4857, %v4864
    %v4866 = vcombine.low %v4327, %v4331
    %v4867 = vcombine.low %v4335, %v4339
    %v4869 = vunpack.c.l.s4 1983009808
    %v4870 = vunpack.c.0.s8 %v4869
    %v4871 = vlaneseq
    %v4872 = vshrl.u32 %v4871, 7
    %v4873 = vsub.s32 %v4870, %v4872
    %v4874 = vrot.slane %v4866, %v4873
    %v4876 = vunpack.c.l.s4 1983009808
    %v4877 = vunpack.c.0.s8 %v4876
    %v4878 = vlaneseq
    %v4879 = vshrl.u32 %v4878, 7
    %v4880 = vsub.s32 %v4877, %v4879
    %v4881 = vrot.slane %v4867, %v4880
    %v4882 = vcombine.low %v4874, %v4881
    %v4883 = vcombine.low %v4343, %v4347
    %v4884 = vcombine.low %v4351, %v4355
    %v4886 = vunpack.c.l.s4 1983009808
    %v4887 = vunpack.c.0.s8 %v4886
    %v4888 = vlaneseq
    %v4889 = vshrl.u32 %v4888, 7
    %v4890 = vsub.s32 %v4887, %v4889
    %v4891 = vrot.slane %v4883, %v4890
    %v4893 = vunpack.c.l.s4 1983009808
    %v4894 = vunpack.c.0.s8 %v4893
    %v4895 = vlaneseq
    %v4896 = vshrl.u32 %v4895, 7
    %v4897 = vsub.s32 %v4894, %v4896
    %v4898 = vrot.slane %v4884, %v4897
    %v4899 = vcombine.low %v4891, %v4898
    %v4900 = vcombine.low %v4359, %v4363
    %v4901 = vcombine.low %v4367, %v4371
    %v4903 = vunpack.c.l.s4 1983009808
    %v4904 = vunpack.c.0.s8 %v4903
    %v4905 = vlaneseq
    %v4906 = vshrl.u32 %v4905, 7
    %v4907 = vsub.s32 %v4904, %v4906
    %v4908 = vrot.slane %v4900, %v4907
    %v4910 = vunpack.c.l.s4 1983009808
    %v4911 = vunpack.c.0.s8 %v4910
    %v4912 = vlaneseq
    %v4913 = vshrl.u32 %v4912, 7
    %v4914 = vsub.s32 %v4911, %v4913
    %v4915 = vrot.slane %v4901, %v4914
    %v4916 = vcombine.low %v4908, %v4915
    %v4949 = vpack.c.bf16 %v4406, %v4389
    %v4950 = vpack.c.bf16 %v4440, %v4423
    %v4951 = vpack.c.bf16 %v4474, %v4457
    %v4952 = vpack.c.bf16 %v4508, %v4491
    %v4953 = vpack.c.bf16 %v4542, %v4525
    %v4954 = vpack.c.bf16 %v4576, %v4559
    %v4955 = vpack.c.bf16 %v4610, %v4593
    %v4956 = vpack.c.bf16 %v4644, %v4627
    %v4957 = vpack.c.bf16 %v4678, %v4661
    %v4958 = vpack.c.bf16 %v4712, %v4695
    %v4959 = vpack.c.bf16 %v4746, %v4729
    %v4960 = vpack.c.bf16 %v4780, %v4763
    %v4961 = vpack.c.bf16 %v4814, %v4797
    %v4962 = vpack.c.bf16 %v4848, %v4831
    %v4963 = vpack.c.bf16 %v4882, %v4865
    %v4964 = vpack.c.bf16 %v4916, %v4899
    %v4966 = vshrl.u32 %v4949, 16
    %v4968 = vrot.slane %v4966, 7
    %v4969 = vshll.u32 %v4949, 16
    %v4971 = vor.u32 %v4968, %v4969
    %v4973 = vshrl.u32 %v4950, 16
    %v4975 = vrot.slane %v4973, 7
    %v4976 = vshll.u32 %v4950, 16
    %v4978 = vor.u32 %v4975, %v4976
    %v4980 = vshrl.u32 %v4951, 16
    %v4982 = vrot.slane %v4980, 7
    %v4983 = vshll.u32 %v4951, 16
    %v4985 = vor.u32 %v4982, %v4983
    %v4987 = vshrl.u32 %v4952, 16
    %v4989 = vrot.slane %v4987, 7
    %v4990 = vshll.u32 %v4952, 16
    %v4992 = vor.u32 %v4989, %v4990
    %v4994 = vshrl.u32 %v4953, 16
    %v4996 = vrot.slane %v4994, 7
    %v4997 = vshll.u32 %v4953, 16
    %v4999 = vor.u32 %v4996, %v4997
    %v5001 = vshrl.u32 %v4954, 16
    %v5003 = vrot.slane %v5001, 7
    %v5004 = vshll.u32 %v4954, 16
    %v5006 = vor.u32 %v5003, %v5004
    %v5008 = vshrl.u32 %v4955, 16
    %v5010 = vrot.slane %v5008, 7
    %v5011 = vshll.u32 %v4955, 16
    %v5013 = vor.u32 %v5010, %v5011
    %v5015 = vshrl.u32 %v4956, 16
    %v5017 = vrot.slane %v5015, 7
    %v5018 = vshll.u32 %v4956, 16
    %v5020 = vor.u32 %v5017, %v5018
    %v5022 = vshrl.u32 %v4957, 16
    %v5024 = vrot.slane %v5022, 7
    %v5025 = vshll.u32 %v4957, 16
    %v5027 = vor.u32 %v5024, %v5025
    %v5029 = vshrl.u32 %v4958, 16
    %v5031 = vrot.slane %v5029, 7
    %v5032 = vshll.u32 %v4958, 16
    %v5034 = vor.u32 %v5031, %v5032
    %v5036 = vshrl.u32 %v4959, 16
    %v5038 = vrot.slane %v5036, 7
    %v5039 = vshll.u32 %v4959, 16
    %v5041 = vor.u32 %v5038, %v5039
    %v5043 = vshrl.u32 %v4960, 16
    %v5045 = vrot.slane %v5043, 7
    %v5046 = vshll.u32 %v4960, 16
    %v5048 = vor.u32 %v5045, %v5046
    %v5050 = vshrl.u32 %v4961, 16
    %v5052 = vrot.slane %v5050, 7
    %v5053 = vshll.u32 %v4961, 16
    %v5055 = vor.u32 %v5052, %v5053
    %v5057 = vshrl.u32 %v4962, 16
    %v5059 = vrot.slane %v5057, 7
    %v5060 = vshll.u32 %v4962, 16
    %v5062 = vor.u32 %v5059, %v5060
    %v5064 = vshrl.u32 %v4963, 16
    %v5066 = vrot.slane %v5064, 7
    %v5067 = vshll.u32 %v4963, 16
    %v5069 = vor.u32 %v5066, %v5067
    %v5071 = vshrl.u32 %v4964, 16
    %v5073 = vrot.slane %v5071, 7
    %v5074 = vshll.u32 %v4964, 16
    %v5076 = vor.u32 %v5073, %v5074
    %v5110 = vsel %vm1593, 0, %v4971
    %v5111 = vsel %vm1593, 0, %v4978
    %v5112 = vsel %vm1593, 0, %v4985
    %v5113 = vsel %vm1593, 0, %v4992
    %v5114 = vsel %vm1593, 0, %v4999
    %v5115 = vsel %vm1593, 0, %v5006
    %v5116 = vsel %vm1593, 0, %v5013
    %v5117 = vsel %vm1593, 0, %v5020
    %v5118 = vsel %vm1593, 0, %v5027
    %v5119 = vsel %vm1593, 0, %v5034
    %v5120 = vsel %vm1593, 0, %v5041
    %v5121 = vsel %vm1593, 0, %v5048
    %v5122 = vsel %vm1593, 0, %v5055
    %v5123 = vsel %vm1593, 0, %v5062
    %v5124 = vsel %vm1593, 0, %v5069
    %v5125 = vsel %vm1593, 0, %v5076
    %v5126 = vsel %vm1593, %v1522, 0
    %v5127 = vsel %vm1593, %v4968, 0
    %v5128 = vsel %vm1593, %v4975, 0
    %v5129 = vsel %vm1593, %v4982, 0
    %v5130 = vsel %vm1593, %v4989, 0
    %v5131 = vsel %vm1593, %v4996, 0
    %v5132 = vsel %vm1593, %v5003, 0
    %v5133 = vsel %vm1593, %v5010, 0
    %v5134 = vsel %vm1593, %v5017, 0
    %v5135 = vsel %vm1593, %v5024, 0
    %v5136 = vsel %vm1593, %v5031, 0
    %v5137 = vsel %vm1593, %v5038, 0
    %v5138 = vsel %vm1593, %v5045, 0
    %v5139 = vsel %vm1593, %v5052, 0
    %v5140 = vsel %vm1593, %v5059, 0
    %v5141 = vsel %vm1593, %v5066, 0
    %v5142 = vsel %vm1593, %v5073, 0
    %vm5143 = vsmask.f32 7424
    %v5145 = vshrl.u32 %v1594, 16
    %v5147 = vshll.u32 %v1594, 16
    %v5149 = vrot.slane %v5147, 1
    %v5150 = vor.u32 %v5145, %v5149
    %v5152 = vshll.u32 %v5126, 16
    %v5154 = vrot.slane %v5152, 1
    %v5155 = vsel %vm5143, %v5150, %v5154
    %v5157 = vshrl.u32 %v5110, 16
    %v5159 = vshll.u32 %v5110, 16
    %v5161 = vrot.slane %v5159, 1
    %v5162 = vor.u32 %v5157, %v5161
    %v5164 = vshll.u32 %v5127, 16
    %v5166 = vrot.slane %v5164, 1
    %v5167 = vsel %vm5143, %v5162, %v5166
    %v5169 = vshrl.u32 %v5111, 16
    %v5171 = vshll.u32 %v5111, 16
    %v5173 = vrot.slane %v5171, 1
    %v5174 = vor.u32 %v5169, %v5173
    %v5176 = vshll.u32 %v5128, 16
    %v5178 = vrot.slane %v5176, 1
    %v5179 = vsel %vm5143, %v5174, %v5178
    %v5181 = vshrl.u32 %v5112, 16
    %v5183 = vshll.u32 %v5112, 16
    %v5185 = vrot.slane %v5183, 1
    %v5186 = vor.u32 %v5181, %v5185
    %v5188 = vshll.u32 %v5129, 16
    %v5190 = vrot.slane %v5188, 1
    %v5191 = vsel %vm5143, %v5186, %v5190
    %v5193 = vshrl.u32 %v5113, 16
    %v5195 = vshll.u32 %v5113, 16
    %v5197 = vrot.slane %v5195, 1
    %v5198 = vor.u32 %v5193, %v5197
    %v5200 = vshll.u32 %v5130, 16
    %v5202 = vrot.slane %v5200, 1
    %v5203 = vsel %vm5143, %v5198, %v5202
    %v5205 = vshrl.u32 %v5114, 16
    %v5207 = vshll.u32 %v5114, 16
    %v5209 = vrot.slane %v5207, 1
    %v5210 = vor.u32 %v5205, %v5209
    %v5212 = vshll.u32 %v5131, 16
    %v5214 = vrot.slane %v5212, 1
    %v5215 = vsel %vm5143, %v5210, %v5214
    %v5217 = vshrl.u32 %v5115, 16
    %v5219 = vshll.u32 %v5115, 16
    %v5221 = vrot.slane %v5219, 1
    %v5222 = vor.u32 %v5217, %v5221
    %v5224 = vshll.u32 %v5132, 16
    %v5226 = vrot.slane %v5224, 1
    %v5227 = vsel %vm5143, %v5222, %v5226
    %v5229 = vshrl.u32 %v5116, 16
    %v5231 = vshll.u32 %v5116, 16
    %v5233 = vrot.slane %v5231, 1
    %v5234 = vor.u32 %v5229, %v5233
    %v5236 = vshll.u32 %v5133, 16
    %v5238 = vrot.slane %v5236, 1
    %v5239 = vsel %vm5143, %v5234, %v5238
    %v5241 = vshrl.u32 %v5117, 16
    %v5243 = vshll.u32 %v5117, 16
    %v5245 = vrot.slane %v5243, 1
    %v5246 = vor.u32 %v5241, %v5245
    %v5248 = vshll.u32 %v5134, 16
    %v5250 = vrot.slane %v5248, 1
    %v5251 = vsel %vm5143, %v5246, %v5250
    %v5253 = vshrl.u32 %v5118, 16
    %v5255 = vshll.u32 %v5118, 16
    %v5257 = vrot.slane %v5255, 1
    %v5258 = vor.u32 %v5253, %v5257
    %v5260 = vshll.u32 %v5135, 16
    %v5262 = vrot.slane %v5260, 1
    %v5263 = vsel %vm5143, %v5258, %v5262
    %v5265 = vshrl.u32 %v5119, 16
    %v5267 = vshll.u32 %v5119, 16
    %v5269 = vrot.slane %v5267, 1
    %v5270 = vor.u32 %v5265, %v5269
    %v5272 = vshll.u32 %v5136, 16
    %v5274 = vrot.slane %v5272, 1
    %v5275 = vsel %vm5143, %v5270, %v5274
    %v5277 = vshrl.u32 %v5120, 16
    %v5279 = vshll.u32 %v5120, 16
    %v5281 = vrot.slane %v5279, 1
    %v5282 = vor.u32 %v5277, %v5281
    %v5284 = vshll.u32 %v5137, 16
    %v5286 = vrot.slane %v5284, 1
    %v5287 = vsel %vm5143, %v5282, %v5286
    %v5289 = vshrl.u32 %v5121, 16
    %v5291 = vshll.u32 %v5121, 16
    %v5293 = vrot.slane %v5291, 1
    %v5294 = vor.u32 %v5289, %v5293
    %v5296 = vshll.u32 %v5138, 16
    %v5298 = vrot.slane %v5296, 1
    %v5299 = vsel %vm5143, %v5294, %v5298
    %v5301 = vshrl.u32 %v5122, 16
    %v5303 = vshll.u32 %v5122, 16
    %v5305 = vrot.slane %v5303, 1
    %v5306 = vor.u32 %v5301, %v5305
    %v5308 = vshll.u32 %v5139, 16
    %v5310 = vrot.slane %v5308, 1
    %v5311 = vsel %vm5143, %v5306, %v5310
    %v5313 = vshrl.u32 %v5123, 16
    %v5315 = vshll.u32 %v5123, 16
    %v5317 = vrot.slane %v5315, 1
    %v5318 = vor.u32 %v5313, %v5317
    %v5320 = vshll.u32 %v5140, 16
    %v5322 = vrot.slane %v5320, 1
    %v5323 = vsel %vm5143, %v5318, %v5322
    %v5325 = vshrl.u32 %v5124, 16
    %v5327 = vshll.u32 %v5124, 16
    %v5329 = vrot.slane %v5327, 1
    %v5330 = vor.u32 %v5325, %v5329
    %v5332 = vshll.u32 %v5141, 16
    %v5334 = vrot.slane %v5332, 1
    %v5335 = vsel %vm5143, %v5330, %v5334
    %v5337 = vshrl.u32 %v5125, 16
    %v5339 = vshll.u32 %v5125, 16
    %v5341 = vrot.slane %v5339, 1
    %v5342 = vor.u32 %v5337, %v5341
    %v5344 = vshll.u32 %v5142, 16
    %v5346 = vrot.slane %v5344, 1
    %v5347 = vsel %vm5143, %v5342, %v5346
    %vm5399 = vcmask 1046528
    %v5400 = vrot.slane %v1594, 1
    %v5401 = vrot.slane %v5126, 1
    %v5402 = vsel %vm5399, %v5400, %v5401
    %v5403 = vrot.slane %v5110, 1
    %v5404 = vrot.slane %v5127, 1
    %v5405 = vsel %vm5399, %v5403, %v5404
    %v5406 = vrot.slane %v5111, 1
    %v5407 = vrot.slane %v5128, 1
    %v5408 = vsel %vm5399, %v5406, %v5407
    %v5409 = vrot.slane %v5112, 1
    %v5410 = vrot.slane %v5129, 1
    %v5411 = vsel %vm5399, %v5409, %v5410
    %v5412 = vrot.slane %v5113, 1
    %v5413 = vrot.slane %v5130, 1
    %v5414 = vsel %vm5399, %v5412, %v5413
    %v5415 = vrot.slane %v5114, 1
    %v5416 = vrot.slane %v5131, 1
    %v5417 = vsel %vm5399, %v5415, %v5416
    %v5418 = vrot.slane %v5115, 1
    %v5419 = vrot.slane %v5132, 1
    %v5420 = vsel %vm5399, %v5418, %v5419
    %v5421 = vrot.slane %v5116, 1
    %v5422 = vrot.slane %v5133, 1
    %v5423 = vsel %vm5399, %v5421, %v5422
    %v5424 = vrot.slane %v5117, 1
    %v5425 = vrot.slane %v5134, 1
    %v5426 = vsel %vm5399, %v5424, %v5425
    %v5427 = vrot.slane %v5118, 1
    %v5428 = vrot.slane %v5135, 1
    %v5429 = vsel %vm5399, %v5427, %v5428
    %v5430 = vrot.slane %v5119, 1
    %v5431 = vrot.slane %v5136, 1
    %v5432 = vsel %vm5399, %v5430, %v5431
    %v5433 = vrot.slane %v5120, 1
    %v5434 = vrot.slane %v5137, 1
    %v5435 = vsel %vm5399, %v5433, %v5434
    %v5436 = vrot.slane %v5121, 1
    %v5437 = vrot.slane %v5138, 1
    %v5438 = vsel %vm5399, %v5436, %v5437
    %v5439 = vrot.slane %v5122, 1
    %v5440 = vrot.slane %v5139, 1
    %v5441 = vsel %vm5399, %v5439, %v5440
    %v5442 = vrot.slane %v5123, 1
    %v5443 = vrot.slane %v5140, 1
    %v5444 = vsel %vm5399, %v5442, %v5443
    %v5445 = vrot.slane %v5124, 1
    %v5446 = vrot.slane %v5141, 1
    %v5447 = vsel %vm5399, %v5445, %v5446
    %v5448 = vrot.slane %v5125, 1
    %v5449 = vrot.slane %v5142, 1
    %v5450 = vsel %vm5399, %v5448, %v5449
    %v5468 = vld [vmem:[#allocation6] sm:$0xf]
    %v5469 = vld [vmem:[#allocation6 + $0x4] sm:$0xf]
    %v5470 = vld [vmem:[#allocation6 + $0x8] sm:$0xf]
    %v5471 = vld [vmem:[#allocation6 + $0xc] sm:$0xf]
    %v5472 = vld [vmem:[#allocation6 + $0x10] sm:$0xf]
    %v5473 = vld [vmem:[#allocation6 + $0x14] sm:$0xf]
    %v5474 = vld [vmem:[#allocation6 + $0x18] sm:$0xf]
    %v5475 = vld [vmem:[#allocation6 + $0x1c] sm:$0xf]
    %v5476 = vld [vmem:[#allocation6 + $0x20] sm:$0xf]
    %v5477 = vld [vmem:[#allocation6 + $0x24] sm:$0xf]
    %v5478 = vld [vmem:[#allocation6 + $0x28] sm:$0xf]
    %v5479 = vld [vmem:[#allocation6 + $0x2c] sm:$0xf]
    %v5480 = vld [vmem:[#allocation6 + $0x30] sm:$0xf]
    %v5481 = vld [vmem:[#allocation6 + $0x34] sm:$0xf]
    %v5482 = vld [vmem:[#allocation6 + $0x38] sm:$0xf]
    %v5483 = vld [vmem:[#allocation6 + $0x3c] sm:$0xf]
    %v5484 = vld [vmem:[#allocation6 + $0x40] sm:$0xf]
    %v5485 = vld [vmem:[#allocation6 + $0x44] sm:$0xf]
    %v5486 = vld [vmem:[#allocation6 + $0x48] sm:$0xf]
    %v5487 = vld [vmem:[#allocation6 + $0x4c] sm:$0xf]
    %v5488 = vld [vmem:[#allocation6 + $0x50] sm:$0xf]
    %v5489 = vld [vmem:[#allocation6 + $0x54] sm:$0xf]
    %v5490 = vld [vmem:[#allocation6 + $0x58] sm:$0xf]
    %v5491 = vld [vmem:[#allocation6 + $0x5c] sm:$0xf]
    %v5492 = vld [vmem:[#allocation6 + $0x60] sm:$0xf]
    %v5493 = vld [vmem:[#allocation6 + $0x64] sm:$0xf]
    %v5494 = vld [vmem:[#allocation6 + $0x68] sm:$0xf]
    %v5495 = vld [vmem:[#allocation6 + $0x6c] sm:$0xf]
    %v5496 = vld [vmem:[#allocation6 + $0x70] sm:$0xf]
    %v5497 = vld [vmem:[#allocation6 + $0x74] sm:$0xf]
    %v5498 = vld [vmem:[#allocation6 + $0x78] sm:$0xf]
    %v5499 = vld [vmem:[#allocation6 + $0x7c] sm:$0xf]
    %v5500 = vld [vmem:[#allocation6 + $0x80] sm:$0xf]
    %v5501 = vld [vmem:[#allocation6 + $0x84] sm:$0xf]
    %v5502 = vld [vmem:[#allocation6 + $0x88] sm:$0xf]
    %v5503 = vld [vmem:[#allocation6 + $0x8c] sm:$0xf]
    %v5504 = vld [vmem:[#allocation6 + $0x90] sm:$0xf]
    %v5505 = vld [vmem:[#allocation6 + $0x94] sm:$0xf]
    %v5506 = vld [vmem:[#allocation6 + $0x98] sm:$0xf]
    %v5507 = vld [vmem:[#allocation6 + $0x9c] sm:$0xf]
    %v5508 = vld [vmem:[#allocation6 + $0xa0] sm:$0xf]
    %v5509 = vld [vmem:[#allocation6 + $0xa4] sm:$0xf]
    %v5510 = vld [vmem:[#allocation6 + $0xa8] sm:$0xf]
    %v5511 = vld [vmem:[#allocation6 + $0xac] sm:$0xf]
    %v5512 = vld [vmem:[#allocation6 + $0xb0] sm:$0xf]
    %v5513 = vld [vmem:[#allocation6 + $0xb4] sm:$0xf]
    %v5514 = vld [vmem:[#allocation6 + $0xb8] sm:$0xf]
    %v5515 = vld [vmem:[#allocation6 + $0xbc] sm:$0xf]
    %v5516 = vld [vmem:[#allocation6 + $0xc0] sm:$0xf]
    %v5517 = vld [vmem:[#allocation6 + $0xc4] sm:$0xf]
    %v5518 = vld [vmem:[#allocation6 + $0xc8] sm:$0xf]
    %v5519 = vld [vmem:[#allocation6 + $0xcc] sm:$0xf]
    %v5520 = vld [vmem:[#allocation6 + $0xd0] sm:$0xf]
    %v5521 = vld [vmem:[#allocation6 + $0xd4] sm:$0xf]
    %v5522 = vld [vmem:[#allocation6 + $0xd8] sm:$0xf]
    %v5523 = vld [vmem:[#allocation6 + $0xdc] sm:$0xf]
    %v5524 = vld [vmem:[#allocation6 + $0xe0] sm:$0xf]
    %v5525 = vld [vmem:[#allocation6 + $0xe4] sm:$0xf]
    %v5526 = vld [vmem:[#allocation6 + $0xe8] sm:$0xf]
    %v5527 = vld [vmem:[#allocation6 + $0xec] sm:$0xf]
    %v5528 = vld [vmem:[#allocation6 + $0xf0] sm:$0xf]
    %v5529 = vld [vmem:[#allocation6 + $0xf4] sm:$0xf]
    %v5530 = vld [vmem:[#allocation6 + $0xf8] sm:$0xf]
    %v5531 = vld [vmem:[#allocation6 + $0xfc] sm:$0xf]
    %v5532 = vld [vmem:[#allocation6 + $0x100] sm:$0xf]
    %v5533 = vld [vmem:[#allocation6 + $0x104] sm:$0xf]
    %v5534 = vld [vmem:[#allocation6 + $0x108] sm:$0xf]
    %v5535 = vld [vmem:[#allocation6 + $0x10c] sm:$0xf]
    %v5536 = vld [vmem:[#allocation6 + $0x110] sm:$0xf]
    %v5537 = vld [vmem:[#allocation6 + $0x114] sm:$0xf]
    %v5538 = vld [vmem:[#allocation6 + $0x118] sm:$0xf]
    %v5539 = vld [vmem:[#allocation6 + $0x11c] sm:$0xf]
    %v5540 = vld [vmem:[#allocation6 + $0x120] sm:$0xf]
    %v5541 = vld [vmem:[#allocation6 + $0x124] sm:$0xf]
    %v5542 = vld [vmem:[#allocation6 + $0x128] sm:$0xf]
    %v5543 = vld [vmem:[#allocation6 + $0x12c] sm:$0xf]
    %v5544 = vld [vmem:[#allocation6 + $0x130] sm:$0xf]
    %v5545 = vld [vmem:[#allocation6 + $0x134] sm:$0xf]
    %v5546 = vld [vmem:[#allocation6 + $0x138] sm:$0xf]
    %v5547 = vld [vmem:[#allocation6 + $0x13c] sm:$0xf]
    %v5548 = vld [vmem:[#allocation6 + $0x140] sm:$0xf]
    %v5549 = vld [vmem:[#allocation6 + $0x144] sm:$0xf]
    %v5550 = vld [vmem:[#allocation6 + $0x148] sm:$0xf]
    %v5551 = vld [vmem:[#allocation6 + $0x14c] sm:$0xf]
    %v5552 = vld [vmem:[#allocation6 + $0x150] sm:$0xf]
    %v5553 = vld [vmem:[#allocation6 + $0x154] sm:$0xf]
    %v5554 = vld [vmem:[#allocation6 + $0x158] sm:$0xf]
    %v5555 = vld [vmem:[#allocation6 + $0x15c] sm:$0xf]
    %v5556 = vld [vmem:[#allocation6 + $0x160] sm:$0xf]
    %v5557 = vld [vmem:[#allocation6 + $0x164] sm:$0xf]
    %v5558 = vld [vmem:[#allocation6 + $0x168] sm:$0xf]
    %v5559 = vld [vmem:[#allocation6 + $0x16c] sm:$0xf]
    %v5560 = vld [vmem:[#allocation6 + $0x170] sm:$0xf]
    %v5561 = vld [vmem:[#allocation6 + $0x174] sm:$0xf]
    %v5562 = vld [vmem:[#allocation6 + $0x178] sm:$0xf]
    %v5563 = vld [vmem:[#allocation6 + $0x17c] sm:$0xf]
    %v5564 = vld [vmem:[#allocation6 + $0x180] sm:$0xf]
    %v5565 = vld [vmem:[#allocation6 + $0x184] sm:$0xf]
    %v5566 = vld [vmem:[#allocation6 + $0x188] sm:$0xf]
    %v5567 = vld [vmem:[#allocation6 + $0x18c] sm:$0xf]
    %v5568 = vld [vmem:[#allocation6 + $0x190] sm:$0xf]
    %v5569 = vld [vmem:[#allocation6 + $0x194] sm:$0xf]
    %v5570 = vld [vmem:[#allocation6 + $0x198] sm:$0xf]
    %v5571 = vld [vmem:[#allocation6 + $0x19c] sm:$0xf]
    %v5572 = vld [vmem:[#allocation6 + $0x1a0] sm:$0xf]
    %v5573 = vld [vmem:[#allocation6 + $0x1a4] sm:$0xf]
    %v5574 = vld [vmem:[#allocation6 + $0x1a8] sm:$0xf]
    %v5575 = vld [vmem:[#allocation6 + $0x1ac] sm:$0xf]
    %v5576 = vld [vmem:[#allocation6 + $0x1b0] sm:$0xf]
    %v5577 = vld [vmem:[#allocation6 + $0x1b4] sm:$0xf]
    %v5578 = vld [vmem:[#allocation6 + $0x1b8] sm:$0xf]
    %v5579 = vld [vmem:[#allocation6 + $0x1bc] sm:$0xf]
    %v5580 = vld [vmem:[#allocation6 + $0x1c0] sm:$0xf]
    %v5581 = vld [vmem:[#allocation6 + $0x1c4] sm:$0xf]
    %v5582 = vld [vmem:[#allocation6 + $0x1c8] sm:$0xf]
    %v5583 = vld [vmem:[#allocation6 + $0x1cc] sm:$0xf]
    %v5584 = vld [vmem:[#allocation6 + $0x1d0] sm:$0xf]
    %v5585 = vld [vmem:[#allocation6 + $0x1d4] sm:$0xf]
    %v5586 = vld [vmem:[#allocation6 + $0x1d8] sm:$0xf]
    %v5587 = vld [vmem:[#allocation6 + $0x1dc] sm:$0xf]
    %v5588 = vld [vmem:[#allocation6 + $0x1e0] sm:$0xf]
    %v5589 = vld [vmem:[#allocation6 + $0x1e4] sm:$0xf]
    %v5590 = vld [vmem:[#allocation6 + $0x1e8] sm:$0xf]
    %v5591 = vld [vmem:[#allocation6 + $0x1ec] sm:$0xf]
    %v5592 = vld [vmem:[#allocation6 + $0x1f0] sm:$0xf]
    %v5593 = vld [vmem:[#allocation6 + $0x1f4] sm:$0xf]
    %v5594 = vld [vmem:[#allocation6 + $0x1f8] sm:$0xf]
    %v5595 = vld [vmem:[#allocation6 + $0x1fc] sm:$0xf]
    %v5596 = vld [vmem:[#allocation6 + $0x200] sm:$0xf]
    %v5597 = vld [vmem:[#allocation6 + $0x204] sm:$0xf]
    %v5598 = vld [vmem:[#allocation6 + $0x208] sm:$0xf]
    %v5599 = vld [vmem:[#allocation6 + $0x20c] sm:$0xf]
    %v5600 = vld [vmem:[#allocation6 + $0x210] sm:$0xf]
    %v5601 = vld [vmem:[#allocation6 + $0x214] sm:$0xf]
    %v5602 = vld [vmem:[#allocation6 + $0x218] sm:$0xf]
    %v5603 = vld [vmem:[#allocation6 + $0x21c] sm:$0xf]
    %v5604 = vld [vmem:[#allocation6 + $0x220] sm:$0xf]
    %v5605 = vld [vmem:[#allocation6 + $0x224] sm:$0xf]
    %v5606 = vld [vmem:[#allocation6 + $0x228] sm:$0xf]
    %v5607 = vld [vmem:[#allocation6 + $0x22c] sm:$0xf]
    %v5608 = vld [vmem:[#allocation6 + $0x230] sm:$0xf]
    %v5609 = vld [vmem:[#allocation6 + $0x234] sm:$0xf]
    %v5610 = vld [vmem:[#allocation6 + $0x238] sm:$0xf]
    %v5611 = vld [vmem:[#allocation6 + $0x23c] sm:$0xf]
    %v5613 = vlaneseq
    %v5614 = vshrl.u32 %v5613, 7
    %v5615 = vsub.s32 0, %v5614
    %v5616 = vrot.slane %v4372, %v5615
    %v5762 = vunpack.c.l.b16 %v5468
    %v5763 = vunpack.c.l.b16 %v5469
    %v5764 = vunpack.c.l.b16 %v5470
    %v5765 = vunpack.c.l.b16 %v5471
    %v5766 = vunpack.c.l.b16 %v5472
    %v5767 = vunpack.c.l.b16 %v5473
    %v5768 = vunpack.c.l.b16 %v5474
    %v5769 = vunpack.c.l.b16 %v5475
    %v5770 = vunpack.c.l.b16 %v5476
    %v5771 = vunpack.c.l.b16 %v5477
    %v5772 = vunpack.c.l.b16 %v5478
    %v5773 = vunpack.c.l.b16 %v5479
    %v5774 = vunpack.c.l.b16 %v5480
    %v5775 = vunpack.c.l.b16 %v5481
    %v5776 = vunpack.c.l.b16 %v5482
    %v5777 = vunpack.c.l.b16 %v5483
    %v5778 = vunpack.c.l.b16 %v5484
    %v5779 = vunpack.c.l.b16 %v5485
    %v5780 = vunpack.c.l.b16 %v5486
    %v5781 = vunpack.c.l.b16 %v5487
    %v5782 = vunpack.c.l.b16 %v5488
    %v5783 = vunpack.c.l.b16 %v5489
    %v5784 = vunpack.c.l.b16 %v5490
    %v5785 = vunpack.c.l.b16 %v5491
    %v5786 = vunpack.c.l.b16 %v5492
    %v5787 = vunpack.c.l.b16 %v5493
    %v5788 = vunpack.c.l.b16 %v5494
    %v5789 = vunpack.c.l.b16 %v5495
    %v5790 = vunpack.c.l.b16 %v5496
    %v5791 = vunpack.c.l.b16 %v5497
    %v5792 = vunpack.c.l.b16 %v5498
    %v5793 = vunpack.c.l.b16 %v5499
    %v5794 = vunpack.c.l.b16 %v5500
    %v5795 = vunpack.c.l.b16 %v5501
    %v5796 = vunpack.c.l.b16 %v5502
    %v5797 = vunpack.c.l.b16 %v5503
    %v5798 = vunpack.c.l.b16 %v5504
    %v5799 = vunpack.c.l.b16 %v5505
    %v5800 = vunpack.c.l.b16 %v5506
    %v5801 = vunpack.c.l.b16 %v5507
    %v5802 = vunpack.c.l.b16 %v5508
    %v5803 = vunpack.c.l.b16 %v5509
    %v5804 = vunpack.c.l.b16 %v5510
    %v5805 = vunpack.c.l.b16 %v5511
    %v5806 = vunpack.c.l.b16 %v5512
    %v5807 = vunpack.c.l.b16 %v5513
    %v5808 = vunpack.c.l.b16 %v5514
    %v5809 = vunpack.c.l.b16 %v5515
    %v5810 = vunpack.c.l.b16 %v5516
    %v5811 = vunpack.c.l.b16 %v5517
    %v5812 = vunpack.c.l.b16 %v5518
    %v5813 = vunpack.c.l.b16 %v5519
    %v5814 = vunpack.c.l.b16 %v5520
    %v5815 = vunpack.c.l.b16 %v5521
    %v5816 = vunpack.c.l.b16 %v5522
    %v5817 = vunpack.c.l.b16 %v5523
    %v5818 = vunpack.c.l.b16 %v5524
    %v5819 = vunpack.c.l.b16 %v5525
    %v5820 = vunpack.c.l.b16 %v5526
    %v5821 = vunpack.c.l.b16 %v5527
    %v5822 = vunpack.c.l.b16 %v5528
    %v5823 = vunpack.c.l.b16 %v5529
    %v5824 = vunpack.c.l.b16 %v5530
    %v5825 = vunpack.c.l.b16 %v5531
    %v5826 = vunpack.c.l.b16 %v5532
    %v5827 = vunpack.c.l.b16 %v5533
    %v5828 = vunpack.c.l.b16 %v5534
    %v5829 = vunpack.c.l.b16 %v5535
    %v5830 = vunpack.c.l.b16 %v5536
    %v5831 = vunpack.c.l.b16 %v5537
    %v5832 = vunpack.c.l.b16 %v5538
    %v5833 = vunpack.c.l.b16 %v5539
    %v5834 = vunpack.c.l.b16 %v5540
    %v5835 = vunpack.c.l.b16 %v5541
    %v5836 = vunpack.c.l.b16 %v5542
    %v5837 = vunpack.c.l.b16 %v5543
    %v5838 = vunpack.c.l.b16 %v5544
    %v5839 = vunpack.c.l.b16 %v5545
    %v5840 = vunpack.c.l.b16 %v5546
    %v5841 = vunpack.c.l.b16 %v5547
    %v5842 = vunpack.c.l.b16 %v5548
    %v5843 = vunpack.c.l.b16 %v5549
    %v5844 = vunpack.c.l.b16 %v5550
    %v5845 = vunpack.c.l.b16 %v5551
    %v5846 = vunpack.c.l.b16 %v5552
    %v5847 = vunpack.c.l.b16 %v5553
    %v5848 = vunpack.c.l.b16 %v5554
    %v5849 = vunpack.c.l.b16 %v5555
    %v5850 = vunpack.c.l.b16 %v5556
    %v5851 = vunpack.c.l.b16 %v5557
    %v5852 = vunpack.c.l.b16 %v5558
    %v5853 = vunpack.c.l.b16 %v5559
    %v5854 = vunpack.c.l.b16 %v5560
    %v5855 = vunpack.c.l.b16 %v5561
    %v5856 = vunpack.c.l.b16 %v5562
    %v5857 = vunpack.c.l.b16 %v5563
    %v5858 = vunpack.c.l.b16 %v5564
    %v5859 = vunpack.c.l.b16 %v5565
    %v5860 = vunpack.c.l.b16 %v5566
    %v5861 = vunpack.c.l.b16 %v5567
    %v5862 = vunpack.c.l.b16 %v5568
    %v5863 = vunpack.c.l.b16 %v5569
    %v5864 = vunpack.c.l.b16 %v5570
    %v5865 = vunpack.c.l.b16 %v5571
    %v5866 = vunpack.c.l.b16 %v5572
    %v5867 = vunpack.c.l.b16 %v5573
    %v5868 = vunpack.c.l.b16 %v5574
    %v5869 = vunpack.c.l.b16 %v5575
    %v5870 = vunpack.c.l.b16 %v5576
    %v5871 = vunpack.c.l.b16 %v5577
    %v5872 = vunpack.c.l.b16 %v5578
    %v5873 = vunpack.c.l.b16 %v5579
    %v5874 = vunpack.c.l.b16 %v5580
    %v5875 = vunpack.c.l.b16 %v5581
    %v5876 = vunpack.c.l.b16 %v5582
    %v5877 = vunpack.c.l.b16 %v5583
    %v5878 = vunpack.c.l.b16 %v5584
    %v5879 = vunpack.c.l.b16 %v5585
    %v5880 = vunpack.c.l.b16 %v5586
    %v5881 = vunpack.c.l.b16 %v5587
    %v5882 = vunpack.c.l.b16 %v5588
    %v5883 = vunpack.c.l.b16 %v5589
    %v5884 = vunpack.c.l.b16 %v5590
    %v5885 = vunpack.c.l.b16 %v5591
    %v5886 = vunpack.c.l.b16 %v5592
    %v5887 = vunpack.c.l.b16 %v5593
    %v5888 = vunpack.c.l.b16 %v5594
    %v5889 = vunpack.c.l.b16 %v5595
    %v5890 = vunpack.c.l.b16 %v5596
    %v5891 = vunpack.c.l.b16 %v5597
    %v5892 = vunpack.c.l.b16 %v5598
    %v5893 = vunpack.c.l.b16 %v5599
    %v5894 = vunpack.c.l.b16 %v5600
    %v5895 = vunpack.c.l.b16 %v5601
    %v5896 = vunpack.c.l.b16 %v5602
    %v5897 = vunpack.c.l.b16 %v5603
    %v5898 = vunpack.c.l.b16 %v5604
    %v5899 = vunpack.c.l.b16 %v5605
    %v5900 = vunpack.c.l.b16 %v5606
    %v5901 = vunpack.c.l.b16 %v5607
    %v5902 = vunpack.c.l.b16 %v5608
    %v5903 = vunpack.c.l.b16 %v5609
    %v5904 = vunpack.c.l.b16 %v5610
    %v5905 = vunpack.c.l.b16 %v5611
    %v5906 = vpack.c.b16 %v5763, %v5762
    %v5907 = vpack.c.b16 %v5765, %v5764
    %v5908 = vpack.c.b16 %v5767, %v5766
    %v5909 = vpack.c.b16 %v5769, %v5768
    %v5910 = vpack.c.b16 %v5771, %v5770
    %v5911 = vpack.c.b16 %v5773, %v5772
    %v5912 = vpack.c.b16 %v5775, %v5774
    %v5913 = vpack.c.b16 %v5777, %v5776
    %v5914 = vpack.c.b16 %v5779, %v5778
    %v5915 = vpack.c.b16 %v5781, %v5780
    %v5916 = vpack.c.b16 %v5783, %v5782
    %v5917 = vpack.c.b16 %v5785, %v5784
    %v5918 = vpack.c.b16 %v5787, %v5786
    %v5919 = vpack.c.b16 %v5789, %v5788
    %v5920 = vpack.c.b16 %v5791, %v5790
    %v5921 = vpack.c.b16 %v5793, %v5792
    %v5922 = vpack.c.b16 %v5795, %v5794
    %v5923 = vpack.c.b16 %v5797, %v5796
    %v5924 = vpack.c.b16 %v5799, %v5798
    %v5925 = vpack.c.b16 %v5801, %v5800
    %v5926 = vpack.c.b16 %v5803, %v5802
    %v5927 = vpack.c.b16 %v5805, %v5804
    %v5928 = vpack.c.b16 %v5807, %v5806
    %v5929 = vpack.c.b16 %v5809, %v5808
    %v5930 = vpack.c.b16 %v5811, %v5810
    %v5931 = vpack.c.b16 %v5813, %v5812
    %v5932 = vpack.c.b16 %v5815, %v5814
    %v5933 = vpack.c.b16 %v5817, %v5816
    %v5934 = vpack.c.b16 %v5819, %v5818
    %v5935 = vpack.c.b16 %v5821, %v5820
    %v5936 = vpack.c.b16 %v5823, %v5822
    %v5937 = vpack.c.b16 %v5825, %v5824
    %v5938 = vpack.c.b16 %v5827, %v5826
    %v5939 = vpack.c.b16 %v5829, %v5828
    %v5940 = vpack.c.b16 %v5831, %v5830
    %v5941 = vpack.c.b16 %v5833, %v5832
    %v5942 = vpack.c.b16 %v5835, %v5834
    %v5943 = vpack.c.b16 %v5837, %v5836
    %v5944 = vpack.c.b16 %v5839, %v5838
    %v5945 = vpack.c.b16 %v5841, %v5840
    %v5946 = vpack.c.b16 %v5843, %v5842
    %v5947 = vpack.c.b16 %v5845, %v5844
    %v5948 = vpack.c.b16 %v5847, %v5846
    %v5949 = vpack.c.b16 %v5849, %v5848
    %v5950 = vpack.c.b16 %v5851, %v5850
    %v5951 = vpack.c.b16 %v5853, %v5852
    %v5952 = vpack.c.b16 %v5855, %v5854
    %v5953 = vpack.c.b16 %v5857, %v5856
    %v5954 = vpack.c.b16 %v5859, %v5858
    %v5955 = vpack.c.b16 %v5861, %v5860
    %v5956 = vpack.c.b16 %v5863, %v5862
    %v5957 = vpack.c.b16 %v5865, %v5864
    %v5958 = vpack.c.b16 %v5867, %v5866
    %v5959 = vpack.c.b16 %v5869, %v5868
    %v5960 = vpack.c.b16 %v5871, %v5870
    %v5961 = vpack.c.b16 %v5873, %v5872
    %v5962 = vpack.c.b16 %v5875, %v5874
    %v5963 = vpack.c.b16 %v5877, %v5876
    %v5964 = vpack.c.b16 %v5879, %v5878
    %v5965 = vpack.c.b16 %v5881, %v5880
    %v5966 = vpack.c.b16 %v5883, %v5882
    %v5967 = vpack.c.b16 %v5885, %v5884
    %v5968 = vpack.c.b16 %v5887, %v5886
    %v5969 = vpack.c.b16 %v5889, %v5888
    %v5970 = vpack.c.b16 %v5891, %v5890
    %v5971 = vpack.c.b16 %v5893, %v5892
    %v5972 = vpack.c.b16 %v5895, %v5894
    %v5973 = vpack.c.b16 %v5897, %v5896
    %v5974 = vpack.c.b16 %v5899, %v5898
    %v5975 = vpack.c.b16 %v5901, %v5900
    %v5976 = vpack.c.b16 %v5903, %v5902
    %v5977 = vpack.c.b16 %v5905, %v5904
    %6050 = vmatprep.subr.bf16.mxu0 0
    %6051 = vmatpush1.bf16.msra.mxu0 %v5906
    %6052 = vmatprep.subr.bf16.mxu0 0
    %6053 = vmatpush1.bf16.msra.mxu0 %v5907
    %6054 = vmatprep.subr.bf16.mxu0 0
    %6055 = vmatpush1.bf16.msra.mxu0 %v5908
    %6056 = vmatprep.subr.bf16.mxu0 0
    %6057 = vmatpush1.bf16.msra.mxu0 %v5909
    %6058 = vmatprep.subr.bf16.mxu0 0
    %6059 = vmatpush1.bf16.msra.mxu0 %v5910
    %6060 = vmatprep.subr.bf16.mxu0 0
    %6061 = vmatpush1.bf16.msra.mxu0 %v5911
    %6062 = vmatprep.subr.bf16.mxu0 0
    %6063 = vmatpush1.bf16.msra.mxu0 %v5912
    %6064 = vmatprep.subr.bf16.mxu0 0
    %6065 = vmatpush1.bf16.msra.mxu0 %v5913
    %6066 = vmatprep.subr.bf16.mxu0 0
    %6067 = vmatpush1.bf16.msra.mxu0 %v5914
    %6068 = vmatprep.subr.bf16.mxu0 0
    %6069 = vmatpush1.bf16.msra.mxu0 %v5915
    %6070 = vmatprep.subr.bf16.mxu0 0
    %6071 = vmatpush1.bf16.msra.mxu0 %v5916
    %6072 = vmatprep.subr.bf16.mxu0 0
    %6073 = vmatpush1.bf16.msra.mxu0 %v5917
    %6074 = vmatprep.subr.bf16.mxu0 0
    %6075 = vmatpush1.bf16.msra.mxu0 %v5918
    %6076 = vmatprep.subr.bf16.mxu0 0
    %6077 = vmatpush1.bf16.msra.mxu0 %v5919
    %6078 = vmatprep.subr.bf16.mxu0 0
    %6079 = vmatpush1.bf16.msra.mxu0 %v5920
    %6080 = vmatprep.subr.bf16.mxu0 0
    %6081 = vmatpush1.bf16.msra.mxu0 %v5921
    %6082 = vmatprep.mubr.bf16.mxu0 %v5155
    %6083 = vmatmul.mubr.bf16.gmra.mrb[0].mxu0 %v1594
    %v6084 = vpop.f32.mrb[0].mxu0
    %v6085 = vadd.f32 %v5616, %v6084
    %v6086 = vpop.f32.mrb[0].mxu0
    %v6087 = vpop.f32.mrb[0].mxu0
    %v6088 = vadd.f32 %v5616, %v6087
    %v6089 = vpop.f32.mrb[0].mxu0
    %6090 = vmatprep.mubr.bf16.mxu0 %v5167
    %6091 = vmatmul.mubr.bf16.gmra.mrb[0].mxu0 %v5110
    %v6092 = vpop.f32.mrb[0].mxu0
    %v6093 = vadd.f32 %v5616, %v6092
    %v6094 = vpop.f32.mrb[0].mxu0
    %v6095 = vpop.f32.mrb[0].mxu0
    %v6096 = vadd.f32 %v5616, %v6095
    %v6097 = vpop.f32.mrb[0].mxu0
    %6098 = vmatprep.mubr.bf16.mxu0 %v5167
    %6099 = vmatmul.mubr.bf16.gmra.mrb[0].mxu0 %v5110
    %v6100 = vpop.f32.mrb[0].mxu0
    %v6101 = vadd.f32 %v5616, %v6100
    %v6102 = vpop.f32.mrb[0].mxu0
    %v6103 = vpop.f32.mrb[0].mxu0
    %v6104 = vadd.f32 %v5616, %v6103
    %v6105 = vpop.f32.mrb[0].mxu0
    %6106 = vmatprep.mubr.bf16.mxu0 %v5179
    %6107 = vmatmul.mubr.bf16.gmra.mrb[0].mxu0 %v5111
    %v6108 = vpop.f32.mrb[0].mxu0
    %v6109 = vadd.f32 %v5616, %v6108
    %v6110 = vpop.f32.mrb[0].mxu0
    %v6111 = vpop.f32.mrb[0].mxu0
    %v6112 = vadd.f32 %v5616, %v6111
    %v6113 = vpop.f32.mrb[0].mxu0
    %6114 = vmatprep.mubr.bf16.mxu0 %v5179
    %6115 = vmatmul.mubr.bf16.gmra.mrb[0].mxu0 %v5111
    %v6116 = vpop.f32.mrb[0].mxu0
    %v6117 = vadd.f32 %v5616, %v6116
    %v6118 = vpop.f32.mrb[0].mxu0
    %v6119 = vpop.f32.mrb[0].mxu0
    %v6120 = vadd.f32 %v5616, %v6119
    %v6121 = vpop.f32.mrb[0].mxu0
    %6122 = vmatprep.mubr.bf16.mxu0 %v5191
    %6123 = vmatmul.mubr.bf16.gmra.mrb[0].mxu0 %v5112
    %v6124 = vpop.f32.mrb[0].mxu0
    %v6125 = vadd.f32 %v5616, %v6124
    %v6126 = vpop.f32.mrb[0].mxu0
    %v6127 = vpop.f32.mrb[0].mxu0
    %v6128 = vadd.f32 %v5616, %v6127
    %v6129 = vpop.f32.mrb[0].mxu0
    %6130 = vmatprep.mubr.bf16.mxu0 %v5191
    %6131 = vmatmul.mubr.bf16.gmra.mrb[0].mxu0 %v5112
    %v6132 = vpop.f32.mrb[0].mxu0
    %v6133 = vadd.f32 %v5616, %v6132
    %v6134 = vpop.f32.mrb[0].mxu0
    %v6135 = vpop.f32.mrb[0].mxu0
    %v6136 = vadd.f32 %v5616, %v6135
    %v6137 = vpop.f32.mrb[0].mxu0
    %6138 = vmatprep.mubr.bf16.mxu0 %v5203
    %6139 = vmatmul.mubr.bf16.gmra.mrb[0].mxu0 %v5113
    %v6140 = vpop.f32.mrb[0].mxu0
    %v6141 = vadd.f32 %v5616, %v6140
    %v6142 = vpop.f32.mrb[0].mxu0
    %v6143 = vpop.f32.mrb[0].mxu0
    %v6144 = vadd.f32 %v5616, %v6143
    %v6145 = vpop.f32.mrb[0].mxu0
    %6146 = vmatprep.mubr.bf16.mxu0 %v5203
    %6147 = vmatmul.mubr.bf16.gmra.mrb[0].mxu0 %v5113
    %v6148 = vpop.f32.mrb[0].mxu0
    %v6149 = vadd.f32 %v5616, %v6148
    %v6150 = vpop.f32.mrb[0].mxu0
    %v6151 = vpop.f32.mrb[0].mxu0
    %v6152 = vadd.f32 %v5616, %v6151
    %v6153 = vpop.f32.mrb[0].mxu0
    %6154 = vmatprep.mubr.bf16.mxu0 %v5215
    %6155 = vmatmul.mubr.bf16.gmra.mrb[0].mxu0 %v5114
    %v6156 = vpop.f32.mrb[0].mxu0
    %v6157 = vadd.f32 %v5616, %v6156
    %v6158 = vpop.f32.mrb[0].mxu0
    %v6159 = vpop.f32.mrb[0].mxu0
    %v6160 = vadd.f32 %v5616, %v6159
    %v6161 = vpop.f32.mrb[0].mxu0
    %6162 = vmatprep.mubr.bf16.mxu0 %v5215
    %6163 = vmatmul.mubr.bf16.gmra.mrb[0].mxu0 %v5114
    %v6164 = vpop.f32.mrb[0].mxu0
    %v6165 = vadd.f32 %v5616, %v6164
    %v6166 = vpop.f32.mrb[0].mxu0
    %v6167 = vpop.f32.mrb[0].mxu0
    %v6168 = vadd.f32 %v5616, %v6167
    %v6169 = vpop.f32.mrb[0].mxu0
    %6170 = vmatprep.mubr.bf16.mxu0 %v5227
    %6171 = vmatmul.mubr.bf16.gmra.mrb[0].mxu0 %v5115
    %v6172 = vpop.f32.mrb[0].mxu0
    %v6173 = vadd.f32 %v5616, %v6172
    %v6174 = vpop.f32.mrb[0].mxu0
    %v6175 = vpop.f32.mrb[0].mxu0
    %v6176 = vadd.f32 %v5616, %v6175
    %v6177 = vpop.f32.mrb[0].mxu0
    %6178 = vmatprep.mubr.bf16.mxu0 %v5227
    %6179 = vmatmul.mubr.bf16.gmra.mrb[0].mxu0 %v5115
    %v6180 = vpop.f32.mrb[0].mxu0
    %v6181 = vadd.f32 %v5616, %v6180
    %v6182 = vpop.f32.mrb[0].mxu0
    %v6183 = vpop.f32.mrb[0].mxu0
    %v6184 = vadd.f32 %v5616, %v6183
    %v6185 = vpop.f32.mrb[0].mxu0
    %6186 = vmatprep.mubr.bf16.mxu0 %v5239
    %6187 = vmatmul.mubr.bf16.gmra.mrb[0].mxu0 %v5116
    %v6188 = vpop.f32.mrb[0].mxu0
    %v6189 = vadd.f32 %v5616, %v6188
    %v6190 = vpop.f32.mrb[0].mxu0
    %v6191 = vpop.f32.mrb[0].mxu0
    %v6192 = vadd.f32 %v5616, %v6191
    %v6193 = vpop.f32.mrb[0].mxu0
    %6194 = vmatprep.mubr.bf16.mxu0 %v5239
    %6195 = vmatmul.mubr.bf16.gmra.mrb[0].mxu0 %v5116
    %v6196 = vpop.f32.mrb[0].mxu0
    %v6197 = vadd.f32 %v5616, %v6196
    %v6198 = vpop.f32.mrb[0].mxu0
    %v6199 = vpop.f32.mrb[0].mxu0
    %v6200 = vadd.f32 %v5616, %v6199
    %v6201 = vpop.f32.mrb[0].mxu0
    %6202 = vmatprep.mubr.bf16.mxu0 %v5251
    %6203 = vmatmul.mubr.bf16.gmra.mrb[0].mxu0 %v5117
    %v6204 = vpop.f32.mrb[0].mxu0
    %v6205 = vadd.f32 %v5616, %v6204
    %v6206 = vpop.f32.mrb[0].mxu0
    %v6207 = vpop.f32.mrb[0].mxu0
    %v6208 = vadd.f32 %v5616, %v6207
    %v6209 = vpop.f32.mrb[0].mxu0
    %6210 = vmatprep.mubr.bf16.mxu0 %v5155
    %6211 = vmatmul.mubr.bf16.gmra.mrb[0].mxu0 %v1594
    %v6212 = vpop.f32.mrb[0].mxu0
    %v6213 = vadd.f32 %v5616, %v6212
    %v6214 = vpop.f32.mrb[0].mxu0
    %v6215 = vpop.f32.mrb[0].mxu0
    %v6216 = vadd.f32 %v5616, %v6215
    %v6217 = vpop.f32.mrb[0].mxu0
    %6218 = vmatprep.mubr.bf16.mxu0 %v5263
    %6219 = vmatmul.mubr.bf16.gmra.mrb[0].mxu0 %v5118
    %v6220 = vpop.f32.mrb[0].mxu0
    %v6221 = vadd.f32 %v5616, %v6220
    %v6222 = vpop.f32.mrb[0].mxu0
    %v6223 = vpop.f32.mrb[0].mxu0
    %v6224 = vadd.f32 %v5616, %v6223
    %v6225 = vpop.f32.mrb[0].mxu0
    %6226 = vmatprep.mubr.bf16.mxu0 %v5263
    %6227 = vmatmul.mubr.bf16.gmra.mrb[0].mxu0 %v5118
    %v6228 = vpop.f32.mrb[0].mxu0
    %v6229 = vadd.f32 %v5616, %v6228
    %v6230 = vpop.f32.mrb[0].mxu0
    %v6231 = vpop.f32.mrb[0].mxu0
    %v6232 = vadd.f32 %v5616, %v6231
    %v6233 = vpop.f32.mrb[0].mxu0
    %6234 = vmatprep.mubr.bf16.mxu0 %v5275
    %6235 = vmatmul.mubr.bf16.gmra.mrb[0].mxu0 %v5119
    %v6236 = vpop.f32.mrb[0].mxu0
    %v6237 = vadd.f32 %v5616, %v6236
    %v6238 = vpop.f32.mrb[0].mxu0
    %v6239 = vpop.f32.mrb[0].mxu0
    %v6240 = vadd.f32 %v5616, %v6239
    %v6241 = vpop.f32.mrb[0].mxu0
    %6242 = vmatprep.mubr.bf16.mxu0 %v5275
    %6243 = vmatmul.mubr.bf16.gmra.mrb[0].mxu0 %v5119
    %v6244 = vpop.f32.mrb[0].mxu0
    %v6245 = vadd.f32 %v5616, %v6244
    %v6246 = vpop.f32.mrb[0].mxu0
    %v6247 = vpop.f32.mrb[0].mxu0
    %v6248 = vadd.f32 %v5616, %v6247
    %v6249 = vpop.f32.mrb[0].mxu0
    %6250 = vmatprep.mubr.bf16.mxu0 %v5287
    %6251 = vmatmul.mubr.bf16.gmra.mrb[0].mxu0 %v5120
    %v6252 = vpop.f32.mrb[0].mxu0
    %v6253 = vadd.f32 %v5616, %v6252
    %v6254 = vpop.f32.mrb[0].mxu0
    %v6255 = vpop.f32.mrb[0].mxu0
    %v6256 = vadd.f32 %v5616, %v6255
    %v6257 = vpop.f32.mrb[0].mxu0
    %6258 = vmatprep.mubr.bf16.mxu0 %v5287
    %6259 = vmatmul.mubr.bf16.gmra.mrb[0].mxu0 %v5120
    %v6260 = vpop.f32.mrb[0].mxu0
    %v6261 = vadd.f32 %v5616, %v6260
    %v6262 = vpop.f32.mrb[0].mxu0
    %v6263 = vpop.f32.mrb[0].mxu0
    %v6264 = vadd.f32 %v5616, %v6263
    %v6265 = vpop.f32.mrb[0].mxu0
    %6266 = vmatprep.mubr.bf16.mxu0 %v5299
    %6267 = vmatmul.mubr.bf16.gmra.mrb[0].mxu0 %v5121
    %v6268 = vpop.f32.mrb[0].mxu0
    %v6269 = vadd.f32 %v5616, %v6268
    %v6270 = vpop.f32.mrb[0].mxu0
    %v6271 = vpop.f32.mrb[0].mxu0
    %v6272 = vadd.f32 %v5616, %v6271
    %v6273 = vpop.f32.mrb[0].mxu0
    %6274 = vmatprep.mubr.bf16.mxu0 %v5299
    %6275 = vmatmul.mubr.bf16.gmra.mrb[0].mxu0 %v5121
    %v6276 = vpop.f32.mrb[0].mxu0
    %v6277 = vadd.f32 %v5616, %v6276
    %v6278 = vpop.f32.mrb[0].mxu0
    %v6279 = vpop.f32.mrb[0].mxu0
    %v6280 = vadd.f32 %v5616, %v6279
    %v6281 = vpop.f32.mrb[0].mxu0
    %6282 = vmatprep.mubr.bf16.mxu0 %v5311
    %6283 = vmatmul.mubr.bf16.gmra.mrb[0].mxu0 %v5122
    %v6284 = vpop.f32.mrb[0].mxu0
    %v6285 = vadd.f32 %v5616, %v6284
    %v6286 = vpop.f32.mrb[0].mxu0
    %v6287 = vpop.f32.mrb[0].mxu0
    %v6288 = vadd.f32 %v5616, %v6287
    %v6289 = vpop.f32.mrb[0].mxu0
    %6290 = vmatprep.mubr.bf16.mxu0 %v5311
    %6291 = vmatmul.mubr.bf16.gmra.mrb[0].mxu0 %v5122
    %v6292 = vpop.f32.mrb[0].mxu0
    %v6293 = vadd.f32 %v5616, %v6292
    %v6294 = vpop.f32.mrb[0].mxu0
    %v6295 = vpop.f32.mrb[0].mxu0
    %v6296 = vadd.f32 %v5616, %v6295
    %v6297 = vpop.f32.mrb[0].mxu0
    %6298 = vmatprep.mubr.bf16.mxu0 %v5323
    %6299 = vmatmul.mubr.bf16.gmra.mrb[0].mxu0 %v5123
    %v6300 = vpop.f32.mrb[0].mxu0
    %v6301 = vadd.f32 %v5616, %v6300
    %v6302 = vpop.f32.mrb[0].mxu0
    %v6303 = vpop.f32.mrb[0].mxu0
    %v6304 = vadd.f32 %v5616, %v6303
    %v6305 = vpop.f32.mrb[0].mxu0
    %6306 = vmatprep.mubr.bf16.mxu0 %v5323
    %6307 = vmatmul.mubr.bf16.gmra.mrb[0].mxu0 %v5123
    %v6308 = vpop.f32.mrb[0].mxu0
    %v6309 = vadd.f32 %v5616, %v6308
    %v6310 = vpop.f32.mrb[0].mxu0
    %v6311 = vpop.f32.mrb[0].mxu0
    %v6312 = vadd.f32 %v5616, %v6311
    %v6313 = vpop.f32.mrb[0].mxu0
    %6314 = vmatprep.mubr.bf16.mxu0 %v5335
    %6315 = vmatmul.mubr.bf16.gmra.mrb[0].mxu0 %v5124
    %v6316 = vpop.f32.mrb[0].mxu0
    %v6317 = vadd.f32 %v5616, %v6316
    %v6318 = vpop.f32.mrb[0].mxu0
    %v6319 = vpop.f32.mrb[0].mxu0
    %v6320 = vadd.f32 %v5616, %v6319
    %v6321 = vpop.f32.mrb[0].mxu0
    %6322 = vmatprep.mubr.bf16.mxu0 %v5335
    %6323 = vmatmul.mubr.bf16.gmra.mrb[0].mxu0 %v5124
    %v6324 = vpop.f32.mrb[0].mxu0
    %v6325 = vadd.f32 %v5616, %v6324
    %v6326 = vpop.f32.mrb[0].mxu0
    %v6327 = vpop.f32.mrb[0].mxu0
    %v6328 = vadd.f32 %v5616, %v6327
    %v6329 = vpop.f32.mrb[0].mxu0
    %6330 = vmatprep.mubr.bf16.mxu0 %v5347
    %6331 = vmatmul.mubr.bf16.gmra.mrb[0].mxu0 %v5125
    %v6332 = vpop.f32.mrb[0].mxu0
    %v6333 = vadd.f32 %v5616, %v6332
    %v6334 = vpop.f32.mrb[0].mxu0
    %v6335 = vpop.f32.mrb[0].mxu0
    %v6336 = vadd.f32 %v5616, %v6335
    %v6337 = vpop.f32.mrb[0].mxu0
    %6338 = vdwg.mxu0
    %6339 = vmatprep.subr.bf16.mxu0 0
    %6340 = vmatpush1.bf16.msra.mxu0 %v5922
    %6341 = vmatprep.subr.bf16.mxu0 0
    %6342 = vmatpush1.bf16.msra.mxu0 %v5923
    %6343 = vmatprep.subr.bf16.mxu0 0
    %6344 = vmatpush1.bf16.msra.mxu0 %v5924
    %6345 = vmatprep.subr.bf16.mxu0 0
    %6346 = vmatpush1.bf16.msra.mxu0 %v5925
    %6347 = vmatprep.subr.bf16.mxu0 0
    %6348 = vmatpush1.bf16.msra.mxu0 %v5926
    %6349 = vmatprep.subr.bf16.mxu0 0
    %6350 = vmatpush1.bf16.msra.mxu0 %v5927
    %6351 = vmatprep.subr.bf16.mxu0 0
    %6352 = vmatpush1.bf16.msra.mxu0 %v5928
    %6353 = vmatprep.subr.bf16.mxu0 0
    %6354 = vmatpush1.bf16.msra.mxu0 %v5929
    %6355 = vmatprep.subr.bf16.mxu0 0
    %6356 = vmatpush1.bf16.msra.mxu0 %v5930
    %6357 = vmatprep.subr.bf16.mxu0 0
    %6358 = vmatpush1.bf16.msra.mxu0 %v5931
    %6359 = vmatprep.subr.bf16.mxu0 0
    %6360 = vmatpush1.bf16.msra.mxu0 %v5932
    %6361 = vmatprep.subr.bf16.mxu0 0
    %6362 = vmatpush1.bf16.msra.mxu0 %v5933
    %6363 = vmatprep.subr.bf16.mxu0 0
    %6364 = vmatpush1.bf16.msra.mxu0 %v5934
    %6365 = vmatprep.subr.bf16.mxu0 0
    %6366 = vmatpush1.bf16.msra.mxu0 %v5935
    %6367 = vmatprep.subr.bf16.mxu0 0
    %6368 = vmatpush1.bf16.msra.mxu0 %v5936
    %6369 = vmatprep.subr.bf16.mxu0 0
    %6370 = vmatpush1.bf16.msra.mxu0 %v5937
    %6371 = vmatprep.mubr.bf16.mxu0 %v5110
    %6372 = vmatmul.mubr.bf16.gmra.mrb[0].mxu0 %v5402
    %v6373 = vpop.f32.mrb[0].mxu0
    %v6374 = vadd.f32 %v6085, %v6373
    %v6375 = vpop.f32.mrb[0].mxu0
    %v6376 = vpop.f32.mrb[0].mxu0
    %v6377 = vadd.f32 %v6088, %v6376
    %v6378 = vpop.f32.mrb[0].mxu0
    %6379 = vmatprep.mubr.bf16.mxu0 %v5110
    %6380 = vmatmul.mubr.bf16.gmra.mrb[0].mxu0 %v5405
    %v6381 = vpop.f32.mrb[0].mxu0
    %v6382 = vadd.f32 %v6093, %v6381
    %v6383 = vpop.f32.mrb[0].mxu0
    %v6384 = vpop.f32.mrb[0].mxu0
    %v6385 = vadd.f32 %v6096, %v6384
    %v6386 = vpop.f32.mrb[0].mxu0
    %6387 = vmatprep.mubr.bf16.mxu0 %v5111
    %6388 = vmatmul.mubr.bf16.gmra.mrb[0].mxu0 %v5405
    %v6389 = vpop.f32.mrb[0].mxu0
    %v6390 = vadd.f32 %v6101, %v6389
    %v6391 = vpop.f32.mrb[0].mxu0
    %v6392 = vpop.f32.mrb[0].mxu0
    %v6393 = vadd.f32 %v6104, %v6392
    %v6394 = vpop.f32.mrb[0].mxu0
    %6395 = vmatprep.mubr.bf16.mxu0 %v5111
    %6396 = vmatmul.mubr.bf16.gmra.mrb[0].mxu0 %v5408
    %v6397 = vpop.f32.mrb[0].mxu0
    %v6398 = vadd.f32 %v6109, %v6397
    %v6399 = vpop.f32.mrb[0].mxu0
    %v6400 = vpop.f32.mrb[0].mxu0
    %v6401 = vadd.f32 %v6112, %v6400
    %v6402 = vpop.f32.mrb[0].mxu0
    %6403 = vmatprep.mubr.bf16.mxu0 %v5112
    %6404 = vmatmul.mubr.bf16.gmra.mrb[0].mxu0 %v5408
    %v6405 = vpop.f32.mrb[0].mxu0
    %v6406 = vadd.f32 %v6117, %v6405
    %v6407 = vpop.f32.mrb[0].mxu0
    %v6408 = vpop.f32.mrb[0].mxu0
    %v6409 = vadd.f32 %v6120, %v6408
    %v6410 = vpop.f32.mrb[0].mxu0
    %6411 = vmatprep.mubr.bf16.mxu0 %v5112
    %6412 = vmatmul.mubr.bf16.gmra.mrb[0].mxu0 %v5411
    %v6413 = vpop.f32.mrb[0].mxu0
    %v6414 = vadd.f32 %v6125, %v6413
    %v6415 = vpop.f32.mrb[0].mxu0
    %v6416 = vpop.f32.mrb[0].mxu0
    %v6417 = vadd.f32 %v6128, %v6416
    %v6418 = vpop.f32.mrb[0].mxu0
    %6419 = vmatprep.mubr.bf16.mxu0 %v5113
    %6420 = vmatmul.mubr.bf16.gmra.mrb[0].mxu0 %v5411
    %v6421 = vpop.f32.mrb[0].mxu0
    %v6422 = vadd.f32 %v6133, %v6421
    %v6423 = vpop.f32.mrb[0].mxu0
    %v6424 = vpop.f32.mrb[0].mxu0
    %v6425 = vadd.f32 %v6136, %v6424
    %v6426 = vpop.f32.mrb[0].mxu0
    %6427 = vmatprep.mubr.bf16.mxu0 %v5113
    %6428 = vmatmul.mubr.bf16.gmra.mrb[0].mxu0 %v5414
    %v6429 = vpop.f32.mrb[0].mxu0
    %v6430 = vadd.f32 %v6141, %v6429
    %v6431 = vpop.f32.mrb[0].mxu0
    %v6432 = vpop.f32.mrb[0].mxu0
    %v6433 = vadd.f32 %v6144, %v6432
    %v6434 = vpop.f32.mrb[0].mxu0
    %6435 = vmatprep.mubr.bf16.mxu0 %v5114
    %6436 = vmatmul.mubr.bf16.gmra.mrb[0].mxu0 %v5414
    %v6437 = vpop.f32.mrb[0].mxu0
    %v6438 = vadd.f32 %v6149, %v6437
    %v6439 = vpop.f32.mrb[0].mxu0
    %v6440 = vpop.f32.mrb[0].mxu0
    %v6441 = vadd.f32 %v6152, %v6440
    %v6442 = vpop.f32.mrb[0].mxu0
    %6443 = vmatprep.mubr.bf16.mxu0 %v5114
    %6444 = vmatmul.mubr.bf16.gmra.mrb[0].mxu0 %v5417
    %v6445 = vpop.f32.mrb[0].mxu0
    %v6446 = vadd.f32 %v6157, %v6445
    %v6447 = vpop.f32.mrb[0].mxu0
    %v6448 = vpop.f32.mrb[0].mxu0
    %v6449 = vadd.f32 %v6160, %v6448
    %v6450 = vpop.f32.mrb[0].mxu0
    %6451 = vmatprep.mubr.bf16.mxu0 %v5115
    %6452 = vmatmul.mubr.bf16.gmra.mrb[0].mxu0 %v5417
    %v6453 = vpop.f32.mrb[0].mxu0
    %v6454 = vadd.f32 %v6165, %v6453
    %v6455 = vpop.f32.mrb[0].mxu0
    %v6456 = vpop.f32.mrb[0].mxu0
    %v6457 = vadd.f32 %v6168, %v6456
    %v6458 = vpop.f32.mrb[0].mxu0
    %6459 = vmatprep.mubr.bf16.mxu0 %v5115
    %6460 = vmatmul.mubr.bf16.gmra.mrb[0].mxu0 %v5420
    %v6461 = vpop.f32.mrb[0].mxu0
    %v6462 = vadd.f32 %v6173, %v6461
    %v6463 = vpop.f32.mrb[0].mxu0
    %v6464 = vpop.f32.mrb[0].mxu0
    %v6465 = vadd.f32 %v6176, %v6464
    %v6466 = vpop.f32.mrb[0].mxu0
    %6467 = vmatprep.mubr.bf16.mxu0 %v5116
    %6468 = vmatmul.mubr.bf16.gmra.mrb[0].mxu0 %v5420
    %v6469 = vpop.f32.mrb[0].mxu0
    %v6470 = vadd.f32 %v6181, %v6469
    %v6471 = vpop.f32.mrb[0].mxu0
    %v6472 = vpop.f32.mrb[0].mxu0
    %v6473 = vadd.f32 %v6184, %v6472
    %v6474 = vpop.f32.mrb[0].mxu0
    %6475 = vmatprep.mubr.bf16.mxu0 %v5116
    %6476 = vmatmul.mubr.bf16.gmra.mrb[0].mxu0 %v5423
    %v6477 = vpop.f32.mrb[0].mxu0
    %v6478 = vadd.f32 %v6189, %v6477
    %v6479 = vpop.f32.mrb[0].mxu0
    %v6480 = vpop.f32.mrb[0].mxu0
    %v6481 = vadd.f32 %v6192, %v6480
    %v6482 = vpop.f32.mrb[0].mxu0
    %6483 = vmatprep.mubr.bf16.mxu0 %v5117
    %6484 = vmatmul.mubr.bf16.gmra.mrb[0].mxu0 %v5423
    %v6485 = vpop.f32.mrb[0].mxu0
    %v6486 = vadd.f32 %v6197, %v6485
    %v6487 = vpop.f32.mrb[0].mxu0
    %v6488 = vpop.f32.mrb[0].mxu0
    %v6489 = vadd.f32 %v6200, %v6488
    %v6490 = vpop.f32.mrb[0].mxu0
    %6491 = vmatprep.mubr.bf16.mxu0 %v5117
    %6492 = vmatmul.mubr.bf16.gmra.mrb[0].mxu0 %v5426
    %v6493 = vpop.f32.mrb[0].mxu0
    %v6494 = vadd.f32 %v6205, %v6493
    %v6495 = vpop.f32.mrb[0].mxu0
    %v6496 = vpop.f32.mrb[0].mxu0
    %v6497 = vadd.f32 %v6208, %v6496
    %v6498 = vpop.f32.mrb[0].mxu0
    %6499 = vmatprep.mubr.bf16.mxu0 %v5118
    %6500 = vmatmul.mubr.bf16.gmra.mrb[0].mxu0 %v5402
    %v6501 = vpop.f32.mrb[0].mxu0
    %v6502 = vadd.f32 %v6213, %v6501
    %v6503 = vpop.f32.mrb[0].mxu0
    %v6504 = vpop.f32.mrb[0].mxu0
    %v6505 = vadd.f32 %v6216, %v6504
    %v6506 = vpop.f32.mrb[0].mxu0
    %6507 = vmatprep.mubr.bf16.mxu0 %v5118
    %6508 = vmatmul.mubr.bf16.gmra.mrb[0].mxu0 %v5429
    %v6509 = vpop.f32.mrb[0].mxu0
    %v6510 = vadd.f32 %v6221, %v6509
    %v6511 = vpop.f32.mrb[0].mxu0
    %v6512 = vpop.f32.mrb[0].mxu0
    %v6513 = vadd.f32 %v6224, %v6512
    %v6514 = vpop.f32.mrb[0].mxu0
    %6515 = vmatprep.mubr.bf16.mxu0 %v5119
    %6516 = vmatmul.mubr.bf16.gmra.mrb[0].mxu0 %v5429
    %v6517 = vpop.f32.mrb[0].mxu0
    %v6518 = vadd.f32 %v6229, %v6517
    %v6519 = vpop.f32.mrb[0].mxu0
    %v6520 = vpop.f32.mrb[0].mxu0
    %v6521 = vadd.f32 %v6232, %v6520
    %v6522 = vpop.f32.mrb[0].mxu0
    %6523 = vmatprep.mubr.bf16.mxu0 %v5119
    %6524 = vmatmul.mubr.bf16.gmra.mrb[0].mxu0 %v5432
    %v6525 = vpop.f32.mrb[0].mxu0
    %v6526 = vadd.f32 %v6237, %v6525
    %v6527 = vpop.f32.mrb[0].mxu0
    %v6528 = vpop.f32.mrb[0].mxu0
    %v6529 = vadd.f32 %v6240, %v6528
    %v6530 = vpop.f32.mrb[0].mxu0
    %6531 = vmatprep.mubr.bf16.mxu0 %v5120
    %6532 = vmatmul.mubr.bf16.gmra.mrb[0].mxu0 %v5432
    %v6533 = vpop.f32.mrb[0].mxu0
    %v6534 = vadd.f32 %v6245, %v6533
    %v6535 = vpop.f32.mrb[0].mxu0
    %v6536 = vpop.f32.mrb[0].mxu0
    %v6537 = vadd.f32 %v6248, %v6536
    %v6538 = vpop.f32.mrb[0].mxu0
    %6539 = vmatprep.mubr.bf16.mxu0 %v5120
    %6540 = vmatmul.mubr.bf16.gmra.mrb[0].mxu0 %v5435
    %v6541 = vpop.f32.mrb[0].mxu0
    %v6542 = vadd.f32 %v6253, %v6541
    %v6543 = vpop.f32.mrb[0].mxu0
    %v6544 = vpop.f32.mrb[0].mxu0
    %v6545 = vadd.f32 %v6256, %v6544
    %v6546 = vpop.f32.mrb[0].mxu0
    %6547 = vmatprep.mubr.bf16.mxu0 %v5121
    %6548 = vmatmul.mubr.bf16.gmra.mrb[0].mxu0 %v5435
    %v6549 = vpop.f32.mrb[0].mxu0
    %v6550 = vadd.f32 %v6261, %v6549
    %v6551 = vpop.f32.mrb[0].mxu0
    %v6552 = vpop.f32.mrb[0].mxu0
    %v6553 = vadd.f32 %v6264, %v6552
    %v6554 = vpop.f32.mrb[0].mxu0
    %6555 = vmatprep.mubr.bf16.mxu0 %v5121
    %6556 = vmatmul.mubr.bf16.gmra.mrb[0].mxu0 %v5438
    %v6557 = vpop.f32.mrb[0].mxu0
    %v6558 = vadd.f32 %v6269, %v6557
    %v6559 = vpop.f32.mrb[0].mxu0
    %v6560 = vpop.f32.mrb[0].mxu0
    %v6561 = vadd.f32 %v6272, %v6560
    %v6562 = vpop.f32.mrb[0].mxu0
    %6563 = vmatprep.mubr.bf16.mxu0 %v5122
    %6564 = vmatmul.mubr.bf16.gmra.mrb[0].mxu0 %v5438
    %v6565 = vpop.f32.mrb[0].mxu0
    %v6566 = vadd.f32 %v6277, %v6565
    %v6567 = vpop.f32.mrb[0].mxu0
    %v6568 = vpop.f32.mrb[0].mxu0
    %v6569 = vadd.f32 %v6280, %v6568
    %v6570 = vpop.f32.mrb[0].mxu0
    %6571 = vmatprep.mubr.bf16.mxu0 %v5122
    %6572 = vmatmul.mubr.bf16.gmra.mrb[0].mxu0 %v5441
    %v6573 = vpop.f32.mrb[0].mxu0
    %v6574 = vadd.f32 %v6285, %v6573
    %v6575 = vpop.f32.mrb[0].mxu0
    %v6576 = vpop.f32.mrb[0].mxu0
    %v6577 = vadd.f32 %v6288, %v6576
    %v6578 = vpop.f32.mrb[0].mxu0
    %6579 = vmatprep.mubr.bf16.mxu0 %v5123
    %6580 = vmatmul.mubr.bf16.gmra.mrb[0].mxu0 %v5441
    %v6581 = vpop.f32.mrb[0].mxu0
    %v6582 = vadd.f32 %v6293, %v6581
    %v6583 = vpop.f32.mrb[0].mxu0
    %v6584 = vpop.f32.mrb[0].mxu0
    %v6585 = vadd.f32 %v6296, %v6584
    %v6586 = vpop.f32.mrb[0].mxu0
    %6587 = vmatprep.mubr.bf16.mxu0 %v5123
    %6588 = vmatmul.mubr.bf16.gmra.mrb[0].mxu0 %v5444
    %v6589 = vpop.f32.mrb[0].mxu0
    %v6590 = vadd.f32 %v6301, %v6589
    %v6591 = vpop.f32.mrb[0].mxu0
    %v6592 = vpop.f32.mrb[0].mxu0
    %v6593 = vadd.f32 %v6304, %v6592
    %v6594 = vpop.f32.mrb[0].mxu0
    %6595 = vmatprep.mubr.bf16.mxu0 %v5124
    %6596 = vmatmul.mubr.bf16.gmra.mrb[0].mxu0 %v5444
    %v6597 = vpop.f32.mrb[0].mxu0
    %v6598 = vadd.f32 %v6309, %v6597
    %v6599 = vpop.f32.mrb[0].mxu0
    %v6600 = vpop.f32.mrb[0].mxu0
    %v6601 = vadd.f32 %v6312, %v6600
    %v6602 = vpop.f32.mrb[0].mxu0
    %6603 = vmatprep.mubr.bf16.mxu0 %v5124
    %6604 = vmatmul.mubr.bf16.gmra.mrb[0].mxu0 %v5447
    %v6605 = vpop.f32.mrb[0].mxu0
    %v6606 = vadd.f32 %v6317, %v6605
    %v6607 = vpop.f32.mrb[0].mxu0
    %v6608 = vpop.f32.mrb[0].mxu0
    %v6609 = vadd.f32 %v6320, %v6608
    %v6610 = vpop.f32.mrb[0].mxu0
    %6611 = vmatprep.mubr.bf16.mxu0 %v5125
    %6612 = vmatmul.mubr.bf16.gmra.mrb[0].mxu0 %v5447
    %v6613 = vpop.f32.mrb[0].mxu0
    %v6614 = vadd.f32 %v6325, %v6613
    %v6615 = vpop.f32.mrb[0].mxu0
    %v6616 = vpop.f32.mrb[0].mxu0
    %v6617 = vadd.f32 %v6328, %v6616
    %v6618 = vpop.f32.mrb[0].mxu0
    %6619 = vmatprep.mubr.bf16.mxu0 %v5125
    %6620 = vmatmul.mubr.bf16.gmra.mrb[0].mxu0 %v5450
    %v6621 = vpop.f32.mrb[0].mxu0
    %v6622 = vadd.f32 %v6333, %v6621
    %v6623 = vpop.f32.mrb[0].mxu0
    %v6624 = vpop.f32.mrb[0].mxu0
    %v6625 = vadd.f32 %v6336, %v6624
    %v6626 = vpop.f32.mrb[0].mxu0
    %6627 = vdwg.mxu0
    %6628 = vmatprep.subr.bf16.mxu0 0
    %6629 = vmatpush1.bf16.msra.mxu0 %v5938
    %6630 = vmatprep.subr.bf16.mxu0 0
    %6631 = vmatpush1.bf16.msra.mxu0 %v5939
    %6632 = vmatprep.subr.bf16.mxu0 0
    %6633 = vmatpush1.bf16.msra.mxu0 %v5940
    %6634 = vmatprep.subr.bf16.mxu0 0
    %6635 = vmatpush1.bf16.msra.mxu0 %v5941
    %6636 = vmatprep.subr.bf16.mxu0 0
    %6637 = vmatpush1.bf16.msra.mxu0 %v5942
    %6638 = vmatprep.subr.bf16.mxu0 0
    %6639 = vmatpush1.bf16.msra.mxu0 %v5943
    %6640 = vmatprep.subr.bf16.mxu0 0
    %6641 = vmatpush1.bf16.msra.mxu0 %v5944
    %6642 = vmatprep.subr.bf16.mxu0 0
    %6643 = vmatpush1.bf16.msra.mxu0 %v5945
    %6644 = vmatprep.subr.bf16.mxu0 0
    %6645 = vmatpush1.bf16.msra.mxu0 %v5946
    %6646 = vmatprep.subr.bf16.mxu0 0
    %6647 = vmatpush1.bf16.msra.mxu0 %v5947
    %6648 = vmatprep.subr.bf16.mxu0 0
    %6649 = vmatpush1.bf16.msra.mxu0 %v5948
    %6650 = vmatprep.subr.bf16.mxu0 0
    %6651 = vmatpush1.bf16.msra.mxu0 %v5949
    %6652 = vmatprep.subr.bf16.mxu0 0
    %6653 = vmatpush1.bf16.msra.mxu0 %v5950
    %6654 = vmatprep.subr.bf16.mxu0 0
    %6655 = vmatpush1.bf16.msra.mxu0 %v5951
    %6656 = vmatprep.subr.bf16.mxu0 0
    %6657 = vmatpush1.bf16.msra.mxu0 %v5952
    %6658 = vmatprep.subr.bf16.mxu0 0
    %6659 = vmatpush1.bf16.msra.mxu0 %v5953
    %6660 = vmatprep.mubr.bf16.mxu0 %v5405
    %6661 = vmatmul.mubr.bf16.gmra.mrb[0].mxu0 %v5167
    %v6662 = vpop.f32.mrb[0].mxu0
    %v6663 = vadd.f32 %v6374, %v6662
    %v6664 = vpop.f32.mrb[0].mxu0
    %v6665 = vpop.f32.mrb[0].mxu0
    %v6666 = vadd.f32 %v6377, %v6665
    %v6667 = vpop.f32.mrb[0].mxu0
    %6668 = vmatprep.mubr.bf16.mxu0 %v5405
    %6669 = vmatmul.mubr.bf16.gmra.mrb[0].mxu0 %v5167
    %v6670 = vpop.f32.mrb[0].mxu0
    %v6671 = vadd.f32 %v6382, %v6670
    %v6672 = vpop.f32.mrb[0].mxu0
    %v6673 = vpop.f32.mrb[0].mxu0
    %v6674 = vadd.f32 %v6385, %v6673
    %v6675 = vpop.f32.mrb[0].mxu0
    %6676 = vmatprep.mubr.bf16.mxu0 %v5408
    %6677 = vmatmul.mubr.bf16.gmra.mrb[0].mxu0 %v5179
    %v6678 = vpop.f32.mrb[0].mxu0
    %v6679 = vadd.f32 %v6390, %v6678
    %v6680 = vpop.f32.mrb[0].mxu0
    %v6681 = vpop.f32.mrb[0].mxu0
    %v6682 = vadd.f32 %v6393, %v6681
    %v6683 = vpop.f32.mrb[0].mxu0
    %6684 = vmatprep.mubr.bf16.mxu0 %v5408
    %6685 = vmatmul.mubr.bf16.gmra.mrb[0].mxu0 %v5179
    %v6686 = vpop.f32.mrb[0].mxu0
    %v6687 = vadd.f32 %v6398, %v6686
    %v6688 = vpop.f32.mrb[0].mxu0
    %v6689 = vpop.f32.mrb[0].mxu0
    %v6690 = vadd.f32 %v6401, %v6689
    %v6691 = vpop.f32.mrb[0].mxu0
    %6692 = vmatprep.mubr.bf16.mxu0 %v5411
    %6693 = vmatmul.mubr.bf16.gmra.mrb[0].mxu0 %v5191
    %v6694 = vpop.f32.mrb[0].mxu0
    %v6695 = vadd.f32 %v6406, %v6694
    %v6696 = vpop.f32.mrb[0].mxu0
    %v6697 = vpop.f32.mrb[0].mxu0
    %v6698 = vadd.f32 %v6409, %v6697
    %v6699 = vpop.f32.mrb[0].mxu0
    %6700 = vmatprep.mubr.bf16.mxu0 %v5411
    %6701 = vmatmul.mubr.bf16.gmra.mrb[0].mxu0 %v5191
    %v6702 = vpop.f32.mrb[0].mxu0
    %v6703 = vadd.f32 %v6414, %v6702
    %v6704 = vpop.f32.mrb[0].mxu0
    %v6705 = vpop.f32.mrb[0].mxu0
    %v6706 = vadd.f32 %v6417, %v6705
    %v6707 = vpop.f32.mrb[0].mxu0
    %6708 = vmatprep.mubr.bf16.mxu0 %v5414
    %6709 = vmatmul.mubr.bf16.gmra.mrb[0].mxu0 %v5203
    %v6710 = vpop.f32.mrb[0].mxu0
    %v6711 = vadd.f32 %v6422, %v6710
    %v6712 = vpop.f32.mrb[0].mxu0
    %v6713 = vpop.f32.mrb[0].mxu0
    %v6714 = vadd.f32 %v6425, %v6713
    %v6715 = vpop.f32.mrb[0].mxu0
    %6716 = vmatprep.mubr.bf16.mxu0 %v5414
    %6717 = vmatmul.mubr.bf16.gmra.mrb[0].mxu0 %v5203
    %v6718 = vpop.f32.mrb[0].mxu0
    %v6719 = vadd.f32 %v6430, %v6718
    %v6720 = vpop.f32.mrb[0].mxu0
    %v6721 = vpop.f32.mrb[0].mxu0
    %v6722 = vadd.f32 %v6433, %v6721
    %v6723 = vpop.f32.mrb[0].mxu0
    %6724 = vmatprep.mubr.bf16.mxu0 %v5417
    %6725 = vmatmul.mubr.bf16.gmra.mrb[0].mxu0 %v5215
    %v6726 = vpop.f32.mrb[0].mxu0
    %v6727 = vadd.f32 %v6438, %v6726
    %v6728 = vpop.f32.mrb[0].mxu0
    %v6729 = vpop.f32.mrb[0].mxu0
    %v6730 = vadd.f32 %v6441, %v6729
    %v6731 = vpop.f32.mrb[0].mxu0
    %6732 = vmatprep.mubr.bf16.mxu0 %v5417
    %6733 = vmatmul.mubr.bf16.gmra.mrb[0].mxu0 %v5215
    %v6734 = vpop.f32.mrb[0].mxu0
    %v6735 = vadd.f32 %v6446, %v6734
    %v6736 = vpop.f32.mrb[0].mxu0
    %v6737 = vpop.f32.mrb[0].mxu0
    %v6738 = vadd.f32 %v6449, %v6737
    %v6739 = vpop.f32.mrb[0].mxu0
    %6740 = vmatprep.mubr.bf16.mxu0 %v5420
    %6741 = vmatmul.mubr.bf16.gmra.mrb[0].mxu0 %v5227
    %v6742 = vpop.f32.mrb[0].mxu0
    %v6743 = vadd.f32 %v6454, %v6742
    %v6744 = vpop.f32.mrb[0].mxu0
    %v6745 = vpop.f32.mrb[0].mxu0
    %v6746 = vadd.f32 %v6457, %v6745
    %v6747 = vpop.f32.mrb[0].mxu0
    %6748 = vmatprep.mubr.bf16.mxu0 %v5420
    %6749 = vmatmul.mubr.bf16.gmra.mrb[0].mxu0 %v5227
    %v6750 = vpop.f32.mrb[0].mxu0
    %v6751 = vadd.f32 %v6462, %v6750
    %v6752 = vpop.f32.mrb[0].mxu0
    %v6753 = vpop.f32.mrb[0].mxu0
    %v6754 = vadd.f32 %v6465, %v6753
    %v6755 = vpop.f32.mrb[0].mxu0
    %6756 = vmatprep.mubr.bf16.mxu0 %v5423
    %6757 = vmatmul.mubr.bf16.gmra.mrb[0].mxu0 %v5239
    %v6758 = vpop.f32.mrb[0].mxu0
    %v6759 = vadd.f32 %v6470, %v6758
    %v6760 = vpop.f32.mrb[0].mxu0
    %v6761 = vpop.f32.mrb[0].mxu0
    %v6762 = vadd.f32 %v6473, %v6761
    %v6763 = vpop.f32.mrb[0].mxu0
    %6764 = vmatprep.mubr.bf16.mxu0 %v5423
    %6765 = vmatmul.mubr.bf16.gmra.mrb[0].mxu0 %v5239
    %v6766 = vpop.f32.mrb[0].mxu0
    %v6767 = vadd.f32 %v6478, %v6766
    %v6768 = vpop.f32.mrb[0].mxu0
    %v6769 = vpop.f32.mrb[0].mxu0
    %v6770 = vadd.f32 %v6481, %v6769
    %v6771 = vpop.f32.mrb[0].mxu0
    %6772 = vmatprep.mubr.bf16.mxu0 %v5426
    %6773 = vmatmul.mubr.bf16.gmra.mrb[0].mxu0 %v5251
    %v6774 = vpop.f32.mrb[0].mxu0
    %v6775 = vadd.f32 %v6486, %v6774
    %v6776 = vpop.f32.mrb[0].mxu0
    %v6777 = vpop.f32.mrb[0].mxu0
    %v6778 = vadd.f32 %v6489, %v6777
    %v6779 = vpop.f32.mrb[0].mxu0
    %6780 = vmatprep.mubr.bf16.mxu0 %v5426
    %6781 = vmatmul.mubr.bf16.gmra.mrb[0].mxu0 %v5251
    %v6782 = vpop.f32.mrb[0].mxu0
    %v6783 = vadd.f32 %v6494, %v6782
    %v6784 = vpop.f32.mrb[0].mxu0
    %v6785 = vpop.f32.mrb[0].mxu0
    %v6786 = vadd.f32 %v6497, %v6785
    %v6787 = vpop.f32.mrb[0].mxu0
    %6788 = vmatprep.mubr.bf16.mxu0 %v5429
    %6789 = vmatmul.mubr.bf16.gmra.mrb[0].mxu0 %v5263
    %v6790 = vpop.f32.mrb[0].mxu0
    %v6791 = vadd.f32 %v6502, %v6790
    %v6792 = vpop.f32.mrb[0].mxu0
    %v6793 = vpop.f32.mrb[0].mxu0
    %v6794 = vadd.f32 %v6505, %v6793
    %v6795 = vpop.f32.mrb[0].mxu0
    %6796 = vmatprep.mubr.bf16.mxu0 %v5429
    %6797 = vmatmul.mubr.bf16.gmra.mrb[0].mxu0 %v5263
    %v6798 = vpop.f32.mrb[0].mxu0
    %v6799 = vadd.f32 %v6510, %v6798
    %v6800 = vpop.f32.mrb[0].mxu0
    %v6801 = vpop.f32.mrb[0].mxu0
    %v6802 = vadd.f32 %v6513, %v6801
    %v6803 = vpop.f32.mrb[0].mxu0
    %6804 = vmatprep.mubr.bf16.mxu0 %v5432
    %6805 = vmatmul.mubr.bf16.gmra.mrb[0].mxu0 %v5275
    %v6806 = vpop.f32.mrb[0].mxu0
    %v6807 = vadd.f32 %v6518, %v6806
    %v6808 = vpop.f32.mrb[0].mxu0
    %v6809 = vpop.f32.mrb[0].mxu0
    %v6810 = vadd.f32 %v6521, %v6809
    %v6811 = vpop.f32.mrb[0].mxu0
    %6812 = vmatprep.mubr.bf16.mxu0 %v5432
    %6813 = vmatmul.mubr.bf16.gmra.mrb[0].mxu0 %v5275
    %v6814 = vpop.f32.mrb[0].mxu0
    %v6815 = vadd.f32 %v6526, %v6814
    %v6816 = vpop.f32.mrb[0].mxu0
    %v6817 = vpop.f32.mrb[0].mxu0
    %v6818 = vadd.f32 %v6529, %v6817
    %v6819 = vpop.f32.mrb[0].mxu0
    %6820 = vmatprep.mubr.bf16.mxu0 %v5435
    %6821 = vmatmul.mubr.bf16.gmra.mrb[0].mxu0 %v5287
    %v6822 = vpop.f32.mrb[0].mxu0
    %v6823 = vadd.f32 %v6534, %v6822
    %v6824 = vpop.f32.mrb[0].mxu0
    %v6825 = vpop.f32.mrb[0].mxu0
    %v6826 = vadd.f32 %v6537, %v6825
    %v6827 = vpop.f32.mrb[0].mxu0
    %6828 = vmatprep.mubr.bf16.mxu0 %v5435
    %6829 = vmatmul.mubr.bf16.gmra.mrb[0].mxu0 %v5287
    %v6830 = vpop.f32.mrb[0].mxu0
    %v6831 = vadd.f32 %v6542, %v6830
    %v6832 = vpop.f32.mrb[0].mxu0
    %v6833 = vpop.f32.mrb[0].mxu0
    %v6834 = vadd.f32 %v6545, %v6833
    %v6835 = vpop.f32.mrb[0].mxu0
    %6836 = vmatprep.mubr.bf16.mxu0 %v5438
    %6837 = vmatmul.mubr.bf16.gmra.mrb[0].mxu0 %v5299
    %v6838 = vpop.f32.mrb[0].mxu0
    %v6839 = vadd.f32 %v6550, %v6838
    %v6840 = vpop.f32.mrb[0].mxu0
    %v6841 = vpop.f32.mrb[0].mxu0
    %v6842 = vadd.f32 %v6553, %v6841
    %v6843 = vpop.f32.mrb[0].mxu0
    %6844 = vmatprep.mubr.bf16.mxu0 %v5438
    %6845 = vmatmul.mubr.bf16.gmra.mrb[0].mxu0 %v5299
    %v6846 = vpop.f32.mrb[0].mxu0
    %v6847 = vadd.f32 %v6558, %v6846
    %v6848 = vpop.f32.mrb[0].mxu0
    %v6849 = vpop.f32.mrb[0].mxu0
    %v6850 = vadd.f32 %v6561, %v6849
    %v6851 = vpop.f32.mrb[0].mxu0
    %6852 = vmatprep.mubr.bf16.mxu0 %v5441
    %6853 = vmatmul.mubr.bf16.gmra.mrb[0].mxu0 %v5311
    %v6854 = vpop.f32.mrb[0].mxu0
    %v6855 = vadd.f32 %v6566, %v6854
    %v6856 = vpop.f32.mrb[0].mxu0
    %v6857 = vpop.f32.mrb[0].mxu0
    %v6858 = vadd.f32 %v6569, %v6857
    %v6859 = vpop.f32.mrb[0].mxu0
    %6860 = vmatprep.mubr.bf16.mxu0 %v5441
    %6861 = vmatmul.mubr.bf16.gmra.mrb[0].mxu0 %v5311
    %v6862 = vpop.f32.mrb[0].mxu0
    %v6863 = vadd.f32 %v6574, %v6862
    %v6864 = vpop.f32.mrb[0].mxu0
    %v6865 = vpop.f32.mrb[0].mxu0
    %v6866 = vadd.f32 %v6577, %v6865
    %v6867 = vpop.f32.mrb[0].mxu0
    %6868 = vmatprep.mubr.bf16.mxu0 %v5444
    %6869 = vmatmul.mubr.bf16.gmra.mrb[0].mxu0 %v5323
    %v6870 = vpop.f32.mrb[0].mxu0
    %v6871 = vadd.f32 %v6582, %v6870
    %v6872 = vpop.f32.mrb[0].mxu0
    %v6873 = vpop.f32.mrb[0].mxu0
    %v6874 = vadd.f32 %v6585, %v6873
    %v6875 = vpop.f32.mrb[0].mxu0
    %6876 = vmatprep.mubr.bf16.mxu0 %v5444
    %6877 = vmatmul.mubr.bf16.gmra.mrb[0].mxu0 %v5323
    %v6878 = vpop.f32.mrb[0].mxu0
    %v6879 = vadd.f32 %v6590, %v6878
    %v6880 = vpop.f32.mrb[0].mxu0
    %v6881 = vpop.f32.mrb[0].mxu0
    %v6882 = vadd.f32 %v6593, %v6881
    %v6883 = vpop.f32.mrb[0].mxu0
    %6884 = vmatprep.mubr.bf16.mxu0 %v5447
    %6885 = vmatmul.mubr.bf16.gmra.mrb[0].mxu0 %v5335
    %v6886 = vpop.f32.mrb[0].mxu0
    %v6887 = vadd.f32 %v6598, %v6886
    %v6888 = vpop.f32.mrb[0].mxu0
    %v6889 = vpop.f32.mrb[0].mxu0
    %v6890 = vadd.f32 %v6601, %v6889
    %v6891 = vpop.f32.mrb[0].mxu0
    %6892 = vmatprep.mubr.bf16.mxu0 %v5447
    %6893 = vmatmul.mubr.bf16.gmra.mrb[0].mxu0 %v5335
    %v6894 = vpop.f32.mrb[0].mxu0
    %v6895 = vadd.f32 %v6606, %v6894
    %v6896 = vpop.f32.mrb[0].mxu0
    %v6897 = vpop.f32.mrb[0].mxu0
    %v6898 = vadd.f32 %v6609, %v6897
    %v6899 = vpop.f32.mrb[0].mxu0
    %6900 = vmatprep.mubr.bf16.mxu0 %v5450
    %6901 = vmatmul.mubr.bf16.gmra.mrb[0].mxu0 %v5347
    %v6902 = vpop.f32.mrb[0].mxu0
    %v6903 = vadd.f32 %v6614, %v6902
    %v6904 = vpop.f32.mrb[0].mxu0
    %v6905 = vpop.f32.mrb[0].mxu0
    %v6906 = vadd.f32 %v6617, %v6905
    %v6907 = vpop.f32.mrb[0].mxu0
    %6908 = vmatprep.mubr.bf16.mxu0 %v5450
    %6909 = vmatmul.mubr.bf16.gmra.mrb[0].mxu0 %v5347
    %v6910 = vpop.f32.mrb[0].mxu0
    %v6911 = vadd.f32 %v6622, %v6910
    %v6912 = vpop.f32.mrb[0].mxu0
    %v6913 = vpop.f32.mrb[0].mxu0
    %v6914 = vadd.f32 %v6625, %v6913
    %v6915 = vpop.f32.mrb[0].mxu0
    %6916 = vdwg.mxu0
    %6917 = vmatprep.subr.bf16.mxu0 0
    %6918 = vmatpush1.bf16.msra.mxu0 %v5954
    %6919 = vmatprep.subr.bf16.mxu0 0
    %6920 = vmatpush1.bf16.msra.mxu0 %v5955
    %6921 = vmatprep.subr.bf16.mxu0 0
    %6922 = vmatpush1.bf16.msra.mxu0 %v5956
    %6923 = vmatprep.subr.bf16.mxu0 0
    %6924 = vmatpush1.bf16.msra.mxu0 %v5957
    %6925 = vmatprep.subr.bf16.mxu0 0
    %6926 = vmatpush1.bf16.msra.mxu0 %v5958
    %6927 = vmatprep.subr.bf16.mxu0 0
    %6928 = vmatpush1.bf16.msra.mxu0 %v5959
    %6929 = vmatprep.subr.bf16.mxu0 0
    %6930 = vmatpush1.bf16.msra.mxu0 %v5960
    %6931 = vmatprep.subr.bf16.mxu0 0
    %6932 = vmatpush1.bf16.msra.mxu0 %v5961
    %6933 = vmatprep.subr.bf16.mxu0 0
    %6934 = vmatpush1.bf16.msra.mxu0 %v5962
    %6935 = vmatprep.subr.bf16.mxu0 0
    %6936 = vmatpush1.bf16.msra.mxu0 %v5963
    %6937 = vmatprep.subr.bf16.mxu0 0
    %6938 = vmatpush1.bf16.msra.mxu0 %v5964
    %6939 = vmatprep.subr.bf16.mxu0 0
    %6940 = vmatpush1.bf16.msra.mxu0 %v5965
    %6941 = vmatprep.subr.bf16.mxu0 0
    %6942 = vmatpush1.bf16.msra.mxu0 %v5966
    %6943 = vmatprep.subr.bf16.mxu0 0
    %6944 = vmatpush1.bf16.msra.mxu0 %v5967
    %6945 = vmatprep.subr.bf16.mxu0 0
    %6946 = vmatpush1.bf16.msra.mxu0 %v5968
    %6947 = vmatprep.subr.bf16.mxu0 0
    %6948 = vmatpush1.bf16.msra.mxu0 %v5969
    %6949 = vmatprep.mubr.bf16.mxu0 %v5167
    %6950 = vmatmul.mubr.bf16.gmra.mrb[0].mxu0 %v5110
    %v6951 = vpop.f32.mrb[0].mxu0
    %v6952 = vadd.f32 %v6663, %v6951
    %v6953 = vpop.f32.mrb[0].mxu0
    %v6954 = vpop.f32.mrb[0].mxu0
    %v6955 = vadd.f32 %v6666, %v6954
    %v6956 = vpop.f32.mrb[0].mxu0
    %6957 = vmatprep.mubr.bf16.mxu0 %v5179
    %6958 = vmatmul.mubr.bf16.gmra.mrb[0].mxu0 %v5111
    %v6959 = vpop.f32.mrb[0].mxu0
    %v6960 = vadd.f32 %v6671, %v6959
    %v6961 = vpop.f32.mrb[0].mxu0
    %v6962 = vpop.f32.mrb[0].mxu0
    %v6963 = vadd.f32 %v6674, %v6962
    %v6964 = vpop.f32.mrb[0].mxu0
    %6965 = vmatprep.mubr.bf16.mxu0 %v5179
    %6966 = vmatmul.mubr.bf16.gmra.mrb[0].mxu0 %v5111
    %v6967 = vpop.f32.mrb[0].mxu0
    %v6968 = vadd.f32 %v6679, %v6967
    %v6969 = vpop.f32.mrb[0].mxu0
    %v6970 = vpop.f32.mrb[0].mxu0
    %v6971 = vadd.f32 %v6682, %v6970
    %v6972 = vpop.f32.mrb[0].mxu0
    %6973 = vmatprep.mubr.bf16.mxu0 %v5191
    %6974 = vmatmul.mubr.bf16.gmra.mrb[0].mxu0 %v5112
    %v6975 = vpop.f32.mrb[0].mxu0
    %v6976 = vadd.f32 %v6687, %v6975
    %v6977 = vpop.f32.mrb[0].mxu0
    %v6978 = vpop.f32.mrb[0].mxu0
    %v6979 = vadd.f32 %v6690, %v6978
    %v6980 = vpop.f32.mrb[0].mxu0
    %6981 = vmatprep.mubr.bf16.mxu0 %v5191
    %6982 = vmatmul.mubr.bf16.gmra.mrb[0].mxu0 %v5112
    %v6983 = vpop.f32.mrb[0].mxu0
    %v6984 = vadd.f32 %v6695, %v6983
    %v6985 = vpop.f32.mrb[0].mxu0
    %v6986 = vpop.f32.mrb[0].mxu0
    %v6987 = vadd.f32 %v6698, %v6986
    %v6988 = vpop.f32.mrb[0].mxu0
    %6989 = vmatprep.mubr.bf16.mxu0 %v5203
    %6990 = vmatmul.mubr.bf16.gmra.mrb[0].mxu0 %v5113
    %v6991 = vpop.f32.mrb[0].mxu0
    %v6992 = vadd.f32 %v6703, %v6991
    %v6993 = vpop.f32.mrb[0].mxu0
    %v6994 = vpop.f32.mrb[0].mxu0
    %v6995 = vadd.f32 %v6706, %v6994
    %v6996 = vpop.f32.mrb[0].mxu0
    %6997 = vmatprep.mubr.bf16.mxu0 %v5203
    %6998 = vmatmul.mubr.bf16.gmra.mrb[0].mxu0 %v5113
    %v6999 = vpop.f32.mrb[0].mxu0
    %v7000 = vadd.f32 %v6711, %v6999
    %v7001 = vpop.f32.mrb[0].mxu0
    %v7002 = vpop.f32.mrb[0].mxu0
    %v7003 = vadd.f32 %v6714, %v7002
    %v7004 = vpop.f32.mrb[0].mxu0
    %7005 = vmatprep.mubr.bf16.mxu0 %v5215
    %7006 = vmatmul.mubr.bf16.gmra.mrb[0].mxu0 %v5114
    %v7007 = vpop.f32.mrb[0].mxu0
    %v7008 = vadd.f32 %v6719, %v7007
    %v7009 = vpop.f32.mrb[0].mxu0
    %v7010 = vpop.f32.mrb[0].mxu0
    %v7011 = vadd.f32 %v6722, %v7010
    %v7012 = vpop.f32.mrb[0].mxu0
    %7013 = vmatprep.mubr.bf16.mxu0 %v5215
    %7014 = vmatmul.mubr.bf16.gmra.mrb[0].mxu0 %v5114
    %v7015 = vpop.f32.mrb[0].mxu0
    %v7016 = vadd.f32 %v6727, %v7015
    %v7017 = vpop.f32.mrb[0].mxu0
    %v7018 = vpop.f32.mrb[0].mxu0
    %v7019 = vadd.f32 %v6730, %v7018
    %v7020 = vpop.f32.mrb[0].mxu0
    %7021 = vmatprep.mubr.bf16.mxu0 %v5227
    %7022 = vmatmul.mubr.bf16.gmra.mrb[0].mxu0 %v5115
    %v7023 = vpop.f32.mrb[0].mxu0
    %v7024 = vadd.f32 %v6735, %v7023
    %v7025 = vpop.f32.mrb[0].mxu0
    %v7026 = vpop.f32.mrb[0].mxu0
    %v7027 = vadd.f32 %v6738, %v7026
    %v7028 = vpop.f32.mrb[0].mxu0
    %7029 = vmatprep.mubr.bf16.mxu0 %v5227
    %7030 = vmatmul.mubr.bf16.gmra.mrb[0].mxu0 %v5115
    %v7031 = vpop.f32.mrb[0].mxu0
    %v7032 = vadd.f32 %v6743, %v7031
    %v7033 = vpop.f32.mrb[0].mxu0
    %v7034 = vpop.f32.mrb[0].mxu0
    %v7035 = vadd.f32 %v6746, %v7034
    %v7036 = vpop.f32.mrb[0].mxu0
    %7037 = vmatprep.mubr.bf16.mxu0 %v5239
    %7038 = vmatmul.mubr.bf16.gmra.mrb[0].mxu0 %v5116
    %v7039 = vpop.f32.mrb[0].mxu0
    %v7040 = vadd.f32 %v6751, %v7039
    %v7041 = vpop.f32.mrb[0].mxu0
    %v7042 = vpop.f32.mrb[0].mxu0
    %v7043 = vadd.f32 %v6754, %v7042
    %v7044 = vpop.f32.mrb[0].mxu0
    %7045 = vmatprep.mubr.bf16.mxu0 %v5239
    %7046 = vmatmul.mubr.bf16.gmra.mrb[0].mxu0 %v5116
    %v7047 = vpop.f32.mrb[0].mxu0
    %v7048 = vadd.f32 %v6759, %v7047
    %v7049 = vpop.f32.mrb[0].mxu0
    %v7050 = vpop.f32.mrb[0].mxu0
    %v7051 = vadd.f32 %v6762, %v7050
    %v7052 = vpop.f32.mrb[0].mxu0
    %7053 = vmatprep.mubr.bf16.mxu0 %v5251
    %7054 = vmatmul.mubr.bf16.gmra.mrb[0].mxu0 %v5117
    %v7055 = vpop.f32.mrb[0].mxu0
    %v7056 = vadd.f32 %v6767, %v7055
    %v7057 = vpop.f32.mrb[0].mxu0
    %v7058 = vpop.f32.mrb[0].mxu0
    %v7059 = vadd.f32 %v6770, %v7058
    %v7060 = vpop.f32.mrb[0].mxu0
    %7061 = vmatprep.mubr.bf16.mxu0 %v5251
    %7062 = vmatmul.mubr.bf16.gmra.mrb[0].mxu0 %v5117
    %v7063 = vpop.f32.mrb[0].mxu0
    %v7064 = vadd.f32 %v6775, %v7063
    %v7065 = vpop.f32.mrb[0].mxu0
    %v7066 = vpop.f32.mrb[0].mxu0
    %v7067 = vadd.f32 %v6778, %v7066
    %v7068 = vpop.f32.mrb[0].mxu0
    %7069 = vmatprep.mubr.bf16.mxu0 %v5155
    %7070 = vmatmul.mubr.bf16.gmra.mrb[0].mxu0 %v1594
    %v7071 = vpop.f32.mrb[0].mxu0
    %v7072 = vadd.f32 %v6783, %v7071
    %v7073 = vpop.f32.mrb[0].mxu0
    %v7074 = vpop.f32.mrb[0].mxu0
    %v7075 = vadd.f32 %v6786, %v7074
    %v7076 = vpop.f32.mrb[0].mxu0
    %7077 = vmatprep.mubr.bf16.mxu0 %v5263
    %7078 = vmatmul.mubr.bf16.gmra.mrb[0].mxu0 %v5118
    %v7079 = vpop.f32.mrb[0].mxu0
    %v7080 = vadd.f32 %v6791, %v7079
    %v7081 = vpop.f32.mrb[0].mxu0
    %v7082 = vpop.f32.mrb[0].mxu0
    %v7083 = vadd.f32 %v6794, %v7082
    %v7084 = vpop.f32.mrb[0].mxu0
    %7085 = vmatprep.mubr.bf16.mxu0 %v5275
    %7086 = vmatmul.mubr.bf16.gmra.mrb[0].mxu0 %v5119
    %v7087 = vpop.f32.mrb[0].mxu0
    %v7088 = vadd.f32 %v6799, %v7087
    %v7089 = vpop.f32.mrb[0].mxu0
    %v7090 = vpop.f32.mrb[0].mxu0
    %v7091 = vadd.f32 %v6802, %v7090
    %v7092 = vpop.f32.mrb[0].mxu0
    %7093 = vmatprep.mubr.bf16.mxu0 %v5275
    %7094 = vmatmul.mubr.bf16.gmra.mrb[0].mxu0 %v5119
    %v7095 = vpop.f32.mrb[0].mxu0
    %v7096 = vadd.f32 %v6807, %v7095
    %v7097 = vpop.f32.mrb[0].mxu0
    %v7098 = vpop.f32.mrb[0].mxu0
    %v7099 = vadd.f32 %v6810, %v7098
    %v7100 = vpop.f32.mrb[0].mxu0
    %7101 = vmatprep.mubr.bf16.mxu0 %v5287
    %7102 = vmatmul.mubr.bf16.gmra.mrb[0].mxu0 %v5120
    %v7103 = vpop.f32.mrb[0].mxu0
    %v7104 = vadd.f32 %v6815, %v7103
    %v7105 = vpop.f32.mrb[0].mxu0
    %v7106 = vpop.f32.mrb[0].mxu0
    %v7107 = vadd.f32 %v6818, %v7106
    %v7108 = vpop.f32.mrb[0].mxu0
    %7109 = vmatprep.mubr.bf16.mxu0 %v5287
    %7110 = vmatmul.mubr.bf16.gmra.mrb[0].mxu0 %v5120
    %v7111 = vpop.f32.mrb[0].mxu0
    %v7112 = vadd.f32 %v6823, %v7111
    %v7113 = vpop.f32.mrb[0].mxu0
    %v7114 = vpop.f32.mrb[0].mxu0
    %v7115 = vadd.f32 %v6826, %v7114
    %v7116 = vpop.f32.mrb[0].mxu0
    %7117 = vmatprep.mubr.bf16.mxu0 %v5299
    %7118 = vmatmul.mubr.bf16.gmra.mrb[0].mxu0 %v5121
    %v7119 = vpop.f32.mrb[0].mxu0
    %v7120 = vadd.f32 %v6831, %v7119
    %v7121 = vpop.f32.mrb[0].mxu0
    %v7122 = vpop.f32.mrb[0].mxu0
    %v7123 = vadd.f32 %v6834, %v7122
    %v7124 = vpop.f32.mrb[0].mxu0
    %7125 = vmatprep.mubr.bf16.mxu0 %v5299
    %7126 = vmatmul.mubr.bf16.gmra.mrb[0].mxu0 %v5121
    %v7127 = vpop.f32.mrb[0].mxu0
    %v7128 = vadd.f32 %v6839, %v7127
    %v7129 = vpop.f32.mrb[0].mxu0
    %v7130 = vpop.f32.mrb[0].mxu0
    %v7131 = vadd.f32 %v6842, %v7130
    %v7132 = vpop.f32.mrb[0].mxu0
    %7133 = vmatprep.mubr.bf16.mxu0 %v5311
    %7134 = vmatmul.mubr.bf16.gmra.mrb[0].mxu0 %v5122
    %v7135 = vpop.f32.mrb[0].mxu0
    %v7136 = vadd.f32 %v6847, %v7135
    %v7137 = vpop.f32.mrb[0].mxu0
    %v7138 = vpop.f32.mrb[0].mxu0
    %v7139 = vadd.f32 %v6850, %v7138
    %v7140 = vpop.f32.mrb[0].mxu0
    %7141 = vmatprep.mubr.bf16.mxu0 %v5311
    %7142 = vmatmul.mubr.bf16.gmra.mrb[0].mxu0 %v5122
    %v7143 = vpop.f32.mrb[0].mxu0
    %v7144 = vadd.f32 %v6855, %v7143
    %v7145 = vpop.f32.mrb[0].mxu0
    %v7146 = vpop.f32.mrb[0].mxu0
    %v7147 = vadd.f32 %v6858, %v7146
    %v7148 = vpop.f32.mrb[0].mxu0
    %7149 = vmatprep.mubr.bf16.mxu0 %v5323
    %7150 = vmatmul.mubr.bf16.gmra.mrb[0].mxu0 %v5123
    %v7151 = vpop.f32.mrb[0].mxu0
    %v7152 = vadd.f32 %v6863, %v7151
    %v7153 = vpop.f32.mrb[0].mxu0
    %v7154 = vpop.f32.mrb[0].mxu0
    %v7155 = vadd.f32 %v6866, %v7154
    %v7156 = vpop.f32.mrb[0].mxu0
    %7157 = vmatprep.mubr.bf16.mxu0 %v5323
    %7158 = vmatmul.mubr.bf16.gmra.mrb[0].mxu0 %v5123
    %v7159 = vpop.f32.mrb[0].mxu0
    %v7160 = vadd.f32 %v6871, %v7159
    %v7161 = vpop.f32.mrb[0].mxu0
    %v7162 = vpop.f32.mrb[0].mxu0
    %v7163 = vadd.f32 %v6874, %v7162
    %v7164 = vpop.f32.mrb[0].mxu0
    %7165 = vmatprep.mubr.bf16.mxu0 %v5335
    %7166 = vmatmul.mubr.bf16.gmra.mrb[0].mxu0 %v5124
    %v7167 = vpop.f32.mrb[0].mxu0
    %v7168 = vadd.f32 %v6879, %v7167
    %v7169 = vpop.f32.mrb[0].mxu0
    %v7170 = vpop.f32.mrb[0].mxu0
    %v7171 = vadd.f32 %v6882, %v7170
    %v7172 = vpop.f32.mrb[0].mxu0
    %7173 = vmatprep.mubr.bf16.mxu0 %v5335
    %7174 = vmatmul.mubr.bf16.gmra.mrb[0].mxu0 %v5124
    %v7175 = vpop.f32.mrb[0].mxu0
    %v7176 = vadd.f32 %v6887, %v7175
    %v7177 = vpop.f32.mrb[0].mxu0
    %v7178 = vpop.f32.mrb[0].mxu0
    %v7179 = vadd.f32 %v6890, %v7178
    %v7180 = vpop.f32.mrb[0].mxu0
    %7181 = vmatprep.mubr.bf16.mxu0 %v5347
    %7182 = vmatmul.mubr.bf16.gmra.mrb[0].mxu0 %v5125
    %v7183 = vpop.f32.mrb[0].mxu0
    %v7184 = vadd.f32 %v6895, %v7183
    %v7185 = vpop.f32.mrb[0].mxu0
    %v7186 = vpop.f32.mrb[0].mxu0
    %v7187 = vadd.f32 %v6898, %v7186
    %v7188 = vpop.f32.mrb[0].mxu0
    %7189 = vmatprep.mubr.bf16.mxu0 %v5347
    %7190 = vmatmul.mubr.bf16.gmra.mrb[0].mxu0 %v5125
    %v7191 = vpop.f32.mrb[0].mxu0
    %v7192 = vadd.f32 %v6903, %v7191
    %v7193 = vpop.f32.mrb[0].mxu0
    %v7194 = vpop.f32.mrb[0].mxu0
    %v7195 = vadd.f32 %v6906, %v7194
    %v7196 = vpop.f32.mrb[0].mxu0
    %7197 = vmatprep.mubr.bf16.mxu0 %v5155
    %7198 = vmatmul.mubr.bf16.gmra.mrb[0].mxu0 %v1594
    %v7199 = vpop.f32.mrb[0].mxu0
    %v7200 = vadd.f32 %v6911, %v7199
    %v7201 = vpop.f32.mrb[0].mxu0
    %v7202 = vpop.f32.mrb[0].mxu0
    %v7203 = vadd.f32 %v6914, %v7202
    %v7204 = vpop.f32.mrb[0].mxu0
    %7205 = vdwg.mxu0
    %7206 = vmatprep.subr.bf16.mxu0 0
    %7207 = vmatpush1.bf16.msra.mxu0 %v5970
    %7208 = vmatprep.subr.bf16.mxu0 0
    %7209 = vmatpush1.bf16.msra.mxu0 %v5971
    %7210 = vmatprep.subr.bf16.mxu0 0
    %7211 = vmatpush1.bf16.msra.mxu0 %v5972
    %7212 = vmatprep.subr.bf16.mxu0 0
    %7213 = vmatpush1.bf16.msra.mxu0 %v5973
    %7214 = vmatprep.subr.bf16.mxu0 0
    %7215 = vmatpush1.bf16.msra.mxu0 %v5974
    %7216 = vmatprep.subr.bf16.mxu0 0
    %7217 = vmatpush1.bf16.msra.mxu0 %v5975
    %7218 = vmatprep.subr.bf16.mxu0 0
    %7219 = vmatpush1.bf16.msra.mxu0 %v5976
    %7220 = vmatprep.subr.bf16.mxu0 0
    %7221 = vmatpush1.bf16.msra.mxu0 %v5977
    %7222 = vmatprep.subr.bf16.mxu0 0
    %7223 = vmatpush1.bf16.msra.mxu0 0
    %7224 = vmatprep.subr.bf16.mxu0 0
    %7225 = vmatpush1.bf16.msra.mxu0 0
    %7226 = vmatprep.subr.bf16.mxu0 0
    %7227 = vmatpush1.bf16.msra.mxu0 0
    %7228 = vmatprep.subr.bf16.mxu0 0
    %7229 = vmatpush1.bf16.msra.mxu0 0
    %7230 = vmatprep.subr.bf16.mxu0 0
    %7231 = vmatpush1.bf16.msra.mxu0 0
    %7232 = vmatprep.subr.bf16.mxu0 0
    %7233 = vmatpush1.bf16.msra.mxu0 0
    %7234 = vmatprep.subr.bf16.mxu0 0
    %7235 = vmatpush1.bf16.msra.mxu0 0
    %7236 = vmatprep.subr.bf16.mxu0 0
    %7237 = vmatpush1.bf16.msra.mxu0 0
    %7238 = vmatprep.mubr.bf16.mxu0 0
    %7239 = vmatmul.mubr.bf16.gmra.mrb[0].mxu0 %v5405
    %v7240 = vpop.f32.mrb[0].mxu0
    %v7241 = vadd.f32 %v6952, %v7240
    %v7242 = vpop.f32.mrb[0].mxu0
    %v7243 = vpop.f32.mrb[0].mxu0
    %v7244 = vadd.f32 %v6955, %v7243
    %v7245 = vpop.f32.mrb[0].mxu0
    %7246 = vmatprep.mubr.bf16.mxu0 0
    %7247 = vmatmul.mubr.bf16.gmra.mrb[0].mxu0 %v5408
    %v7248 = vpop.f32.mrb[0].mxu0
    %v7249 = vadd.f32 %v6960, %v7248
    %v7250 = vpop.f32.mrb[0].mxu0
    %v7251 = vpop.f32.mrb[0].mxu0
    %v7252 = vadd.f32 %v6963, %v7251
    %v7253 = vpop.f32.mrb[0].mxu0
    %7254 = vmatprep.mubr.bf16.mxu0 0
    %7255 = vmatmul.mubr.bf16.gmra.mrb[0].mxu0 %v5408
    %v7256 = vpop.f32.mrb[0].mxu0
    %v7257 = vadd.f32 %v6968, %v7256
    %v7258 = vpop.f32.mrb[0].mxu0
    %v7259 = vpop.f32.mrb[0].mxu0
    %v7260 = vadd.f32 %v6971, %v7259
    %v7261 = vpop.f32.mrb[0].mxu0
    %7262 = vmatprep.mubr.bf16.mxu0 0
    %7263 = vmatmul.mubr.bf16.gmra.mrb[0].mxu0 %v5411
    %v7264 = vpop.f32.mrb[0].mxu0
    %v7265 = vadd.f32 %v6976, %v7264
    %v7266 = vpop.f32.mrb[0].mxu0
    %v7267 = vpop.f32.mrb[0].mxu0
    %v7268 = vadd.f32 %v6979, %v7267
    %v7269 = vpop.f32.mrb[0].mxu0
    %7270 = vmatprep.mubr.bf16.mxu0 0
    %7271 = vmatmul.mubr.bf16.gmra.mrb[0].mxu0 %v5411
    %v7272 = vpop.f32.mrb[0].mxu0
    %v7273 = vadd.f32 %v6984, %v7272
    %v7274 = vpop.f32.mrb[0].mxu0
    %v7275 = vpop.f32.mrb[0].mxu0
    %v7276 = vadd.f32 %v6987, %v7275
    %v7277 = vpop.f32.mrb[0].mxu0
    %7278 = vmatprep.mubr.bf16.mxu0 0
    %7279 = vmatmul.mubr.bf16.gmra.mrb[0].mxu0 %v5414
    %v7280 = vpop.f32.mrb[0].mxu0
    %v7281 = vadd.f32 %v6992, %v7280
    %v7282 = vpop.f32.mrb[0].mxu0
    %v7283 = vpop.f32.mrb[0].mxu0
    %v7284 = vadd.f32 %v6995, %v7283
    %v7285 = vpop.f32.mrb[0].mxu0
    %7286 = vmatprep.mubr.bf16.mxu0 0
    %7287 = vmatmul.mubr.bf16.gmra.mrb[0].mxu0 %v5414
    %v7288 = vpop.f32.mrb[0].mxu0
    %v7289 = vadd.f32 %v7000, %v7288
    %v7290 = vpop.f32.mrb[0].mxu0
    %v7291 = vpop.f32.mrb[0].mxu0
    %v7292 = vadd.f32 %v7003, %v7291
    %v7293 = vpop.f32.mrb[0].mxu0
    %7294 = vmatprep.mubr.bf16.mxu0 0
    %7295 = vmatmul.mubr.bf16.gmra.mrb[0].mxu0 %v5417
    %v7296 = vpop.f32.mrb[0].mxu0
    %v7297 = vadd.f32 %v7008, %v7296
    %v7298 = vpop.f32.mrb[0].mxu0
    %v7299 = vpop.f32.mrb[0].mxu0
    %v7300 = vadd.f32 %v7011, %v7299
    %v7301 = vpop.f32.mrb[0].mxu0
    %7302 = vmatprep.mubr.bf16.mxu0 0
    %7303 = vmatmul.mubr.bf16.gmra.mrb[0].mxu0 %v5417
    %v7304 = vpop.f32.mrb[0].mxu0
    %v7305 = vadd.f32 %v7016, %v7304
    %v7306 = vpop.f32.mrb[0].mxu0
    %v7307 = vpop.f32.mrb[0].mxu0
    %v7308 = vadd.f32 %v7019, %v7307
    %v7309 = vpop.f32.mrb[0].mxu0
    %7310 = vmatprep.mubr.bf16.mxu0 0
    %7311 = vmatmul.mubr.bf16.gmra.mrb[0].mxu0 %v5420
    %v7312 = vpop.f32.mrb[0].mxu0
    %v7313 = vadd.f32 %v7024, %v7312
    %v7314 = vpop.f32.mrb[0].mxu0
    %v7315 = vpop.f32.mrb[0].mxu0
    %v7316 = vadd.f32 %v7027, %v7315
    %v7317 = vpop.f32.mrb[0].mxu0
    %7318 = vmatprep.mubr.bf16.mxu0 0
    %7319 = vmatmul.mubr.bf16.gmra.mrb[0].mxu0 %v5420
    %v7320 = vpop.f32.mrb[0].mxu0
    %v7321 = vadd.f32 %v7032, %v7320
    %v7322 = vpop.f32.mrb[0].mxu0
    %v7323 = vpop.f32.mrb[0].mxu0
    %v7324 = vadd.f32 %v7035, %v7323
    %v7325 = vpop.f32.mrb[0].mxu0
    %7326 = vmatprep.mubr.bf16.mxu0 0
    %7327 = vmatmul.mubr.bf16.gmra.mrb[0].mxu0 %v5423
    %v7328 = vpop.f32.mrb[0].mxu0
    %v7329 = vadd.f32 %v7040, %v7328
    %v7330 = vpop.f32.mrb[0].mxu0
    %v7331 = vpop.f32.mrb[0].mxu0
    %v7332 = vadd.f32 %v7043, %v7331
    %v7333 = vpop.f32.mrb[0].mxu0
    %7334 = vmatprep.mubr.bf16.mxu0 0
    %7335 = vmatmul.mubr.bf16.gmra.mrb[0].mxu0 %v5423
    %v7336 = vpop.f32.mrb[0].mxu0
    %v7337 = vadd.f32 %v7048, %v7336
    %v7338 = vpop.f32.mrb[0].mxu0
    %v7339 = vpop.f32.mrb[0].mxu0
    %v7340 = vadd.f32 %v7051, %v7339
    %v7341 = vpop.f32.mrb[0].mxu0
    %7342 = vmatprep.mubr.bf16.mxu0 0
    %7343 = vmatmul.mubr.bf16.gmra.mrb[0].mxu0 %v5426
    %v7344 = vpop.f32.mrb[0].mxu0
    %v7345 = vadd.f32 %v7056, %v7344
    %v7346 = vpop.f32.mrb[0].mxu0
    %v7347 = vpop.f32.mrb[0].mxu0
    %v7348 = vadd.f32 %v7059, %v7347
    %v7349 = vpop.f32.mrb[0].mxu0
    %7350 = vmatprep.mubr.bf16.mxu0 0
    %7351 = vmatmul.mubr.bf16.gmra.mrb[0].mxu0 %v5426
    %v7352 = vpop.f32.mrb[0].mxu0
    %v7353 = vadd.f32 %v7064, %v7352
    %v7354 = vpop.f32.mrb[0].mxu0
    %v7355 = vpop.f32.mrb[0].mxu0
    %v7356 = vadd.f32 %v7067, %v7355
    %v7357 = vpop.f32.mrb[0].mxu0
    %7358 = vmatprep.mubr.bf16.mxu0 0
    %7359 = vmatmul.mubr.bf16.gmra.mrb[0].mxu0 %v5402
    %v7360 = vpop.f32.mrb[0].mxu0
    %v7361 = vadd.f32 %v7072, %v7360
    %v7362 = vpop.f32.mrb[0].mxu0
    %v7363 = vpop.f32.mrb[0].mxu0
    %v7364 = vadd.f32 %v7075, %v7363
    %v7365 = vpop.f32.mrb[0].mxu0
    %7366 = vmatprep.mubr.bf16.mxu0 0
    %7367 = vmatmul.mubr.bf16.gmra.mrb[0].mxu0 %v5429
    %v7368 = vpop.f32.mrb[0].mxu0
    %v7369 = vadd.f32 %v7080, %v7368
    %v7370 = vpop.f32.mrb[0].mxu0
    %v7371 = vpop.f32.mrb[0].mxu0
    %v7372 = vadd.f32 %v7083, %v7371
    %v7373 = vpop.f32.mrb[0].mxu0
    %7374 = vmatprep.mubr.bf16.mxu0 0
    %7375 = vmatmul.mubr.bf16.gmra.mrb[0].mxu0 %v5432
    %v7376 = vpop.f32.mrb[0].mxu0
    %v7377 = vadd.f32 %v7088, %v7376
    %v7378 = vpop.f32.mrb[0].mxu0
    %v7379 = vpop.f32.mrb[0].mxu0
    %v7380 = vadd.f32 %v7091, %v7379
    %v7381 = vpop.f32.mrb[0].mxu0
    %7382 = vmatprep.mubr.bf16.mxu0 0
    %7383 = vmatmul.mubr.bf16.gmra.mrb[0].mxu0 %v5432
    %v7384 = vpop.f32.mrb[0].mxu0
    %v7385 = vadd.f32 %v7096, %v7384
    %v7386 = vpop.f32.mrb[0].mxu0
    %v7387 = vpop.f32.mrb[0].mxu0
    %v7388 = vadd.f32 %v7099, %v7387
    %v7389 = vpop.f32.mrb[0].mxu0
    %7390 = vmatprep.mubr.bf16.mxu0 0
    %7391 = vmatmul.mubr.bf16.gmra.mrb[0].mxu0 %v5435
    %v7392 = vpop.f32.mrb[0].mxu0
    %v7393 = vadd.f32 %v7104, %v7392
    %v7394 = vpop.f32.mrb[0].mxu0
    %v7395 = vpop.f32.mrb[0].mxu0
    %v7396 = vadd.f32 %v7107, %v7395
    %v7397 = vpop.f32.mrb[0].mxu0
    %7398 = vmatprep.mubr.bf16.mxu0 0
    %7399 = vmatmul.mubr.bf16.gmra.mrb[0].mxu0 %v5435
    %v7400 = vpop.f32.mrb[0].mxu0
    %v7401 = vadd.f32 %v7112, %v7400
    %v7402 = vpop.f32.mrb[0].mxu0
    %v7403 = vpop.f32.mrb[0].mxu0
    %v7404 = vadd.f32 %v7115, %v7403
    %v7405 = vpop.f32.mrb[0].mxu0
    %7406 = vmatprep.mubr.bf16.mxu0 0
    %7407 = vmatmul.mubr.bf16.gmra.mrb[0].mxu0 %v5438
    %v7408 = vpop.f32.mrb[0].mxu0
    %v7409 = vadd.f32 %v7120, %v7408
    %v7410 = vpop.f32.mrb[0].mxu0
    %v7411 = vpop.f32.mrb[0].mxu0
    %v7412 = vadd.f32 %v7123, %v7411
    %v7413 = vpop.f32.mrb[0].mxu0
    %7414 = vmatprep.mubr.bf16.mxu0 0
    %7415 = vmatmul.mubr.bf16.gmra.mrb[0].mxu0 %v5438
    %v7416 = vpop.f32.mrb[0].mxu0
    %v7417 = vadd.f32 %v7128, %v7416
    %v7418 = vpop.f32.mrb[0].mxu0
    %v7419 = vpop.f32.mrb[0].mxu0
    %v7420 = vadd.f32 %v7131, %v7419
    %v7421 = vpop.f32.mrb[0].mxu0
    %7422 = vmatprep.mubr.bf16.mxu0 0
    %7423 = vmatmul.mubr.bf16.gmra.mrb[0].mxu0 %v5441
    %v7424 = vpop.f32.mrb[0].mxu0
    %v7425 = vadd.f32 %v7136, %v7424
    %v7426 = vpop.f32.mrb[0].mxu0
    %v7427 = vpop.f32.mrb[0].mxu0
    %v7428 = vadd.f32 %v7139, %v7427
    %v7429 = vpop.f32.mrb[0].mxu0
    %7430 = vmatprep.mubr.bf16.mxu0 0
    %7431 = vmatmul.mubr.bf16.gmra.mrb[0].mxu0 %v5441
    %v7432 = vpop.f32.mrb[0].mxu0
    %v7433 = vadd.f32 %v7144, %v7432
    %v7434 = vpop.f32.mrb[0].mxu0
    %v7435 = vpop.f32.mrb[0].mxu0
    %v7436 = vadd.f32 %v7147, %v7435
    %v7437 = vpop.f32.mrb[0].mxu0
    %7438 = vmatprep.mubr.bf16.mxu0 0
    %7439 = vmatmul.mubr.bf16.gmra.mrb[0].mxu0 %v5444
    %v7440 = vpop.f32.mrb[0].mxu0
    %v7441 = vadd.f32 %v7152, %v7440
    %v7442 = vpop.f32.mrb[0].mxu0
    %v7443 = vpop.f32.mrb[0].mxu0
    %v7444 = vadd.f32 %v7155, %v7443
    %v7445 = vpop.f32.mrb[0].mxu0
    %7446 = vmatprep.mubr.bf16.mxu0 0
    %7447 = vmatmul.mubr.bf16.gmra.mrb[0].mxu0 %v5444
    %v7448 = vpop.f32.mrb[0].mxu0
    %v7449 = vadd.f32 %v7160, %v7448
    %v7450 = vpop.f32.mrb[0].mxu0
    %v7451 = vpop.f32.mrb[0].mxu0
    %v7452 = vadd.f32 %v7163, %v7451
    %v7453 = vpop.f32.mrb[0].mxu0
    %7454 = vmatprep.mubr.bf16.mxu0 0
    %7455 = vmatmul.mubr.bf16.gmra.mrb[0].mxu0 %v5447
    %v7456 = vpop.f32.mrb[0].mxu0
    %v7457 = vadd.f32 %v7168, %v7456
    %v7458 = vpop.f32.mrb[0].mxu0
    %v7459 = vpop.f32.mrb[0].mxu0
    %v7460 = vadd.f32 %v7171, %v7459
    %v7461 = vpop.f32.mrb[0].mxu0
    %7462 = vmatprep.mubr.bf16.mxu0 0
    %7463 = vmatmul.mubr.bf16.gmra.mrb[0].mxu0 %v5447
    %v7464 = vpop.f32.mrb[0].mxu0
    %v7465 = vadd.f32 %v7176, %v7464
    %v7466 = vpop.f32.mrb[0].mxu0
    %v7467 = vpop.f32.mrb[0].mxu0
    %v7468 = vadd.f32 %v7179, %v7467
    %v7469 = vpop.f32.mrb[0].mxu0
    %7470 = vmatprep.mubr.bf16.mxu0 0
    %7471 = vmatmul.mubr.bf16.gmra.mrb[0].mxu0 %v5450
    %v7472 = vpop.f32.mrb[0].mxu0
    %v7473 = vadd.f32 %v7184, %v7472
    %v7474 = vpop.f32.mrb[0].mxu0
    %v7475 = vpop.f32.mrb[0].mxu0
    %v7476 = vadd.f32 %v7187, %v7475
    %v7477 = vpop.f32.mrb[0].mxu0
    %7478 = vmatprep.mubr.bf16.mxu0 0
    %7479 = vmatmul.mubr.bf16.gmra.mrb[0].mxu0 %v5450
    %v7480 = vpop.f32.mrb[0].mxu0
    %v7481 = vadd.f32 %v7192, %v7480
    %v7482 = vpop.f32.mrb[0].mxu0
    %v7483 = vpop.f32.mrb[0].mxu0
    %v7484 = vadd.f32 %v7195, %v7483
    %v7485 = vpop.f32.mrb[0].mxu0
    %7486 = vmatprep.mubr.bf16.mxu0 0
    %7487 = vmatmul.mubr.bf16.gmra.mrb[0].mxu0 %v5402
    %v7488 = vpop.f32.mrb[0].mxu0
    %v7489 = vadd.f32 %v7200, %v7488
    %v7490 = vpop.f32.mrb[0].mxu0
    %v7491 = vpop.f32.mrb[0].mxu0
    %v7492 = vadd.f32 %v7203, %v7491
    %v7493 = vpop.f32.mrb[0].mxu0
    %7494 = vdwg.mxu0
    %v7495 = vld [vmem:[%s11] sm:$0x1]
    %v7496 = vld [vmem:[%s11 + $0x1] sm:$0x1]
    %v7497 = vld [vmem:[%s12] sm:$0x1]
    %v7498 = vld [vmem:[%s12 + $0x1] sm:$0x1]
    %v7499 = vadd.f32 %v7241, %v7244
    %v7500 = vadd.f32 %v7499, %v7249
    %v7501 = vadd.f32 %v7500, %v7252
    %v7502 = vadd.f32 %v7501, %v7257
    %v7503 = vadd.f32 %v7502, %v7260
    %v7504 = vadd.f32 %v7503, %v7265
    %v7505 = vadd.f32 %v7504, %v7268
    %v7506 = vadd.f32 %v7505, %v7273
    %v7507 = vadd.f32 %v7506, %v7276
    %v7508 = vadd.f32 %v7507, %v7281
    %v7509 = vadd.f32 %v7508, %v7284
    %v7510 = vadd.f32 %v7509, %v7289
    %v7511 = vadd.f32 %v7510, %v7292
    %v7512 = vadd.f32 %v7511, %v7297
    %v7513 = vadd.f32 %v7512, %v7300
    %v7514 = vadd.f32 %v7513, %v7305
    %v7515 = vadd.f32 %v7514, %v7308
    %v7516 = vadd.f32 %v7515, %v7313
    %v7517 = vadd.f32 %v7516, %v7316
    %v7518 = vadd.f32 %v7517, %v7321
    %v7519 = vadd.f32 %v7518, %v7324
    %v7520 = vadd.f32 %v7519, %v7329
    %v7521 = vadd.f32 %v7520, %v7332
    %v7522 = vadd.f32 %v7521, %v7337
    %v7523 = vadd.f32 %v7522, %v7340
    %v7524 = vadd.f32 %v7523, %v7345
    %v7525 = vadd.f32 %v7524, %v7348
    %v7526 = vadd.f32 %v7525, %v7353
    %v7527 = vadd.f32 %v7526, %v7356
    %v7528 = vadd.f32 %v7527, %v7361
    %v7529 = vadd.f32 %v7528, %v7364
    %v7530 = vadd.f32 %v7529, %v7369
    %v7531 = vadd.f32 %v7530, %v7372
    %v7532 = vadd.f32 %v7531, %v7377
    %v7533 = vadd.f32 %v7532, %v7380
    %v7534 = vadd.f32 %v7533, %v7385
    %v7535 = vadd.f32 %v7534, %v7388
    %v7536 = vadd.f32 %v7535, %v7393
    %v7537 = vadd.f32 %v7536, %v7396
    %v7538 = vadd.f32 %v7537, %v7401
    %v7539 = vadd.f32 %v7538, %v7404
    %v7540 = vadd.f32 %v7539, %v7409
    %v7541 = vadd.f32 %v7540, %v7412
    %v7542 = vadd.f32 %v7541, %v7417
    %v7543 = vadd.f32 %v7542, %v7420
    %v7544 = vadd.f32 %v7543, %v7425
    %v7545 = vadd.f32 %v7544, %v7428
    %v7546 = vadd.f32 %v7545, %v7433
    %v7547 = vadd.f32 %v7546, %v7436
    %v7548 = vadd.f32 %v7547, %v7441
    %v7549 = vadd.f32 %v7548, %v7444
    %v7550 = vadd.f32 %v7549, %v7449
    %v7551 = vadd.f32 %v7550, %v7452
    %v7552 = vadd.f32 %v7551, %v7457
    %v7553 = vadd.f32 %v7552, %v7460
    %v7554 = vadd.f32 %v7553, %v7465
    %v7555 = vadd.f32 %v7554, %v7468
    %v7556 = vadd.f32 %v7555, %v7473
    %v7557 = vadd.f32 %v7556, %v7476
    %v7558 = vadd.f32 %v7557, %v7481
    %v7559 = vadd.f32 %v7558, %v7484
    %v7560 = vadd.f32 %v7559, %v7489
    %v7561 = vadd.f32 %v7560, %v7492
    %v7562 = vrot.slane %v7561, 4
    %v7563 = vadd.f32 %v7561, %v7562
    %v7564 = vrot.slane %v7563, 2
    %v7565 = vadd.f32 %v7563, %v7564
    %v7566 = vrot.slane %v7565, 1
    %v7567 = vadd.f32 %v7565, %v7566
    %v7568 = vmul.f32 %v7567, 0.001953125
    %v7569 = vmul.f32 %v7241, %v7241
    %v7570 = vmul.f32 %v7244, %v7244
    %v7571 = vmul.f32 %v7249, %v7249
    %v7572 = vmul.f32 %v7252, %v7252
    %v7573 = vmul.f32 %v7257, %v7257
    %v7574 = vmul.f32 %v7260, %v7260
    %v7575 = vmul.f32 %v7265, %v7265
    %v7576 = vmul.f32 %v7268, %v7268
    %v7577 = vmul.f32 %v7273, %v7273
    %v7578 = vmul.f32 %v7276, %v7276
    %v7579 = vmul.f32 %v7281, %v7281
    %v7580 = vmul.f32 %v7284, %v7284
    %v7581 = vmul.f32 %v7289, %v7289
    %v7582 = vmul.f32 %v7292, %v7292
    %v7583 = vmul.f32 %v7297, %v7297
    %v7584 = vmul.f32 %v7300, %v7300
    %v7585 = vmul.f32 %v7305, %v7305
    %v7586 = vmul.f32 %v7308, %v7308
    %v7587 = vmul.f32 %v7313, %v7313
    %v7588 = vmul.f32 %v7316, %v7316
    %v7589 = vmul.f32 %v7321, %v7321
    %v7590 = vmul.f32 %v7324, %v7324
    %v7591 = vmul.f32 %v7329, %v7329
    %v7592 = vmul.f32 %v7332, %v7332
    %v7593 = vmul.f32 %v7337, %v7337
    %v7594 = vmul.f32 %v7340, %v7340
    %v7595 = vmul.f32 %v7345, %v7345
    %v7596 = vmul.f32 %v7348, %v7348
    %v7597 = vmul.f32 %v7353, %v7353
    %v7598 = vmul.f32 %v7356, %v7356
    %v7599 = vmul.f32 %v7361, %v7361
    %v7600 = vmul.f32 %v7364, %v7364
    %v7601 = vmul.f32 %v7369, %v7369
    %v7602 = vmul.f32 %v7372, %v7372
    %v7603 = vmul.f32 %v7377, %v7377
    %v7604 = vmul.f32 %v7380, %v7380
    %v7605 = vmul.f32 %v7385, %v7385
    %v7606 = vmul.f32 %v7388, %v7388
    %v7607 = vmul.f32 %v7393, %v7393
    %v7608 = vmul.f32 %v7396, %v7396
    %v7609 = vmul.f32 %v7401, %v7401
    %v7610 = vmul.f32 %v7404, %v7404
    %v7611 = vmul.f32 %v7409, %v7409
    %v7612 = vmul.f32 %v7412, %v7412
    %v7613 = vmul.f32 %v7417, %v7417
    %v7614 = vmul.f32 %v7420, %v7420
    %v7615 = vmul.f32 %v7425, %v7425
    %v7616 = vmul.f32 %v7428, %v7428
    %v7617 = vmul.f32 %v7433, %v7433
    %v7618 = vmul.f32 %v7436, %v7436
    %v7619 = vmul.f32 %v7441, %v7441
    %v7620 = vmul.f32 %v7444, %v7444
    %v7621 = vmul.f32 %v7449, %v7449
    %v7622 = vmul.f32 %v7452, %v7452
    %v7623 = vmul.f32 %v7457, %v7457
    %v7624 = vmul.f32 %v7460, %v7460
    %v7625 = vmul.f32 %v7465, %v7465
    %v7626 = vmul.f32 %v7468, %v7468
    %v7627 = vmul.f32 %v7473, %v7473
    %v7628 = vmul.f32 %v7476, %v7476
    %v7629 = vmul.f32 %v7481, %v7481
    %v7630 = vmul.f32 %v7484, %v7484
    %v7631 = vmul.f32 %v7489, %v7489
    %v7632 = vmul.f32 %v7492, %v7492
    %v7633 = vadd.f32 %v7569, %v7570
    %v7634 = vadd.f32 %v7633, %v7571
    %v7635 = vadd.f32 %v7634, %v7572
    %v7636 = vadd.f32 %v7635, %v7573
    %v7637 = vadd.f32 %v7636, %v7574
    %v7638 = vadd.f32 %v7637, %v7575
    %v7639 = vadd.f32 %v7638, %v7576
    %v7640 = vadd.f32 %v7639, %v7577
    %v7641 = vadd.f32 %v7640, %v7578
    %v7642 = vadd.f32 %v7641, %v7579
    %v7643 = vadd.f32 %v7642, %v7580
    %v7644 = vadd.f32 %v7643, %v7581
    %v7645 = vadd.f32 %v7644, %v7582
    %v7646 = vadd.f32 %v7645, %v7583
    %v7647 = vadd.f32 %v7646, %v7584
    %v7648 = vadd.f32 %v7647, %v7585
    %v7649 = vadd.f32 %v7648, %v7586
    %v7650 = vadd.f32 %v7649, %v7587
    %v7651 = vadd.f32 %v7650, %v7588
    %v7652 = vadd.f32 %v7651, %v7589
    %v7653 = vadd.f32 %v7652, %v7590
    %v7654 = vadd.f32 %v7653, %v7591
    %v7655 = vadd.f32 %v7654, %v7592
    %v7656 = vadd.f32 %v7655, %v7593
    %v7657 = vadd.f32 %v7656, %v7594
    %v7658 = vadd.f32 %v7657, %v7595
    %v7659 = vadd.f32 %v7658, %v7596
    %v7660 = vadd.f32 %v7659, %v7597
    %v7661 = vadd.f32 %v7660, %v7598
    %v7662 = vadd.f32 %v7661, %v7599
    %v7663 = vadd.f32 %v7662, %v7600
    %v7664 = vadd.f32 %v7663, %v7601
    %v7665 = vadd.f32 %v7664, %v7602
    %v7666 = vadd.f32 %v7665, %v7603
    %v7667 = vadd.f32 %v7666, %v7604
    %v7668 = vadd.f32 %v7667, %v7605
    %v7669 = vadd.f32 %v7668, %v7606
    %v7670 = vadd.f32 %v7669, %v7607
    %v7671 = vadd.f32 %v7670, %v7608
    %v7672 = vadd.f32 %v7671, %v7609
    %v7673 = vadd.f32 %v7672, %v7610
    %v7674 = vadd.f32 %v7673, %v7611
    %v7675 = vadd.f32 %v7674, %v7612
    %v7676 = vadd.f32 %v7675, %v7613
    %v7677 = vadd.f32 %v7676, %v7614
    %v7678 = vadd.f32 %v7677, %v7615
    %v7679 = vadd.f32 %v7678, %v7616
    %v7680 = vadd.f32 %v7679, %v7617
    %v7681 = vadd.f32 %v7680, %v7618
    %v7682 = vadd.f32 %v7681, %v7619
    %v7683 = vadd.f32 %v7682, %v7620
    %v7684 = vadd.f32 %v7683, %v7621
    %v7685 = vadd.f32 %v7684, %v7622
    %v7686 = vadd.f32 %v7685, %v7623
    %v7687 = vadd.f32 %v7686, %v7624
    %v7688 = vadd.f32 %v7687, %v7625
    %v7689 = vadd.f32 %v7688, %v7626
    %v7690 = vadd.f32 %v7689, %v7627
    %v7691 = vadd.f32 %v7690, %v7628
    %v7692 = vadd.f32 %v7691, %v7629
    %v7693 = vadd.f32 %v7692, %v7630
    %v7694 = vadd.f32 %v7693, %v7631
    %v7695 = vadd.f32 %v7694, %v7632
    %v7696 = vrot.slane %v7695, 4
    %v7697 = vadd.f32 %v7695, %v7696
    %v7698 = vrot.slane %v7697, 2
    %v7699 = vadd.f32 %v7697, %v7698
    %v7700 = vrot.slane %v7699, 1
    %v7701 = vadd.f32 %v7699, %v7700
    %v7702 = vmul.f32 %v7701, 0.001953125
    %v7703 = vmul.f32 %v7568, %v7568
    %v7704 = vsub.f32 %v7702, %v7703
    %v7705 = vadd.f32 %v7704, 1e-05
    %v7706 = vrsqrt.pop %v7705
    %v7707 = vmul.f32 %v7495, %v7706
    %v7708 = vmul.f32 %v7496, %v7706
    %v7709 = vmul.f32 %v7568, %v7707
    %v7710 = vmul.f32 %v7568, %v7708
    %v7711 = vsub.f32 %v7497, %v7709
    %v7712 = vsub.f32 %v7498, %v7710
    %v7715 = vlaneseq
    %v7716 = vshrl.u32 %v7715, 7
    %v7717 = vsub.s32 0, %v7716
    %v7718 = vrot.slane %v7707, %v7717
    %v7719 = vlaneseq
    %v7720 = vshrl.u32 %v7719, 7
    %v7721 = vsub.s32 0, %v7720
    %v7722 = vrot.slane %v7708, %v7721
    %v7725 = vmul.f32 %v7241, %v7718
    %v7726 = vmul.f32 %v7244, %v7718
    %v7727 = vmul.f32 %v7249, %v7718
    %v7728 = vmul.f32 %v7252, %v7718
    %v7729 = vmul.f32 %v7257, %v7718
    %v7730 = vmul.f32 %v7260, %v7718
    %v7731 = vmul.f32 %v7265, %v7718
    %v7732 = vmul.f32 %v7268, %v7718
    %v7733 = vmul.f32 %v7273, %v7718
    %v7734 = vmul.f32 %v7276, %v7718
    %v7735 = vmul.f32 %v7281, %v7718
    %v7736 = vmul.f32 %v7284, %v7718
    %v7737 = vmul.f32 %v7289, %v7718
    %v7738 = vmul.f32 %v7292, %v7718
    %v7739 = vmul.f32 %v7297, %v7718
    %v7740 = vmul.f32 %v7300, %v7718
    %v7741 = vmul.f32 %v7305, %v7718
    %v7742 = vmul.f32 %v7308, %v7718
    %v7743 = vmul.f32 %v7313, %v7718
    %v7744 = vmul.f32 %v7316, %v7718
    %v7745 = vmul.f32 %v7321, %v7718
    %v7746 = vmul.f32 %v7324, %v7718
    %v7747 = vmul.f32 %v7329, %v7718
    %v7748 = vmul.f32 %v7332, %v7718
    %v7749 = vmul.f32 %v7337, %v7718
    %v7750 = vmul.f32 %v7340, %v7718
    %v7751 = vmul.f32 %v7345, %v7718
    %v7752 = vmul.f32 %v7348, %v7718
    %v7753 = vmul.f32 %v7353, %v7718
    %v7754 = vmul.f32 %v7356, %v7718
    %v7755 = vmul.f32 %v7361, %v7718
    %v7756 = vmul.f32 %v7364, %v7718
    %v7757 = vmul.f32 %v7369, %v7722
    %v7758 = vmul.f32 %v7372, %v7722
    %v7759 = vmul.f32 %v7377, %v7722
    %v7760 = vmul.f32 %v7380, %v7722
    %v7761 = vmul.f32 %v7385, %v7722
    %v7762 = vmul.f32 %v7388, %v7722
    %v7763 = vmul.f32 %v7393, %v7722
    %v7764 = vmul.f32 %v7396, %v7722
    %v7765 = vmul.f32 %v7401, %v7722
    %v7766 = vmul.f32 %v7404, %v7722
    %v7767 = vmul.f32 %v7409, %v7722
    %v7768 = vmul.f32 %v7412, %v7722
    %v7769 = vmul.f32 %v7417, %v7722
    %v7770 = vmul.f32 %v7420, %v7722
    %v7771 = vmul.f32 %v7425, %v7722
    %v7772 = vmul.f32 %v7428, %v7722
    %v7773 = vmul.f32 %v7433, %v7722
    %v7774 = vmul.f32 %v7436, %v7722
    %v7775 = vmul.f32 %v7441, %v7722
    %v7776 = vmul.f32 %v7444, %v7722
    %v7777 = vmul.f32 %v7449, %v7722
    %v7778 = vmul.f32 %v7452, %v7722
    %v7779 = vmul.f32 %v7457, %v7722
    %v7780 = vmul.f32 %v7460, %v7722
    %v7781 = vmul.f32 %v7465, %v7722
    %v7782 = vmul.f32 %v7468, %v7722
    %v7783 = vmul.f32 %v7473, %v7722
    %v7784 = vmul.f32 %v7476, %v7722
    %v7785 = vmul.f32 %v7481, %v7722
    %v7786 = vmul.f32 %v7484, %v7722
    %v7787 = vmul.f32 %v7489, %v7722
    %v7788 = vmul.f32 %v7492, %v7722
    %v7791 = vlaneseq
    %v7792 = vshrl.u32 %v7791, 7
    %v7793 = vsub.s32 0, %v7792
    %v7794 = vrot.slane %v7711, %v7793
    %v7795 = vlaneseq
    %v7796 = vshrl.u32 %v7795, 7
    %v7797 = vsub.s32 0, %v7796
    %v7798 = vrot.slane %v7712, %v7797
    %v7801 = vadd.f32 %v7725, %v7794
    %v7802 = vadd.f32 %v7726, %v7794
    %v7803 = vadd.f32 %v7727, %v7794
    %v7804 = vadd.f32 %v7728, %v7794
    %v7805 = vadd.f32 %v7729, %v7794
    %v7806 = vadd.f32 %v7730, %v7794
    %v7807 = vadd.f32 %v7731, %v7794
    %v7808 = vadd.f32 %v7732, %v7794
    %v7809 = vadd.f32 %v7733, %v7794
    %v7810 = vadd.f32 %v7734, %v7794
    %v7811 = vadd.f32 %v7735, %v7794
    %v7812 = vadd.f32 %v7736, %v7794
    %v7813 = vadd.f32 %v7737, %v7794
    %v7814 = vadd.f32 %v7738, %v7794
    %v7815 = vadd.f32 %v7739, %v7794
    %v7816 = vadd.f32 %v7740, %v7794
    %v7817 = vadd.f32 %v7741, %v7794
    %v7818 = vadd.f32 %v7742, %v7794
    %v7819 = vadd.f32 %v7743, %v7794
    %v7820 = vadd.f32 %v7744, %v7794
    %v7821 = vadd.f32 %v7745, %v7794
    %v7822 = vadd.f32 %v7746, %v7794
    %v7823 = vadd.f32 %v7747, %v7794
    %v7824 = vadd.f32 %v7748, %v7794
    %v7825 = vadd.f32 %v7749, %v7794
    %v7826 = vadd.f32 %v7750, %v7794
    %v7827 = vadd.f32 %v7751, %v7794
    %v7828 = vadd.f32 %v7752, %v7794
    %v7829 = vadd.f32 %v7753, %v7794
    %v7830 = vadd.f32 %v7754, %v7794
    %v7831 = vadd.f32 %v7755, %v7794
    %v7832 = vadd.f32 %v7756, %v7794
    %v7833 = vadd.f32 %v7757, %v7798
    %v7834 = vadd.f32 %v7758, %v7798
    %v7835 = vadd.f32 %v7759, %v7798
    %v7836 = vadd.f32 %v7760, %v7798
    %v7837 = vadd.f32 %v7761, %v7798
    %v7838 = vadd.f32 %v7762, %v7798
    %v7839 = vadd.f32 %v7763, %v7798
    %v7840 = vadd.f32 %v7764, %v7798
    %v7841 = vadd.f32 %v7765, %v7798
    %v7842 = vadd.f32 %v7766, %v7798
    %v7843 = vadd.f32 %v7767, %v7798
    %v7844 = vadd.f32 %v7768, %v7798
    %v7845 = vadd.f32 %v7769, %v7798
    %v7846 = vadd.f32 %v7770, %v7798
    %v7847 = vadd.f32 %v7771, %v7798
    %v7848 = vadd.f32 %v7772, %v7798
    %v7849 = vadd.f32 %v7773, %v7798
    %v7850 = vadd.f32 %v7774, %v7798
    %v7851 = vadd.f32 %v7775, %v7798
    %v7852 = vadd.f32 %v7776, %v7798
    %v7853 = vadd.f32 %v7777, %v7798
    %v7854 = vadd.f32 %v7778, %v7798
    %v7855 = vadd.f32 %v7779, %v7798
    %v7856 = vadd.f32 %v7780, %v7798
    %v7857 = vadd.f32 %v7781, %v7798
    %v7858 = vadd.f32 %v7782, %v7798
    %v7859 = vadd.f32 %v7783, %v7798
    %v7860 = vadd.f32 %v7784, %v7798
    %v7861 = vadd.f32 %v7785, %v7798
    %v7862 = vadd.f32 %v7786, %v7798
    %v7863 = vadd.f32 %v7787, %v7798
    %v7864 = vadd.f32 %v7788, %v7798
    %v7865 = vmul.f32 %v7801, 0.2
    %v7866 = vmul.f32 %v7802, 0.2
    %v7867 = vmul.f32 %v7803, 0.2
    %v7868 = vmul.f32 %v7804, 0.2
    %v7869 = vmul.f32 %v7805, 0.2
    %v7870 = vmul.f32 %v7806, 0.2
    %v7871 = vmul.f32 %v7807, 0.2
    %v7872 = vmul.f32 %v7808, 0.2
    %v7873 = vmul.f32 %v7809, 0.2
    %v7874 = vmul.f32 %v7810, 0.2
    %v7875 = vmul.f32 %v7811, 0.2
    %v7876 = vmul.f32 %v7812, 0.2
    %v7877 = vmul.f32 %v7813, 0.2
    %v7878 = vmul.f32 %v7814, 0.2
    %v7879 = vmul.f32 %v7815, 0.2
    %v7880 = vmul.f32 %v7816, 0.2
    %v7881 = vmul.f32 %v7817, 0.2
    %v7882 = vmul.f32 %v7818, 0.2
    %v7883 = vmul.f32 %v7819, 0.2
    %v7884 = vmul.f32 %v7820, 0.2
    %v7885 = vmul.f32 %v7821, 0.2
    %v7886 = vmul.f32 %v7822, 0.2
    %v7887 = vmul.f32 %v7823, 0.2
    %v7888 = vmul.f32 %v7824, 0.2
    %v7889 = vmul.f32 %v7825, 0.2
    %v7890 = vmul.f32 %v7826, 0.2
    %v7891 = vmul.f32 %v7827, 0.2
    %v7892 = vmul.f32 %v7828, 0.2
    %v7893 = vmul.f32 %v7829, 0.2
    %v7894 = vmul.f32 %v7830, 0.2
    %v7895 = vmul.f32 %v7831, 0.2
    %v7896 = vmul.f32 %v7832, 0.2
    %v7897 = vmul.f32 %v7833, 0.2
    %v7898 = vmul.f32 %v7834, 0.2
    %v7899 = vmul.f32 %v7835, 0.2
    %v7900 = vmul.f32 %v7836, 0.2
    %v7901 = vmul.f32 %v7837, 0.2
    %v7902 = vmul.f32 %v7838, 0.2
    %v7903 = vmul.f32 %v7839, 0.2
    %v7904 = vmul.f32 %v7840, 0.2
    %v7905 = vmul.f32 %v7841, 0.2
    %v7906 = vmul.f32 %v7842, 0.2
    %v7907 = vmul.f32 %v7843, 0.2
    %v7908 = vmul.f32 %v7844, 0.2
    %v7909 = vmul.f32 %v7845, 0.2
    %v7910 = vmul.f32 %v7846, 0.2
    %v7911 = vmul.f32 %v7847, 0.2
    %v7912 = vmul.f32 %v7848, 0.2
    %v7913 = vmul.f32 %v7849, 0.2
    %v7914 = vmul.f32 %v7850, 0.2
    %v7915 = vmul.f32 %v7851, 0.2
    %v7916 = vmul.f32 %v7852, 0.2
    %v7917 = vmul.f32 %v7853, 0.2
    %v7918 = vmul.f32 %v7854, 0.2
    %v7919 = vmul.f32 %v7855, 0.2
    %v7920 = vmul.f32 %v7856, 0.2
    %v7921 = vmul.f32 %v7857, 0.2
    %v7922 = vmul.f32 %v7858, 0.2
    %v7923 = vmul.f32 %v7859, 0.2
    %v7924 = vmul.f32 %v7860, 0.2
    %v7925 = vmul.f32 %v7861, 0.2
    %v7926 = vmul.f32 %v7862, 0.2
    %v7927 = vmul.f32 %v7863, 0.2
    %v7928 = vmul.f32 %v7864, 0.2
    %v7929 = vmax.f32 %v7801, %v7865
    %v7930 = vmax.f32 %v7802, %v7866
    %v7931 = vmax.f32 %v7803, %v7867
    %v7932 = vmax.f32 %v7804, %v7868
    %v7933 = vmax.f32 %v7805, %v7869
    %v7934 = vmax.f32 %v7806, %v7870
    %v7935 = vmax.f32 %v7807, %v7871
    %v7936 = vmax.f32 %v7808, %v7872
    %v7937 = vmax.f32 %v7809, %v7873
    %v7938 = vmax.f32 %v7810, %v7874
    %v7939 = vmax.f32 %v7811, %v7875
    %v7940 = vmax.f32 %v7812, %v7876
    %v7941 = vmax.f32 %v7813, %v7877
    %v7942 = vmax.f32 %v7814, %v7878
    %v7943 = vmax.f32 %v7815, %v7879
    %v7944 = vmax.f32 %v7816, %v7880
    %v7945 = vmax.f32 %v7817, %v7881
    %v7946 = vmax.f32 %v7818, %v7882
    %v7947 = vmax.f32 %v7819, %v7883
    %v7948 = vmax.f32 %v7820, %v7884
    %v7949 = vmax.f32 %v7821, %v7885
    %v7950 = vmax.f32 %v7822, %v7886
    %v7951 = vmax.f32 %v7823, %v7887
    %v7952 = vmax.f32 %v7824, %v7888
    %v7953 = vmax.f32 %v7825, %v7889
    %v7954 = vmax.f32 %v7826, %v7890
    %v7955 = vmax.f32 %v7827, %v7891
    %v7956 = vmax.f32 %v7828, %v7892
    %v7957 = vmax.f32 %v7829, %v7893
    %v7958 = vmax.f32 %v7830, %v7894
    %v7959 = vmax.f32 %v7831, %v7895
    %v7960 = vmax.f32 %v7832, %v7896
    %v7961 = vmax.f32 %v7833, %v7897
    %v7962 = vmax.f32 %v7834, %v7898
    %v7963 = vmax.f32 %v7835, %v7899
    %v7964 = vmax.f32 %v7836, %v7900
    %v7965 = vmax.f32 %v7837, %v7901
    %v7966 = vmax.f32 %v7838, %v7902
    %v7967 = vmax.f32 %v7839, %v7903
    %v7968 = vmax.f32 %v7840, %v7904
    %v7969 = vmax.f32 %v7841, %v7905
    %v7970 = vmax.f32 %v7842, %v7906
    %v7971 = vmax.f32 %v7843, %v7907
    %v7972 = vmax.f32 %v7844, %v7908
    %v7973 = vmax.f32 %v7845, %v7909
    %v7974 = vmax.f32 %v7846, %v7910
    %v7975 = vmax.f32 %v7847, %v7911
    %v7976 = vmax.f32 %v7848, %v7912
    %v7977 = vmax.f32 %v7849, %v7913
    %v7978 = vmax.f32 %v7850, %v7914
    %v7979 = vmax.f32 %v7851, %v7915
    %v7980 = vmax.f32 %v7852, %v7916
    %v7981 = vmax.f32 %v7853, %v7917
    %v7982 = vmax.f32 %v7854, %v7918
    %v7983 = vmax.f32 %v7855, %v7919
    %v7984 = vmax.f32 %v7856, %v7920
    %v7985 = vmax.f32 %v7857, %v7921
    %v7986 = vmax.f32 %v7858, %v7922
    %v7987 = vmax.f32 %v7859, %v7923
    %v7988 = vmax.f32 %v7860, %v7924
    %v7989 = vmax.f32 %v7861, %v7925
    %v7990 = vmax.f32 %v7862, %v7926
    %v7991 = vmax.f32 %v7863, %v7927
    %v7992 = vmax.f32 %v7864, %v7928
    %v7993 = vld [vmem:[%s14] sm:$0x1]
    %v7994 = vpack.c.bf16 %v7930, %v7929
    %v7995 = vpack.c.bf16 %v7932, %v7931
    %v7996 = vpack.c.bf16 %v7934, %v7933
    %v7997 = vpack.c.bf16 %v7936, %v7935
    %v7998 = vpack.c.bf16 %v7938, %v7937
    %v7999 = vpack.c.bf16 %v7940, %v7939
    %v8000 = vpack.c.bf16 %v7942, %v7941
    %v8001 = vpack.c.bf16 %v7944, %v7943
    %v8002 = vpack.c.bf16 %v7946, %v7945
    %v8003 = vpack.c.bf16 %v7948, %v7947
    %v8004 = vpack.c.bf16 %v7950, %v7949
    %v8005 = vpack.c.bf16 %v7952, %v7951
    %v8006 = vpack.c.bf16 %v7954, %v7953
    %v8007 = vpack.c.bf16 %v7956, %v7955
    %v8008 = vpack.c.bf16 %v7958, %v7957
    %v8009 = vpack.c.bf16 %v7960, %v7959
    %v8010 = vpack.c.bf16 %v7962, %v7961
    %v8011 = vpack.c.bf16 %v7964, %v7963
    %v8012 = vpack.c.bf16 %v7966, %v7965
    %v8013 = vpack.c.bf16 %v7968, %v7967
    %v8014 = vpack.c.bf16 %v7970, %v7969
    %v8015 = vpack.c.bf16 %v7972, %v7971
    %v8016 = vpack.c.bf16 %v7974, %v7973
    %v8017 = vpack.c.bf16 %v7976, %v7975
    %v8018 = vpack.c.bf16 %v7978, %v7977
    %v8019 = vpack.c.bf16 %v7980, %v7979
    %v8020 = vpack.c.bf16 %v7982, %v7981
    %v8021 = vpack.c.bf16 %v7984, %v7983
    %v8022 = vpack.c.bf16 %v7986, %v7985
    %v8023 = vpack.c.bf16 %v7988, %v7987
    %v8024 = vpack.c.bf16 %v7990, %v7989
    %v8025 = vpack.c.bf16 %v7992, %v7991
    %v8027 = vshrl.u32 %v7994, 16
    %v8029 = vrot.slane %v8027, 7
    %v8030 = vshll.u32 %v7994, 16
    %v8032 = vor.u32 %v8029, %v8030
    %v8034 = vshrl.u32 %v7995, 16
    %v8036 = vrot.slane %v8034, 7
    %v8037 = vshll.u32 %v7995, 16
    %v8039 = vor.u32 %v8036, %v8037
    %v8041 = vshrl.u32 %v7996, 16
    %v8043 = vrot.slane %v8041, 7
    %v8044 = vshll.u32 %v7996, 16
    %v8046 = vor.u32 %v8043, %v8044
    %v8048 = vshrl.u32 %v7997, 16
    %v8050 = vrot.slane %v8048, 7
    %v8051 = vshll.u32 %v7997, 16
    %v8053 = vor.u32 %v8050, %v8051
    %v8055 = vshrl.u32 %v7998, 16
    %v8057 = vrot.slane %v8055, 7
    %v8058 = vshll.u32 %v7998, 16
    %v8060 = vor.u32 %v8057, %v8058
    %v8062 = vshrl.u32 %v7999, 16
    %v8064 = vrot.slane %v8062, 7
    %v8065 = vshll.u32 %v7999, 16
    %v8067 = vor.u32 %v8064, %v8065
    %v8069 = vshrl.u32 %v8000, 16
    %v8071 = vrot.slane %v8069, 7
    %v8072 = vshll.u32 %v8000, 16
    %v8074 = vor.u32 %v8071, %v8072
    %v8076 = vshrl.u32 %v8001, 16
    %v8078 = vrot.slane %v8076, 7
    %v8079 = vshll.u32 %v8001, 16
    %v8081 = vor.u32 %v8078, %v8079
    %v8083 = vshrl.u32 %v8002, 16
    %v8085 = vrot.slane %v8083, 7
    %v8086 = vshll.u32 %v8002, 16
    %v8088 = vor.u32 %v8085, %v8086
    %v8090 = vshrl.u32 %v8003, 16
    %v8092 = vrot.slane %v8090, 7
    %v8093 = vshll.u32 %v8003, 16
    %v8095 = vor.u32 %v8092, %v8093
    %v8097 = vshrl.u32 %v8004, 16
    %v8099 = vrot.slane %v8097, 7
    %v8100 = vshll.u32 %v8004, 16
    %v8102 = vor.u32 %v8099, %v8100
    %v8104 = vshrl.u32 %v8005, 16
    %v8106 = vrot.slane %v8104, 7
    %v8107 = vshll.u32 %v8005, 16
    %v8109 = vor.u32 %v8106, %v8107
    %v8111 = vshrl.u32 %v8006, 16
    %v8113 = vrot.slane %v8111, 7
    %v8114 = vshll.u32 %v8006, 16
    %v8116 = vor.u32 %v8113, %v8114
    %v8118 = vshrl.u32 %v8007, 16
    %v8120 = vrot.slane %v8118, 7
    %v8121 = vshll.u32 %v8007, 16
    %v8123 = vor.u32 %v8120, %v8121
    %v8125 = vshrl.u32 %v8008, 16
    %v8127 = vrot.slane %v8125, 7
    %v8128 = vshll.u32 %v8008, 16
    %v8130 = vor.u32 %v8127, %v8128
    %v8132 = vshrl.u32 %v8009, 16
    %v8134 = vrot.slane %v8132, 7
    %v8135 = vshll.u32 %v8009, 16
    %v8137 = vor.u32 %v8134, %v8135
    %v8139 = vshrl.u32 %v8010, 16
    %v8141 = vrot.slane %v8139, 7
    %v8142 = vshll.u32 %v8010, 16
    %v8144 = vor.u32 %v8141, %v8142
    %v8146 = vshrl.u32 %v8011, 16
    %v8148 = vrot.slane %v8146, 7
    %v8149 = vshll.u32 %v8011, 16
    %v8151 = vor.u32 %v8148, %v8149
    %v8153 = vshrl.u32 %v8012, 16
    %v8155 = vrot.slane %v8153, 7
    %v8156 = vshll.u32 %v8012, 16
    %v8158 = vor.u32 %v8155, %v8156
    %v8160 = vshrl.u32 %v8013, 16
    %v8162 = vrot.slane %v8160, 7
    %v8163 = vshll.u32 %v8013, 16
    %v8165 = vor.u32 %v8162, %v8163
    %v8167 = vshrl.u32 %v8014, 16
    %v8169 = vrot.slane %v8167, 7
    %v8170 = vshll.u32 %v8014, 16
    %v8172 = vor.u32 %v8169, %v8170
    %v8174 = vshrl.u32 %v8015, 16
    %v8176 = vrot.slane %v8174, 7
    %v8177 = vshll.u32 %v8015, 16
    %v8179 = vor.u32 %v8176, %v8177
    %v8181 = vshrl.u32 %v8016, 16
    %v8183 = vrot.slane %v8181, 7
    %v8184 = vshll.u32 %v8016, 16
    %v8186 = vor.u32 %v8183, %v8184
    %v8188 = vshrl.u32 %v8017, 16
    %v8190 = vrot.slane %v8188, 7
    %v8191 = vshll.u32 %v8017, 16
    %v8193 = vor.u32 %v8190, %v8191
    %v8195 = vshrl.u32 %v8018, 16
    %v8197 = vrot.slane %v8195, 7
    %v8198 = vshll.u32 %v8018, 16
    %v8200 = vor.u32 %v8197, %v8198
    %v8202 = vshrl.u32 %v8019, 16
    %v8204 = vrot.slane %v8202, 7
    %v8205 = vshll.u32 %v8019, 16
    %v8207 = vor.u32 %v8204, %v8205
    %v8209 = vshrl.u32 %v8020, 16
    %v8211 = vrot.slane %v8209, 7
    %v8212 = vshll.u32 %v8020, 16
    %v8214 = vor.u32 %v8211, %v8212
    %v8216 = vshrl.u32 %v8021, 16
    %v8218 = vrot.slane %v8216, 7
    %v8219 = vshll.u32 %v8021, 16
    %v8221 = vor.u32 %v8218, %v8219
    %v8223 = vshrl.u32 %v8022, 16
    %v8225 = vrot.slane %v8223, 7
    %v8226 = vshll.u32 %v8022, 16
    %v8228 = vor.u32 %v8225, %v8226
    %v8230 = vshrl.u32 %v8023, 16
    %v8232 = vrot.slane %v8230, 7
    %v8233 = vshll.u32 %v8023, 16
    %v8235 = vor.u32 %v8232, %v8233
    %v8237 = vshrl.u32 %v8024, 16
    %v8239 = vrot.slane %v8237, 7
    %v8240 = vshll.u32 %v8024, 16
    %v8242 = vor.u32 %v8239, %v8240
    %v8244 = vshrl.u32 %v8025, 16
    %v8246 = vrot.slane %v8244, 7
    %v8247 = vshll.u32 %v8025, 16
    %v8249 = vor.u32 %v8246, %v8247
    %v8314 = vsel %vm1593, 0, %v8032
    %v8315 = vsel %vm1593, 0, %v8039
    %v8316 = vsel %vm1593, 0, %v8046
    %v8317 = vsel %vm1593, 0, %v8053
    %v8318 = vsel %vm1593, 0, %v8060
    %v8319 = vsel %vm1593, 0, %v8067
    %v8320 = vsel %vm1593, 0, %v8074
    %v8321 = vsel %vm1593, 0, %v8081
    %v8322 = vsel %vm1593, 0, %v8088
    %v8323 = vsel %vm1593, 0, %v8095
    %v8324 = vsel %vm1593, 0, %v8102
    %v8325 = vsel %vm1593, 0, %v8109
    %v8326 = vsel %vm1593, 0, %v8116
    %v8327 = vsel %vm1593, 0, %v8123
    %v8328 = vsel %vm1593, 0, %v8130
    %v8329 = vsel %vm1593, 0, %v8137
    %v8330 = vsel %vm1593, 0, %v8144
    %v8331 = vsel %vm1593, 0, %v8151
    %v8332 = vsel %vm1593, 0, %v8158
    %v8333 = vsel %vm1593, 0, %v8165
    %v8334 = vsel %vm1593, 0, %v8172
    %v8335 = vsel %vm1593, 0, %v8179
    %v8336 = vsel %vm1593, 0, %v8186
    %v8337 = vsel %vm1593, 0, %v8193
    %v8338 = vsel %vm1593, 0, %v8200
    %v8339 = vsel %vm1593, 0, %v8207
    %v8340 = vsel %vm1593, 0, %v8214
    %v8341 = vsel %vm1593, 0, %v8221
    %v8342 = vsel %vm1593, 0, %v8228
    %v8343 = vsel %vm1593, 0, %v8235
    %v8344 = vsel %vm1593, 0, %v8242
    %v8345 = vsel %vm1593, 0, %v8249
    %v8346 = vsel %vm1593, %v8029, 0
    %v8347 = vsel %vm1593, %v8036, 0
    %v8348 = vsel %vm1593, %v8043, 0
    %v8349 = vsel %vm1593, %v8050, 0
    %v8350 = vsel %vm1593, %v8057, 0
    %v8351 = vsel %vm1593, %v8064, 0
    %v8352 = vsel %vm1593, %v8071, 0
    %v8353 = vsel %vm1593, %v8078, 0
    %v8354 = vsel %vm1593, %v8085, 0
    %v8355 = vsel %vm1593, %v8092, 0
    %v8356 = vsel %vm1593, %v8099, 0
    %v8357 = vsel %vm1593, %v8106, 0
    %v8358 = vsel %vm1593, %v8113, 0
    %v8359 = vsel %vm1593, %v8120, 0
    %v8360 = vsel %vm1593, %v8127, 0
    %v8361 = vsel %vm1593, %v8134, 0
    %v8362 = vsel %vm1593, %v8141, 0
    %v8363 = vsel %vm1593, %v8148, 0
    %v8364 = vsel %vm1593, %v8155, 0
    %v8365 = vsel %vm1593, %v8162, 0
    %v8366 = vsel %vm1593, %v8169, 0
    %v8367 = vsel %vm1593, %v8176, 0
    %v8368 = vsel %vm1593, %v8183, 0
    %v8369 = vsel %vm1593, %v8190, 0
    %v8370 = vsel %vm1593, %v8197, 0
    %v8371 = vsel %vm1593, %v8204, 0
    %v8372 = vsel %vm1593, %v8211, 0
    %v8373 = vsel %vm1593, %v8218, 0
    %v8374 = vsel %vm1593, %v8225, 0
    %v8375 = vsel %vm1593, %v8232, 0
    %v8376 = vsel %vm1593, %v8239, 0
    %v8377 = vsel %vm1593, %v8246, 0
    %v8379 = vshrl.u32 %v8314, 16
    %v8381 = vshll.u32 %v8314, 16
    %v8383 = vrot.slane %v8381, 1
    %v8384 = vor.u32 %v8379, %v8383
    %v8386 = vshll.u32 %v8346, 16
    %v8388 = vrot.slane %v8386, 1
    %v8389 = vsel %vm5143, %v8384, %v8388
    %v8391 = vshrl.u32 %v8315, 16
    %v8393 = vshll.u32 %v8315, 16
    %v8395 = vrot.slane %v8393, 1
    %v8396 = vor.u32 %v8391, %v8395
    %v8398 = vshll.u32 %v8347, 16
    %v8400 = vrot.slane %v8398, 1
    %v8401 = vsel %vm5143, %v8396, %v8400
    %v8403 = vshrl.u32 %v8316, 16
    %v8405 = vshll.u32 %v8316, 16
    %v8407 = vrot.slane %v8405, 1
    %v8408 = vor.u32 %v8403, %v8407
    %v8410 = vshll.u32 %v8348, 16
    %v8412 = vrot.slane %v8410, 1
    %v8413 = vsel %vm5143, %v8408, %v8412
    %v8415 = vshrl.u32 %v8317, 16
    %v8417 = vshll.u32 %v8317, 16
    %v8419 = vrot.slane %v8417, 1
    %v8420 = vor.u32 %v8415, %v8419
    %v8422 = vshll.u32 %v8349, 16
    %v8424 = vrot.slane %v8422, 1
    %v8425 = vsel %vm5143, %v8420, %v8424
    %v8427 = vshrl.u32 %v8318, 16
    %v8429 = vshll.u32 %v8318, 16
    %v8431 = vrot.slane %v8429, 1
    %v8432 = vor.u32 %v8427, %v8431
    %v8434 = vshll.u32 %v8350, 16
    %v8436 = vrot.slane %v8434, 1
    %v8437 = vsel %vm5143, %v8432, %v8436
    %v8439 = vshrl.u32 %v8319, 16
    %v8441 = vshll.u32 %v8319, 16
    %v8443 = vrot.slane %v8441, 1
    %v8444 = vor.u32 %v8439, %v8443
    %v8446 = vshll.u32 %v8351, 16
    %v8448 = vrot.slane %v8446, 1
    %v8449 = vsel %vm5143, %v8444, %v8448
    %v8451 = vshrl.u32 %v8320, 16
    %v8453 = vshll.u32 %v8320, 16
    %v8455 = vrot.slane %v8453, 1
    %v8456 = vor.u32 %v8451, %v8455
    %v8458 = vshll.u32 %v8352, 16
    %v8460 = vrot.slane %v8458, 1
    %v8461 = vsel %vm5143, %v8456, %v8460
    %v8463 = vshrl.u32 %v8321, 16
    %v8465 = vshll.u32 %v8321, 16
    %v8467 = vrot.slane %v8465, 1
    %v8468 = vor.u32 %v8463, %v8467
    %v8470 = vshll.u32 %v8353, 16
    %v8472 = vrot.slane %v8470, 1
    %v8473 = vsel %vm5143, %v8468, %v8472
    %v8475 = vshrl.u32 %v8322, 16
    %v8477 = vshll.u32 %v8322, 16
    %v8479 = vrot.slane %v8477, 1
    %v8480 = vor.u32 %v8475, %v8479
    %v8482 = vshll.u32 %v8354, 16
    %v8484 = vrot.slane %v8482, 1
    %v8485 = vsel %vm5143, %v8480, %v8484
    %v8487 = vshrl.u32 %v8323, 16
    %v8489 = vshll.u32 %v8323, 16
    %v8491 = vrot.slane %v8489, 1
    %v8492 = vor.u32 %v8487, %v8491
    %v8494 = vshll.u32 %v8355, 16
    %v8496 = vrot.slane %v8494, 1
    %v8497 = vsel %vm5143, %v8492, %v8496
    %v8499 = vshrl.u32 %v8324, 16
    %v8501 = vshll.u32 %v8324, 16
    %v8503 = vrot.slane %v8501, 1
    %v8504 = vor.u32 %v8499, %v8503
    %v8506 = vshll.u32 %v8356, 16
    %v8508 = vrot.slane %v8506, 1
    %v8509 = vsel %vm5143, %v8504, %v8508
    %v8511 = vshrl.u32 %v8325, 16
    %v8513 = vshll.u32 %v8325, 16
    %v8515 = vrot.slane %v8513, 1
    %v8516 = vor.u32 %v8511, %v8515
    %v8518 = vshll.u32 %v8357, 16
    %v8520 = vrot.slane %v8518, 1
    %v8521 = vsel %vm5143, %v8516, %v8520
    %v8523 = vshrl.u32 %v8326, 16
    %v8525 = vshll.u32 %v8326, 16
    %v8527 = vrot.slane %v8525, 1
    %v8528 = vor.u32 %v8523, %v8527
    %v8530 = vshll.u32 %v8358, 16
    %v8532 = vrot.slane %v8530, 1
    %v8533 = vsel %vm5143, %v8528, %v8532
    %v8535 = vshrl.u32 %v8327, 16
    %v8537 = vshll.u32 %v8327, 16
    %v8539 = vrot.slane %v8537, 1
    %v8540 = vor.u32 %v8535, %v8539
    %v8542 = vshll.u32 %v8359, 16
    %v8544 = vrot.slane %v8542, 1
    %v8545 = vsel %vm5143, %v8540, %v8544
    %v8547 = vshrl.u32 %v8328, 16
    %v8549 = vshll.u32 %v8328, 16
    %v8551 = vrot.slane %v8549, 1
    %v8552 = vor.u32 %v8547, %v8551
    %v8554 = vshll.u32 %v8360, 16
    %v8556 = vrot.slane %v8554, 1
    %v8557 = vsel %vm5143, %v8552, %v8556
    %v8559 = vshrl.u32 %v8330, 16
    %v8561 = vshll.u32 %v8330, 16
    %v8563 = vrot.slane %v8561, 1
    %v8564 = vor.u32 %v8559, %v8563
    %v8566 = vshll.u32 %v8362, 16
    %v8568 = vrot.slane %v8566, 1
    %v8569 = vsel %vm5143, %v8564, %v8568
    %v8571 = vshrl.u32 %v8331, 16
    %v8573 = vshll.u32 %v8331, 16
    %v8575 = vrot.slane %v8573, 1
    %v8576 = vor.u32 %v8571, %v8575
    %v8578 = vshll.u32 %v8363, 16
    %v8580 = vrot.slane %v8578, 1
    %v8581 = vsel %vm5143, %v8576, %v8580
    %v8583 = vshrl.u32 %v8332, 16
    %v8585 = vshll.u32 %v8332, 16
    %v8587 = vrot.slane %v8585, 1
    %v8588 = vor.u32 %v8583, %v8587
    %v8590 = vshll.u32 %v8364, 16
    %v8592 = vrot.slane %v8590, 1
    %v8593 = vsel %vm5143, %v8588, %v8592
    %v8595 = vshrl.u32 %v8333, 16
    %v8597 = vshll.u32 %v8333, 16
    %v8599 = vrot.slane %v8597, 1
    %v8600 = vor.u32 %v8595, %v8599
    %v8602 = vshll.u32 %v8365, 16
    %v8604 = vrot.slane %v8602, 1
    %v8605 = vsel %vm5143, %v8600, %v8604
    %v8607 = vshrl.u32 %v8334, 16
    %v8609 = vshll.u32 %v8334, 16
    %v8611 = vrot.slane %v8609, 1
    %v8612 = vor.u32 %v8607, %v8611
    %v8614 = vshll.u32 %v8366, 16
    %v8616 = vrot.slane %v8614, 1
    %v8617 = vsel %vm5143, %v8612, %v8616
    %v8619 = vshrl.u32 %v8335, 16
    %v8621 = vshll.u32 %v8335, 16
    %v8623 = vrot.slane %v8621, 1
    %v8624 = vor.u32 %v8619, %v8623
    %v8626 = vshll.u32 %v8367, 16
    %v8628 = vrot.slane %v8626, 1
    %v8629 = vsel %vm5143, %v8624, %v8628
    %v8631 = vshrl.u32 %v8336, 16
    %v8633 = vshll.u32 %v8336, 16
    %v8635 = vrot.slane %v8633, 1
    %v8636 = vor.u32 %v8631, %v8635
    %v8638 = vshll.u32 %v8368, 16
    %v8640 = vrot.slane %v8638, 1
    %v8641 = vsel %vm5143, %v8636, %v8640
    %v8643 = vshrl.u32 %v8337, 16
    %v8645 = vshll.u32 %v8337, 16
    %v8647 = vrot.slane %v8645, 1
    %v8648 = vor.u32 %v8643, %v8647
    %v8650 = vshll.u32 %v8369, 16
    %v8652 = vrot.slane %v8650, 1
    %v8653 = vsel %vm5143, %v8648, %v8652
    %v8655 = vshrl.u32 %v8338, 16
    %v8657 = vshll.u32 %v8338, 16
    %v8659 = vrot.slane %v8657, 1
    %v8660 = vor.u32 %v8655, %v8659
    %v8662 = vshll.u32 %v8370, 16
    %v8664 = vrot.slane %v8662, 1
    %v8665 = vsel %vm5143, %v8660, %v8664
    %v8667 = vshrl.u32 %v8339, 16
    %v8669 = vshll.u32 %v8339, 16
    %v8671 = vrot.slane %v8669, 1
    %v8672 = vor.u32 %v8667, %v8671
    %v8674 = vshll.u32 %v8371, 16
    %v8676 = vrot.slane %v8674, 1
    %v8677 = vsel %vm5143, %v8672, %v8676
    %v8679 = vshrl.u32 %v8340, 16
    %v8681 = vshll.u32 %v8340, 16
    %v8683 = vrot.slane %v8681, 1
    %v8684 = vor.u32 %v8679, %v8683
    %v8686 = vshll.u32 %v8372, 16
    %v8688 = vrot.slane %v8686, 1
    %v8689 = vsel %vm5143, %v8684, %v8688
    %v8691 = vshrl.u32 %v8341, 16
    %v8693 = vshll.u32 %v8341, 16
    %v8695 = vrot.slane %v8693, 1
    %v8696 = vor.u32 %v8691, %v8695
    %v8698 = vshll.u32 %v8373, 16
    %v8700 = vrot.slane %v8698, 1
    %v8701 = vsel %vm5143, %v8696, %v8700
    %v8703 = vshrl.u32 %v8342, 16
    %v8705 = vshll.u32 %v8342, 16
    %v8707 = vrot.slane %v8705, 1
    %v8708 = vor.u32 %v8703, %v8707
    %v8710 = vshll.u32 %v8374, 16
    %v8712 = vrot.slane %v8710, 1
    %v8713 = vsel %vm5143, %v8708, %v8712
    %v8715 = vshrl.u32 %v8343, 16
    %v8717 = vshll.u32 %v8343, 16
    %v8719 = vrot.slane %v8717, 1
    %v8720 = vor.u32 %v8715, %v8719
    %v8722 = vshll.u32 %v8375, 16
    %v8724 = vrot.slane %v8722, 1
    %v8725 = vsel %vm5143, %v8720, %v8724
    %v8727 = vshrl.u32 %v8344, 16
    %v8729 = vshll.u32 %v8344, 16
    %v8731 = vrot.slane %v8729, 1
    %v8732 = vor.u32 %v8727, %v8731
    %v8734 = vshll.u32 %v8376, 16
    %v8736 = vrot.slane %v8734, 1
    %v8737 = vsel %vm5143, %v8732, %v8736
    %v8828 = vrot.slane %v8314, 1
    %v8829 = vrot.slane %v8346, 1
    %v8830 = vsel %vm5399, %v8828, %v8829
    %v8831 = vrot.slane %v8315, 1
    %v8832 = vrot.slane %v8347, 1
    %v8833 = vsel %vm5399, %v8831, %v8832
    %v8834 = vrot.slane %v8316, 1
    %v8835 = vrot.slane %v8348, 1
    %v8836 = vsel %vm5399, %v8834, %v8835
    %v8837 = vrot.slane %v8317, 1
    %v8838 = vrot.slane %v8349, 1
    %v8839 = vsel %vm5399, %v8837, %v8838
    %v8840 = vrot.slane %v8318, 1
    %v8841 = vrot.slane %v8350, 1
    %v8842 = vsel %vm5399, %v8840, %v8841
    %v8843 = vrot.slane %v8319, 1
    %v8844 = vrot.slane %v8351, 1
    %v8845 = vsel %vm5399, %v8843, %v8844
    %v8846 = vrot.slane %v8320, 1
    %v8847 = vrot.slane %v8352, 1
    %v8848 = vsel %vm5399, %v8846, %v8847
    %v8849 = vrot.slane %v8321, 1
    %v8850 = vrot.slane %v8353, 1
    %v8851 = vsel %vm5399, %v8849, %v8850
    %v8852 = vrot.slane %v8322, 1
    %v8853 = vrot.slane %v8354, 1
    %v8854 = vsel %vm5399, %v8852, %v8853
    %v8855 = vrot.slane %v8323, 1
    %v8856 = vrot.slane %v8355, 1
    %v8857 = vsel %vm5399, %v8855, %v8856
    %v8858 = vrot.slane %v8324, 1
    %v8859 = vrot.slane %v8356, 1
    %v8860 = vsel %vm5399, %v8858, %v8859
    %v8861 = vrot.slane %v8325, 1
    %v8862 = vrot.slane %v8357, 1
    %v8863 = vsel %vm5399, %v8861, %v8862
    %v8864 = vrot.slane %v8326, 1
    %v8865 = vrot.slane %v8358, 1
    %v8866 = vsel %vm5399, %v8864, %v8865
    %v8867 = vrot.slane %v8327, 1
    %v8868 = vrot.slane %v8359, 1
    %v8869 = vsel %vm5399, %v8867, %v8868
    %v8870 = vrot.slane %v8328, 1
    %v8871 = vrot.slane %v8360, 1
    %v8872 = vsel %vm5399, %v8870, %v8871
    %v8873 = vrot.slane %v8330, 1
    %v8874 = vrot.slane %v8362, 1
    %v8875 = vsel %vm5399, %v8873, %v8874
    %v8876 = vrot.slane %v8331, 1
    %v8877 = vrot.slane %v8363, 1
    %v8878 = vsel %vm5399, %v8876, %v8877
    %v8879 = vrot.slane %v8332, 1
    %v8880 = vrot.slane %v8364, 1
    %v8881 = vsel %vm5399, %v8879, %v8880
    %v8882 = vrot.slane %v8333, 1
    %v8883 = vrot.slane %v8365, 1
    %v8884 = vsel %vm5399, %v8882, %v8883
    %v8885 = vrot.slane %v8334, 1
    %v8886 = vrot.slane %v8366, 1
    %v8887 = vsel %vm5399, %v8885, %v8886
    %v8888 = vrot.slane %v8335, 1
    %v8889 = vrot.slane %v8367, 1
    %v8890 = vsel %vm5399, %v8888, %v8889
    %v8891 = vrot.slane %v8336, 1
    %v8892 = vrot.slane %v8368, 1
    %v8893 = vsel %vm5399, %v8891, %v8892
    %v8894 = vrot.slane %v8337, 1
    %v8895 = vrot.slane %v8369, 1
    %v8896 = vsel %vm5399, %v8894, %v8895
    %v8897 = vrot.slane %v8338, 1
    %v8898 = vrot.slane %v8370, 1
    %v8899 = vsel %vm5399, %v8897, %v8898
    %v8900 = vrot.slane %v8339, 1
    %v8901 = vrot.slane %v8371, 1
    %v8902 = vsel %vm5399, %v8900, %v8901
    %v8903 = vrot.slane %v8340, 1
    %v8904 = vrot.slane %v8372, 1
    %v8905 = vsel %vm5399, %v8903, %v8904
    %v8906 = vrot.slane %v8341, 1
    %v8907 = vrot.slane %v8373, 1
    %v8908 = vsel %vm5399, %v8906, %v8907
    %v8909 = vrot.slane %v8342, 1
    %v8910 = vrot.slane %v8374, 1
    %v8911 = vsel %vm5399, %v8909, %v8910
    %v8912 = vrot.slane %v8343, 1
    %v8913 = vrot.slane %v8375, 1
    %v8914 = vsel %vm5399, %v8912, %v8913
    %v8915 = vrot.slane %v8344, 1
    %v8916 = vrot.slane %v8376, 1
    %v8917 = vsel %vm5399, %v8915, %v8916
    %v8949 = vshrl.u32 %v8329, 16
    %v8951 = vshll.u32 %v8329, 16
    %v8953 = vrot.slane %v8951, 1
    %v8954 = vor.u32 %v8949, %v8953
    %v8956 = vshll.u32 %v8361, 16
    %v8958 = vrot.slane %v8956, 1
    %v8959 = vsel %vm5143, %v8954, %v8958
    %v8961 = vshrl.u32 %v8345, 16
    %v8963 = vshll.u32 %v8345, 16
    %v8965 = vrot.slane %v8963, 1
    %v8966 = vor.u32 %v8961, %v8965
    %v8968 = vshll.u32 %v8377, 16
    %v8970 = vrot.slane %v8968, 1
    %v8971 = vsel %vm5143, %v8966, %v8970
    %v8978 = vrot.slane %v8329, 1
    %v8979 = vrot.slane %v8361, 1
    %v8980 = vsel %vm5399, %v8978, %v8979
    %v8981 = vrot.slane %v8345, 1
    %v8982 = vrot.slane %v8377, 1
    %v8983 = vsel %vm5399, %v8981, %v8982
    %v8986 = vld [vmem:[#allocation7] sm:$0xf]
    %v8987 = vld [vmem:[#allocation7 + $0x4] sm:$0xf]
    %v8988 = vld [vmem:[#allocation7 + $0x8] sm:$0xf]
    %v8989 = vld [vmem:[#allocation7 + $0xc] sm:$0xf]
    %v8990 = vld [vmem:[#allocation7 + $0x10] sm:$0xf]
    %v8991 = vld [vmem:[#allocation7 + $0x14] sm:$0xf]
    %v8992 = vld [vmem:[#allocation7 + $0x18] sm:$0xf]
    %v8993 = vld [vmem:[#allocation7 + $0x1c] sm:$0xf]
    %v8994 = vld [vmem:[#allocation7 + $0x20] sm:$0xf]
    %v8995 = vld [vmem:[#allocation7 + $0x24] sm:$0xf]
    %v8996 = vld [vmem:[#allocation7 + $0x28] sm:$0xf]
    %v8997 = vld [vmem:[#allocation7 + $0x2c] sm:$0xf]
    %v8998 = vld [vmem:[#allocation7 + $0x30] sm:$0xf]
    %v8999 = vld [vmem:[#allocation7 + $0x34] sm:$0xf]
    %v9000 = vld [vmem:[#allocation7 + $0x38] sm:$0xf]
    %v9001 = vld [vmem:[#allocation7 + $0x3c] sm:$0xf]
    %v9002 = vld [vmem:[#allocation7 + $0x40] sm:$0xf]
    %v9003 = vld [vmem:[#allocation7 + $0x44] sm:$0xf]
    %v9004 = vld [vmem:[#allocation7 + $0x48] sm:$0xf]
    %v9005 = vld [vmem:[#allocation7 + $0x4c] sm:$0xf]
    %v9006 = vld [vmem:[#allocation7 + $0x50] sm:$0xf]
    %v9007 = vld [vmem:[#allocation7 + $0x54] sm:$0xf]
    %v9008 = vld [vmem:[#allocation7 + $0x58] sm:$0xf]
    %v9009 = vld [vmem:[#allocation7 + $0x5c] sm:$0xf]
    %v9010 = vld [vmem:[#allocation7 + $0x60] sm:$0xf]
    %v9011 = vld [vmem:[#allocation7 + $0x64] sm:$0xf]
    %v9012 = vld [vmem:[#allocation7 + $0x68] sm:$0xf]
    %v9013 = vld [vmem:[#allocation7 + $0x6c] sm:$0xf]
    %v9014 = vld [vmem:[#allocation7 + $0x70] sm:$0xf]
    %v9015 = vld [vmem:[#allocation7 + $0x74] sm:$0xf]
    %v9016 = vld [vmem:[#allocation7 + $0x78] sm:$0xf]
    %v9017 = vld [vmem:[#allocation7 + $0x7c] sm:$0xf]
    %v9018 = vld [vmem:[#allocation7 + $0x80] sm:$0xf]
    %v9019 = vld [vmem:[#allocation7 + $0x84] sm:$0xf]
    %v9020 = vld [vmem:[#allocation7 + $0x88] sm:$0xf]
    %v9021 = vld [vmem:[#allocation7 + $0x8c] sm:$0xf]
    %v9022 = vld [vmem:[#allocation7 + $0x90] sm:$0xf]
    %v9023 = vld [vmem:[#allocation7 + $0x94] sm:$0xf]
    %v9024 = vld [vmem:[#allocation7 + $0x98] sm:$0xf]
    %v9025 = vld [vmem:[#allocation7 + $0x9c] sm:$0xf]
    %v9026 = vld [vmem:[#allocation7 + $0xa0] sm:$0xf]
    %v9027 = vld [vmem:[#allocation7 + $0xa4] sm:$0xf]
    %v9028 = vld [vmem:[#allocation7 + $0xa8] sm:$0xf]
    %v9029 = vld [vmem:[#allocation7 + $0xac] sm:$0xf]
    %v9030 = vld [vmem:[#allocation7 + $0xb0] sm:$0xf]
    %v9031 = vld [vmem:[#allocation7 + $0xb4] sm:$0xf]
    %v9032 = vld [vmem:[#allocation7 + $0xb8] sm:$0xf]
    %v9033 = vld [vmem:[#allocation7 + $0xbc] sm:$0xf]
    %v9034 = vld [vmem:[#allocation7 + $0xc0] sm:$0xf]
    %v9035 = vld [vmem:[#allocation7 + $0xc4] sm:$0xf]
    %v9036 = vld [vmem:[#allocation7 + $0xc8] sm:$0xf]
    %v9037 = vld [vmem:[#allocation7 + $0xcc] sm:$0xf]
    %v9038 = vld [vmem:[#allocation7 + $0xd0] sm:$0xf]
    %v9039 = vld [vmem:[#allocation7 + $0xd4] sm:$0xf]
    %v9040 = vld [vmem:[#allocation7 + $0xd8] sm:$0xf]
    %v9041 = vld [vmem:[#allocation7 + $0xdc] sm:$0xf]
    %v9042 = vld [vmem:[#allocation7 + $0xe0] sm:$0xf]
    %v9043 = vld [vmem:[#allocation7 + $0xe4] sm:$0xf]
    %v9044 = vld [vmem:[#allocation7 + $0xe8] sm:$0xf]
    %v9045 = vld [vmem:[#allocation7 + $0xec] sm:$0xf]
    %v9046 = vld [vmem:[#allocation7 + $0xf0] sm:$0xf]
    %v9047 = vld [vmem:[#allocation7 + $0xf4] sm:$0xf]
    %v9048 = vld [vmem:[#allocation7 + $0xf8] sm:$0xf]
    %v9049 = vld [vmem:[#allocation7 + $0xfc] sm:$0xf]
    %v9050 = vld [vmem:[#allocation7 + $0x100] sm:$0xf]
    %v9051 = vld [vmem:[#allocation7 + $0x104] sm:$0xf]
    %v9052 = vld [vmem:[#allocation7 + $0x108] sm:$0xf]
    %v9053 = vld [vmem:[#allocation7 + $0x10c] sm:$0xf]
    %v9054 = vld [vmem:[#allocation7 + $0x110] sm:$0xf]
    %v9055 = vld [vmem:[#allocation7 + $0x114] sm:$0xf]
    %v9056 = vld [vmem:[#allocation7 + $0x118] sm:$0xf]
    %v9057 = vld [vmem:[#allocation7 + $0x11c] sm:$0xf]
    %v9058 = vld [vmem:[#allocation7 + $0x120] sm:$0xf]
    %v9059 = vld [vmem:[#allocation7 + $0x124] sm:$0xf]
    %v9060 = vld [vmem:[#allocation7 + $0x128] sm:$0xf]
    %v9061 = vld [vmem:[#allocation7 + $0x12c] sm:$0xf]
    %v9062 = vld [vmem:[#allocation7 + $0x130] sm:$0xf]
    %v9063 = vld [vmem:[#allocation7 + $0x134] sm:$0xf]
    %v9064 = vld [vmem:[#allocation7 + $0x138] sm:$0xf]
    %v9065 = vld [vmem:[#allocation7 + $0x13c] sm:$0xf]
    %v9066 = vld [vmem:[#allocation7 + $0x140] sm:$0xf]
    %v9067 = vld [vmem:[#allocation7 + $0x144] sm:$0xf]
    %v9068 = vld [vmem:[#allocation7 + $0x148] sm:$0xf]
    %v9069 = vld [vmem:[#allocation7 + $0x14c] sm:$0xf]
    %v9070 = vld [vmem:[#allocation7 + $0x150] sm:$0xf]
    %v9071 = vld [vmem:[#allocation7 + $0x154] sm:$0xf]
    %v9072 = vld [vmem:[#allocation7 + $0x158] sm:$0xf]
    %v9073 = vld [vmem:[#allocation7 + $0x15c] sm:$0xf]
    %v9074 = vld [vmem:[#allocation7 + $0x160] sm:$0xf]
    %v9075 = vld [vmem:[#allocation7 + $0x164] sm:$0xf]
    %v9076 = vld [vmem:[#allocation7 + $0x168] sm:$0xf]
    %v9077 = vld [vmem:[#allocation7 + $0x16c] sm:$0xf]
    %v9078 = vld [vmem:[#allocation7 + $0x170] sm:$0xf]
    %v9079 = vld [vmem:[#allocation7 + $0x174] sm:$0xf]
    %v9080 = vld [vmem:[#allocation7 + $0x178] sm:$0xf]
    %v9081 = vld [vmem:[#allocation7 + $0x17c] sm:$0xf]
    %v9082 = vld [vmem:[#allocation7 + $0x180] sm:$0xf]
    %v9083 = vld [vmem:[#allocation7 + $0x184] sm:$0xf]
    %v9084 = vld [vmem:[#allocation7 + $0x188] sm:$0xf]
    %v9085 = vld [vmem:[#allocation7 + $0x18c] sm:$0xf]
    %v9086 = vld [vmem:[#allocation7 + $0x190] sm:$0xf]
    %v9087 = vld [vmem:[#allocation7 + $0x194] sm:$0xf]
    %v9088 = vld [vmem:[#allocation7 + $0x198] sm:$0xf]
    %v9089 = vld [vmem:[#allocation7 + $0x19c] sm:$0xf]
    %v9090 = vld [vmem:[#allocation7 + $0x1a0] sm:$0xf]
    %v9091 = vld [vmem:[#allocation7 + $0x1a4] sm:$0xf]
    %v9092 = vld [vmem:[#allocation7 + $0x1a8] sm:$0xf]
    %v9093 = vld [vmem:[#allocation7 + $0x1ac] sm:$0xf]
    %v9094 = vld [vmem:[#allocation7 + $0x1b0] sm:$0xf]
    %v9095 = vld [vmem:[#allocation7 + $0x1b4] sm:$0xf]
    %v9096 = vld [vmem:[#allocation7 + $0x1b8] sm:$0xf]
    %v9097 = vld [vmem:[#allocation7 + $0x1bc] sm:$0xf]
    %v9098 = vld [vmem:[#allocation7 + $0x1c0] sm:$0xf]
    %v9099 = vld [vmem:[#allocation7 + $0x1c4] sm:$0xf]
    %v9100 = vld [vmem:[#allocation7 + $0x1c8] sm:$0xf]
    %v9101 = vld [vmem:[#allocation7 + $0x1cc] sm:$0xf]
    %v9102 = vld [vmem:[#allocation7 + $0x1d0] sm:$0xf]
    %v9103 = vld [vmem:[#allocation7 + $0x1d4] sm:$0xf]
    %v9104 = vld [vmem:[#allocation7 + $0x1d8] sm:$0xf]
    %v9105 = vld [vmem:[#allocation7 + $0x1dc] sm:$0xf]
    %v9106 = vld [vmem:[#allocation7 + $0x1e0] sm:$0xf]
    %v9107 = vld [vmem:[#allocation7 + $0x1e4] sm:$0xf]
    %v9108 = vld [vmem:[#allocation7 + $0x1e8] sm:$0xf]
    %v9109 = vld [vmem:[#allocation7 + $0x1ec] sm:$0xf]
    %v9110 = vld [vmem:[#allocation7 + $0x1f0] sm:$0xf]
    %v9111 = vld [vmem:[#allocation7 + $0x1f4] sm:$0xf]
    %v9112 = vld [vmem:[#allocation7 + $0x1f8] sm:$0xf]
    %v9113 = vld [vmem:[#allocation7 + $0x1fc] sm:$0xf]
    %v9114 = vld [vmem:[#allocation7 + $0x200] sm:$0xf]
    %v9115 = vld [vmem:[#allocation7 + $0x204] sm:$0xf]
    %v9116 = vld [vmem:[#allocation7 + $0x208] sm:$0xf]
    %v9117 = vld [vmem:[#allocation7 + $0x20c] sm:$0xf]
    %v9118 = vld [vmem:[#allocation7 + $0x210] sm:$0xf]
    %v9119 = vld [vmem:[#allocation7 + $0x214] sm:$0xf]
    %v9120 = vld [vmem:[#allocation7 + $0x218] sm:$0xf]
    %v9121 = vld [vmem:[#allocation7 + $0x21c] sm:$0xf]
    %v9122 = vld [vmem:[#allocation7 + $0x220] sm:$0xf]
    %v9123 = vld [vmem:[#allocation7 + $0x224] sm:$0xf]
    %v9124 = vld [vmem:[#allocation7 + $0x228] sm:$0xf]
    %v9125 = vld [vmem:[#allocation7 + $0x22c] sm:$0xf]
    %v9126 = vld [vmem:[#allocation7 + $0x230] sm:$0xf]
    %v9127 = vld [vmem:[#allocation7 + $0x234] sm:$0xf]
    %v9128 = vld [vmem:[#allocation7 + $0x238] sm:$0xf]
    %v9129 = vld [vmem:[#allocation7 + $0x23c] sm:$0xf]
    %v9131 = vlaneseq
    %v9132 = vshrl.u32 %v9131, 7
    %v9133 = vsub.s32 0, %v9132
    %v9134 = vrot.slane %v7993, %v9133
    %v9280 = vunpack.c.l.b16 %v8986
    %v9281 = vunpack.c.l.b16 %v8987
    %v9282 = vunpack.c.l.b16 %v8988
    %v9283 = vunpack.c.l.b16 %v8989
    %v9284 = vunpack.c.l.b16 %v8990
    %v9285 = vunpack.c.l.b16 %v8991
    %v9286 = vunpack.c.l.b16 %v8992
    %v9287 = vunpack.c.l.b16 %v8993
    %v9288 = vunpack.c.l.b16 %v8994
    %v9289 = vunpack.c.l.b16 %v8995
    %v9290 = vunpack.c.l.b16 %v8996
    %v9291 = vunpack.c.l.b16 %v8997
    %v9292 = vunpack.c.l.b16 %v8998
    %v9293 = vunpack.c.l.b16 %v8999
    %v9294 = vunpack.c.l.b16 %v9000
    %v9295 = vunpack.c.l.b16 %v9001
    %v9296 = vunpack.c.l.b16 %v9002
    %v9297 = vunpack.c.l.b16 %v9003
    %v9298 = vunpack.c.l.b16 %v9004
    %v9299 = vunpack.c.l.b16 %v9005
    %v9300 = vunpack.c.l.b16 %v9006
    %v9301 = vunpack.c.l.b16 %v9007
    %v9302 = vunpack.c.l.b16 %v9008
    %v9303 = vunpack.c.l.b16 %v9009
    %v9304 = vunpack.c.l.b16 %v9010
    %v9305 = vunpack.c.l.b16 %v9011
    %v9306 = vunpack.c.l.b16 %v9012
    %v9307 = vunpack.c.l.b16 %v9013
    %v9308 = vunpack.c.l.b16 %v9014
    %v9309 = vunpack.c.l.b16 %v9015
    %v9310 = vunpack.c.l.b16 %v9016
    %v9311 = vunpack.c.l.b16 %v9017
    %v9312 = vunpack.c.l.b16 %v9018
    %v9313 = vunpack.c.l.b16 %v9019
    %v9314 = vunpack.c.l.b16 %v9020
    %v9315 = vunpack.c.l.b16 %v9021
    %v9316 = vunpack.c.l.b16 %v9022
    %v9317 = vunpack.c.l.b16 %v9023
    %v9318 = vunpack.c.l.b16 %v9024
    %v9319 = vunpack.c.l.b16 %v9025
    %v9320 = vunpack.c.l.b16 %v9026
    %v9321 = vunpack.c.l.b16 %v9027
    %v9322 = vunpack.c.l.b16 %v9028
    %v9323 = vunpack.c.l.b16 %v9029
    %v9324 = vunpack.c.l.b16 %v9030
    %v9325 = vunpack.c.l.b16 %v9031
    %v9326 = vunpack.c.l.b16 %v9032
    %v9327 = vunpack.c.l.b16 %v9033
    %v9328 = vunpack.c.l.b16 %v9034
    %v9329 = vunpack.c.l.b16 %v9035
    %v9330 = vunpack.c.l.b16 %v9036
    %v9331 = vunpack.c.l.b16 %v9037
    %v9332 = vunpack.c.l.b16 %v9038
    %v9333 = vunpack.c.l.b16 %v9039
    %v9334 = vunpack.c.l.b16 %v9040
    %v9335 = vunpack.c.l.b16 %v9041
    %v9336 = vunpack.c.l.b16 %v9042
    %v9337 = vunpack.c.l.b16 %v9043
    %v9338 = vunpack.c.l.b16 %v9044
    %v9339 = vunpack.c.l.b16 %v9045
    %v9340 = vunpack.c.l.b16 %v9046
    %v9341 = vunpack.c.l.b16 %v9047
    %v9342 = vunpack.c.l.b16 %v9048
    %v9343 = vunpack.c.l.b16 %v9049
    %v9344 = vunpack.c.l.b16 %v9050
    %v9345 = vunpack.c.l.b16 %v9051
    %v9346 = vunpack.c.l.b16 %v9052
    %v9347 = vunpack.c.l.b16 %v9053
    %v9348 = vunpack.c.l.b16 %v9054
    %v9349 = vunpack.c.l.b16 %v9055
    %v9350 = vunpack.c.l.b16 %v9056
    %v9351 = vunpack.c.l.b16 %v9057
    %v9352 = vunpack.c.l.b16 %v9058
    %v9353 = vunpack.c.l.b16 %v9059
    %v9354 = vunpack.c.l.b16 %v9060
    %v9355 = vunpack.c.l.b16 %v9061
    %v9356 = vunpack.c.l.b16 %v9062
    %v9357 = vunpack.c.l.b16 %v9063
    %v9358 = vunpack.c.l.b16 %v9064
    %v9359 = vunpack.c.l.b16 %v9065
    %v9360 = vunpack.c.l.b16 %v9066
    %v9361 = vunpack.c.l.b16 %v9067
    %v9362 = vunpack.c.l.b16 %v9068
    %v9363 = vunpack.c.l.b16 %v9069
    %v9364 = vunpack.c.l.b16 %v9070
    %v9365 = vunpack.c.l.b16 %v9071
    %v9366 = vunpack.c.l.b16 %v9072
    %v9367 = vunpack.c.l.b16 %v9073
    %v9368 = vunpack.c.l.b16 %v9074
    %v9369 = vunpack.c.l.b16 %v9075
    %v9370 = vunpack.c.l.b16 %v9076
    %v9371 = vunpack.c.l.b16 %v9077
    %v9372 = vunpack.c.l.b16 %v9078
    %v9373 = vunpack.c.l.b16 %v9079
    %v9374 = vunpack.c.l.b16 %v9080
    %v9375 = vunpack.c.l.b16 %v9081
    %v9376 = vunpack.c.l.b16 %v9082
    %v9377 = vunpack.c.l.b16 %v9083
    %v9378 = vunpack.c.l.b16 %v9084
    %v9379 = vunpack.c.l.b16 %v9085
    %v9380 = vunpack.c.l.b16 %v9086
    %v9381 = vunpack.c.l.b16 %v9087
    %v9382 = vunpack.c.l.b16 %v9088
    %v9383 = vunpack.c.l.b16 %v9089
    %v9384 = vunpack.c.l.b16 %v9090
    %v9385 = vunpack.c.l.b16 %v9091
    %v9386 = vunpack.c.l.b16 %v9092
    %v9387 = vunpack.c.l.b16 %v9093
    %v9388 = vunpack.c.l.b16 %v9094
    %v9389 = vunpack.c.l.b16 %v9095
    %v9390 = vunpack.c.l.b16 %v9096
    %v9391 = vunpack.c.l.b16 %v9097
    %v9392 = vunpack.c.l.b16 %v9098
    %v9393 = vunpack.c.l.b16 %v9099
    %v9394 = vunpack.c.l.b16 %v9100
    %v9395 = vunpack.c.l.b16 %v9101
    %v9396 = vunpack.c.l.b16 %v9102
    %v9397 = vunpack.c.l.b16 %v9103
    %v9398 = vunpack.c.l.b16 %v9104
    %v9399 = vunpack.c.l.b16 %v9105
    %v9400 = vunpack.c.l.b16 %v9106
    %v9401 = vunpack.c.l.b16 %v9107
    %v9402 = vunpack.c.l.b16 %v9108
    %v9403 = vunpack.c.l.b16 %v9109
    %v9404 = vunpack.c.l.b16 %v9110
    %v9405 = vunpack.c.l.b16 %v9111
    %v9406 = vunpack.c.l.b16 %v9112
    %v9407 = vunpack.c.l.b16 %v9113
    %v9408 = vunpack.c.l.b16 %v9114
    %v9409 = vunpack.c.l.b16 %v9115
    %v9410 = vunpack.c.l.b16 %v9116
    %v9411 = vunpack.c.l.b16 %v9117
    %v9412 = vunpack.c.l.b16 %v9118
    %v9413 = vunpack.c.l.b16 %v9119
    %v9414 = vunpack.c.l.b16 %v9120
    %v9415 = vunpack.c.l.b16 %v9121
    %v9416 = vunpack.c.l.b16 %v9122
    %v9417 = vunpack.c.l.b16 %v9123
    %v9418 = vunpack.c.l.b16 %v9124
    %v9419 = vunpack.c.l.b16 %v9125
    %v9420 = vunpack.c.l.b16 %v9126
    %v9421 = vunpack.c.l.b16 %v9127
    %v9422 = vunpack.c.l.b16 %v9128
    %v9423 = vunpack.c.l.b16 %v9129
    %v9424 = vpack.c.b16 %v9281, %v9280
    %v9425 = vpack.c.b16 %v9283, %v9282
    %v9426 = vpack.c.b16 %v9285, %v9284
    %v9427 = vpack.c.b16 %v9287, %v9286
    %v9428 = vpack.c.b16 %v9289, %v9288
    %v9429 = vpack.c.b16 %v9291, %v9290
    %v9430 = vpack.c.b16 %v9293, %v9292
    %v9431 = vpack.c.b16 %v9295, %v9294
    %v9432 = vpack.c.b16 %v9297, %v9296
    %v9433 = vpack.c.b16 %v9299, %v9298
    %v9434 = vpack.c.b16 %v9301, %v9300
    %v9435 = vpack.c.b16 %v9303, %v9302
    %v9436 = vpack.c.b16 %v9305, %v9304
    %v9437 = vpack.c.b16 %v9307, %v9306
    %v9438 = vpack.c.b16 %v9309, %v9308
    %v9439 = vpack.c.b16 %v9311, %v9310
    %v9440 = vpack.c.b16 %v9313, %v9312
    %v9441 = vpack.c.b16 %v9315, %v9314
    %v9442 = vpack.c.b16 %v9317, %v9316
    %v9443 = vpack.c.b16 %v9319, %v9318
    %v9444 = vpack.c.b16 %v9321, %v9320
    %v9445 = vpack.c.b16 %v9323, %v9322
    %v9446 = vpack.c.b16 %v9325, %v9324
    %v9447 = vpack.c.b16 %v9327, %v9326
    %v9448 = vpack.c.b16 %v9329, %v9328
    %v9449 = vpack.c.b16 %v9331, %v9330
    %v9450 = vpack.c.b16 %v9333, %v9332
    %v9451 = vpack.c.b16 %v9335, %v9334
    %v9452 = vpack.c.b16 %v9337, %v9336
    %v9453 = vpack.c.b16 %v9339, %v9338
    %v9454 = vpack.c.b16 %v9341, %v9340
    %v9455 = vpack.c.b16 %v9343, %v9342
    %v9456 = vpack.c.b16 %v9345, %v9344
    %v9457 = vpack.c.b16 %v9347, %v9346
    %v9458 = vpack.c.b16 %v9349, %v9348
    %v9459 = vpack.c.b16 %v9351, %v9350
    %v9460 = vpack.c.b16 %v9353, %v9352
    %v9461 = vpack.c.b16 %v9355, %v9354
    %v9462 = vpack.c.b16 %v9357, %v9356
    %v9463 = vpack.c.b16 %v9359, %v9358
    %v9464 = vpack.c.b16 %v9361, %v9360
    %v9465 = vpack.c.b16 %v9363, %v9362
    %v9466 = vpack.c.b16 %v9365, %v9364
    %v9467 = vpack.c.b16 %v9367, %v9366
    %v9468 = vpack.c.b16 %v9369, %v9368
    %v9469 = vpack.c.b16 %v9371, %v9370
    %v9470 = vpack.c.b16 %v9373, %v9372
    %v9471 = vpack.c.b16 %v9375, %v9374
    %v9472 = vpack.c.b16 %v9377, %v9376
    %v9473 = vpack.c.b16 %v9379, %v9378
    %v9474 = vpack.c.b16 %v9381, %v9380
    %v9475 = vpack.c.b16 %v9383, %v9382
    %v9476 = vpack.c.b16 %v9385, %v9384
    %v9477 = vpack.c.b16 %v9387, %v9386
    %v9478 = vpack.c.b16 %v9389, %v9388
    %v9479 = vpack.c.b16 %v9391, %v9390
    %v9480 = vpack.c.b16 %v9393, %v9392
    %v9481 = vpack.c.b16 %v9395, %v9394
    %v9482 = vpack.c.b16 %v9397, %v9396
    %v9483 = vpack.c.b16 %v9399, %v9398
    %v9484 = vpack.c.b16 %v9401, %v9400
    %v9485 = vpack.c.b16 %v9403, %v9402
    %v9486 = vpack.c.b16 %v9405, %v9404
    %v9487 = vpack.c.b16 %v9407, %v9406
    %v9488 = vpack.c.b16 %v9409, %v9408
    %v9489 = vpack.c.b16 %v9411, %v9410
    %v9490 = vpack.c.b16 %v9413, %v9412
    %v9491 = vpack.c.b16 %v9415, %v9414
    %v9492 = vpack.c.b16 %v9417, %v9416
    %v9493 = vpack.c.b16 %v9419, %v9418
    %v9494 = vpack.c.b16 %v9421, %v9420
    %v9495 = vpack.c.b16 %v9423, %v9422
    %9568 = vmatprep.subr.bf16.mxu0 0
    %9569 = vmatpush1.bf16.msra.mxu0 %v9424
    %9570 = vmatprep.subr.bf16.mxu0 0
    %9571 = vmatpush1.bf16.msra.mxu0 %v9425
    %9572 = vmatprep.subr.bf16.mxu0 0
    %9573 = vmatpush1.bf16.msra.mxu0 %v9426
    %9574 = vmatprep.subr.bf16.mxu0 0
    %9575 = vmatpush1.bf16.msra.mxu0 %v9427
    %9576 = vmatprep.subr.bf16.mxu0 0
    %9577 = vmatpush1.bf16.msra.mxu0 %v9428
    %9578 = vmatprep.subr.bf16.mxu0 0
    %9579 = vmatpush1.bf16.msra.mxu0 %v9429
    %9580 = vmatprep.subr.bf16.mxu0 0
    %9581 = vmatpush1.bf16.msra.mxu0 %v9430
    %9582 = vmatprep.subr.bf16.mxu0 0
    %9583 = vmatpush1.bf16.msra.mxu0 %v9431
    %9584 = vmatprep.subr.bf16.mxu0 0
    %9585 = vmatpush1.bf16.msra.mxu0 %v9432
    %9586 = vmatprep.subr.bf16.mxu0 0
    %9587 = vmatpush1.bf16.msra.mxu0 %v9433
    %9588 = vmatprep.subr.bf16.mxu0 0
    %9589 = vmatpush1.bf16.msra.mxu0 %v9434
    %9590 = vmatprep.subr.bf16.mxu0 0
    %9591 = vmatpush1.bf16.msra.mxu0 %v9435
    %9592 = vmatprep.subr.bf16.mxu0 0
    %9593 = vmatpush1.bf16.msra.mxu0 %v9436
    %9594 = vmatprep.subr.bf16.mxu0 0
    %9595 = vmatpush1.bf16.msra.mxu0 %v9437
    %9596 = vmatprep.subr.bf16.mxu0 0
    %9597 = vmatpush1.bf16.msra.mxu0 %v9438
    %9598 = vmatprep.subr.bf16.mxu0 0
    %9599 = vmatpush1.bf16.msra.mxu0 %v9439
    %9600 = vmatprep.mubr.bf16.mxu0 %v5155
    %9601 = vmatmul.mubr.bf16.gmra.mrb[0].mxu0 %v1594
    %v9602 = vpop.f32.mrb[0].mxu0
    %v9603 = vadd.f32 %v9134, %v9602
    %v9604 = vpop.f32.mrb[0].mxu0
    %v9605 = vpop.f32.mrb[0].mxu0
    %v9606 = vadd.f32 %v9134, %v9605
    %v9607 = vpop.f32.mrb[0].mxu0
    %9608 = vmatprep.mubr.bf16.mxu0 %v8389
    %9609 = vmatmul.mubr.bf16.gmra.mrb[0].mxu0 %v8314
    %v9610 = vpop.f32.mrb[0].mxu0
    %v9611 = vadd.f32 %v9134, %v9610
    %v9612 = vpop.f32.mrb[0].mxu0
    %v9613 = vpop.f32.mrb[0].mxu0
    %v9614 = vadd.f32 %v9134, %v9613
    %v9615 = vpop.f32.mrb[0].mxu0
    %9616 = vmatprep.mubr.bf16.mxu0 %v8401
    %9617 = vmatmul.mubr.bf16.gmra.mrb[0].mxu0 %v8315
    %v9618 = vpop.f32.mrb[0].mxu0
    %v9619 = vadd.f32 %v9134, %v9618
    %v9620 = vpop.f32.mrb[0].mxu0
    %v9621 = vpop.f32.mrb[0].mxu0
    %v9622 = vadd.f32 %v9134, %v9621
    %v9623 = vpop.f32.mrb[0].mxu0
    %9624 = vmatprep.mubr.bf16.mxu0 %v8413
    %9625 = vmatmul.mubr.bf16.gmra.mrb[0].mxu0 %v8316
    %v9626 = vpop.f32.mrb[0].mxu0
    %v9627 = vadd.f32 %v9134, %v9626
    %v9628 = vpop.f32.mrb[0].mxu0
    %v9629 = vpop.f32.mrb[0].mxu0
    %v9630 = vadd.f32 %v9134, %v9629
    %v9631 = vpop.f32.mrb[0].mxu0
    %9632 = vmatprep.mubr.bf16.mxu0 %v8425
    %9633 = vmatmul.mubr.bf16.gmra.mrb[0].mxu0 %v8317
    %v9634 = vpop.f32.mrb[0].mxu0
    %v9635 = vadd.f32 %v9134, %v9634
    %v9636 = vpop.f32.mrb[0].mxu0
    %v9637 = vpop.f32.mrb[0].mxu0
    %v9638 = vadd.f32 %v9134, %v9637
    %v9639 = vpop.f32.mrb[0].mxu0
    %9640 = vmatprep.mubr.bf16.mxu0 %v8437
    %9641 = vmatmul.mubr.bf16.gmra.mrb[0].mxu0 %v8318
    %v9642 = vpop.f32.mrb[0].mxu0
    %v9643 = vadd.f32 %v9134, %v9642
    %v9644 = vpop.f32.mrb[0].mxu0
    %v9645 = vpop.f32.mrb[0].mxu0
    %v9646 = vadd.f32 %v9134, %v9645
    %v9647 = vpop.f32.mrb[0].mxu0
    %9648 = vmatprep.mubr.bf16.mxu0 %v8449
    %9649 = vmatmul.mubr.bf16.gmra.mrb[0].mxu0 %v8319
    %v9650 = vpop.f32.mrb[0].mxu0
    %v9651 = vadd.f32 %v9134, %v9650
    %v9652 = vpop.f32.mrb[0].mxu0
    %v9653 = vpop.f32.mrb[0].mxu0
    %v9654 = vadd.f32 %v9134, %v9653
    %v9655 = vpop.f32.mrb[0].mxu0
    %9656 = vmatprep.mubr.bf16.mxu0 %v8461
    %9657 = vmatmul.mubr.bf16.gmra.mrb[0].mxu0 %v8320
    %v9658 = vpop.f32.mrb[0].mxu0
    %v9659 = vadd.f32 %v9134, %v9658
    %v9660 = vpop.f32.mrb[0].mxu0
    %v9661 = vpop.f32.mrb[0].mxu0
    %v9662 = vadd.f32 %v9134, %v9661
    %v9663 = vpop.f32.mrb[0].mxu0
    %9664 = vmatprep.mubr.bf16.mxu0 %v8473
    %9665 = vmatmul.mubr.bf16.gmra.mrb[0].mxu0 %v8321
    %v9666 = vpop.f32.mrb[0].mxu0
    %v9667 = vadd.f32 %v9134, %v9666
    %v9668 = vpop.f32.mrb[0].mxu0
    %v9669 = vpop.f32.mrb[0].mxu0
    %v9670 = vadd.f32 %v9134, %v9669
    %v9671 = vpop.f32.mrb[0].mxu0
    %9672 = vmatprep.mubr.bf16.mxu0 %v8485
    %9673 = vmatmul.mubr.bf16.gmra.mrb[0].mxu0 %v8322
    %v9674 = vpop.f32.mrb[0].mxu0
    %v9675 = vadd.f32 %v9134, %v9674
    %v9676 = vpop.f32.mrb[0].mxu0
    %v9677 = vpop.f32.mrb[0].mxu0
    %v9678 = vadd.f32 %v9134, %v9677
    %v9679 = vpop.f32.mrb[0].mxu0
    %9680 = vmatprep.mubr.bf16.mxu0 %v8497
    %9681 = vmatmul.mubr.bf16.gmra.mrb[0].mxu0 %v8323
    %v9682 = vpop.f32.mrb[0].mxu0
    %v9683 = vadd.f32 %v9134, %v9682
    %v9684 = vpop.f32.mrb[0].mxu0
    %v9685 = vpop.f32.mrb[0].mxu0
    %v9686 = vadd.f32 %v9134, %v9685
    %v9687 = vpop.f32.mrb[0].mxu0
    %9688 = vmatprep.mubr.bf16.mxu0 %v8509
    %9689 = vmatmul.mubr.bf16.gmra.mrb[0].mxu0 %v8324
    %v9690 = vpop.f32.mrb[0].mxu0
    %v9691 = vadd.f32 %v9134, %v9690
    %v9692 = vpop.f32.mrb[0].mxu0
    %v9693 = vpop.f32.mrb[0].mxu0
    %v9694 = vadd.f32 %v9134, %v9693
    %v9695 = vpop.f32.mrb[0].mxu0
    %9696 = vmatprep.mubr.bf16.mxu0 %v8521
    %9697 = vmatmul.mubr.bf16.gmra.mrb[0].mxu0 %v8325
    %v9698 = vpop.f32.mrb[0].mxu0
    %v9699 = vadd.f32 %v9134, %v9698
    %v9700 = vpop.f32.mrb[0].mxu0
    %v9701 = vpop.f32.mrb[0].mxu0
    %v9702 = vadd.f32 %v9134, %v9701
    %v9703 = vpop.f32.mrb[0].mxu0
    %9704 = vmatprep.mubr.bf16.mxu0 %v8533
    %9705 = vmatmul.mubr.bf16.gmra.mrb[0].mxu0 %v8326
    %v9706 = vpop.f32.mrb[0].mxu0
    %v9707 = vadd.f32 %v9134, %v9706
    %v9708 = vpop.f32.mrb[0].mxu0
    %v9709 = vpop.f32.mrb[0].mxu0
    %v9710 = vadd.f32 %v9134, %v9709
    %v9711 = vpop.f32.mrb[0].mxu0
    %9712 = vmatprep.mubr.bf16.mxu0 %v8545
    %9713 = vmatmul.mubr.bf16.gmra.mrb[0].mxu0 %v8327
    %v9714 = vpop.f32.mrb[0].mxu0
    %v9715 = vadd.f32 %v9134, %v9714
    %v9716 = vpop.f32.mrb[0].mxu0
    %v9717 = vpop.f32.mrb[0].mxu0
    %v9718 = vadd.f32 %v9134, %v9717
    %v9719 = vpop.f32.mrb[0].mxu0
    %9720 = vmatprep.mubr.bf16.mxu0 %v8557
    %9721 = vmatmul.mubr.bf16.gmra.mrb[0].mxu0 %v8328
    %v9722 = vpop.f32.mrb[0].mxu0
    %v9723 = vadd.f32 %v9134, %v9722
    %v9724 = vpop.f32.mrb[0].mxu0
    %v9725 = vpop.f32.mrb[0].mxu0
    %v9726 = vadd.f32 %v9134, %v9725
    %v9727 = vpop.f32.mrb[0].mxu0
    %9728 = vmatprep.mubr.bf16.mxu0 %v5155
    %9729 = vmatmul.mubr.bf16.gmra.mrb[0].mxu0 %v1594
    %v9730 = vpop.f32.mrb[0].mxu0
    %v9731 = vadd.f32 %v9134, %v9730
    %v9732 = vpop.f32.mrb[0].mxu0
    %v9733 = vpop.f32.mrb[0].mxu0
    %v9734 = vadd.f32 %v9134, %v9733
    %v9735 = vpop.f32.mrb[0].mxu0
    %9736 = vmatprep.mubr.bf16.mxu0 %v8569
    %9737 = vmatmul.mubr.bf16.gmra.mrb[0].mxu0 %v8330
    %v9738 = vpop.f32.mrb[0].mxu0
    %v9739 = vadd.f32 %v9134, %v9738
    %v9740 = vpop.f32.mrb[0].mxu0
    %v9741 = vpop.f32.mrb[0].mxu0
    %v9742 = vadd.f32 %v9134, %v9741
    %v9743 = vpop.f32.mrb[0].mxu0
    %9744 = vmatprep.mubr.bf16.mxu0 %v8581
    %9745 = vmatmul.mubr.bf16.gmra.mrb[0].mxu0 %v8331
    %v9746 = vpop.f32.mrb[0].mxu0
    %v9747 = vadd.f32 %v9134, %v9746
    %v9748 = vpop.f32.mrb[0].mxu0
    %v9749 = vpop.f32.mrb[0].mxu0
    %v9750 = vadd.f32 %v9134, %v9749
    %v9751 = vpop.f32.mrb[0].mxu0
    %9752 = vmatprep.mubr.bf16.mxu0 %v8593
    %9753 = vmatmul.mubr.bf16.gmra.mrb[0].mxu0 %v8332
    %v9754 = vpop.f32.mrb[0].mxu0
    %v9755 = vadd.f32 %v9134, %v9754
    %v9756 = vpop.f32.mrb[0].mxu0
    %v9757 = vpop.f32.mrb[0].mxu0
    %v9758 = vadd.f32 %v9134, %v9757
    %v9759 = vpop.f32.mrb[0].mxu0
    %9760 = vmatprep.mubr.bf16.mxu0 %v8605
    %9761 = vmatmul.mubr.bf16.gmra.mrb[0].mxu0 %v8333
    %v9762 = vpop.f32.mrb[0].mxu0
    %v9763 = vadd.f32 %v9134, %v9762
    %v9764 = vpop.f32.mrb[0].mxu0
    %v9765 = vpop.f32.mrb[0].mxu0
    %v9766 = vadd.f32 %v9134, %v9765
    %v9767 = vpop.f32.mrb[0].mxu0
    %9768 = vmatprep.mubr.bf16.mxu0 %v8617
    %9769 = vmatmul.mubr.bf16.gmra.mrb[0].mxu0 %v8334
    %v9770 = vpop.f32.mrb[0].mxu0
    %v9771 = vadd.f32 %v9134, %v9770
    %v9772 = vpop.f32.mrb[0].mxu0
    %v9773 = vpop.f32.mrb[0].mxu0
    %v9774 = vadd.f32 %v9134, %v9773
    %v9775 = vpop.f32.mrb[0].mxu0
    %9776 = vmatprep.mubr.bf16.mxu0 %v8629
    %9777 = vmatmul.mubr.bf16.gmra.mrb[0].mxu0 %v8335
    %v9778 = vpop.f32.mrb[0].mxu0
    %v9779 = vadd.f32 %v9134, %v9778
    %v9780 = vpop.f32.mrb[0].mxu0
    %v9781 = vpop.f32.mrb[0].mxu0
    %v9782 = vadd.f32 %v9134, %v9781
    %v9783 = vpop.f32.mrb[0].mxu0
    %9784 = vmatprep.mubr.bf16.mxu0 %v8641
    %9785 = vmatmul.mubr.bf16.gmra.mrb[0].mxu0 %v8336
    %v9786 = vpop.f32.mrb[0].mxu0
    %v9787 = vadd.f32 %v9134, %v9786
    %v9788 = vpop.f32.mrb[0].mxu0
    %v9789 = vpop.f32.mrb[0].mxu0
    %v9790 = vadd.f32 %v9134, %v9789
    %v9791 = vpop.f32.mrb[0].mxu0
    %9792 = vmatprep.mubr.bf16.mxu0 %v8653
    %9793 = vmatmul.mubr.bf16.gmra.mrb[0].mxu0 %v8337
    %v9794 = vpop.f32.mrb[0].mxu0
    %v9795 = vadd.f32 %v9134, %v9794
    %v9796 = vpop.f32.mrb[0].mxu0
    %v9797 = vpop.f32.mrb[0].mxu0
    %v9798 = vadd.f32 %v9134, %v9797
    %v9799 = vpop.f32.mrb[0].mxu0
    %9800 = vmatprep.mubr.bf16.mxu0 %v8665
    %9801 = vmatmul.mubr.bf16.gmra.mrb[0].mxu0 %v8338
    %v9802 = vpop.f32.mrb[0].mxu0
    %v9803 = vadd.f32 %v9134, %v9802
    %v9804 = vpop.f32.mrb[0].mxu0
    %v9805 = vpop.f32.mrb[0].mxu0
    %v9806 = vadd.f32 %v9134, %v9805
    %v9807 = vpop.f32.mrb[0].mxu0
    %9808 = vmatprep.mubr.bf16.mxu0 %v8677
    %9809 = vmatmul.mubr.bf16.gmra.mrb[0].mxu0 %v8339
    %v9810 = vpop.f32.mrb[0].mxu0
    %v9811 = vadd.f32 %v9134, %v9810
    %v9812 = vpop.f32.mrb[0].mxu0
    %v9813 = vpop.f32.mrb[0].mxu0
    %v9814 = vadd.f32 %v9134, %v9813
    %v9815 = vpop.f32.mrb[0].mxu0
    %9816 = vmatprep.mubr.bf16.mxu0 %v8689
    %9817 = vmatmul.mubr.bf16.gmra.mrb[0].mxu0 %v8340
    %v9818 = vpop.f32.mrb[0].mxu0
    %v9819 = vadd.f32 %v9134, %v9818
    %v9820 = vpop.f32.mrb[0].mxu0
    %v9821 = vpop.f32.mrb[0].mxu0
    %v9822 = vadd.f32 %v9134, %v9821
    %v9823 = vpop.f32.mrb[0].mxu0
    %9824 = vmatprep.mubr.bf16.mxu0 %v8701
    %9825 = vmatmul.mubr.bf16.gmra.mrb[0].mxu0 %v8341
    %v9826 = vpop.f32.mrb[0].mxu0
    %v9827 = vadd.f32 %v9134, %v9826
    %v9828 = vpop.f32.mrb[0].mxu0
    %v9829 = vpop.f32.mrb[0].mxu0
    %v9830 = vadd.f32 %v9134, %v9829
    %v9831 = vpop.f32.mrb[0].mxu0
    %9832 = vmatprep.mubr.bf16.mxu0 %v8713
    %9833 = vmatmul.mubr.bf16.gmra.mrb[0].mxu0 %v8342
    %v9834 = vpop.f32.mrb[0].mxu0
    %v9835 = vadd.f32 %v9134, %v9834
    %v9836 = vpop.f32.mrb[0].mxu0
    %v9837 = vpop.f32.mrb[0].mxu0
    %v9838 = vadd.f32 %v9134, %v9837
    %v9839 = vpop.f32.mrb[0].mxu0
    %9840 = vmatprep.mubr.bf16.mxu0 %v8725
    %9841 = vmatmul.mubr.bf16.gmra.mrb[0].mxu0 %v8343
    %v9842 = vpop.f32.mrb[0].mxu0
    %v9843 = vadd.f32 %v9134, %v9842
    %v9844 = vpop.f32.mrb[0].mxu0
    %v9845 = vpop.f32.mrb[0].mxu0
    %v9846 = vadd.f32 %v9134, %v9845
    %v9847 = vpop.f32.mrb[0].mxu0
    %9848 = vmatprep.mubr.bf16.mxu0 %v8737
    %9849 = vmatmul.mubr.bf16.gmra.mrb[0].mxu0 %v8344
    %v9850 = vpop.f32.mrb[0].mxu0
    %v9851 = vadd.f32 %v9134, %v9850
    %v9852 = vpop.f32.mrb[0].mxu0
    %v9853 = vpop.f32.mrb[0].mxu0
    %v9854 = vadd.f32 %v9134, %v9853
    %v9855 = vpop.f32.mrb[0].mxu0
    %9856 = vdwg.mxu0
    %9857 = vmatprep.subr.bf16.mxu0 0
    %9858 = vmatpush1.bf16.msra.mxu0 %v9440
    %9859 = vmatprep.subr.bf16.mxu0 0
    %9860 = vmatpush1.bf16.msra.mxu0 %v9441
    %9861 = vmatprep.subr.bf16.mxu0 0
    %9862 = vmatpush1.bf16.msra.mxu0 %v9442
    %9863 = vmatprep.subr.bf16.mxu0 0
    %9864 = vmatpush1.bf16.msra.mxu0 %v9443
    %9865 = vmatprep.subr.bf16.mxu0 0
    %9866 = vmatpush1.bf16.msra.mxu0 %v9444
    %9867 = vmatprep.subr.bf16.mxu0 0
    %9868 = vmatpush1.bf16.msra.mxu0 %v9445
    %9869 = vmatprep.subr.bf16.mxu0 0
    %9870 = vmatpush1.bf16.msra.mxu0 %v9446
    %9871 = vmatprep.subr.bf16.mxu0 0
    %9872 = vmatpush1.bf16.msra.mxu0 %v9447
    %9873 = vmatprep.subr.bf16.mxu0 0
    %9874 = vmatpush1.bf16.msra.mxu0 %v9448
    %9875 = vmatprep.subr.bf16.mxu0 0
    %9876 = vmatpush1.bf16.msra.mxu0 %v9449
    %9877 = vmatprep.subr.bf16.mxu0 0
    %9878 = vmatpush1.bf16.msra.mxu0 %v9450
    %9879 = vmatprep.subr.bf16.mxu0 0
    %9880 = vmatpush1.bf16.msra.mxu0 %v9451
    %9881 = vmatprep.subr.bf16.mxu0 0
    %9882 = vmatpush1.bf16.msra.mxu0 %v9452
    %9883 = vmatprep.subr.bf16.mxu0 0
    %9884 = vmatpush1.bf16.msra.mxu0 %v9453
    %9885 = vmatprep.subr.bf16.mxu0 0
    %9886 = vmatpush1.bf16.msra.mxu0 %v9454
    %9887 = vmatprep.subr.bf16.mxu0 0
    %9888 = vmatpush1.bf16.msra.mxu0 %v9455
    %9889 = vmatprep.mubr.bf16.mxu0 %v8314
    %9890 = vmatmul.mubr.bf16.gmra.mrb[0].mxu0 %v5402
    %v9891 = vpop.f32.mrb[0].mxu0
    %v9892 = vadd.f32 %v9603, %v9891
    %v9893 = vpop.f32.mrb[0].mxu0
    %v9894 = vpop.f32.mrb[0].mxu0
    %v9895 = vadd.f32 %v9606, %v9894
    %v9896 = vpop.f32.mrb[0].mxu0
    %9897 = vmatprep.mubr.bf16.mxu0 %v8315
    %9898 = vmatmul.mubr.bf16.gmra.mrb[0].mxu0 %v8830
    %v9899 = vpop.f32.mrb[0].mxu0
    %v9900 = vadd.f32 %v9611, %v9899
    %v9901 = vpop.f32.mrb[0].mxu0
    %v9902 = vpop.f32.mrb[0].mxu0
    %v9903 = vadd.f32 %v9614, %v9902
    %v9904 = vpop.f32.mrb[0].mxu0
    %9905 = vmatprep.mubr.bf16.mxu0 %v8316
    %9906 = vmatmul.mubr.bf16.gmra.mrb[0].mxu0 %v8833
    %v9907 = vpop.f32.mrb[0].mxu0
    %v9908 = vadd.f32 %v9619, %v9907
    %v9909 = vpop.f32.mrb[0].mxu0
    %v9910 = vpop.f32.mrb[0].mxu0
    %v9911 = vadd.f32 %v9622, %v9910
    %v9912 = vpop.f32.mrb[0].mxu0
    %9913 = vmatprep.mubr.bf16.mxu0 %v8317
    %9914 = vmatmul.mubr.bf16.gmra.mrb[0].mxu0 %v8836
    %v9915 = vpop.f32.mrb[0].mxu0
    %v9916 = vadd.f32 %v9627, %v9915
    %v9917 = vpop.f32.mrb[0].mxu0
    %v9918 = vpop.f32.mrb[0].mxu0
    %v9919 = vadd.f32 %v9630, %v9918
    %v9920 = vpop.f32.mrb[0].mxu0
    %9921 = vmatprep.mubr.bf16.mxu0 %v8318
    %9922 = vmatmul.mubr.bf16.gmra.mrb[0].mxu0 %v8839
    %v9923 = vpop.f32.mrb[0].mxu0
    %v9924 = vadd.f32 %v9635, %v9923
    %v9925 = vpop.f32.mrb[0].mxu0
    %v9926 = vpop.f32.mrb[0].mxu0
    %v9927 = vadd.f32 %v9638, %v9926
    %v9928 = vpop.f32.mrb[0].mxu0
    %9929 = vmatprep.mubr.bf16.mxu0 %v8319
    %9930 = vmatmul.mubr.bf16.gmra.mrb[0].mxu0 %v8842
    %v9931 = vpop.f32.mrb[0].mxu0
    %v9932 = vadd.f32 %v9643, %v9931
    %v9933 = vpop.f32.mrb[0].mxu0
    %v9934 = vpop.f32.mrb[0].mxu0
    %v9935 = vadd.f32 %v9646, %v9934
    %v9936 = vpop.f32.mrb[0].mxu0
    %9937 = vmatprep.mubr.bf16.mxu0 %v8320
    %9938 = vmatmul.mubr.bf16.gmra.mrb[0].mxu0 %v8845
    %v9939 = vpop.f32.mrb[0].mxu0
    %v9940 = vadd.f32 %v9651, %v9939
    %v9941 = vpop.f32.mrb[0].mxu0
    %v9942 = vpop.f32.mrb[0].mxu0
    %v9943 = vadd.f32 %v9654, %v9942
    %v9944 = vpop.f32.mrb[0].mxu0
    %9945 = vmatprep.mubr.bf16.mxu0 %v8321
    %9946 = vmatmul.mubr.bf16.gmra.mrb[0].mxu0 %v8848
    %v9947 = vpop.f32.mrb[0].mxu0
    %v9948 = vadd.f32 %v9659, %v9947
    %v9949 = vpop.f32.mrb[0].mxu0
    %v9950 = vpop.f32.mrb[0].mxu0
    %v9951 = vadd.f32 %v9662, %v9950
    %v9952 = vpop.f32.mrb[0].mxu0
    %9953 = vmatprep.mubr.bf16.mxu0 %v8322
    %9954 = vmatmul.mubr.bf16.gmra.mrb[0].mxu0 %v8851
    %v9955 = vpop.f32.mrb[0].mxu0
    %v9956 = vadd.f32 %v9667, %v9955
    %v9957 = vpop.f32.mrb[0].mxu0
    %v9958 = vpop.f32.mrb[0].mxu0
    %v9959 = vadd.f32 %v9670, %v9958
    %v9960 = vpop.f32.mrb[0].mxu0
    %9961 = vmatprep.mubr.bf16.mxu0 %v8323
    %9962 = vmatmul.mubr.bf16.gmra.mrb[0].mxu0 %v8854
    %v9963 = vpop.f32.mrb[0].mxu0
    %v9964 = vadd.f32 %v9675, %v9963
    %v9965 = vpop.f32.mrb[0].mxu0
    %v9966 = vpop.f32.mrb[0].mxu0
    %v9967 = vadd.f32 %v9678, %v9966
    %v9968 = vpop.f32.mrb[0].mxu0
    %9969 = vmatprep.mubr.bf16.mxu0 %v8324
    %9970 = vmatmul.mubr.bf16.gmra.mrb[0].mxu0 %v8857
    %v9971 = vpop.f32.mrb[0].mxu0
    %v9972 = vadd.f32 %v9683, %v9971
    %v9973 = vpop.f32.mrb[0].mxu0
    %v9974 = vpop.f32.mrb[0].mxu0
    %v9975 = vadd.f32 %v9686, %v9974
    %v9976 = vpop.f32.mrb[0].mxu0
    %9977 = vmatprep.mubr.bf16.mxu0 %v8325
    %9978 = vmatmul.mubr.bf16.gmra.mrb[0].mxu0 %v8860
    %v9979 = vpop.f32.mrb[0].mxu0
    %v9980 = vadd.f32 %v9691, %v9979
    %v9981 = vpop.f32.mrb[0].mxu0
    %v9982 = vpop.f32.mrb[0].mxu0
    %v9983 = vadd.f32 %v9694, %v9982
    %v9984 = vpop.f32.mrb[0].mxu0
    %9985 = vmatprep.mubr.bf16.mxu0 %v8326
    %9986 = vmatmul.mubr.bf16.gmra.mrb[0].mxu0 %v8863
    %v9987 = vpop.f32.mrb[0].mxu0
    %v9988 = vadd.f32 %v9699, %v9987
    %v9989 = vpop.f32.mrb[0].mxu0
    %v9990 = vpop.f32.mrb[0].mxu0
    %v9991 = vadd.f32 %v9702, %v9990
    %v9992 = vpop.f32.mrb[0].mxu0
    %9993 = vmatprep.mubr.bf16.mxu0 %v8327
    %9994 = vmatmul.mubr.bf16.gmra.mrb[0].mxu0 %v8866
    %v9995 = vpop.f32.mrb[0].mxu0
    %v9996 = vadd.f32 %v9707, %v9995
    %v9997 = vpop.f32.mrb[0].mxu0
    %v9998 = vpop.f32.mrb[0].mxu0
    %v9999 = vadd.f32 %v9710, %v9998
    %v10000 = vpop.f32.mrb[0].mxu0
    %10001 = vmatprep.mubr.bf16.mxu0 %v8328
    %10002 = vmatmul.mubr.bf16.gmra.mrb[0].mxu0 %v8869
    %v10003 = vpop.f32.mrb[0].mxu0
    %v10004 = vadd.f32 %v9715, %v10003
    %v10005 = vpop.f32.mrb[0].mxu0
    %v10006 = vpop.f32.mrb[0].mxu0
    %v10007 = vadd.f32 %v9718, %v10006
    %v10008 = vpop.f32.mrb[0].mxu0
    %10009 = vmatprep.mubr.bf16.mxu0 %v8329
    %10010 = vmatmul.mubr.bf16.gmra.mrb[0].mxu0 %v8872
    %v10011 = vpop.f32.mrb[0].mxu0
    %v10012 = vadd.f32 %v9723, %v10011
    %v10013 = vpop.f32.mrb[0].mxu0
    %v10014 = vpop.f32.mrb[0].mxu0
    %v10015 = vadd.f32 %v9726, %v10014
    %v10016 = vpop.f32.mrb[0].mxu0
    %10017 = vmatprep.mubr.bf16.mxu0 %v8330
    %10018 = vmatmul.mubr.bf16.gmra.mrb[0].mxu0 %v5402
    %v10019 = vpop.f32.mrb[0].mxu0
    %v10020 = vadd.f32 %v9731, %v10019
    %v10021 = vpop.f32.mrb[0].mxu0
    %v10022 = vpop.f32.mrb[0].mxu0
    %v10023 = vadd.f32 %v9734, %v10022
    %v10024 = vpop.f32.mrb[0].mxu0
    %10025 = vmatprep.mubr.bf16.mxu0 %v8331
    %10026 = vmatmul.mubr.bf16.gmra.mrb[0].mxu0 %v8875
    %v10027 = vpop.f32.mrb[0].mxu0
    %v10028 = vadd.f32 %v9739, %v10027
    %v10029 = vpop.f32.mrb[0].mxu0
    %v10030 = vpop.f32.mrb[0].mxu0
    %v10031 = vadd.f32 %v9742, %v10030
    %v10032 = vpop.f32.mrb[0].mxu0
    %10033 = vmatprep.mubr.bf16.mxu0 %v8332
    %10034 = vmatmul.mubr.bf16.gmra.mrb[0].mxu0 %v8878
    %v10035 = vpop.f32.mrb[0].mxu0
    %v10036 = vadd.f32 %v9747, %v10035
    %v10037 = vpop.f32.mrb[0].mxu0
    %v10038 = vpop.f32.mrb[0].mxu0
    %v10039 = vadd.f32 %v9750, %v10038
    %v10040 = vpop.f32.mrb[0].mxu0
    %10041 = vmatprep.mubr.bf16.mxu0 %v8333
    %10042 = vmatmul.mubr.bf16.gmra.mrb[0].mxu0 %v8881
    %v10043 = vpop.f32.mrb[0].mxu0
    %v10044 = vadd.f32 %v9755, %v10043
    %v10045 = vpop.f32.mrb[0].mxu0
    %v10046 = vpop.f32.mrb[0].mxu0
    %v10047 = vadd.f32 %v9758, %v10046
    %v10048 = vpop.f32.mrb[0].mxu0
    %10049 = vmatprep.mubr.bf16.mxu0 %v8334
    %10050 = vmatmul.mubr.bf16.gmra.mrb[0].mxu0 %v8884
    %v10051 = vpop.f32.mrb[0].mxu0
    %v10052 = vadd.f32 %v9763, %v10051
    %v10053 = vpop.f32.mrb[0].mxu0
    %v10054 = vpop.f32.mrb[0].mxu0
    %v10055 = vadd.f32 %v9766, %v10054
    %v10056 = vpop.f32.mrb[0].mxu0
    %10057 = vmatprep.mubr.bf16.mxu0 %v8335
    %10058 = vmatmul.mubr.bf16.gmra.mrb[0].mxu0 %v8887
    %v10059 = vpop.f32.mrb[0].mxu0
    %v10060 = vadd.f32 %v9771, %v10059
    %v10061 = vpop.f32.mrb[0].mxu0
    %v10062 = vpop.f32.mrb[0].mxu0
    %v10063 = vadd.f32 %v9774, %v10062
    %v10064 = vpop.f32.mrb[0].mxu0
    %10065 = vmatprep.mubr.bf16.mxu0 %v8336
    %10066 = vmatmul.mubr.bf16.gmra.mrb[0].mxu0 %v8890
    %v10067 = vpop.f32.mrb[0].mxu0
    %v10068 = vadd.f32 %v9779, %v10067
    %v10069 = vpop.f32.mrb[0].mxu0
    %v10070 = vpop.f32.mrb[0].mxu0
    %v10071 = vadd.f32 %v9782, %v10070
    %v10072 = vpop.f32.mrb[0].mxu0
    %10073 = vmatprep.mubr.bf16.mxu0 %v8337
    %10074 = vmatmul.mubr.bf16.gmra.mrb[0].mxu0 %v8893
    %v10075 = vpop.f32.mrb[0].mxu0
    %v10076 = vadd.f32 %v9787, %v10075
    %v10077 = vpop.f32.mrb[0].mxu0
    %v10078 = vpop.f32.mrb[0].mxu0
    %v10079 = vadd.f32 %v9790, %v10078
    %v10080 = vpop.f32.mrb[0].mxu0
    %10081 = vmatprep.mubr.bf16.mxu0 %v8338
    %10082 = vmatmul.mubr.bf16.gmra.mrb[0].mxu0 %v8896
    %v10083 = vpop.f32.mrb[0].mxu0
    %v10084 = vadd.f32 %v9795, %v10083
    %v10085 = vpop.f32.mrb[0].mxu0
    %v10086 = vpop.f32.mrb[0].mxu0
    %v10087 = vadd.f32 %v9798, %v10086
    %v10088 = vpop.f32.mrb[0].mxu0
    %10089 = vmatprep.mubr.bf16.mxu0 %v8339
    %10090 = vmatmul.mubr.bf16.gmra.mrb[0].mxu0 %v8899
    %v10091 = vpop.f32.mrb[0].mxu0
    %v10092 = vadd.f32 %v9803, %v10091
    %v10093 = vpop.f32.mrb[0].mxu0
    %v10094 = vpop.f32.mrb[0].mxu0
    %v10095 = vadd.f32 %v9806, %v10094
    %v10096 = vpop.f32.mrb[0].mxu0
    %10097 = vmatprep.mubr.bf16.mxu0 %v8340
    %10098 = vmatmul.mubr.bf16.gmra.mrb[0].mxu0 %v8902
    %v10099 = vpop.f32.mrb[0].mxu0
    %v10100 = vadd.f32 %v9811, %v10099
    %v10101 = vpop.f32.mrb[0].mxu0
    %v10102 = vpop.f32.mrb[0].mxu0
    %v10103 = vadd.f32 %v9814, %v10102
    %v10104 = vpop.f32.mrb[0].mxu0
    %10105 = vmatprep.mubr.bf16.mxu0 %v8341
    %10106 = vmatmul.mubr.bf16.gmra.mrb[0].mxu0 %v8905
    %v10107 = vpop.f32.mrb[0].mxu0
    %v10108 = vadd.f32 %v9819, %v10107
    %v10109 = vpop.f32.mrb[0].mxu0
    %v10110 = vpop.f32.mrb[0].mxu0
    %v10111 = vadd.f32 %v9822, %v10110
    %v10112 = vpop.f32.mrb[0].mxu0
    %10113 = vmatprep.mubr.bf16.mxu0 %v8342
    %10114 = vmatmul.mubr.bf16.gmra.mrb[0].mxu0 %v8908
    %v10115 = vpop.f32.mrb[0].mxu0
    %v10116 = vadd.f32 %v9827, %v10115
    %v10117 = vpop.f32.mrb[0].mxu0
    %v10118 = vpop.f32.mrb[0].mxu0
    %v10119 = vadd.f32 %v9830, %v10118
    %v10120 = vpop.f32.mrb[0].mxu0
    %10121 = vmatprep.mubr.bf16.mxu0 %v8343
    %10122 = vmatmul.mubr.bf16.gmra.mrb[0].mxu0 %v8911
    %v10123 = vpop.f32.mrb[0].mxu0
    %v10124 = vadd.f32 %v9835, %v10123
    %v10125 = vpop.f32.mrb[0].mxu0
    %v10126 = vpop.f32.mrb[0].mxu0
    %v10127 = vadd.f32 %v9838, %v10126
    %v10128 = vpop.f32.mrb[0].mxu0
    %10129 = vmatprep.mubr.bf16.mxu0 %v8344
    %10130 = vmatmul.mubr.bf16.gmra.mrb[0].mxu0 %v8914
    %v10131 = vpop.f32.mrb[0].mxu0
    %v10132 = vadd.f32 %v9843, %v10131
    %v10133 = vpop.f32.mrb[0].mxu0
    %v10134 = vpop.f32.mrb[0].mxu0
    %v10135 = vadd.f32 %v9846, %v10134
    %v10136 = vpop.f32.mrb[0].mxu0
    %10137 = vmatprep.mubr.bf16.mxu0 %v8345
    %10138 = vmatmul.mubr.bf16.gmra.mrb[0].mxu0 %v8917
    %v10139 = vpop.f32.mrb[0].mxu0
    %v10140 = vadd.f32 %v9851, %v10139
    %v10141 = vpop.f32.mrb[0].mxu0
    %v10142 = vpop.f32.mrb[0].mxu0
    %v10143 = vadd.f32 %v9854, %v10142
    %v10144 = vpop.f32.mrb[0].mxu0
    %10145 = vdwg.mxu0
    %10146 = vmatprep.subr.bf16.mxu0 0
    %10147 = vmatpush1.bf16.msra.mxu0 %v9456
    %10148 = vmatprep.subr.bf16.mxu0 0
    %10149 = vmatpush1.bf16.msra.mxu0 %v9457
    %10150 = vmatprep.subr.bf16.mxu0 0
    %10151 = vmatpush1.bf16.msra.mxu0 %v9458
    %10152 = vmatprep.subr.bf16.mxu0 0
    %10153 = vmatpush1.bf16.msra.mxu0 %v9459
    %10154 = vmatprep.subr.bf16.mxu0 0
    %10155 = vmatpush1.bf16.msra.mxu0 %v9460
    %10156 = vmatprep.subr.bf16.mxu0 0
    %10157 = vmatpush1.bf16.msra.mxu0 %v9461
    %10158 = vmatprep.subr.bf16.mxu0 0
    %10159 = vmatpush1.bf16.msra.mxu0 %v9462
    %10160 = vmatprep.subr.bf16.mxu0 0
    %10161 = vmatpush1.bf16.msra.mxu0 %v9463
    %10162 = vmatprep.subr.bf16.mxu0 0
    %10163 = vmatpush1.bf16.msra.mxu0 %v9464
    %10164 = vmatprep.subr.bf16.mxu0 0
    %10165 = vmatpush1.bf16.msra.mxu0 %v9465
    %10166 = vmatprep.subr.bf16.mxu0 0
    %10167 = vmatpush1.bf16.msra.mxu0 %v9466
    %10168 = vmatprep.subr.bf16.mxu0 0
    %10169 = vmatpush1.bf16.msra.mxu0 %v9467
    %10170 = vmatprep.subr.bf16.mxu0 0
    %10171 = vmatpush1.bf16.msra.mxu0 %v9468
    %10172 = vmatprep.subr.bf16.mxu0 0
    %10173 = vmatpush1.bf16.msra.mxu0 %v9469
    %10174 = vmatprep.subr.bf16.mxu0 0
    %10175 = vmatpush1.bf16.msra.mxu0 %v9470
    %10176 = vmatprep.subr.bf16.mxu0 0
    %10177 = vmatpush1.bf16.msra.mxu0 %v9471
    %10178 = vmatprep.mubr.bf16.mxu0 %v8830
    %10179 = vmatmul.mubr.bf16.gmra.mrb[0].mxu0 %v8389
    %v10180 = vpop.f32.mrb[0].mxu0
    %v10181 = vadd.f32 %v9892, %v10180
    %v10182 = vpop.f32.mrb[0].mxu0
    %v10183 = vpop.f32.mrb[0].mxu0
    %v10184 = vadd.f32 %v9895, %v10183
    %v10185 = vpop.f32.mrb[0].mxu0
    %10186 = vmatprep.mubr.bf16.mxu0 %v8833
    %10187 = vmatmul.mubr.bf16.gmra.mrb[0].mxu0 %v8401
    %v10188 = vpop.f32.mrb[0].mxu0
    %v10189 = vadd.f32 %v9900, %v10188
    %v10190 = vpop.f32.mrb[0].mxu0
    %v10191 = vpop.f32.mrb[0].mxu0
    %v10192 = vadd.f32 %v9903, %v10191
    %v10193 = vpop.f32.mrb[0].mxu0
    %10194 = vmatprep.mubr.bf16.mxu0 %v8836
    %10195 = vmatmul.mubr.bf16.gmra.mrb[0].mxu0 %v8413
    %v10196 = vpop.f32.mrb[0].mxu0
    %v10197 = vadd.f32 %v9908, %v10196
    %v10198 = vpop.f32.mrb[0].mxu0
    %v10199 = vpop.f32.mrb[0].mxu0
    %v10200 = vadd.f32 %v9911, %v10199
    %v10201 = vpop.f32.mrb[0].mxu0
    %10202 = vmatprep.mubr.bf16.mxu0 %v8839
    %10203 = vmatmul.mubr.bf16.gmra.mrb[0].mxu0 %v8425
    %v10204 = vpop.f32.mrb[0].mxu0
    %v10205 = vadd.f32 %v9916, %v10204
    %v10206 = vpop.f32.mrb[0].mxu0
    %v10207 = vpop.f32.mrb[0].mxu0
    %v10208 = vadd.f32 %v9919, %v10207
    %v10209 = vpop.f32.mrb[0].mxu0
    %10210 = vmatprep.mubr.bf16.mxu0 %v8842
    %10211 = vmatmul.mubr.bf16.gmra.mrb[0].mxu0 %v8437
    %v10212 = vpop.f32.mrb[0].mxu0
    %v10213 = vadd.f32 %v9924, %v10212
    %v10214 = vpop.f32.mrb[0].mxu0
    %v10215 = vpop.f32.mrb[0].mxu0
    %v10216 = vadd.f32 %v9927, %v10215
    %v10217 = vpop.f32.mrb[0].mxu0
    %10218 = vmatprep.mubr.bf16.mxu0 %v8845
    %10219 = vmatmul.mubr.bf16.gmra.mrb[0].mxu0 %v8449
    %v10220 = vpop.f32.mrb[0].mxu0
    %v10221 = vadd.f32 %v9932, %v10220
    %v10222 = vpop.f32.mrb[0].mxu0
    %v10223 = vpop.f32.mrb[0].mxu0
    %v10224 = vadd.f32 %v9935, %v10223
    %v10225 = vpop.f32.mrb[0].mxu0
    %10226 = vmatprep.mubr.bf16.mxu0 %v8848
    %10227 = vmatmul.mubr.bf16.gmra.mrb[0].mxu0 %v8461
    %v10228 = vpop.f32.mrb[0].mxu0
    %v10229 = vadd.f32 %v9940, %v10228
    %v10230 = vpop.f32.mrb[0].mxu0
    %v10231 = vpop.f32.mrb[0].mxu0
    %v10232 = vadd.f32 %v9943, %v10231
    %v10233 = vpop.f32.mrb[0].mxu0
    %10234 = vmatprep.mubr.bf16.mxu0 %v8851
    %10235 = vmatmul.mubr.bf16.gmra.mrb[0].mxu0 %v8473
    %v10236 = vpop.f32.mrb[0].mxu0
    %v10237 = vadd.f32 %v9948, %v10236
    %v10238 = vpop.f32.mrb[0].mxu0
    %v10239 = vpop.f32.mrb[0].mxu0
    %v10240 = vadd.f32 %v9951, %v10239
    %v10241 = vpop.f32.mrb[0].mxu0
    %10242 = vmatprep.mubr.bf16.mxu0 %v8854
    %10243 = vmatmul.mubr.bf16.gmra.mrb[0].mxu0 %v8485
    %v10244 = vpop.f32.mrb[0].mxu0
    %v10245 = vadd.f32 %v9956, %v10244
    %v10246 = vpop.f32.mrb[0].mxu0
    %v10247 = vpop.f32.mrb[0].mxu0
    %v10248 = vadd.f32 %v9959, %v10247
    %v10249 = vpop.f32.mrb[0].mxu0
    %10250 = vmatprep.mubr.bf16.mxu0 %v8857
    %10251 = vmatmul.mubr.bf16.gmra.mrb[0].mxu0 %v8497
    %v10252 = vpop.f32.mrb[0].mxu0
    %v10253 = vadd.f32 %v9964, %v10252
    %v10254 = vpop.f32.mrb[0].mxu0
    %v10255 = vpop.f32.mrb[0].mxu0
    %v10256 = vadd.f32 %v9967, %v10255
    %v10257 = vpop.f32.mrb[0].mxu0
    %10258 = vmatprep.mubr.bf16.mxu0 %v8860
    %10259 = vmatmul.mubr.bf16.gmra.mrb[0].mxu0 %v8509
    %v10260 = vpop.f32.mrb[0].mxu0
    %v10261 = vadd.f32 %v9972, %v10260
    %v10262 = vpop.f32.mrb[0].mxu0
    %v10263 = vpop.f32.mrb[0].mxu0
    %v10264 = vadd.f32 %v9975, %v10263
    %v10265 = vpop.f32.mrb[0].mxu0
    %10266 = vmatprep.mubr.bf16.mxu0 %v8863
    %10267 = vmatmul.mubr.bf16.gmra.mrb[0].mxu0 %v8521
    %v10268 = vpop.f32.mrb[0].mxu0
    %v10269 = vadd.f32 %v9980, %v10268
    %v10270 = vpop.f32.mrb[0].mxu0
    %v10271 = vpop.f32.mrb[0].mxu0
    %v10272 = vadd.f32 %v9983, %v10271
    %v10273 = vpop.f32.mrb[0].mxu0
    %10274 = vmatprep.mubr.bf16.mxu0 %v8866
    %10275 = vmatmul.mubr.bf16.gmra.mrb[0].mxu0 %v8533
    %v10276 = vpop.f32.mrb[0].mxu0
    %v10277 = vadd.f32 %v9988, %v10276
    %v10278 = vpop.f32.mrb[0].mxu0
    %v10279 = vpop.f32.mrb[0].mxu0
    %v10280 = vadd.f32 %v9991, %v10279
    %v10281 = vpop.f32.mrb[0].mxu0
    %10282 = vmatprep.mubr.bf16.mxu0 %v8869
    %10283 = vmatmul.mubr.bf16.gmra.mrb[0].mxu0 %v8545
    %v10284 = vpop.f32.mrb[0].mxu0
    %v10285 = vadd.f32 %v9996, %v10284
    %v10286 = vpop.f32.mrb[0].mxu0
    %v10287 = vpop.f32.mrb[0].mxu0
    %v10288 = vadd.f32 %v9999, %v10287
    %v10289 = vpop.f32.mrb[0].mxu0
    %10290 = vmatprep.mubr.bf16.mxu0 %v8872
    %10291 = vmatmul.mubr.bf16.gmra.mrb[0].mxu0 %v8557
    %v10292 = vpop.f32.mrb[0].mxu0
    %v10293 = vadd.f32 %v10004, %v10292
    %v10294 = vpop.f32.mrb[0].mxu0
    %v10295 = vpop.f32.mrb[0].mxu0
    %v10296 = vadd.f32 %v10007, %v10295
    %v10297 = vpop.f32.mrb[0].mxu0
    %10298 = vmatprep.mubr.bf16.mxu0 %v8980
    %10299 = vmatmul.mubr.bf16.gmra.mrb[0].mxu0 %v8959
    %v10300 = vpop.f32.mrb[0].mxu0
    %v10301 = vadd.f32 %v10012, %v10300
    %v10302 = vpop.f32.mrb[0].mxu0
    %v10303 = vpop.f32.mrb[0].mxu0
    %v10304 = vadd.f32 %v10015, %v10303
    %v10305 = vpop.f32.mrb[0].mxu0
    %10306 = vmatprep.mubr.bf16.mxu0 %v8875
    %10307 = vmatmul.mubr.bf16.gmra.mrb[0].mxu0 %v8569
    %v10308 = vpop.f32.mrb[0].mxu0
    %v10309 = vadd.f32 %v10020, %v10308
    %v10310 = vpop.f32.mrb[0].mxu0
    %v10311 = vpop.f32.mrb[0].mxu0
    %v10312 = vadd.f32 %v10023, %v10311
    %v10313 = vpop.f32.mrb[0].mxu0
    %10314 = vmatprep.mubr.bf16.mxu0 %v8878
    %10315 = vmatmul.mubr.bf16.gmra.mrb[0].mxu0 %v8581
    %v10316 = vpop.f32.mrb[0].mxu0
    %v10317 = vadd.f32 %v10028, %v10316
    %v10318 = vpop.f32.mrb[0].mxu0
    %v10319 = vpop.f32.mrb[0].mxu0
    %v10320 = vadd.f32 %v10031, %v10319
    %v10321 = vpop.f32.mrb[0].mxu0
    %10322 = vmatprep.mubr.bf16.mxu0 %v8881
    %10323 = vmatmul.mubr.bf16.gmra.mrb[0].mxu0 %v8593
    %v10324 = vpop.f32.mrb[0].mxu0
    %v10325 = vadd.f32 %v10036, %v10324
    %v10326 = vpop.f32.mrb[0].mxu0
    %v10327 = vpop.f32.mrb[0].mxu0
    %v10328 = vadd.f32 %v10039, %v10327
    %v10329 = vpop.f32.mrb[0].mxu0
    %10330 = vmatprep.mubr.bf16.mxu0 %v8884
    %10331 = vmatmul.mubr.bf16.gmra.mrb[0].mxu0 %v8605
    %v10332 = vpop.f32.mrb[0].mxu0
    %v10333 = vadd.f32 %v10044, %v10332
    %v10334 = vpop.f32.mrb[0].mxu0
    %v10335 = vpop.f32.mrb[0].mxu0
    %v10336 = vadd.f32 %v10047, %v10335
    %v10337 = vpop.f32.mrb[0].mxu0
    %10338 = vmatprep.mubr.bf16.mxu0 %v8887
    %10339 = vmatmul.mubr.bf16.gmra.mrb[0].mxu0 %v8617
    %v10340 = vpop.f32.mrb[0].mxu0
    %v10341 = vadd.f32 %v10052, %v10340
    %v10342 = vpop.f32.mrb[0].mxu0
    %v10343 = vpop.f32.mrb[0].mxu0
    %v10344 = vadd.f32 %v10055, %v10343
    %v10345 = vpop.f32.mrb[0].mxu0
    %10346 = vmatprep.mubr.bf16.mxu0 %v8890
    %10347 = vmatmul.mubr.bf16.gmra.mrb[0].mxu0 %v8629
    %v10348 = vpop.f32.mrb[0].mxu0
    %v10349 = vadd.f32 %v10060, %v10348
    %v10350 = vpop.f32.mrb[0].mxu0
    %v10351 = vpop.f32.mrb[0].mxu0
    %v10352 = vadd.f32 %v10063, %v10351
    %v10353 = vpop.f32.mrb[0].mxu0
    %10354 = vmatprep.mubr.bf16.mxu0 %v8893
    %10355 = vmatmul.mubr.bf16.gmra.mrb[0].mxu0 %v8641
    %v10356 = vpop.f32.mrb[0].mxu0
    %v10357 = vadd.f32 %v10068, %v10356
    %v10358 = vpop.f32.mrb[0].mxu0
    %v10359 = vpop.f32.mrb[0].mxu0
    %v10360 = vadd.f32 %v10071, %v10359
    %v10361 = vpop.f32.mrb[0].mxu0
    %10362 = vmatprep.mubr.bf16.mxu0 %v8896
    %10363 = vmatmul.mubr.bf16.gmra.mrb[0].mxu0 %v8653
    %v10364 = vpop.f32.mrb[0].mxu0
    %v10365 = vadd.f32 %v10076, %v10364
    %v10366 = vpop.f32.mrb[0].mxu0
    %v10367 = vpop.f32.mrb[0].mxu0
    %v10368 = vadd.f32 %v10079, %v10367
    %v10369 = vpop.f32.mrb[0].mxu0
    %10370 = vmatprep.mubr.bf16.mxu0 %v8899
    %10371 = vmatmul.mubr.bf16.gmra.mrb[0].mxu0 %v8665
    %v10372 = vpop.f32.mrb[0].mxu0
    %v10373 = vadd.f32 %v10084, %v10372
    %v10374 = vpop.f32.mrb[0].mxu0
    %v10375 = vpop.f32.mrb[0].mxu0
    %v10376 = vadd.f32 %v10087, %v10375
    %v10377 = vpop.f32.mrb[0].mxu0
    %10378 = vmatprep.mubr.bf16.mxu0 %v8902
    %10379 = vmatmul.mubr.bf16.gmra.mrb[0].mxu0 %v8677
    %v10380 = vpop.f32.mrb[0].mxu0
    %v10381 = vadd.f32 %v10092, %v10380
    %v10382 = vpop.f32.mrb[0].mxu0
    %v10383 = vpop.f32.mrb[0].mxu0
    %v10384 = vadd.f32 %v10095, %v10383
    %v10385 = vpop.f32.mrb[0].mxu0
    %10386 = vmatprep.mubr.bf16.mxu0 %v8905
    %10387 = vmatmul.mubr.bf16.gmra.mrb[0].mxu0 %v8689
    %v10388 = vpop.f32.mrb[0].mxu0
    %v10389 = vadd.f32 %v10100, %v10388
    %v10390 = vpop.f32.mrb[0].mxu0
    %v10391 = vpop.f32.mrb[0].mxu0
    %v10392 = vadd.f32 %v10103, %v10391
    %v10393 = vpop.f32.mrb[0].mxu0
    %10394 = vmatprep.mubr.bf16.mxu0 %v8908
    %10395 = vmatmul.mubr.bf16.gmra.mrb[0].mxu0 %v8701
    %v10396 = vpop.f32.mrb[0].mxu0
    %v10397 = vadd.f32 %v10108, %v10396
    %v10398 = vpop.f32.mrb[0].mxu0
    %v10399 = vpop.f32.mrb[0].mxu0
    %v10400 = vadd.f32 %v10111, %v10399
    %v10401 = vpop.f32.mrb[0].mxu0
    %10402 = vmatprep.mubr.bf16.mxu0 %v8911
    %10403 = vmatmul.mubr.bf16.gmra.mrb[0].mxu0 %v8713
    %v10404 = vpop.f32.mrb[0].mxu0
    %v10405 = vadd.f32 %v10116, %v10404
    %v10406 = vpop.f32.mrb[0].mxu0
    %v10407 = vpop.f32.mrb[0].mxu0
    %v10408 = vadd.f32 %v10119, %v10407
    %v10409 = vpop.f32.mrb[0].mxu0
    %10410 = vmatprep.mubr.bf16.mxu0 %v8914
    %10411 = vmatmul.mubr.bf16.gmra.mrb[0].mxu0 %v8725
    %v10412 = vpop.f32.mrb[0].mxu0
    %v10413 = vadd.f32 %v10124, %v10412
    %v10414 = vpop.f32.mrb[0].mxu0
    %v10415 = vpop.f32.mrb[0].mxu0
    %v10416 = vadd.f32 %v10127, %v10415
    %v10417 = vpop.f32.mrb[0].mxu0
    %10418 = vmatprep.mubr.bf16.mxu0 %v8917
    %10419 = vmatmul.mubr.bf16.gmra.mrb[0].mxu0 %v8737
    %v10420 = vpop.f32.mrb[0].mxu0
    %v10421 = vadd.f32 %v10132, %v10420
    %v10422 = vpop.f32.mrb[0].mxu0
    %v10423 = vpop.f32.mrb[0].mxu0
    %v10424 = vadd.f32 %v10135, %v10423
    %v10425 = vpop.f32.mrb[0].mxu0
    %10426 = vmatprep.mubr.bf16.mxu0 %v8983
    %10427 = vmatmul.mubr.bf16.gmra.mrb[0].mxu0 %v8971
    %v10428 = vpop.f32.mrb[0].mxu0
    %v10429 = vadd.f32 %v10140, %v10428
    %v10430 = vpop.f32.mrb[0].mxu0
    %v10431 = vpop.f32.mrb[0].mxu0
    %v10432 = vadd.f32 %v10143, %v10431
    %v10433 = vpop.f32.mrb[0].mxu0
    %10434 = vdwg.mxu0
    %10435 = vmatprep.subr.bf16.mxu0 0
    %10436 = vmatpush1.bf16.msra.mxu0 %v9472
    %10437 = vmatprep.subr.bf16.mxu0 0
    %10438 = vmatpush1.bf16.msra.mxu0 %v9473
    %10439 = vmatprep.subr.bf16.mxu0 0
    %10440 = vmatpush1.bf16.msra.mxu0 %v9474
    %10441 = vmatprep.subr.bf16.mxu0 0
    %10442 = vmatpush1.bf16.msra.mxu0 %v9475
    %10443 = vmatprep.subr.bf16.mxu0 0
    %10444 = vmatpush1.bf16.msra.mxu0 %v9476
    %10445 = vmatprep.subr.bf16.mxu0 0
    %10446 = vmatpush1.bf16.msra.mxu0 %v9477
    %10447 = vmatprep.subr.bf16.mxu0 0
    %10448 = vmatpush1.bf16.msra.mxu0 %v9478
    %10449 = vmatprep.subr.bf16.mxu0 0
    %10450 = vmatpush1.bf16.msra.mxu0 %v9479
    %10451 = vmatprep.subr.bf16.mxu0 0
    %10452 = vmatpush1.bf16.msra.mxu0 %v9480
    %10453 = vmatprep.subr.bf16.mxu0 0
    %10454 = vmatpush1.bf16.msra.mxu0 %v9481
    %10455 = vmatprep.subr.bf16.mxu0 0
    %10456 = vmatpush1.bf16.msra.mxu0 %v9482
    %10457 = vmatprep.subr.bf16.mxu0 0
    %10458 = vmatpush1.bf16.msra.mxu0 %v9483
    %10459 = vmatprep.subr.bf16.mxu0 0
    %10460 = vmatpush1.bf16.msra.mxu0 %v9484
    %10461 = vmatprep.subr.bf16.mxu0 0
    %10462 = vmatpush1.bf16.msra.mxu0 %v9485
    %10463 = vmatprep.subr.bf16.mxu0 0
    %10464 = vmatpush1.bf16.msra.mxu0 %v9486
    %10465 = vmatprep.subr.bf16.mxu0 0
    %10466 = vmatpush1.bf16.msra.mxu0 %v9487
    %10467 = vmatprep.mubr.bf16.mxu0 %v8401
    %10468 = vmatmul.mubr.bf16.gmra.mrb[0].mxu0 %v8315
    %v10469 = vpop.f32.mrb[0].mxu0
    %v10470 = vadd.f32 %v10181, %v10469
    %v10471 = vpop.f32.mrb[0].mxu0
    %v10472 = vpop.f32.mrb[0].mxu0
    %v10473 = vadd.f32 %v10184, %v10472
    %v10474 = vpop.f32.mrb[0].mxu0
    %10475 = vmatprep.mubr.bf16.mxu0 %v8413
    %10476 = vmatmul.mubr.bf16.gmra.mrb[0].mxu0 %v8316
    %v10477 = vpop.f32.mrb[0].mxu0
    %v10478 = vadd.f32 %v10189, %v10477
    %v10479 = vpop.f32.mrb[0].mxu0
    %v10480 = vpop.f32.mrb[0].mxu0
    %v10481 = vadd.f32 %v10192, %v10480
    %v10482 = vpop.f32.mrb[0].mxu0
    %10483 = vmatprep.mubr.bf16.mxu0 %v8425
    %10484 = vmatmul.mubr.bf16.gmra.mrb[0].mxu0 %v8317
    %v10485 = vpop.f32.mrb[0].mxu0
    %v10486 = vadd.f32 %v10197, %v10485
    %v10487 = vpop.f32.mrb[0].mxu0
    %v10488 = vpop.f32.mrb[0].mxu0
    %v10489 = vadd.f32 %v10200, %v10488
    %v10490 = vpop.f32.mrb[0].mxu0
    %10491 = vmatprep.mubr.bf16.mxu0 %v8437
    %10492 = vmatmul.mubr.bf16.gmra.mrb[0].mxu0 %v8318
    %v10493 = vpop.f32.mrb[0].mxu0
    %v10494 = vadd.f32 %v10205, %v10493
    %v10495 = vpop.f32.mrb[0].mxu0
    %v10496 = vpop.f32.mrb[0].mxu0
    %v10497 = vadd.f32 %v10208, %v10496
    %v10498 = vpop.f32.mrb[0].mxu0
    %10499 = vmatprep.mubr.bf16.mxu0 %v8449
    %10500 = vmatmul.mubr.bf16.gmra.mrb[0].mxu0 %v8319
    %v10501 = vpop.f32.mrb[0].mxu0
    %v10502 = vadd.f32 %v10213, %v10501
    %v10503 = vpop.f32.mrb[0].mxu0
    %v10504 = vpop.f32.mrb[0].mxu0
    %v10505 = vadd.f32 %v10216, %v10504
    %v10506 = vpop.f32.mrb[0].mxu0
    %10507 = vmatprep.mubr.bf16.mxu0 %v8461
    %10508 = vmatmul.mubr.bf16.gmra.mrb[0].mxu0 %v8320
    %v10509 = vpop.f32.mrb[0].mxu0
    %v10510 = vadd.f32 %v10221, %v10509
    %v10511 = vpop.f32.mrb[0].mxu0
    %v10512 = vpop.f32.mrb[0].mxu0
    %v10513 = vadd.f32 %v10224, %v10512
    %v10514 = vpop.f32.mrb[0].mxu0
    %10515 = vmatprep.mubr.bf16.mxu0 %v8473
    %10516 = vmatmul.mubr.bf16.gmra.mrb[0].mxu0 %v8321
    %v10517 = vpop.f32.mrb[0].mxu0
    %v10518 = vadd.f32 %v10229, %v10517
    %v10519 = vpop.f32.mrb[0].mxu0
    %v10520 = vpop.f32.mrb[0].mxu0
    %v10521 = vadd.f32 %v10232, %v10520
    %v10522 = vpop.f32.mrb[0].mxu0
    %10523 = vmatprep.mubr.bf16.mxu0 %v8485
    %10524 = vmatmul.mubr.bf16.gmra.mrb[0].mxu0 %v8322
    %v10525 = vpop.f32.mrb[0].mxu0
    %v10526 = vadd.f32 %v10237, %v10525
    %v10527 = vpop.f32.mrb[0].mxu0
    %v10528 = vpop.f32.mrb[0].mxu0
    %v10529 = vadd.f32 %v10240, %v10528
    %v10530 = vpop.f32.mrb[0].mxu0
    %10531 = vmatprep.mubr.bf16.mxu0 %v8497
    %10532 = vmatmul.mubr.bf16.gmra.mrb[0].mxu0 %v8323
    %v10533 = vpop.f32.mrb[0].mxu0
    %v10534 = vadd.f32 %v10245, %v10533
    %v10535 = vpop.f32.mrb[0].mxu0
    %v10536 = vpop.f32.mrb[0].mxu0
    %v10537 = vadd.f32 %v10248, %v10536
    %v10538 = vpop.f32.mrb[0].mxu0
    %10539 = vmatprep.mubr.bf16.mxu0 %v8509
    %10540 = vmatmul.mubr.bf16.gmra.mrb[0].mxu0 %v8324
    %v10541 = vpop.f32.mrb[0].mxu0
    %v10542 = vadd.f32 %v10253, %v10541
    %v10543 = vpop.f32.mrb[0].mxu0
    %v10544 = vpop.f32.mrb[0].mxu0
    %v10545 = vadd.f32 %v10256, %v10544
    %v10546 = vpop.f32.mrb[0].mxu0
    %10547 = vmatprep.mubr.bf16.mxu0 %v8521
    %10548 = vmatmul.mubr.bf16.gmra.mrb[0].mxu0 %v8325
    %v10549 = vpop.f32.mrb[0].mxu0
    %v10550 = vadd.f32 %v10261, %v10549
    %v10551 = vpop.f32.mrb[0].mxu0
    %v10552 = vpop.f32.mrb[0].mxu0
    %v10553 = vadd.f32 %v10264, %v10552
    %v10554 = vpop.f32.mrb[0].mxu0
    %10555 = vmatprep.mubr.bf16.mxu0 %v8533
    %10556 = vmatmul.mubr.bf16.gmra.mrb[0].mxu0 %v8326
    %v10557 = vpop.f32.mrb[0].mxu0
    %v10558 = vadd.f32 %v10269, %v10557
    %v10559 = vpop.f32.mrb[0].mxu0
    %v10560 = vpop.f32.mrb[0].mxu0
    %v10561 = vadd.f32 %v10272, %v10560
    %v10562 = vpop.f32.mrb[0].mxu0
    %10563 = vmatprep.mubr.bf16.mxu0 %v8545
    %10564 = vmatmul.mubr.bf16.gmra.mrb[0].mxu0 %v8327
    %v10565 = vpop.f32.mrb[0].mxu0
    %v10566 = vadd.f32 %v10277, %v10565
    %v10567 = vpop.f32.mrb[0].mxu0
    %v10568 = vpop.f32.mrb[0].mxu0
    %v10569 = vadd.f32 %v10280, %v10568
    %v10570 = vpop.f32.mrb[0].mxu0
    %10571 = vmatprep.mubr.bf16.mxu0 %v8557
    %10572 = vmatmul.mubr.bf16.gmra.mrb[0].mxu0 %v8328
    %v10573 = vpop.f32.mrb[0].mxu0
    %v10574 = vadd.f32 %v10285, %v10573
    %v10575 = vpop.f32.mrb[0].mxu0
    %v10576 = vpop.f32.mrb[0].mxu0
    %v10577 = vadd.f32 %v10288, %v10576
    %v10578 = vpop.f32.mrb[0].mxu0
    %10579 = vmatprep.mubr.bf16.mxu0 %v8959
    %10580 = vmatmul.mubr.bf16.gmra.mrb[0].mxu0 %v8329
    %v10581 = vpop.f32.mrb[0].mxu0
    %v10582 = vadd.f32 %v10293, %v10581
    %v10583 = vpop.f32.mrb[0].mxu0
    %v10584 = vpop.f32.mrb[0].mxu0
    %v10585 = vadd.f32 %v10296, %v10584
    %v10586 = vpop.f32.mrb[0].mxu0
    %10587 = vmatprep.mubr.bf16.mxu0 %v5155
    %10588 = vmatmul.mubr.bf16.gmra.mrb[0].mxu0 %v1594
    %v10589 = vpop.f32.mrb[0].mxu0
    %v10590 = vadd.f32 %v10301, %v10589
    %v10591 = vpop.f32.mrb[0].mxu0
    %v10592 = vpop.f32.mrb[0].mxu0
    %v10593 = vadd.f32 %v10304, %v10592
    %v10594 = vpop.f32.mrb[0].mxu0
    %10595 = vmatprep.mubr.bf16.mxu0 %v8581
    %10596 = vmatmul.mubr.bf16.gmra.mrb[0].mxu0 %v8331
    %v10597 = vpop.f32.mrb[0].mxu0
    %v10598 = vadd.f32 %v10309, %v10597
    %v10599 = vpop.f32.mrb[0].mxu0
    %v10600 = vpop.f32.mrb[0].mxu0
    %v10601 = vadd.f32 %v10312, %v10600
    %v10602 = vpop.f32.mrb[0].mxu0
    %10603 = vmatprep.mubr.bf16.mxu0 %v8593
    %10604 = vmatmul.mubr.bf16.gmra.mrb[0].mxu0 %v8332
    %v10605 = vpop.f32.mrb[0].mxu0
    %v10606 = vadd.f32 %v10317, %v10605
    %v10607 = vpop.f32.mrb[0].mxu0
    %v10608 = vpop.f32.mrb[0].mxu0
    %v10609 = vadd.f32 %v10320, %v10608
    %v10610 = vpop.f32.mrb[0].mxu0
    %10611 = vmatprep.mubr.bf16.mxu0 %v8605
    %10612 = vmatmul.mubr.bf16.gmra.mrb[0].mxu0 %v8333
    %v10613 = vpop.f32.mrb[0].mxu0
    %v10614 = vadd.f32 %v10325, %v10613
    %v10615 = vpop.f32.mrb[0].mxu0
    %v10616 = vpop.f32.mrb[0].mxu0
    %v10617 = vadd.f32 %v10328, %v10616
    %v10618 = vpop.f32.mrb[0].mxu0
    %10619 = vmatprep.mubr.bf16.mxu0 %v8617
    %10620 = vmatmul.mubr.bf16.gmra.mrb[0].mxu0 %v8334
    %v10621 = vpop.f32.mrb[0].mxu0
    %v10622 = vadd.f32 %v10333, %v10621
    %v10623 = vpop.f32.mrb[0].mxu0
    %v10624 = vpop.f32.mrb[0].mxu0
    %v10625 = vadd.f32 %v10336, %v10624
    %v10626 = vpop.f32.mrb[0].mxu0
    %10627 = vmatprep.mubr.bf16.mxu0 %v8629
    %10628 = vmatmul.mubr.bf16.gmra.mrb[0].mxu0 %v8335
    %v10629 = vpop.f32.mrb[0].mxu0
    %v10630 = vadd.f32 %v10341, %v10629
    %v10631 = vpop.f32.mrb[0].mxu0
    %v10632 = vpop.f32.mrb[0].mxu0
    %v10633 = vadd.f32 %v10344, %v10632
    %v10634 = vpop.f32.mrb[0].mxu0
    %10635 = vmatprep.mubr.bf16.mxu0 %v8641
    %10636 = vmatmul.mubr.bf16.gmra.mrb[0].mxu0 %v8336
    %v10637 = vpop.f32.mrb[0].mxu0
    %v10638 = vadd.f32 %v10349, %v10637
    %v10639 = vpop.f32.mrb[0].mxu0
    %v10640 = vpop.f32.mrb[0].mxu0
    %v10641 = vadd.f32 %v10352, %v10640
    %v10642 = vpop.f32.mrb[0].mxu0
    %10643 = vmatprep.mubr.bf16.mxu0 %v8653
    %10644 = vmatmul.mubr.bf16.gmra.mrb[0].mxu0 %v8337
    %v10645 = vpop.f32.mrb[0].mxu0
    %v10646 = vadd.f32 %v10357, %v10645
    %v10647 = vpop.f32.mrb[0].mxu0
    %v10648 = vpop.f32.mrb[0].mxu0
    %v10649 = vadd.f32 %v10360, %v10648
    %v10650 = vpop.f32.mrb[0].mxu0
    %10651 = vmatprep.mubr.bf16.mxu0 %v8665
    %10652 = vmatmul.mubr.bf16.gmra.mrb[0].mxu0 %v8338
    %v10653 = vpop.f32.mrb[0].mxu0
    %v10654 = vadd.f32 %v10365, %v10653
    %v10655 = vpop.f32.mrb[0].mxu0
    %v10656 = vpop.f32.mrb[0].mxu0
    %v10657 = vadd.f32 %v10368, %v10656
    %v10658 = vpop.f32.mrb[0].mxu0
    %10659 = vmatprep.mubr.bf16.mxu0 %v8677
    %10660 = vmatmul.mubr.bf16.gmra.mrb[0].mxu0 %v8339
    %v10661 = vpop.f32.mrb[0].mxu0
    %v10662 = vadd.f32 %v10373, %v10661
    %v10663 = vpop.f32.mrb[0].mxu0
    %v10664 = vpop.f32.mrb[0].mxu0
    %v10665 = vadd.f32 %v10376, %v10664
    %v10666 = vpop.f32.mrb[0].mxu0
    %10667 = vmatprep.mubr.bf16.mxu0 %v8689
    %10668 = vmatmul.mubr.bf16.gmra.mrb[0].mxu0 %v8340
    %v10669 = vpop.f32.mrb[0].mxu0
    %v10670 = vadd.f32 %v10381, %v10669
    %v10671 = vpop.f32.mrb[0].mxu0
    %v10672 = vpop.f32.mrb[0].mxu0
    %v10673 = vadd.f32 %v10384, %v10672
    %v10674 = vpop.f32.mrb[0].mxu0
    %10675 = vmatprep.mubr.bf16.mxu0 %v8701
    %10676 = vmatmul.mubr.bf16.gmra.mrb[0].mxu0 %v8341
    %v10677 = vpop.f32.mrb[0].mxu0
    %v10678 = vadd.f32 %v10389, %v10677
    %v10679 = vpop.f32.mrb[0].mxu0
    %v10680 = vpop.f32.mrb[0].mxu0
    %v10681 = vadd.f32 %v10392, %v10680
    %v10682 = vpop.f32.mrb[0].mxu0
    %10683 = vmatprep.mubr.bf16.mxu0 %v8713
    %10684 = vmatmul.mubr.bf16.gmra.mrb[0].mxu0 %v8342
    %v10685 = vpop.f32.mrb[0].mxu0
    %v10686 = vadd.f32 %v10397, %v10685
    %v10687 = vpop.f32.mrb[0].mxu0
    %v10688 = vpop.f32.mrb[0].mxu0
    %v10689 = vadd.f32 %v10400, %v10688
    %v10690 = vpop.f32.mrb[0].mxu0
    %10691 = vmatprep.mubr.bf16.mxu0 %v8725
    %10692 = vmatmul.mubr.bf16.gmra.mrb[0].mxu0 %v8343
    %v10693 = vpop.f32.mrb[0].mxu0
    %v10694 = vadd.f32 %v10405, %v10693
    %v10695 = vpop.f32.mrb[0].mxu0
    %v10696 = vpop.f32.mrb[0].mxu0
    %v10697 = vadd.f32 %v10408, %v10696
    %v10698 = vpop.f32.mrb[0].mxu0
    %10699 = vmatprep.mubr.bf16.mxu0 %v8737
    %10700 = vmatmul.mubr.bf16.gmra.mrb[0].mxu0 %v8344
    %v10701 = vpop.f32.mrb[0].mxu0
    %v10702 = vadd.f32 %v10413, %v10701
    %v10703 = vpop.f32.mrb[0].mxu0
    %v10704 = vpop.f32.mrb[0].mxu0
    %v10705 = vadd.f32 %v10416, %v10704
    %v10706 = vpop.f32.mrb[0].mxu0
    %10707 = vmatprep.mubr.bf16.mxu0 %v8971
    %10708 = vmatmul.mubr.bf16.gmra.mrb[0].mxu0 %v8345
    %v10709 = vpop.f32.mrb[0].mxu0
    %v10710 = vadd.f32 %v10421, %v10709
    %v10711 = vpop.f32.mrb[0].mxu0
    %v10712 = vpop.f32.mrb[0].mxu0
    %v10713 = vadd.f32 %v10424, %v10712
    %v10714 = vpop.f32.mrb[0].mxu0
    %10715 = vmatprep.mubr.bf16.mxu0 %v5155
    %10716 = vmatmul.mubr.bf16.gmra.mrb[0].mxu0 %v1594
    %v10717 = vpop.f32.mrb[0].mxu0
    %v10718 = vadd.f32 %v10429, %v10717
    %v10719 = vpop.f32.mrb[0].mxu0
    %v10720 = vpop.f32.mrb[0].mxu0
    %v10721 = vadd.f32 %v10432, %v10720
    %v10722 = vpop.f32.mrb[0].mxu0
    %10723 = vdwg.mxu0
    %10724 = vmatprep.subr.bf16.mxu0 0
    %10725 = vmatpush1.bf16.msra.mxu0 %v9488
    %10726 = vmatprep.subr.bf16.mxu0 0
    %10727 = vmatpush1.bf16.msra.mxu0 %v9489
    %10728 = vmatprep.subr.bf16.mxu0 0
    %10729 = vmatpush1.bf16.msra.mxu0 %v9490
    %10730 = vmatprep.subr.bf16.mxu0 0
    %10731 = vmatpush1.bf16.msra.mxu0 %v9491
    %10732 = vmatprep.subr.bf16.mxu0 0
    %10733 = vmatpush1.bf16.msra.mxu0 %v9492
    %10734 = vmatprep.subr.bf16.mxu0 0
    %10735 = vmatpush1.bf16.msra.mxu0 %v9493
    %10736 = vmatprep.subr.bf16.mxu0 0
    %10737 = vmatpush1.bf16.msra.mxu0 %v9494
    %10738 = vmatprep.subr.bf16.mxu0 0
    %10739 = vmatpush1.bf16.msra.mxu0 %v9495
    %10740 = vmatprep.subr.bf16.mxu0 0
    %10741 = vmatpush1.bf16.msra.mxu0 0
    %10742 = vmatprep.subr.bf16.mxu0 0
    %10743 = vmatpush1.bf16.msra.mxu0 0
    %10744 = vmatprep.subr.bf16.mxu0 0
    %10745 = vmatpush1.bf16.msra.mxu0 0
    %10746 = vmatprep.subr.bf16.mxu0 0
    %10747 = vmatpush1.bf16.msra.mxu0 0
    %10748 = vmatprep.subr.bf16.mxu0 0
    %10749 = vmatpush1.bf16.msra.mxu0 0
    %10750 = vmatprep.subr.bf16.mxu0 0
    %10751 = vmatpush1.bf16.msra.mxu0 0
    %10752 = vmatprep.subr.bf16.mxu0 0
    %10753 = vmatpush1.bf16.msra.mxu0 0
    %10754 = vmatprep.subr.bf16.mxu0 0
    %10755 = vmatpush1.bf16.msra.mxu0 0
    %10756 = vmatprep.mubr.bf16.mxu0 0
    %10757 = vmatmul.mubr.bf16.gmra.mrb[0].mxu0 %v8833
    %v10758 = vpop.f32.mrb[0].mxu0
    %v10759 = vadd.f32 %v10470, %v10758
    %v10760 = vpop.f32.mrb[0].mxu0
    %v10761 = vpop.f32.mrb[0].mxu0
    %v10762 = vadd.f32 %v10473, %v10761
    %v10763 = vpop.f32.mrb[0].mxu0
    %10764 = vmatprep.mubr.bf16.mxu0 0
    %10765 = vmatmul.mubr.bf16.gmra.mrb[0].mxu0 %v8836
    %v10766 = vpop.f32.mrb[0].mxu0
    %v10767 = vadd.f32 %v10478, %v10766
    %v10768 = vpop.f32.mrb[0].mxu0
    %v10769 = vpop.f32.mrb[0].mxu0
    %v10770 = vadd.f32 %v10481, %v10769
    %v10771 = vpop.f32.mrb[0].mxu0
    %10772 = vmatprep.mubr.bf16.mxu0 0
    %10773 = vmatmul.mubr.bf16.gmra.mrb[0].mxu0 %v8839
    %v10774 = vpop.f32.mrb[0].mxu0
    %v10775 = vadd.f32 %v10486, %v10774
    %v10776 = vpop.f32.mrb[0].mxu0
    %v10777 = vpop.f32.mrb[0].mxu0
    %v10778 = vadd.f32 %v10489, %v10777
    %v10779 = vpop.f32.mrb[0].mxu0
    %10780 = vmatprep.mubr.bf16.mxu0 0
    %10781 = vmatmul.mubr.bf16.gmra.mrb[0].mxu0 %v8842
    %v10782 = vpop.f32.mrb[0].mxu0
    %v10783 = vadd.f32 %v10494, %v10782
    %v10784 = vpop.f32.mrb[0].mxu0
    %v10785 = vpop.f32.mrb[0].mxu0
    %v10786 = vadd.f32 %v10497, %v10785
    %v10787 = vpop.f32.mrb[0].mxu0
    %10788 = vmatprep.mubr.bf16.mxu0 0
    %10789 = vmatmul.mubr.bf16.gmra.mrb[0].mxu0 %v8845
    %v10790 = vpop.f32.mrb[0].mxu0
    %v10791 = vadd.f32 %v10502, %v10790
    %v10792 = vpop.f32.mrb[0].mxu0
    %v10793 = vpop.f32.mrb[0].mxu0
    %v10794 = vadd.f32 %v10505, %v10793
    %v10795 = vpop.f32.mrb[0].mxu0
    %10796 = vmatprep.mubr.bf16.mxu0 0
    %10797 = vmatmul.mubr.bf16.gmra.mrb[0].mxu0 %v8848
    %v10798 = vpop.f32.mrb[0].mxu0
    %v10799 = vadd.f32 %v10510, %v10798
    %v10800 = vpop.f32.mrb[0].mxu0
    %v10801 = vpop.f32.mrb[0].mxu0
    %v10802 = vadd.f32 %v10513, %v10801
    %v10803 = vpop.f32.mrb[0].mxu0
    %10804 = vmatprep.mubr.bf16.mxu0 0
    %10805 = vmatmul.mubr.bf16.gmra.mrb[0].mxu0 %v8851
    %v10806 = vpop.f32.mrb[0].mxu0
    %v10807 = vadd.f32 %v10518, %v10806
    %v10808 = vpop.f32.mrb[0].mxu0
    %v10809 = vpop.f32.mrb[0].mxu0
    %v10810 = vadd.f32 %v10521, %v10809
    %v10811 = vpop.f32.mrb[0].mxu0
    %10812 = vmatprep.mubr.bf16.mxu0 0
    %10813 = vmatmul.mubr.bf16.gmra.mrb[0].mxu0 %v8854
    %v10814 = vpop.f32.mrb[0].mxu0
    %v10815 = vadd.f32 %v10526, %v10814
    %v10816 = vpop.f32.mrb[0].mxu0
    %v10817 = vpop.f32.mrb[0].mxu0
    %v10818 = vadd.f32 %v10529, %v10817
    %v10819 = vpop.f32.mrb[0].mxu0
    %10820 = vmatprep.mubr.bf16.mxu0 0
    %10821 = vmatmul.mubr.bf16.gmra.mrb[0].mxu0 %v8857
    %v10822 = vpop.f32.mrb[0].mxu0
    %v10823 = vadd.f32 %v10534, %v10822
    %v10824 = vpop.f32.mrb[0].mxu0
    %v10825 = vpop.f32.mrb[0].mxu0
    %v10826 = vadd.f32 %v10537, %v10825
    %v10827 = vpop.f32.mrb[0].mxu0
    %10828 = vmatprep.mubr.bf16.mxu0 0
    %10829 = vmatmul.mubr.bf16.gmra.mrb[0].mxu0 %v8860
    %v10830 = vpop.f32.mrb[0].mxu0
    %v10831 = vadd.f32 %v10542, %v10830
    %v10832 = vpop.f32.mrb[0].mxu0
    %v10833 = vpop.f32.mrb[0].mxu0
    %v10834 = vadd.f32 %v10545, %v10833
    %v10835 = vpop.f32.mrb[0].mxu0
    %10836 = vmatprep.mubr.bf16.mxu0 0
    %10837 = vmatmul.mubr.bf16.gmra.mrb[0].mxu0 %v8863
    %v10838 = vpop.f32.mrb[0].mxu0
    %v10839 = vadd.f32 %v10550, %v10838
    %v10840 = vpop.f32.mrb[0].mxu0
    %v10841 = vpop.f32.mrb[0].mxu0
    %v10842 = vadd.f32 %v10553, %v10841
    %v10843 = vpop.f32.mrb[0].mxu0
    %10844 = vmatprep.mubr.bf16.mxu0 0
    %10845 = vmatmul.mubr.bf16.gmra.mrb[0].mxu0 %v8866
    %v10846 = vpop.f32.mrb[0].mxu0
    %v10847 = vadd.f32 %v10558, %v10846
    %v10848 = vpop.f32.mrb[0].mxu0
    %v10849 = vpop.f32.mrb[0].mxu0
    %v10850 = vadd.f32 %v10561, %v10849
    %v10851 = vpop.f32.mrb[0].mxu0
    %10852 = vmatprep.mubr.bf16.mxu0 0
    %10853 = vmatmul.mubr.bf16.gmra.mrb[0].mxu0 %v8869
    %v10854 = vpop.f32.mrb[0].mxu0
    %v10855 = vadd.f32 %v10566, %v10854
    %v10856 = vpop.f32.mrb[0].mxu0
    %v10857 = vpop.f32.mrb[0].mxu0
    %v10858 = vadd.f32 %v10569, %v10857
    %v10859 = vpop.f32.mrb[0].mxu0
    %10860 = vmatprep.mubr.bf16.mxu0 0
    %10861 = vmatmul.mubr.bf16.gmra.mrb[0].mxu0 %v8872
    %v10862 = vpop.f32.mrb[0].mxu0
    %v10863 = vadd.f32 %v10574, %v10862
    %v10864 = vpop.f32.mrb[0].mxu0
    %v10865 = vpop.f32.mrb[0].mxu0
    %v10866 = vadd.f32 %v10577, %v10865
    %v10867 = vpop.f32.mrb[0].mxu0
    %10868 = vmatprep.mubr.bf16.mxu0 0
    %10869 = vmatmul.mubr.bf16.gmra.mrb[0].mxu0 %v8980
    %v10870 = vpop.f32.mrb[0].mxu0
    %v10871 = vadd.f32 %v10582, %v10870
    %v10872 = vpop.f32.mrb[0].mxu0
    %v10873 = vpop.f32.mrb[0].mxu0
    %v10874 = vadd.f32 %v10585, %v10873
    %v10875 = vpop.f32.mrb[0].mxu0
    %10876 = vmatprep.mubr.bf16.mxu0 0
    %10877 = vmatmul.mubr.bf16.gmra.mrb[0].mxu0 %v5402
    %v10878 = vpop.f32.mrb[0].mxu0
    %v10879 = vadd.f32 %v10590, %v10878
    %v10880 = vpop.f32.mrb[0].mxu0
    %v10881 = vpop.f32.mrb[0].mxu0
    %v10882 = vadd.f32 %v10593, %v10881
    %v10883 = vpop.f32.mrb[0].mxu0
    %10884 = vmatprep.mubr.bf16.mxu0 0
    %10885 = vmatmul.mubr.bf16.gmra.mrb[0].mxu0 %v8878
    %v10886 = vpop.f32.mrb[0].mxu0
    %v10887 = vadd.f32 %v10598, %v10886
    %v10888 = vpop.f32.mrb[0].mxu0
    %v10889 = vpop.f32.mrb[0].mxu0
    %v10890 = vadd.f32 %v10601, %v10889
    %v10891 = vpop.f32.mrb[0].mxu0
    %10892 = vmatprep.mubr.bf16.mxu0 0
    %10893 = vmatmul.mubr.bf16.gmra.mrb[0].mxu0 %v8881
    %v10894 = vpop.f32.mrb[0].mxu0
    %v10895 = vadd.f32 %v10606, %v10894
    %v10896 = vpop.f32.mrb[0].mxu0
    %v10897 = vpop.f32.mrb[0].mxu0
    %v10898 = vadd.f32 %v10609, %v10897
    %v10899 = vpop.f32.mrb[0].mxu0
    %10900 = vmatprep.mubr.bf16.mxu0 0
    %10901 = vmatmul.mubr.bf16.gmra.mrb[0].mxu0 %v8884
    %v10902 = vpop.f32.mrb[0].mxu0
    %v10903 = vadd.f32 %v10614, %v10902
    %v10904 = vpop.f32.mrb[0].mxu0
    %v10905 = vpop.f32.mrb[0].mxu0
    %v10906 = vadd.f32 %v10617, %v10905
    %v10907 = vpop.f32.mrb[0].mxu0
    %10908 = vmatprep.mubr.bf16.mxu0 0
    %10909 = vmatmul.mubr.bf16.gmra.mrb[0].mxu0 %v8887
    %v10910 = vpop.f32.mrb[0].mxu0
    %v10911 = vadd.f32 %v10622, %v10910
    %v10912 = vpop.f32.mrb[0].mxu0
    %v10913 = vpop.f32.mrb[0].mxu0
    %v10914 = vadd.f32 %v10625, %v10913
    %v10915 = vpop.f32.mrb[0].mxu0
    %10916 = vmatprep.mubr.bf16.mxu0 0
    %10917 = vmatmul.mubr.bf16.gmra.mrb[0].mxu0 %v8890
    %v10918 = vpop.f32.mrb[0].mxu0
    %v10919 = vadd.f32 %v10630, %v10918
    %v10920 = vpop.f32.mrb[0].mxu0
    %v10921 = vpop.f32.mrb[0].mxu0
    %v10922 = vadd.f32 %v10633, %v10921
    %v10923 = vpop.f32.mrb[0].mxu0
    %10924 = vmatprep.mubr.bf16.mxu0 0
    %10925 = vmatmul.mubr.bf16.gmra.mrb[0].mxu0 %v8893
    %v10926 = vpop.f32.mrb[0].mxu0
    %v10927 = vadd.f32 %v10638, %v10926
    %v10928 = vpop.f32.mrb[0].mxu0
    %v10929 = vpop.f32.mrb[0].mxu0
    %v10930 = vadd.f32 %v10641, %v10929
    %v10931 = vpop.f32.mrb[0].mxu0
    %10932 = vmatprep.mubr.bf16.mxu0 0
    %10933 = vmatmul.mubr.bf16.gmra.mrb[0].mxu0 %v8896
    %v10934 = vpop.f32.mrb[0].mxu0
    %v10935 = vadd.f32 %v10646, %v10934
    %v10936 = vpop.f32.mrb[0].mxu0
    %v10937 = vpop.f32.mrb[0].mxu0
    %v10938 = vadd.f32 %v10649, %v10937
    %v10939 = vpop.f32.mrb[0].mxu0
    %10940 = vmatprep.mubr.bf16.mxu0 0
    %10941 = vmatmul.mubr.bf16.gmra.mrb[0].mxu0 %v8899
    %v10942 = vpop.f32.mrb[0].mxu0
    %v10943 = vadd.f32 %v10654, %v10942
    %v10944 = vpop.f32.mrb[0].mxu0
    %v10945 = vpop.f32.mrb[0].mxu0
    %v10946 = vadd.f32 %v10657, %v10945
    %v10947 = vpop.f32.mrb[0].mxu0
    %10948 = vmatprep.mubr.bf16.mxu0 0
    %10949 = vmatmul.mubr.bf16.gmra.mrb[0].mxu0 %v8902
    %v10950 = vpop.f32.mrb[0].mxu0
    %v10951 = vadd.f32 %v10662, %v10950
    %v10952 = vpop.f32.mrb[0].mxu0
    %v10953 = vpop.f32.mrb[0].mxu0
    %v10954 = vadd.f32 %v10665, %v10953
    %v10955 = vpop.f32.mrb[0].mxu0
    %10956 = vmatprep.mubr.bf16.mxu0 0
    %10957 = vmatmul.mubr.bf16.gmra.mrb[0].mxu0 %v8905
    %v10958 = vpop.f32.mrb[0].mxu0
    %v10959 = vadd.f32 %v10670, %v10958
    %v10960 = vpop.f32.mrb[0].mxu0
    %v10961 = vpop.f32.mrb[0].mxu0
    %v10962 = vadd.f32 %v10673, %v10961
    %v10963 = vpop.f32.mrb[0].mxu0
    %10964 = vmatprep.mubr.bf16.mxu0 0
    %10965 = vmatmul.mubr.bf16.gmra.mrb[0].mxu0 %v8908
    %v10966 = vpop.f32.mrb[0].mxu0
    %v10967 = vadd.f32 %v10678, %v10966
    %v10968 = vpop.f32.mrb[0].mxu0
    %v10969 = vpop.f32.mrb[0].mxu0
    %v10970 = vadd.f32 %v10681, %v10969
    %v10971 = vpop.f32.mrb[0].mxu0
    %10972 = vmatprep.mubr.bf16.mxu0 0
    %10973 = vmatmul.mubr.bf16.gmra.mrb[0].mxu0 %v8911
    %v10974 = vpop.f32.mrb[0].mxu0
    %v10975 = vadd.f32 %v10686, %v10974
    %v10976 = vpop.f32.mrb[0].mxu0
    %v10977 = vpop.f32.mrb[0].mxu0
    %v10978 = vadd.f32 %v10689, %v10977
    %v10979 = vpop.f32.mrb[0].mxu0
    %10980 = vmatprep.mubr.bf16.mxu0 0
    %10981 = vmatmul.mubr.bf16.gmra.mrb[0].mxu0 %v8914
    %v10982 = vpop.f32.mrb[0].mxu0
    %v10983 = vadd.f32 %v10694, %v10982
    %v10984 = vpop.f32.mrb[0].mxu0
    %v10985 = vpop.f32.mrb[0].mxu0
    %v10986 = vadd.f32 %v10697, %v10985
    %v10987 = vpop.f32.mrb[0].mxu0
    %10988 = vmatprep.mubr.bf16.mxu0 0
    %10989 = vmatmul.mubr.bf16.gmra.mrb[0].mxu0 %v8917
    %v10990 = vpop.f32.mrb[0].mxu0
    %v10991 = vadd.f32 %v10702, %v10990
    %v10992 = vpop.f32.mrb[0].mxu0
    %v10993 = vpop.f32.mrb[0].mxu0
    %v10994 = vadd.f32 %v10705, %v10993
    %v10995 = vpop.f32.mrb[0].mxu0
    %10996 = vmatprep.mubr.bf16.mxu0 0
    %10997 = vmatmul.mubr.bf16.gmra.mrb[0].mxu0 %v8983
    %v10998 = vpop.f32.mrb[0].mxu0
    %v10999 = vadd.f32 %v10710, %v10998
    %v11000 = vpop.f32.mrb[0].mxu0
    %v11001 = vpop.f32.mrb[0].mxu0
    %v11002 = vadd.f32 %v10713, %v11001
    %v11003 = vpop.f32.mrb[0].mxu0
    %11004 = vmatprep.mubr.bf16.mxu0 0
    %11005 = vmatmul.mubr.bf16.gmra.mrb[0].mxu0 %v5402
    %v11006 = vpop.f32.mrb[0].mxu0
    %v11007 = vadd.f32 %v10718, %v11006
    %v11008 = vpop.f32.mrb[0].mxu0
    %v11009 = vpop.f32.mrb[0].mxu0
    %v11010 = vadd.f32 %v10721, %v11009
    %v11011 = vpop.f32.mrb[0].mxu0
    %11012 = vdwg.mxu0
    %11013 = vxpose.xlu0.b32.start [1/16] %v10759, 128
    %11014 = vxpose.xlu0.b32.cont [2/16] %v10762, 128
    %11015 = vxpose.xlu0.b32.cont [3/16] %v10767, 128
    %11016 = vxpose.xlu0.b32.cont [4/16] %v10770, 128
    %11017 = vxpose.xlu0.b32.cont [5/16] %v10775, 128
    %11018 = vxpose.xlu0.b32.cont [6/16] %v10778, 128
    %11019 = vxpose.xlu0.b32.cont [7/16] %v10783, 128
    %11020 = vxpose.xlu0.b32.cont [8/16] %v10786, 128
    %11021 = vxpose.xlu0.b32.cont [9/16] %v10791, 128
    %11022 = vxpose.xlu0.b32.cont [10/16] %v10794, 128
    %11023 = vxpose.xlu0.b32.cont [11/16] %v10799, 128
    %11024 = vxpose.xlu0.b32.cont [12/16] %v10802, 128
    %11025 = vxpose.xlu0.b32.cont [13/16] %v10807, 128
    %11026 = vxpose.xlu0.b32.cont [14/16] %v10810, 128
    %11027 = vxpose.xlu0.b32.cont [15/16] %v10815, 128
    %11028 = vxpose.xlu0.b32.end [16/16] %v10818, 128
    %v11029 = vpop.trf.xlu0
    %v11030 = vpop.trf.xlu0
    %v11031 = vpop.trf.xlu0
    %v11032 = vpop.trf.xlu0
    %v11033 = vpop.trf.xlu0
    %v11034 = vpop.trf.xlu0
    %v11035 = vpop.trf.xlu0
    %v11036 = vpop.trf.xlu0
    %v11037 = vpop.trf.xlu0
    %v11038 = vpop.trf.xlu0
    %v11039 = vpop.trf.xlu0
    %v11040 = vpop.trf.xlu0
    %v11041 = vpop.trf.xlu0
    %v11042 = vpop.trf.xlu0
    %v11043 = vpop.trf.xlu0
    %v11044 = vpop.trf.xlu0
    %11045 = vxpose.xlu0.b32.start [1/16] %v10823, 128
    %11046 = vxpose.xlu0.b32.cont [2/16] %v10826, 128
    %11047 = vxpose.xlu0.b32.cont [3/16] %v10831, 128
    %11048 = vxpose.xlu0.b32.cont [4/16] %v10834, 128
    %11049 = vxpose.xlu0.b32.cont [5/16] %v10839, 128
    %11050 = vxpose.xlu0.b32.cont [6/16] %v10842, 128
    %11051 = vxpose.xlu0.b32.cont [7/16] %v10847, 128
    %11052 = vxpose.xlu0.b32.cont [8/16] %v10850, 128
    %11053 = vxpose.xlu0.b32.cont [9/16] %v10855, 128
    %11054 = vxpose.xlu0.b32.cont [10/16] %v10858, 128
    %11055 = vxpose.xlu0.b32.cont [11/16] %v10863, 128
    %11056 = vxpose.xlu0.b32.cont [12/16] %v10866, 128
    %11057 = vxpose.xlu0.b32.cont [13/16] %v10871, 128
    %11058 = vxpose.xlu0.b32.cont [14/16] %v10874, 128
    %11059 = vxpose.xlu0.b32.cont [15/16] %v10879, 128
    %11060 = vxpose.xlu0.b32.end [16/16] %v10882, 128
    %v11061 = vpop.trf.xlu0
    %v11062 = vpop.trf.xlu0
    %v11063 = vpop.trf.xlu0
    %v11064 = vpop.trf.xlu0
    %v11065 = vpop.trf.xlu0
    %v11066 = vpop.trf.xlu0
    %v11067 = vpop.trf.xlu0
    %v11068 = vpop.trf.xlu0
    %v11069 = vpop.trf.xlu0
    %v11070 = vpop.trf.xlu0
    %v11071 = vpop.trf.xlu0
    %v11072 = vpop.trf.xlu0
    %v11073 = vpop.trf.xlu0
    %v11074 = vpop.trf.xlu0
    %v11075 = vpop.trf.xlu0
    %v11076 = vpop.trf.xlu0
    %11077 = vxpose.xlu0.b32.start [1/16] %v10887, 128
    %11078 = vxpose.xlu0.b32.cont [2/16] %v10890, 128
    %11079 = vxpose.xlu0.b32.cont [3/16] %v10895, 128
    %11080 = vxpose.xlu0.b32.cont [4/16] %v10898, 128
    %11081 = vxpose.xlu0.b32.cont [5/16] %v10903, 128
    %11082 = vxpose.xlu0.b32.cont [6/16] %v10906, 128
    %11083 = vxpose.xlu0.b32.cont [7/16] %v10911, 128
    %11084 = vxpose.xlu0.b32.cont [8/16] %v10914, 128
    %11085 = vxpose.xlu0.b32.cont [9/16] %v10919, 128
    %11086 = vxpose.xlu0.b32.cont [10/16] %v10922, 128
    %11087 = vxpose.xlu0.b32.cont [11/16] %v10927, 128
    %11088 = vxpose.xlu0.b32.cont [12/16] %v10930, 128
    %11089 = vxpose.xlu0.b32.cont [13/16] %v10935, 128
    %11090 = vxpose.xlu0.b32.cont [14/16] %v10938, 128
    %11091 = vxpose.xlu0.b32.cont [15/16] %v10943, 128
    %11092 = vxpose.xlu0.b32.end [16/16] %v10946, 128
    %v11093 = vpop.trf.xlu0
    %v11094 = vpop.trf.xlu0
    %v11095 = vpop.trf.xlu0
    %v11096 = vpop.trf.xlu0
    %v11097 = vpop.trf.xlu0
    %v11098 = vpop.trf.xlu0
    %v11099 = vpop.trf.xlu0
    %v11100 = vpop.trf.xlu0
    %v11101 = vpop.trf.xlu0
    %v11102 = vpop.trf.xlu0
    %v11103 = vpop.trf.xlu0
    %v11104 = vpop.trf.xlu0
    %v11105 = vpop.trf.xlu0
    %v11106 = vpop.trf.xlu0
    %v11107 = vpop.trf.xlu0
    %v11108 = vpop.trf.xlu0
    %11109 = vxpose.xlu0.b32.start [1/16] %v10951, 128
    %11110 = vxpose.xlu0.b32.cont [2/16] %v10954, 128
    %11111 = vxpose.xlu0.b32.cont [3/16] %v10959, 128
    %11112 = vxpose.xlu0.b32.cont [4/16] %v10962, 128
    %11113 = vxpose.xlu0.b32.cont [5/16] %v10967, 128
    %11114 = vxpose.xlu0.b32.cont [6/16] %v10970, 128
    %11115 = vxpose.xlu0.b32.cont [7/16] %v10975, 128
    %11116 = vxpose.xlu0.b32.cont [8/16] %v10978, 128
    %11117 = vxpose.xlu0.b32.cont [9/16] %v10983, 128
    %11118 = vxpose.xlu0.b32.cont [10/16] %v10986, 128
    %11119 = vxpose.xlu0.b32.cont [11/16] %v10991, 128
    %11120 = vxpose.xlu0.b32.cont [12/16] %v10994, 128
    %11121 = vxpose.xlu0.b32.cont [13/16] %v10999, 128
    %11122 = vxpose.xlu0.b32.cont [14/16] %v11002, 128
    %11123 = vxpose.xlu0.b32.cont [15/16] %v11007, 128
    %11124 = vxpose.xlu0.b32.end [16/16] %v11010, 128
    %v11125 = vpop.trf.xlu0
    %v11126 = vpop.trf.xlu0
    %v11127 = vpop.trf.xlu0
    %v11128 = vpop.trf.xlu0
    %v11129 = vpop.trf.xlu0
    %v11130 = vpop.trf.xlu0
    %v11131 = vpop.trf.xlu0
    %v11132 = vpop.trf.xlu0
    %v11133 = vpop.trf.xlu0
    %v11134 = vpop.trf.xlu0
    %v11135 = vpop.trf.xlu0
    %v11136 = vpop.trf.xlu0
    %v11137 = vpop.trf.xlu0
    %v11138 = vpop.trf.xlu0
    %v11139 = vpop.trf.xlu0
    %v11140 = vpop.trf.xlu0
    %v11141 = vtanh.pop %v11029
    %v11142 = vtanh.pop %v11061
    %v11143 = vtanh.pop %v11093
    %v11144 = vtanh.pop %v11125
    %v11145 = vadd.f32 %v11141, %v11142
    %v11146 = vadd.f32 %v11145, %v11143
    %v11147 = vadd.f32 %v11146, %v11144
    %11148 = vadd.xlane.f32.xlu0 %v11147
    %v11149 = vpop.xlane.xlu0 %11148
    %v11150 = vmul.f32 %v11149, 0.001953125
    %v11151 = vmul.f32 %v11141, %v11141
    %v11152 = vmul.f32 %v11142, %v11142
    %v11153 = vmul.f32 %v11143, %v11143
    %v11154 = vmul.f32 %v11144, %v11144
    %v11155 = vadd.f32 %v11151, %v11152
    %v11156 = vadd.f32 %v11155, %v11153
    %v11157 = vadd.f32 %v11156, %v11154
    %11158 = vadd.xlane.f32.xlu0 %v11157
    %v11159 = vpop.xlane.xlu0 %11158
    %v11160 = vmul.f32 %v11159, 0.001953125
    %v11161 = vmul.f32 %v11150, %v11150
    %v11162 = vsub.f32 %v11160, %v11161
    %v11163 = vsub.f32 %v11141, %v11150
    %v11164 = vsub.f32 %v11142, %v11150
    %v11165 = vsub.f32 %v11143, %v11150
    %v11166 = vsub.f32 %v11144, %v11150
    %v11167 = vadd.f32 %v11162, 1e-05
    %v11168 = vrsqrt.pop %v11167
    %v11169 = vmul.f32 %v11163, %v11168
    %v11170 = vmul.f32 %v11164, %v11168
    %v11171 = vmul.f32 %v11165, %v11168
    %v11172 = vmul.f32 %v11166, %v11168
    %11173 = vst [vmem:[%s15] sm:$0xff] %v11169
    %11174 = vst [vmem:[%s15 + $0x8] sm:$0xff] %v11170
    %11175 = vst [vmem:[%s15 + $0x10] sm:$0xff] %v11171
    %11176 = vst [vmem:[%s15 + $0x18] sm:$0xff] %v11172
    // Predicated region
    $region78: #{generator_forward.1} parent=1 // pred_check
      _
    $region79: #{generator_forward.1} parent=1 // pred_check_branch
      %11178 = sbr.rel (0) target = $region81
    $region80: #{generator_forward.1} parent=1 // pred_region
      _
    $region81: #{generator_forward.1} parent=1 // pred_fallthru
      _
    // Predicated region
    $region82: #{generator_forward.1} parent=1 // pred_check
      _
    $region83: #{generator_forward.1} parent=1 // pred_check_branch
      %11180 = sbr.rel (0) target = $region85
    $region84: #{generator_forward.1} parent=1 // pred_region
      _
    $region85: #{generator_forward.1} parent=1 // pred_fallthru
      _
    %11181 = vsyncpa [#allocation3], 1
    %11182 = vsyncpa [#allocation5], 1
    %11183 = vsyncpa [#allocation8], 1

</llo_original>
